<compile_context>
chip_gen: v5e
topology: v5e:2x2
jax: 0.10.0
libtpu: 0.0.40
codegen_flags: <defaults>
</compile_context>

<pallas_src>
import math
import functools

import jax
import jax.numpy as jnp
from jax.experimental import pallas as pl
from jax.experimental.pallas import tpu as pltpu

EPS = 1e-5
_SQRT2 = math.sqrt(2.0)


def _gelu(x):
    # Exact (erf) GELU, matching torch.nn.GELU() default.
    # (tanh approx would move work to the EUP; kept exact for parity.)
    return 0.5 * x * (1.0 + jax.lax.erf(x / _SQRT2))


def _pick_tile(m, cap=512):
    """Largest multiple-of-8 divisor of m that is <= cap (fallback: m)."""
    t = min(cap, m)
    t -= t % 8
    while t >= 8:
        if m % t == 0:
            return t
        t -= 8
    return m


# ----------------------------- kernels --------------------------------------

def _stats_kernel(x_ref, sum_ref, sq_ref):
    # Accumulate per-channel sum / sum-of-squares over the M grid axis.
    @pl.when(pl.program_id(0) == 0)
    def _():
        sum_ref[...] = jnp.zeros_like(sum_ref)
        sq_ref[...] = jnp.zeros_like(sq_ref)
    x = x_ref[...].astype(jnp.float32)
    sum_ref[...] += jnp.sum(x, axis=0, keepdims=True)
    sq_ref[...] += jnp.sum(x * x, axis=0, keepdims=True)


def _pw_kernel(x_ref, w_ref, b_ref, o_ref):
    # 1x1 conv (PreNorm BN already folded into w/b): y = x @ W + b.
    y = jnp.dot(x_ref[...].astype(jnp.bfloat16), w_ref[...],
                preferred_element_type=jnp.float32)
    o_ref[...] = (y + b_ref[...]).astype(o_ref.dtype)


def _dw3x3_kernel(y_ref, s_ref, t_ref, w_ref, o_ref, pad_ref):
    # Depthwise 3x3, pad=1.  Prologue applies fused BN (scale/shift) + GELU.
    _, H, W, _ = o_ref.shape
    a = _gelu(y_ref[...].astype(jnp.float32) * s_ref[...] + t_ref[...])
    pad_ref[...] = jnp.zeros_like(pad_ref)          # zero halo (cheap, per-tile)
    pad_ref[:, 1:H + 1, 1:W + 1, :] = a             # interior = activated tile
    o_ref[...] = pad_ref[:, 0:H, 0:W, :] * w_ref[0, :]
    for k in range(1, 9):
        i, j = k // 3, k % 3
        o_ref[...] += pad_ref[:, i:i + H, j:j + W, :] * w_ref[k, :]


def _se_pool_kernel(y_ref, s_ref, t_ref, o_ref, *, inv_hw):
    # Fused BN + GELU + spatial mean (SE squeeze), accumulated over grid axis 1.
    @pl.when(pl.program_id(1) == 0)
    def _():
        o_ref[...] = jnp.zeros_like(o_ref)
    a = _gelu(y_ref[0].astype(jnp.float32) * s_ref[...] + t_ref[...])
    o_ref[0] += jnp.sum(a, axis=0, keepdims=True) * inv_hw


def _se_mlp_kernel(p_ref, w1_ref, w2_ref, o_ref):
    # Tiny SE excitation MLP: sigmoid(GELU(p @ W1) @ W2).
    h = _gelu(jnp.dot(p_ref[...], w1_ref[...], preferred_element_type=jnp.float32))
    g = jnp.dot(h, w2_ref[...], preferred_element_type=jnp.float32)
    o_ref[...] = 1.0 / (1.0 + jnp.exp(-g))


def _pw2_fused_kernel(y_ref, s_ref, t_ref, g_ref, w_ref, o_ref):
    # Fused: BN + GELU + SE-gate + 1x1 conv (hidden -> oup).
    a = _gelu(y_ref[0].astype(jnp.float32) * s_ref[...] + t_ref[...])
    a = a * g_ref[0]
    y = jnp.dot(a.astype(jnp.bfloat16), w_ref[...],
                preferred_element_type=jnp.float32)
    o_ref[0] = y.astype(o_ref.dtype)


def _residual_bn_kernel(x_ref, y_ref, s_ref, t_ref, o_ref):
    # out = x + BN(y)  (scale/shift precomputed), lane-dense layout.
    o_ref[...] = (x_ref[...] + y_ref[...] * s_ref[...] + t_ref[...]
                  ).astype(o_ref.dtype)


# ----------------------------- wrappers --------------------------------------

def _stats(x2d):
    """Per-channel mean / biased variance of an (M, C) tensor (tiled reduce)."""
    M, C = x2d.shape
    tm = _pick_tile(M)
    s, q = pl.pallas_call(
        _stats_kernel,
        grid=(M // tm,),
        in_specs=[pl.BlockSpec((tm, C), lambda i: (i, 0))],
        out_specs=(pl.BlockSpec((1, C), lambda i: (0, 0)),
                   pl.BlockSpec((1, C), lambda i: (0, 0))),
        out_shape=(jax.ShapeDtypeStruct((1, C), jnp.float32),
                   jax.ShapeDtypeStruct((1, C), jnp.float32)),
        compiler_params=pltpu.CompilerParams(dimension_semantics=("arbitrary",)),
    )(x2d)
    inv_m = 1.0 / M
    mean = s * inv_m
    var = jnp.maximum(q * inv_m - mean * mean, 0.0)
    return mean, var


def _bn_scale_shift(mean, var, gamma, beta):
    scale = gamma * jax.lax.rsqrt(var + EPS)
    shift = beta - mean * scale
    return scale, shift


def _pw_conv(x2d, w_bf16, bias):
    M, Cin = x2d.shape
    Cout = w_bf16.shape[1]
    tm = _pick_tile(M)
    return pl.pallas_call(
        _pw_kernel,
        grid=(M // tm,),
        in_specs=[pl.BlockSpec((tm, Cin), lambda i: (i, 0)),
                  pl.BlockSpec((Cin, Cout), lambda i: (0, 0)),
                  pl.BlockSpec((1, Cout), lambda i: (0, 0))],
        out_specs=pl.BlockSpec((tm, Cout), lambda i: (i, 0)),
        out_shape=jax.ShapeDtypeStruct((M, Cout), jnp.float32),
        compiler_params=pltpu.CompilerParams(dimension_semantics=("parallel",)),
    )(x2d, w_bf16, bias)


def _dw_conv3x3(y4d, scale, shift, w):
    B, H, W, C = y4d.shape
    return pl.pallas_call(
        _dw3x3_kernel,
        grid=(B,),
        in_specs=[pl.BlockSpec((1, H, W, C), lambda b: (b, 0, 0, 0)),
                  pl.BlockSpec((1, C), lambda b: (0, 0)),
                  pl.BlockSpec((1, C), lambda b: (0, 0)),
                  pl.BlockSpec((9, C), lambda b: (0, 0))],
        out_specs=pl.BlockSpec((1, H, W, C), lambda b: (b, 0, 0, 0)),
        out_shape=jax.ShapeDtypeStruct((B, H, W, C), jnp.float32),
        scratch_shapes=[pltpu.VMEM((1, H + 2, W + 2, C), jnp.float32)],
        compiler_params=pltpu.CompilerParams(dimension_semantics=("parallel",)),
    )(y4d, scale, shift, w)


def _se_pool(y3d, scale, shift):
    B, HW, C = y3d.shape
    tm = _pick_tile(HW)
    kern = functools.partial(_se_pool_kernel, inv_hw=1.0 / HW)
    return pl.pallas_call(
        kern,
        grid=(B, HW // tm),
        in_specs=[pl.BlockSpec((1, tm, C), lambda b, m: (b, m, 0)),
                  pl.BlockSpec((1, C), lambda b, m: (0, 0)),
                  pl.BlockSpec((1, C), lambda b, m: (0, 0))],
        out_specs=pl.BlockSpec((1, 1, C), lambda b, m: (b, 0, 0)),
        out_shape=jax.ShapeDtypeStruct((B, 1, C), jnp.float32),
        compiler_params=pltpu.CompilerParams(
            dimension_semantics=("parallel", "arbitrary")),
    )(y3d, scale, shift)


def _se_mlp(pooled2d, w1, w2):
    B = pooled2d.shape[0]
    C = w2.shape[1]
    return pl.pallas_call(
        _se_mlp_kernel,
        in_specs=[pl.BlockSpec(memory_space=pltpu.MemorySpace.VMEM)] * 3,
        out_specs=pl.BlockSpec(memory_space=pltpu.MemorySpace.VMEM),
        out_shape=jax.ShapeDtypeStruct((B, C), jnp.float32),
    )(pooled2d, w1, w2)


def _pw_conv_fused_out(y3d, scale, shift, gate3d, w_bf16):
    B, HW, C = y3d.shape
    Cout = w_bf16.shape[1]
    tm = _pick_tile(HW)
    return pl.pallas_call(
        _pw2_fused_kernel,
        grid=(B, HW // tm),
        in_specs=[pl.BlockSpec((1, tm, C), lambda b, m: (b, m, 0)),
                  pl.BlockSpec((1, C), lambda b, m: (0, 0)),
                  pl.BlockSpec((1, C), lambda b, m: (0, 0)),
                  pl.BlockSpec((1, 1, C), lambda b, m: (b, 0, 0)),
                  pl.BlockSpec((C, Cout), lambda b, m: (0, 0))],
        out_specs=pl.BlockSpec((1, tm, Cout), lambda b, m: (b, m, 0)),
        out_shape=jax.ShapeDtypeStruct((B, HW, Cout), jnp.float32),
        compiler_params=pltpu.CompilerParams(
            dimension_semantics=("parallel", "parallel")),
    )(y3d, scale, shift, gate3d, w_bf16)


def _residual_bn(x_ld, y_ld, scale_ld, shift_ld):
    M2, N = x_ld.shape
    tm = _pick_tile(M2)
    return pl.pallas_call(
        _residual_bn_kernel,
        grid=(M2 // tm,),
        in_specs=[pl.BlockSpec((tm, N), lambda i: (i, 0)),
                  pl.BlockSpec((tm, N), lambda i: (i, 0)),
                  pl.BlockSpec((1, N), lambda i: (0, 0)),
                  pl.BlockSpec((1, N), lambda i: (0, 0))],
        out_specs=pl.BlockSpec((tm, N), lambda i: (i, 0)),
        out_shape=jax.ShapeDtypeStruct((M2, N), jnp.float32),
        compiler_params=pltpu.CompilerParams(dimension_semantics=("parallel",)),
    )(x_ld, y_ld, scale_ld, shift_ld)


# ----------------------------- MBConv forward --------------------------------

def mbconv_forward(params, x_nchw):
    B, C, H, W = x_nchw.shape
    hidden = params['w1'].shape[1]
    oup = params['w2'].shape[1]
    M, HW = B * H * W, H * W

    x_nhwc = jnp.transpose(x_nchw, (0, 2, 3, 1))        # NHWC
    x2d = x_nhwc.reshape(M, C)

    # PreNorm BN (over inp channels) folded into the first 1x1 conv.
    mean0, var0 = _stats(x2d)
    s0, t0 = _bn_scale_shift(mean0, var0, params['bn0_g'], params['bn0_b'])
    w1f = (params['w1'] * s0[0][:, None]).astype(jnp.bfloat16)   # (C, hidden)
    b1f = t0 @ params['w1']                                      # (1, hidden)
    y1 = _pw_conv(x2d, w1f, b1f)                                 # (M, hidden)

    # BN1 + GELU fused into the depthwise-conv prologue.
    mean1, var1 = _stats(y1)
    s1, t1 = _bn_scale_shift(mean1, var1, params['bn1_g'], params['bn1_b'])
    y2 = _dw_conv3x3(y1.reshape(B, H, W, hidden), s1, t1, params['dw_w'])
    y2_3d = y2.reshape(B, HW, hidden)

    # BN2 + GELU fused into SE pooling and into the output 1x1 conv.
    mean2, var2 = _stats(y2.reshape(M, hidden))
    s2, t2 = _bn_scale_shift(mean2, var2, params['bn2_g'], params['bn2_b'])

    pooled = _se_pool(y2_3d, s2, t2)                             # (B, 1, hidden)
    gate = _se_mlp(pooled.reshape(B, hidden),
                   params['se_w1'], params['se_w2'])             # (B, hidden)

    y3 = _pw_conv_fused_out(y2_3d, s2, t2, gate.reshape(B, 1, hidden),
                            params['w2'].astype(jnp.bfloat16))   # (B, HW, oup)

    # BN3 + residual add, lane-dense (B*H, W*oup) layout.
    mean3, var3 = _stats(y3.reshape(M, oup))
    s3, t3 = _bn_scale_shift(mean3, var3, params['bn3_g'], params['bn3_b'])
    s3_ld = jnp.tile(s3, (1, W))
    t3_ld = jnp.tile(t3, (1, W))
    x_ld = x_nhwc.reshape(B * H, W * C)
    y3_ld = y3.reshape(B * H, W * oup)
    out_ld = _residual_bn(x_ld, y3_ld, s3_ld, t3_ld)             # (B*H, W*C)

    return jnp.transpose(out_ld.reshape(B, H, W, oup), (0, 3, 1, 2))


# ----------------------------- parameters ------------------------------------

def init_params(key, inp, oup, expansion=4):
    hidden = int(inp * expansion)
    se_dim = int(inp * 0.25)
    ks = jax.random.split(key, 5)

    def conv_w(k, cin, cout):                 # 1x1 conv / linear, laid out (Cin, Cout)
        std = math.sqrt(2.0 / cin)
        return std * jax.random.normal(k, (cin, cout), jnp.float32)

    def dw_w(k, ch):                          # depthwise 3x3, laid out (9, C)
        std = math.sqrt(2.0 / 9.0)
        return std * jax.random.normal(k, (9, ch), jnp.float32)

    ones = lambda c: jnp.ones((1, c), jnp.float32)
    zeros = lambda c: jnp.zeros((1, c), jnp.float32)

    return {
        'bn0_g': ones(inp), 'bn0_b': zeros(inp),          # PreNorm BN
        'w1': conv_w(ks[0], inp, hidden),                 # 1x1 expand (no bias)
        'bn1_g': ones(hidden), 'bn1_b': zeros(hidden),
        'dw_w': dw_w(ks[1], hidden),                      # depthwise 3x3 (no bias)
        'bn2_g': ones(hidden), 'bn2_b': zeros(hidden),
        'se_w1': conv_w(ks[2], hidden, se_dim),           # SE squeeze (no bias)
        'se_w2': conv_w(ks[3], se_dim, hidden),           # SE excite (no bias)
        'w2': conv_w(ks[4], hidden, oup),                 # 1x1 project (no bias)
        'bn3_g': ones(oup), 'bn3_b': zeros(oup),
    }


if __name__ == "__main__":
    inp = oup = 32                      # residual path requires inp == oup
    B, H, W = 2, 16, 16                 # hidden = 128, SE bottleneck = 8
    key = jax.random.PRNGKey(0)
    pkey, xkey = jax.random.split(key)
    params = init_params(pkey, inp, oup, expansion=4)
    x = jax.random.normal(xkey, (B, inp, H, W), jnp.float32)   # NCHW like PyTorch

    fwd = jax.jit(mbconv_forward)
    out = fwd(params, x)
    jax.block_until_ready(out)

    assert out.shape == (B, oup, H, W)
    assert bool(jnp.all(jnp.isfinite(out)))
    print("KERNEL_OK")
</pallas_src>

<mosaic_0001>
module attributes {stable_mosaic.version = 11 : i64} {
  func.func @_stats_kernel(%arg0: i32, %arg1: memref<512x32xf32, #tpu.memory_space<vmem>>, %arg2: memref<1x32xf32, #tpu.memory_space<vmem>>, %arg3: memref<1x32xf32, #tpu.memory_space<vmem>>) attributes {dimension_semantics = [#tpu.dimension_semantics<arbitrary>], iteration_bounds = array<i64: 1>, scalar_prefetch = 0 : i64, scratch_operands = 0 : i64, tpu.core_type = #tpu.core_type<tc>, window_params = [{transform_indices = @transform_0, window_bounds = array<i64: 512, 32>}, {pipeline_mode = #tpu.pipeline_mode<synchronous>, transform_indices = @transform_1, window_bounds = array<i64: 1, 32>}, {pipeline_mode = #tpu.pipeline_mode<synchronous>, transform_indices = @transform_2, window_bounds = array<i64: 1, 32>}]} {
    %c0_i32 = arith.constant 0 : i32
    %0 = arith.cmpi eq, %arg0, %c0_i32 : i32
    %1 = arith.extui %0 : i1 to i32
    %c0_i32_0 = arith.constant 0 : i32
    %2 = arith.cmpi ne, %1, %c0_i32_0 : i32
    scf.if %2 {
      %cst_11 = arith.constant 0.000000e+00 : f32
      %15 = vector.broadcast %cst_11 : f32 to vector<1x32xf32>
      %c0_12 = arith.constant 0 : index
      %c0_13 = arith.constant 0 : index
      %16 = vector.load %arg2[%c0_12, %c0_13] : memref<1x32xf32, #tpu.memory_space<vmem>>, vector<1x32xf32>
      tpu.vector_store %arg2[%c0_12, %c0_13], %15 {strides = array<i32>} : memref<1x32xf32, #tpu.memory_space<vmem>>, vector<1x32xf32>,
      %cst_14 = arith.constant 0.000000e+00 : f32
      %17 = vector.broadcast %cst_14 : f32 to vector<1x32xf32>
      %c0_15 = arith.constant 0 : index
      %c0_16 = arith.constant 0 : index
      %18 = vector.load %arg3[%c0_15, %c0_16] : memref<1x32xf32, #tpu.memory_space<vmem>>, vector<1x32xf32>
      tpu.vector_store %arg3[%c0_15, %c0_16], %17 {strides = array<i32>} : memref<1x32xf32, #tpu.memory_space<vmem>>, vector<1x32xf32>,
    } else {
    }
    %c0 = arith.constant 0 : index
    %c0_1 = arith.constant 0 : index
    %3 = vector.load %arg1[%c0, %c0_1] : memref<512x32xf32, #tpu.memory_space<vmem>>, vector<512x32xf32>
    %c0_2 = arith.constant 0 : index
    %c0_3 = arith.constant 0 : index
    %4 = vector.load %arg2[%c0_2, %c0_3] : memref<1x32xf32, #tpu.memory_space<vmem>>, vector<1x32xf32>
    %cst = arith.constant dense<0.000000e+00> : vector<32xf32>
    %5 = vector.multi_reduction <add>, %3, %cst [0] : vector<512x32xf32> to vector<32xf32>
    %6 = vector.shape_cast %5 : vector<32xf32> to vector<1x32xf32>
    %7 = arith.addf %4, %6 : vector<1x32xf32>
    %c0_4 = arith.constant 0 : index
    %c0_5 = arith.constant 0 : index
    %8 = vector.load %arg2[%c0_4, %c0_5] : memref<1x32xf32, #tpu.memory_space<vmem>>, vector<1x32xf32>
    tpu.vector_store %arg2[%c0_4, %c0_5], %7 {strides = array<i32>} : memref<1x32xf32, #tpu.memory_space<vmem>>, vector<1x32xf32>,
    %c0_6 = arith.constant 0 : index
    %c0_7 = arith.constant 0 : index
    %9 = vector.load %arg3[%c0_6, %c0_7] : memref<1x32xf32, #tpu.memory_space<vmem>>, vector<1x32xf32>
    %10 = arith.mulf %3, %3 : vector<512x32xf32>
    %cst_8 = arith.constant dense<0.000000e+00> : vector<32xf32>
    %11 = vector.multi_reduction <add>, %10, %cst_8 [0] : vector<512x32xf32> to vector<32xf32>
    %12 = vector.shape_cast %11 : vector<32xf32> to vector<1x32xf32>
    %13 = arith.addf %9, %12 : vector<1x32xf32>
    %c0_9 = arith.constant 0 : index
    %c0_10 = arith.constant 0 : index
    %14 = vector.load %arg3[%c0_9, %c0_10] : memref<1x32xf32, #tpu.memory_space<vmem>>, vector<1x32xf32>
    tpu.vector_store %arg3[%c0_9, %c0_10], %13 {strides = array<i32>} : memref<1x32xf32, #tpu.memory_space<vmem>>, vector<1x32xf32>,
    return
  }
  func.func @transform_0(%arg0: i32) -> (i32, i32) {
    %c0_i32 = arith.constant 0 : i32
    %c0_i32_0 = arith.constant 0 : i32
    return %arg0, %c0_i32 : i32, i32
  }
  func.func @transform_1(%arg0: i32) -> (i32, i32) {
    %c0_i32 = arith.constant 0 : i32
    %c0_i32_0 = arith.constant 0 : i32
    %c0_i32_1 = arith.constant 0 : i32
    return %c0_i32, %c0_i32_0 : i32, i32
  }
  func.func @transform_2(%arg0: i32) -> (i32, i32) {
    %c0_i32 = arith.constant 0 : i32
    %c0_i32_0 = arith.constant 0 : i32
    %c0_i32_1 = arith.constant 0 : i32
    return %c0_i32, %c0_i32_0 : i32, i32
  }
}

module attributes {stable_mosaic.version = 11 : i64} {
  func.func @_pw_kernel(%arg0: i32, %arg1: memref<512x32xf32, #tpu.memory_space<vmem>>, %arg2: memref<32x128xbf16, #tpu.memory_space<vmem>>, %arg3: memref<1x128xf32, #tpu.memory_space<vmem>>, %arg4: memref<512x128xf32, #tpu.memory_space<vmem>>) attributes {dimension_semantics = [#tpu.dimension_semantics<parallel>], iteration_bounds = array<i64: 1>, scalar_prefetch = 0 : i64, scratch_operands = 0 : i64, tpu.core_type = #tpu.core_type<tc>, window_params = [{transform_indices = @transform_0, window_bounds = array<i64: 512, 32>}, {pipeline_mode = #tpu.pipeline_mode<synchronous>, transform_indices = @transform_1, window_bounds = array<i64: 32, 128>}, {pipeline_mode = #tpu.pipeline_mode<synchronous>, transform_indices = @transform_2, window_bounds = array<i64: 1, 128>}, {transform_indices = @transform_3, window_bounds = array<i64: 512, 128>}]} {
    %c0 = arith.constant 0 : index
    %c0_0 = arith.constant 0 : index
    %0 = vector.load %arg1[%c0, %c0_0] : memref<512x32xf32, #tpu.memory_space<vmem>>, vector<512x32xf32>
    %1 = arith.truncf %0 : vector<512x32xf32> to vector<512x32xbf16>
    %c0_1 = arith.constant 0 : index
    %c0_2 = arith.constant 0 : index
    %2 = vector.load %arg2[%c0_1, %c0_2] : memref<32x128xbf16, #tpu.memory_space<vmem>>, vector<32x128xbf16>
    %cst = arith.constant dense<0.000000e+00> : vector<512x128xf32>
    %3 = tpu.matmul %1, %2, %cst {dimension_numbers = #tpu.dot_dimension_numbers<[1], [0], [0], [1], [0, 0, 1, 1], [], []>} : vector<512x32xbf16>, vector<32x128xbf16>, vector<512x128xf32> -> vector<512x128xf32>
    %c0_3 = arith.constant 0 : index
    %c0_4 = arith.constant 0 : index
    %4 = vector.load %arg3[%c0_3, %c0_4] : memref<1x128xf32, #tpu.memory_space<vmem>>, vector<1x128xf32>
    %5 = vector.broadcast %4 : vector<1x128xf32> to vector<512x128xf32>
    %6 = arith.addf %3, %5 : vector<512x128xf32>
    %c0_5 = arith.constant 0 : index
    %c0_6 = arith.constant 0 : index
    %7 = vector.load %arg4[%c0_5, %c0_6] : memref<512x128xf32, #tpu.memory_space<vmem>>, vector<512x128xf32>
    tpu.vector_store %arg4[%c0_5, %c0_6], %6 {strides = array<i32>} : memref<512x128xf32, #tpu.memory_space<vmem>>, vector<512x128xf32>,
    return
  }
  func.func @transform_0(%arg0: i32) -> (i32, i32) {
    %c0_i32 = arith.constant 0 : i32
    %c0_i32_0 = arith.constant 0 : i32
    return %arg0, %c0_i32 : i32, i32
  }
  func.func @transform_1(%arg0: i32) -> (i32, i32) {
    %c0_i32 = arith.constant 0 : i32
    %c0_i32_0 = arith.constant 0 : i32
    %c0_i32_1 = arith.constant 0 : i32
    return %c0_i32, %c0_i32_0 : i32, i32
  }
  func.func @transform_2(%arg0: i32) -> (i32, i32) {
    %c0_i32 = arith.constant 0 : i32
    %c0_i32_0 = arith.constant 0 : i32
    %c0_i32_1 = arith.constant 0 : i32
    return %c0_i32, %c0_i32_0 : i32, i32
  }
  func.func @transform_3(%arg0: i32) -> (i32, i32) {
    %c0_i32 = arith.constant 0 : i32
    %c0_i32_0 = arith.constant 0 : i32
    return %arg0, %c0_i32 : i32, i32
  }
}

module attributes {stable_mosaic.version = 11 : i64} {
  func.func @_stats_kernel(%arg0: i32, %arg1: memref<512x128xf32, #tpu.memory_space<vmem>>, %arg2: memref<1x128xf32, #tpu.memory_space<vmem>>, %arg3: memref<1x128xf32, #tpu.memory_space<vmem>>) attributes {dimension_semantics = [#tpu.dimension_semantics<arbitrary>], iteration_bounds = array<i64: 1>, scalar_prefetch = 0 : i64, scratch_operands = 0 : i64, tpu.core_type = #tpu.core_type<tc>, window_params = [{transform_indices = @transform_0, window_bounds = array<i64: 512, 128>}, {pipeline_mode = #tpu.pipeline_mode<synchronous>, transform_indices = @transform_1, window_bounds = array<i64: 1, 128>}, {pipeline_mode = #tpu.pipeline_mode<synchronous>, transform_indices = @transform_2, window_bounds = array<i64: 1, 128>}]} {
    %c0_i32 = arith.constant 0 : i32
    %0 = arith.cmpi eq, %arg0, %c0_i32 : i32
    %1 = arith.extui %0 : i1 to i32
    %c0_i32_0 = arith.constant 0 : i32
    %2 = arith.cmpi ne, %1, %c0_i32_0 : i32
    scf.if %2 {
      %cst_11 = arith.constant 0.000000e+00 : f32
      %15 = vector.broadcast %cst_11 : f32 to vector<1x128xf32>
      %c0_12 = arith.constant 0 : index
      %c0_13 = arith.constant 0 : index
      %16 = vector.load %arg2[%c0_12, %c0_13] : memref<1x128xf32, #tpu.memory_space<vmem>>, vector<1x128xf32>
      tpu.vector_store %arg2[%c0_12, %c0_13], %15 {strides = array<i32>} : memref<1x128xf32, #tpu.memory_space<vmem>>, vector<1x128xf32>,
      %cst_14 = arith.constant 0.000000e+00 : f32
      %17 = vector.broadcast %cst_14 : f32 to vector<1x128xf32>
      %c0_15 = arith.constant 0 : index
      %c0_16 = arith.constant 0 : index
      %18 = vector.load %arg3[%c0_15, %c0_16] : memref<1x128xf32, #tpu.memory_space<vmem>>, vector<1x128xf32>
      tpu.vector_store %arg3[%c0_15, %c0_16], %17 {strides = array<i32>} : memref<1x128xf32, #tpu.memory_space<vmem>>, vector<1x128xf32>,
    } else {
    }
    %c0 = arith.constant 0 : index
    %c0_1 = arith.constant 0 : index
    %3 = vector.load %arg1[%c0, %c0_1] : memref<512x128xf32, #tpu.memory_space<vmem>>, vector<512x128xf32>
    %c0_2 = arith.constant 0 : index
    %c0_3 = arith.constant 0 : index
    %4 = vector.load %arg2[%c0_2, %c0_3] : memref<1x128xf32, #tpu.memory_space<vmem>>, vector<1x128xf32>
    %cst = arith.constant dense<0.000000e+00> : vector<128xf32>
    %5 = vector.multi_reduction <add>, %3, %cst [0] : vector<512x128xf32> to vector<128xf32>
    %6 = vector.shape_cast %5 : vector<128xf32> to vector<1x128xf32>
    %7 = arith.addf %4, %6 : vector<1x128xf32>
    %c0_4 = arith.constant 0 : index
    %c0_5 = arith.constant 0 : index
    %8 = vector.load %arg2[%c0_4, %c0_5] : memref<1x128xf32, #tpu.memory_space<vmem>>, vector<1x128xf32>
    tpu.vector_store %arg2[%c0_4, %c0_5], %7 {strides = array<i32>} : memref<1x128xf32, #tpu.memory_space<vmem>>, vector<1x128xf32>,
    %c0_6 = arith.constant 0 : index
    %c0_7 = arith.constant 0 : index
    %9 = vector.load %arg3[%c0_6, %c0_7] : memref<1x128xf32, #tpu.memory_space<vmem>>, vector<1x128xf32>
    %10 = arith.mulf %3, %3 : vector<512x128xf32>
    %cst_8 = arith.constant dense<0.000000e+00> : vector<128xf32>
    %11 = vector.multi_reduction <add>, %10, %cst_8 [0] : vector<512x128xf32> to vector<128xf32>
    %12 = vector.shape_cast %11 : vector<128xf32> to vector<1x128xf32>
    %13 = arith.addf %9, %12 : vector<1x128xf32>
    %c0_9 = arith.constant 0 : index
    %c0_10 = arith.constant 0 : index
    %14 = vector.load %arg3[%c0_9, %c0_10] : memref<1x128xf32, #tpu.memory_space<vmem>>, vector<1x128xf32>
    tpu.vector_store %arg3[%c0_9, %c0_10], %13 {strides = array<i32>} : memref<1x128xf32, #tpu.memory_space<vmem>>, vector<1x128xf32>,
    return
  }
  func.func @transform_0(%arg0: i32) -> (i32, i32) {
    %c0_i32 = arith.constant 0 : i32
    %c0_i32_0 = arith.constant 0 : i32
    return %arg0, %c0_i32 : i32, i32
  }
  func.func @transform_1(%arg0: i32) -> (i32, i32) {
    %c0_i32 = arith.constant 0 : i32
    %c0_i32_0 = arith.constant 0 : i32
    %c0_i32_1 = arith.constant 0 : i32
    return %c0_i32, %c0_i32_0 : i32, i32
  }
  func.func @transform_2(%arg0: i32) -> (i32, i32) {
    %c0_i32 = arith.constant 0 : i32
    %c0_i32_0 = arith.constant 0 : i32
    %c0_i32_1 = arith.constant 0 : i32
    return %c0_i32, %c0_i32_0 : i32, i32
  }
}

module attributes {stable_mosaic.version = 11 : i64} {
  func.func @_dw3x3_kernel(%arg0: i32, %arg1: memref<1x16x16x128xf32, #tpu.memory_space<vmem>>, %arg2: memref<1x128xf32, #tpu.memory_space<vmem>>, %arg3: memref<1x128xf32, #tpu.memory_space<vmem>>, %arg4: memref<9x128xf32, #tpu.memory_space<vmem>>, %arg5: memref<1x16x16x128xf32, #tpu.memory_space<vmem>>, %arg6: memref<1x18x18x128xf32, #tpu.memory_space<vmem>>) attributes {dimension_semantics = [#tpu.dimension_semantics<parallel>], iteration_bounds = array<i64: 2>, scalar_prefetch = 0 : i64, scratch_operands = 1 : i64, tpu.core_type = #tpu.core_type<tc>, window_params = [{transform_indices = @transform_0, window_bounds = array<i64: 1, 16, 16, 128>}, {pipeline_mode = #tpu.pipeline_mode<synchronous>, transform_indices = @transform_1, window_bounds = array<i64: 1, 128>}, {pipeline_mode = #tpu.pipeline_mode<synchronous>, transform_indices = @transform_2, window_bounds = array<i64: 1, 128>}, {pipeline_mode = #tpu.pipeline_mode<synchronous>, transform_indices = @transform_3, window_bounds = array<i64: 9, 128>}, {transform_indices = @transform_4, window_bounds = array<i64: 1, 16, 16, 128>}]} {
    %c0 = arith.constant 0 : index
    %c0_0 = arith.constant 0 : index
    %c0_1 = arith.constant 0 : index
    %c0_2 = arith.constant 0 : index
    %0 = vector.load %arg1[%c0, %c0_0, %c0_1, %c0_2] : memref<1x16x16x128xf32, #tpu.memory_space<vmem>>, vector<1x16x16x128xf32>
    %c0_3 = arith.constant 0 : index
    %c0_4 = arith.constant 0 : index
    %1 = vector.load %arg2[%c0_3, %c0_4] : memref<1x128xf32, #tpu.memory_space<vmem>>, vector<1x128xf32>
    %2 = vector.shape_cast %1 : vector<1x128xf32> to vector<1x1x1x128xf32>
    %3 = vector.broadcast %2 : vector<1x1x1x128xf32> to vector<1x16x16x128xf32>
    %4 = arith.mulf %0, %3 : vector<1x16x16x128xf32>
    %c0_5 = arith.constant 0 : index
    %c0_6 = arith.constant 0 : index
    %5 = vector.load %arg3[%c0_5, %c0_6] : memref<1x128xf32, #tpu.memory_space<vmem>>, vector<1x128xf32>
    %6 = vector.shape_cast %5 : vector<1x128xf32> to vector<1x1x1x128xf32>
    %7 = vector.broadcast %6 : vector<1x1x1x128xf32> to vector<1x16x16x128xf32>
    %8 = arith.addf %4, %7 : vector<1x16x16x128xf32>
    %cst = arith.constant 5.000000e-01 : f32
    %9 = vector.broadcast %cst : f32 to vector<1x16x16x128xf32>
    %10 = arith.mulf %9, %8 : vector<1x16x16x128xf32>
    %cst_7 = arith.constant 1.41421354 : f32
    %11 = vector.broadcast %cst_7 : f32 to vector<1x16x16x128xf32>
    %12 = arith.divf %8, %11 : vector<1x16x16x128xf32>
    %13 = math.erf %12 : vector<1x16x16x128xf32>
    %cst_8 = arith.constant 1.000000e+00 : f32
    %14 = vector.broadcast %cst_8 : f32 to vector<1x16x16x128xf32>
    %15 = arith.addf %14, %13 : vector<1x16x16x128xf32>
    %16 = arith.mulf %10, %15 : vector<1x16x16x128xf32>
    %cst_9 = arith.constant 0.000000e+00 : f32
    %17 = vector.broadcast %cst_9 : f32 to vector<1x18x18x128xf32>
    %c0_10 = arith.constant 0 : index
    %c0_11 = arith.constant 0 : index
    %c0_12 = arith.constant 0 : index
    %c0_13 = arith.constant 0 : index
    %18 = vector.load %arg6[%c0_10, %c0_11, %c0_12, %c0_13] : memref<1x18x18x128xf32, #tpu.memory_space<vmem>>, vector<1x18x18x128xf32>
    tpu.vector_store %arg6[%c0_10, %c0_11, %c0_12, %c0_13], %17 {strides = array<i32>} : memref<1x18x18x128xf32, #tpu.memory_space<vmem>>, vector<1x18x18x128xf32>,
    %c0_14 = arith.constant 0 : index
    %c1 = arith.constant 1 : index
    %c1_15 = arith.constant 1 : index
    %c0_16 = arith.constant 0 : index
    %19 = vector.load %arg6[%c0_14, %c1, %c1_15, %c0_16] : memref<1x18x18x128xf32, #tpu.memory_space<vmem>>, vector<1x16x16x128xf32>
    tpu.vector_store %arg6[%c0_14, %c1, %c1_15, %c0_16], %16 {strides = array<i32>} : memref<1x18x18x128xf32, #tpu.memory_space<vmem>>, vector<1x16x16x128xf32>,
    %c0_17 = arith.constant 0 : index
    %c0_18 = arith.constant 0 : index
    %c0_19 = arith.constant 0 : index
    %c0_20 = arith.constant 0 : index
    %20 = vector.load %arg6[%c0_17, %c0_18, %c0_19, %c0_20] : memref<1x18x18x128xf32, #tpu.memory_space<vmem>>, vector<1x16x16x128xf32>
    %c0_21 = arith.constant 0 : index
    %c0_22 = arith.constant 0 : index
    %21 = vector.load %arg4[%c0_21, %c0_22] : memref<9x128xf32, #tpu.memory_space<vmem>>, vector<1x128xf32>
    %22 = vector.shape_cast %21 : vector<1x128xf32> to vector<128xf32>
    %23 = vector.shape_cast %22 : vector<128xf32> to vector<1x1x1x128xf32>
    %24 = vector.broadcast %23 : vector<1x1x1x128xf32> to vector<1x16x16x128xf32>
    %25 = arith.mulf %20, %24 : vector<1x16x16x128xf32>
    %c0_23 = arith.constant 0 : index
    %c0_24 = arith.constant 0 : index
    %c0_25 = arith.constant 0 : index
    %c0_26 = arith.constant 0 : index
    %26 = vector.load %arg5[%c0_23, %c0_24, %c0_25, %c0_26] : memref<1x16x16x128xf32, #tpu.memory_space<vmem>>, vector<1x16x16x128xf32>
    tpu.vector_store %arg5[%c0_23, %c0_24, %c0_25, %c0_26], %25 {strides = array<i32>} : memref<1x16x16x128xf32, #tpu.memory_space<vmem>>, vector<1x16x16x128xf32>,
    %c0_27 = arith.constant 0 : index
    %c0_28 = arith.constant 0 : index
    %c0_29 = arith.constant 0 : index
    %c0_30 = arith.constant 0 : index
    %27 = vector.load %arg5[%c0_27, %c0_28, %c0_29, %c0_30] : memref<1x16x16x128xf32, #tpu.memory_space<vmem>>, vector<1x16x16x128xf32>
    %c0_31 = arith.constant 0 : index
    %c0_32 = arith.constant 0 : index
    %c1_33 = arith.constant 1 : index
    %c0_34 = arith.constant 0 : index
    %28 = vector.load %arg6[%c0_31, %c0_32, %c1_33, %c0_34] : memref<1x18x18x128xf32, #tpu.memory_space<vmem>>, vector<1x16x16x128xf32>
    %c1_35 = arith.constant 1 : index
    %c0_36 = arith.constant 0 : index
    %29 = vector.load %arg4[%c1_35, %c0_36] : memref<9x128xf32, #tpu.memory_space<vmem>>, vector<1x128xf32>
    %30 = vector.shape_cast %29 : vector<1x128xf32> to vector<128xf32>
    %31 = vector.shape_cast %30 : vector<128xf32> to vector<1x1x1x128xf32>
    %32 = vector.broadcast %31 : vector<1x1x1x128xf32> to vector<1x16x16x128xf32>
    %33 = arith.mulf %28, %32 : vector<1x16x16x128xf32>
    %34 = arith.addf %27, %33 : vector<1x16x16x128xf32>
    %c0_37 = arith.constant 0 : index
    %c0_38 = arith.constant 0 : index
    %c0_39 = arith.constant 0 : index
    %c0_40 = arith.constant 0 : index
    %35 = vector.load %arg5[%c0_37, %c0_38, %c0_39, %c0_40] : memref<1x16x16x128xf32, #tpu.memory_space<vmem>>, vector<1x16x16x128xf32>
    tpu.vector_store %arg5[%c0_37, %c0_38, %c0_39, %c0_40], %34 {strides = array<i32>} : memref<1x16x16x128xf32, #tpu.memory_space<vmem>>, vector<1x16x16x128xf32>,
    %c0_41 = arith.constant 0 : index
    %c0_42 = arith.constant 0 : index
    %c0_43 = arith.constant 0 : index
    %c0_44 = arith.constant 0 : index
    %36 = vector.load %arg5[%c0_41, %c0_42, %c0_43, %c0_44] : memref<1x16x16x128xf32, #tpu.memory_space<vmem>>, vector<1x16x16x128xf32>
    %c0_45 = arith.constant 0 : index
    %c0_46 = arith.constant 0 : index
    %c2 = arith.constant 2 : index
    %c0_47 = arith.constant 0 : index
    %37 = vector.load %arg6[%c0_45, %c0_46, %c2, %c0_47] : memref<1x18x18x128xf32, #tpu.memory_space<vmem>>, vector<1x16x16x128xf32>
    %c2_48 = arith.constant 2 : index
    %c0_49 = arith.constant 0 : index
    %38 = vector.load %arg4[%c2_48, %c0_49] : memref<9x128xf32, #tpu.memory_space<vmem>>, vector<1x128xf32>
    %39 = vector.shape_cast %38 : vector<1x128xf32> to vector<128xf32>
    %40 = vector.shape_cast %39 : vector<128xf32> to vector<1x1x1x128xf32>
    %41 = vector.broadcast %40 : vector<1x1x1x128xf32> to vector<1x16x16x128xf32>
    %42 = arith.mulf %37, %41 : vector<1x16x16x128xf32>
    %43 = arith.addf %36, %42 : vector<1x16x16x128xf32>
    %c0_50 = arith.constant 0 : index
    %c0_51 = arith.constant 0 : index
    %c0_52 = arith.constant 0 : index
    %c0_53 = arith.constant 0 : index
    %44 = vector.load %arg5[%c0_50, %c0_51, %c0_52, %c0_53] : memref<1x16x16x128xf32, #tpu.memory_space<vmem>>, vector<1x16x16x128xf32>
    tpu.vector_store %arg5[%c0_50, %c0_51, %c0_52, %c0_53], %43 {strides = array<i32>} : memref<1x16x16x128xf32, #tpu.memory_space<vmem>>, vector<1x16x16x128xf32>,
    %c0_54 = arith.constant 0 : index
    %c0_55 = arith.constant 0 : index
    %c0_56 = arith.constant 0 : index
    %c0_57 = arith.constant 0 : index
    %45 = vector.load %arg5[%c0_54, %c0_55, %c0_56, %c0_57] : memref<1x16x16x128xf32, #tpu.memory_space<vmem>>, vector<1x16x16x128xf32>
    %c0_58 = arith.constant 0 : index
    %c1_59 = arith.constant 1 : index
    %c0_60 = arith.constant 0 : index
    %c0_61 = arith.constant 0 : index
    %46 = vector.load %arg6[%c0_58, %c1_59, %c0_60, %c0_61] : memref<1x18x18x128xf32, #tpu.memory_space<vmem>>, vector<1x16x16x128xf32>
    %c3 = arith.constant 3 : index
    %c0_62 = arith.constant 0 : index
    %47 = vector.load %arg4[%c3, %c0_62] : memref<9x128xf32, #tpu.memory_space<vmem>>, vector<1x128xf32>
    %48 = vector.shape_cast %47 : vector<1x128xf32> to vector<128xf32>
    %49 = vector.shape_cast %48 : vector<128xf32> to vector<1x1x1x128xf32>
    %50 = vector.broadcast %49 : vector<1x1x1x128xf32> to vector<1x16x16x128xf32>
    %51 = arith.mulf %46, %50 : vector<1x16x16x128xf32>
    %52 = arith.addf %45, %51 : vector<1x16x16x128xf32>
    %c0_63 = arith.constant 0 : index
    %c0_64 = arith.constant 0 : index
    %c0_65 = arith.constant 0 : index
    %c0_66 = arith.constant 0 : index
    %53 = vector.load %arg5[%c0_63, %c0_64, %c0_65, %c0_66] : memref<1x16x16x128xf32, #tpu.memory_space<vmem>>, vector<1x16x16x128xf32>
    tpu.vector_store %arg5[%c0_63, %c0_64, %c0_65, %c0_66], %52 {strides = array<i32>} : memref<1x16x16x128xf32, #tpu.memory_space<vmem>>, vector<1x16x16x128xf32>,
    %c0_67 = arith.constant 0 : index
    %c0_68 = arith.constant 0 : index
    %c0_69 = arith.constant 0 : index
    %c0_70 = arith.constant 0 : index
    %54 = vector.load %arg5[%c0_67, %c0_68, %c0_69, %c0_70] : memref<1x16x16x128xf32, #tpu.memory_space<vmem>>, vector<1x16x16x128xf32>
    %c0_71 = arith.constant 0 : index
    %c1_72 = arith.constant 1 : index
    %c1_73 = arith.constant 1 : index
    %c0_74 = arith.constant 0 : index
    %55 = vector.load %arg6[%c0_71, %c1_72, %c1_73, %c0_74] : memref<1x18x18x128xf32, #tpu.memory_space<vmem>>, vector<1x16x16x128xf32>
    %c4 = arith.constant 4 : index
    %c0_75 = arith.constant 0 : index
    %56 = vector.load %arg4[%c4, %c0_75] : memref<9x128xf32, #tpu.memory_space<vmem>>, vector<1x128xf32>
    %57 = vector.shape_cast %56 : vector<1x128xf32> to vector<128xf32>
    %58 = vector.shape_cast %57 : vector<128xf32> to vector<1x1x1x128xf32>
    %59 = vector.broadcast %58 : vector<1x1x1x128xf32> to vector<1x16x16x128xf32>
    %60 = arith.mulf %55, %59 : vector<1x16x16x128xf32>
    %61 = arith.addf %54, %60 : vector<1x16x16x128xf32>
    %c0_76 = arith.constant 0 : index
    %c0_77 = arith.constant 0 : index
    %c0_78 = arith.constant 0 : index
    %c0_79 = arith.constant 0 : index
    %62 = vector.load %arg5[%c0_76, %c0_77, %c0_78, %c0_79] : memref<1x16x16x128xf32, #tpu.memory_space<vmem>>, vector<1x16x16x128xf32>
    tpu.vector_store %arg5[%c0_76, %c0_77, %c0_78, %c0_79], %61 {strides = array<i32>} : memref<1x16x16x128xf32, #tpu.memory_space<vmem>>, vector<1x16x16x128xf32>,
    %c0_80 = arith.constant 0 : index
    %c0_81 = arith.constant 0 : index
    %c0_82 = arith.constant 0 : index
    %c0_83 = arith.constant 0 : index
    %63 = vector.load %arg5[%c0_80, %c0_81, %c0_82, %c0_83] : memref<1x16x16x128xf32, #tpu.memory_space<vmem>>, vector<1x16x16x128xf32>
    %c0_84 = arith.constant 0 : index
    %c1_85 = arith.constant 1 : index
    %c2_86 = arith.constant 2 : index
    %c0_87 = arith.constant 0 : index
    %64 = vector.load %arg6[%c0_84, %c1_85, %c2_86, %c0_87] : memref<1x18x18x128xf32, #tpu.memory_space<vmem>>, vector<1x16x16x128xf32>
    %c5 = arith.constant 5 : index
    %c0_88 = arith.constant 0 : index
    %65 = vector.load %arg4[%c5, %c0_88] : memref<9x128xf32, #tpu.memory_space<vmem>>, vector<1x128xf32>
    %66 = vector.shape_cast %65 : vector<1x128xf32> to vector<128xf32>
    %67 = vector.shape_cast %66 : vector<128xf32> to vector<1x1x1x128xf32>
    %68 = vector.broadcast %67 : vector<1x1x1x128xf32> to vector<1x16x16x128xf32>
    %69 = arith.mulf %64, %68 : vector<1x16x16x128xf32>
    %70 = arith.addf %63, %69 : vector<1x16x16x128xf32>
    %c0_89 = arith.constant 0 : index
    %c0_90 = arith.constant 0 : index
    %c0_91 = arith.constant 0 : index
    %c0_92 = arith.constant 0 : index
    %71 = vector.load %arg5[%c0_89, %c0_90, %c0_91, %c0_92] : memref<1x16x16x128xf32, #tpu.memory_space<vmem>>, vector<1x16x16x128xf32>
    tpu.vector_store %arg5[%c0_89, %c0_90, %c0_91, %c0_92], %70 {strides = array<i32>} : memref<1x16x16x128xf32, #tpu.memory_space<vmem>>, vector<1x16x16x128xf32>,
    %c0_93 = arith.constant 0 : index
    %c0_94 = arith.constant 0 : index
    %c0_95 = arith.constant 0 : index
    %c0_96 = arith.constant 0 : index
    %72 = vector.load %arg5[%c0_93, %c0_94, %c0_95, %c0_96] : memref<1x16x16x128xf32, #tpu.memory_space<vmem>>, vector<1x16x16x128xf32>
    %c0_97 = arith.constant 0 : index
    %c2_98 = arith.constant 2 : index
    %c0_99 = arith.constant 0 : index
    %c0_100 = arith.constant 0 : index
    %73 = vector.load %arg6[%c0_97, %c2_98, %c0_99, %c0_100] : memref<1x18x18x128xf32, #tpu.memory_space<vmem>>, vector<1x16x16x128xf32>
    %c6 = arith.constant 6 : index
    %c0_101 = arith.constant 0 : index
    %74 = vector.load %arg4[%c6, %c0_101] : memref<9x128xf32, #tpu.memory_space<vmem>>, vector<1x128xf32>
    %75 = vector.shape_cast %74 : vector<1x128xf32> to vector<128xf32>
    %76 = vector.shape_cast %75 : vector<128xf32> to vector<1x1x1x128xf32>
    %77 = vector.broadcast %76 : vector<1x1x1x128xf32> to vector<1x16x16x128xf32>
    %78 = arith.mulf %73, %77 : vector<1x16x16x128xf32>
    %79 = arith.addf %72, %78 : vector<1x16x16x128xf32>
    %c0_102 = arith.constant 0 : index
    %c0_103 = arith.constant 0 : index
    %c0_104 = arith.constant 0 : index
    %c0_105 = arith.constant 0 : index
    %80 = vector.load %arg5[%c0_102, %c0_103, %c0_104, %c0_105] : memref<1x16x16x128xf32, #tpu.memory_space<vmem>>, vector<1x16x16x128xf32>
    tpu.vector_store %arg5[%c0_102, %c0_103, %c0_104, %c0_105], %79 {strides = array<i32>} : memref<1x16x16x128xf32, #tpu.memory_space<vmem>>, vector<1x16x16x128xf32>,
    %c0_106 = arith.constant 0 : index
    %c0_107 = arith.constant 0 : index
    %c0_108 = arith.constant 0 : index
    %c0_109 = arith.constant 0 : index
    %81 = vector.load %arg5[%c0_106, %c0_107, %c0_108, %c0_109] : memref<1x16x16x128xf32, #tpu.memory_space<vmem>>, vector<1x16x16x128xf32>
    %c0_110 = arith.constant 0 : index
    %c2_111 = arith.constant 2 : index
    %c1_112 = arith.constant 1 : index
    %c0_113 = arith.constant 0 : index
    %82 = vector.load %arg6[%c0_110, %c2_111, %c1_112, %c0_113] : memref<1x18x18x128xf32, #tpu.memory_space<vmem>>, vector<1x16x16x128xf32>
    %c7 = arith.constant 7 : index
    %c0_114 = arith.constant 0 : index
    %83 = vector.load %arg4[%c7, %c0_114] : memref<9x128xf32, #tpu.memory_space<vmem>>, vector<1x128xf32>
    %84 = vector.shape_cast %83 : vector<1x128xf32> to vector<128xf32>
    %85 = vector.shape_cast %84 : vector<128xf32> to vector<1x1x1x128xf32>
    %86 = vector.broadcast %85 : vector<1x1x1x128xf32> to vector<1x16x16x128xf32>
    %87 = arith.mulf %82, %86 : vector<1x16x16x128xf32>
    %88 = arith.addf %81, %87 : vector<1x16x16x128xf32>
    %c0_115 = arith.constant 0 : index
    %c0_116 = arith.constant 0 : index
    %c0_117 = arith.constant 0 : index
    %c0_118 = arith.constant 0 : index
    %89 = vector.load %arg5[%c0_115, %c0_116, %c0_117, %c0_118] : memref<1x16x16x128xf32, #tpu.memory_space<vmem>>, vector<1x16x16x128xf32>
    tpu.vector_store %arg5[%c0_115, %c0_116, %c0_117, %c0_118], %88 {strides = array<i32>} : memref<1x16x16x128xf32, #tpu.memory_space<vmem>>, vector<1x16x16x128xf32>,
    %c0_119 = arith.constant 0 : index
    %c0_120 = arith.constant 0 : index
    %c0_121 = arith.constant 0 : index
    %c0_122 = arith.constant 0 : index
    %90 = vector.load %arg5[%c0_119, %c0_120, %c0_121, %c0_122] : memref<1x16x16x128xf32, #tpu.memory_space<vmem>>, vector<1x16x16x128xf32>
    %c0_123 = arith.constant 0 : index
    %c2_124 = arith.constant 2 : index
    %c2_125 = arith.constant 2 : index
    %c0_126 = arith.constant 0 : index
    %91 = vector.load %arg6[%c0_123, %c2_124, %c2_125, %c0_126] : memref<1x18x18x128xf32, #tpu.memory_space<vmem>>, vector<1x16x16x128xf32>
    %c8 = arith.constant 8 : index
    %c0_127 = arith.constant 0 : index
    %92 = vector.load %arg4[%c8, %c0_127] : memref<9x128xf32, #tpu.memory_space<vmem>>, vector<1x128xf32>
    %93 = vector.shape_cast %92 : vector<1x128xf32> to vector<128xf32>
    %94 = vector.shape_cast %93 : vector<128xf32> to vector<1x1x1x128xf32>
    %95 = vector.broadcast %94 : vector<1x1x1x128xf32> to vector<1x16x16x128xf32>
    %96 = arith.mulf %91, %95 : vector<1x16x16x128xf32>
    %97 = arith.addf %90, %96 : vector<1x16x16x128xf32>
    %c0_128 = arith.constant 0 : index
    %c0_129 = arith.constant 0 : index
    %c0_130 = arith.constant 0 : index
    %c0_131 = arith.constant 0 : index
    %98 = vector.load %arg5[%c0_128, %c0_129, %c0_130, %c0_131] : memref<1x16x16x128xf32, #tpu.memory_space<vmem>>, vector<1x16x16x128xf32>
    tpu.vector_store %arg5[%c0_128, %c0_129, %c0_130, %c0_131], %97 {strides = array<i32>} : memref<1x16x16x128xf32, #tpu.memory_space<vmem>>, vector<1x16x16x128xf32>,
    return
  }
  func.func @transform_0(%arg0: i32) -> (i32, i32, i32, i32) {
    %c0_i32 = arith.constant 0 : i32
    %c0_i32_0 = arith.constant 0 : i32
    %c0_i32_1 = arith.constant 0 : i32
    %c0_i32_2 = arith.constant 0 : i32
    return %arg0, %c0_i32, %c0_i32_0, %c0_i32_1 : i32, i32, i32, i32
  }
  func.func @transform_1(%arg0: i32) -> (i32, i32) {
    %c0_i32 = arith.constant 0 : i32
    %c0_i32_0 = arith.constant 0 : i32
    %c0_i32_1 = arith.constant 0 : i32
    return %c0_i32, %c0_i32_0 : i32, i32
  }
  func.func @transform_2(%arg0: i32) -> (i32, i32) {
    %c0_i32 = arith.constant 0 : i32
    %c0_i32_0 = arith.constant 0 : i32
    %c0_i32_1 = arith.constant 0 : i32
    return %c0_i32, %c0_i32_0 : i32, i32
  }
  func.func @transform_3(%arg0: i32) -> (i32, i32) {
    %c0_i32 = arith.constant 0 : i32
    %c0_i32_0 = arith.constant 0 : i32
    %c0_i32_1 = arith.constant 0 : i32
    return %c0_i32, %c0_i32_0 : i32, i32
  }
  func.func @transform_4(%arg0: i32) -> (i32, i32, i32, i32) {
    %c0_i32 = arith.constant 0 : i32
    %c0_i32_0 = arith.constant 0 : i32
    %c0_i32_1 = arith.constant 0 : i32
    %c0_i32_2 = arith.constant 0 : i32
    return %arg0, %c0_i32, %c0_i32_0, %c0_i32_1 : i32, i32, i32, i32
  }
}

module attributes {stable_mosaic.version = 11 : i64} {
  func.func @_se_pool_kernel(%arg0: i32, %arg1: i32, %arg2: memref<1x256x128xf32, #tpu.memory_space<vmem>>, %arg3: memref<1x128xf32, #tpu.memory_space<vmem>>, %arg4: memref<1x128xf32, #tpu.memory_space<vmem>>, %arg5: memref<1x1x128xf32, #tpu.memory_space<vmem>>) attributes {dimension_semantics = [#tpu.dimension_semantics<parallel>, #tpu.dimension_semantics<arbitrary>], iteration_bounds = array<i64: 2, 1>, scalar_prefetch = 0 : i64, scratch_operands = 0 : i64, tpu.core_type = #tpu.core_type<tc>, window_params = [{transform_indices = @transform_0, window_bounds = array<i64: 1, 256, 128>}, {pipeline_mode = #tpu.pipeline_mode<synchronous>, transform_indices = @transform_1, window_bounds = array<i64: 1, 128>}, {pipeline_mode = #tpu.pipeline_mode<synchronous>, transform_indices = @transform_2, window_bounds = array<i64: 1, 128>}, {transform_indices = @transform_3, window_bounds = array<i64: 1, 1, 128>}]} {
    %c0_i32 = arith.constant 0 : i32
    %0 = arith.cmpi eq, %arg1, %c0_i32 : i32
    %1 = arith.extui %0 : i1 to i32
    %c0_i32_0 = arith.constant 0 : i32
    %2 = arith.cmpi ne, %1, %c0_i32_0 : i32
    scf.if %2 {
      %cst_17 = arith.constant 0.000000e+00 : f32
      %29 = vector.broadcast %cst_17 : f32 to vector<1x1x128xf32>
      %c0_18 = arith.constant 0 : index
      %c0_19 = arith.constant 0 : index
      %c0_20 = arith.constant 0 : index
      %30 = vector.load %arg5[%c0_18, %c0_19, %c0_20] : memref<1x1x128xf32, #tpu.memory_space<vmem>>, vector<1x1x128xf32>
      tpu.vector_store %arg5[%c0_18, %c0_19, %c0_20], %29 {strides = array<i32>} : memref<1x1x128xf32, #tpu.memory_space<vmem>>, vector<1x1x128xf32>,
    } else {
    }
    %c0 = arith.constant 0 : index
    %c0_1 = arith.constant 0 : index
    %c0_2 = arith.constant 0 : index
    %3 = vector.load %arg2[%c0, %c0_1, %c0_2] : memref<1x256x128xf32, #tpu.memory_space<vmem>>, vector<1x256x128xf32>
    %4 = vector.shape_cast %3 : vector<1x256x128xf32> to vector<256x128xf32>
    %c0_3 = arith.constant 0 : index
    %c0_4 = arith.constant 0 : index
    %5 = vector.load %arg3[%c0_3, %c0_4] : memref<1x128xf32, #tpu.memory_space<vmem>>, vector<1x128xf32>
    %6 = vector.broadcast %5 : vector<1x128xf32> to vector<256x128xf32>
    %7 = arith.mulf %4, %6 : vector<256x128xf32>
    %c0_5 = arith.constant 0 : index
    %c0_6 = arith.constant 0 : index
    %8 = vector.load %arg4[%c0_5, %c0_6] : memref<1x128xf32, #tpu.memory_space<vmem>>, vector<1x128xf32>
    %9 = vector.broadcast %8 : vector<1x128xf32> to vector<256x128xf32>
    %10 = arith.addf %7, %9 : vector<256x128xf32>
    %cst = arith.constant 5.000000e-01 : f32
    %11 = vector.broadcast %cst : f32 to vector<256x128xf32>
    %12 = arith.mulf %11, %10 : vector<256x128xf32>
    %cst_7 = arith.constant 1.41421354 : f32
    %13 = vector.broadcast %cst_7 : f32 to vector<256x128xf32>
    %14 = arith.divf %10, %13 : vector<256x128xf32>
    %15 = math.erf %14 : vector<256x128xf32>
    %cst_8 = arith.constant 1.000000e+00 : f32
    %16 = vector.broadcast %cst_8 : f32 to vector<256x128xf32>
    %17 = arith.addf %16, %15 : vector<256x128xf32>
    %18 = arith.mulf %12, %17 : vector<256x128xf32>
    %c0_9 = arith.constant 0 : index
    %c0_10 = arith.constant 0 : index
    %c0_11 = arith.constant 0 : index
    %19 = vector.load %arg5[%c0_9, %c0_10, %c0_11] : memref<1x1x128xf32, #tpu.memory_space<vmem>>, vector<1x1x128xf32>
    %20 = vector.shape_cast %19 : vector<1x1x128xf32> to vector<1x128xf32>
    %cst_12 = arith.constant dense<0.000000e+00> : vector<128xf32>
    %21 = vector.multi_reduction <add>, %18, %cst_12 [0] : vector<256x128xf32> to vector<128xf32>
    %22 = vector.shape_cast %21 : vector<128xf32> to vector<1x128xf32>
    %cst_13 = arith.constant 3.906250e-03 : f32
    %23 = vector.broadcast %cst_13 : f32 to vector<1x128xf32>
    %24 = arith.mulf %22, %23 : vector<1x128xf32>
    %25 = arith.addf %20, %24 : vector<1x128xf32>
    %c0_14 = arith.constant 0 : index
    %c0_15 = arith.constant 0 : index
    %c0_16 = arith.constant 0 : index
    %26 = vector.load %arg5[%c0_14, %c0_15, %c0_16] : memref<1x1x128xf32, #tpu.memory_space<vmem>>, vector<1x1x128xf32>
    %27 = vector.shape_cast %26 : vector<1x1x128xf32> to vector<1x128xf32>
    %28 = vector.shape_cast %25 : vector<1x128xf32> to vector<1x1x128xf32>
    tpu.vector_store %arg5[%c0_14, %c0_15, %c0_16], %28 {strides = array<i32>} : memref<1x1x128xf32, #tpu.memory_space<vmem>>, vector<1x1x128xf32>,
    return
  }
  func.func @transform_0(%arg0: i32, %arg1: i32) -> (i32, i32, i32) {
    %c0_i32 = arith.constant 0 : i32
    %c0_i32_0 = arith.constant 0 : i32
    return %arg0, %arg1, %c0_i32 : i32, i32, i32
  }
  func.func @transform_1(%arg0: i32, %arg1: i32) -> (i32, i32) {
    %c0_i32 = arith.constant 0 : i32
    %c0_i32_0 = arith.constant 0 : i32
    %c0_i32_1 = arith.constant 0 : i32
    return %c0_i32, %c0_i32_0 : i32, i32
  }
  func.func @transform_2(%arg0: i32, %arg1: i32) -> (i32, i32) {
    %c0_i32 = arith.constant 0 : i32
    %c0_i32_0 = arith.constant 0 : i32
    %c0_i32_1 = arith.constant 0 : i32
    return %c0_i32, %c0_i32_0 : i32, i32
  }
  func.func @transform_3(%arg0: i32, %arg1: i32) -> (i32, i32, i32) {
    %c0_i32 = arith.constant 0 : i32
    %c0_i32_0 = arith.constant 0 : i32
    %c0_i32_1 = arith.constant 0 : i32
    return %arg0, %c0_i32, %c0_i32_0 : i32, i32, i32
  }
}

module attributes {stable_mosaic.version = 11 : i64} {
  func.func @_pw2_fused_kernel(%arg0: i32, %arg1: i32, %arg2: memref<1x256x128xf32, #tpu.memory_space<vmem>>, %arg3: memref<1x128xf32, #tpu.memory_space<vmem>>, %arg4: memref<1x128xf32, #tpu.memory_space<vmem>>, %arg5: memref<1x1x128xf32, #tpu.memory_space<vmem>>, %arg6: memref<128x32xbf16, #tpu.memory_space<vmem>>, %arg7: memref<1x256x32xf32, #tpu.memory_space<vmem>>) attributes {dimension_semantics = [#tpu.dimension_semantics<parallel>, #tpu.dimension_semantics<parallel>], iteration_bounds = array<i64: 2, 1>, scalar_prefetch = 0 : i64, scratch_operands = 0 : i64, tpu.core_type = #tpu.core_type<tc>, window_params = [{transform_indices = @transform_0, window_bounds = array<i64: 1, 256, 128>}, {pipeline_mode = #tpu.pipeline_mode<synchronous>, transform_indices = @transform_1, window_bounds = array<i64: 1, 128>}, {pipeline_mode = #tpu.pipeline_mode<synchronous>, transform_indices = @transform_2, window_bounds = array<i64: 1, 128>}, {transform_indices = @transform_3, window_bounds = array<i64: 1, 1, 128>}, {pipeline_mode = #tpu.pipeline_mode<synchronous>, transform_indices = @transform_4, window_bounds = array<i64: 128, 32>}, {transform_indices = @transform_5, window_bounds = array<i64: 1, 256, 32>}]} {
    %c0 = arith.constant 0 : index
    %c0_0 = arith.constant 0 : index
    %c0_1 = arith.constant 0 : index
    %0 = vector.load %arg2[%c0, %c0_0, %c0_1] : memref<1x256x128xf32, #tpu.memory_space<vmem>>, vector<1x256x128xf32>
    %1 = vector.shape_cast %0 : vector<1x256x128xf32> to vector<256x128xf32>
    %c0_2 = arith.constant 0 : index
    %c0_3 = arith.constant 0 : index
    %2 = vector.load %arg3[%c0_2, %c0_3] : memref<1x128xf32, #tpu.memory_space<vmem>>, vector<1x128xf32>
    %3 = vector.broadcast %2 : vector<1x128xf32> to vector<256x128xf32>
    %4 = arith.mulf %1, %3 : vector<256x128xf32>
    %c0_4 = arith.constant 0 : index
    %c0_5 = arith.constant 0 : index
    %5 = vector.load %arg4[%c0_4, %c0_5] : memref<1x128xf32, #tpu.memory_space<vmem>>, vector<1x128xf32>
    %6 = vector.broadcast %5 : vector<1x128xf32> to vector<256x128xf32>
    %7 = arith.addf %4, %6 : vector<256x128xf32>
    %cst = arith.constant 5.000000e-01 : f32
    %8 = vector.broadcast %cst : f32 to vector<256x128xf32>
    %9 = arith.mulf %8, %7 : vector<256x128xf32>
    %cst_6 = arith.constant 1.41421354 : f32
    %10 = vector.broadcast %cst_6 : f32 to vector<256x128xf32>
    %11 = arith.divf %7, %10 : vector<256x128xf32>
    %12 = math.erf %11 : vector<256x128xf32>
    %cst_7 = arith.constant 1.000000e+00 : f32
    %13 = vector.broadcast %cst_7 : f32 to vector<256x128xf32>
    %14 = arith.addf %13, %12 : vector<256x128xf32>
    %15 = arith.mulf %9, %14 : vector<256x128xf32>
    %c0_8 = arith.constant 0 : index
    %c0_9 = arith.constant 0 : index
    %c0_10 = arith.constant 0 : index
    %16 = vector.load %arg5[%c0_8, %c0_9, %c0_10] : memref<1x1x128xf32, #tpu.memory_space<vmem>>, vector<1x1x128xf32>
    %17 = vector.shape_cast %16 : vector<1x1x128xf32> to vector<1x128xf32>
    %18 = vector.broadcast %17 : vector<1x128xf32> to vector<256x128xf32>
    %19 = arith.mulf %15, %18 : vector<256x128xf32>
    %20 = arith.truncf %19 : vector<256x128xf32> to vector<256x128xbf16>
    %c0_11 = arith.constant 0 : index
    %c0_12 = arith.constant 0 : index
    %21 = vector.load %arg6[%c0_11, %c0_12] : memref<128x32xbf16, #tpu.memory_space<vmem>>, vector<128x32xbf16>
    %cst_13 = arith.constant dense<0.000000e+00> : vector<256x32xf32>
    %22 = tpu.matmul %20, %21, %cst_13 {dimension_numbers = #tpu.dot_dimension_numbers<[1], [0], [0], [1], [0, 0, 1, 1], [], []>} : vector<256x128xbf16>, vector<128x32xbf16>, vector<256x32xf32> -> vector<256x32xf32>
    %c0_14 = arith.constant 0 : index
    %c0_15 = arith.constant 0 : index
    %c0_16 = arith.constant 0 : index
    %23 = vector.load %arg7[%c0_14, %c0_15, %c0_16] : memref<1x256x32xf32, #tpu.memory_space<vmem>>, vector<1x256x32xf32>
    %24 = vector.shape_cast %23 : vector<1x256x32xf32> to vector<256x32xf32>
    %25 = vector.shape_cast %22 : vector<256x32xf32> to vector<1x256x32xf32>
    tpu.vector_store %arg7[%c0_14, %c0_15, %c0_16], %25 {strides = array<i32>} : memref<1x256x32xf32, #tpu.memory_space<vmem>>, vector<1x256x32xf32>,
    return
  }
  func.func @transform_0(%arg0: i32, %arg1: i32) -> (i32, i32, i32) {
    %c0_i32 = arith.constant 0 : i32
    %c0_i32_0 = arith.constant 0 : i32
    return %arg0, %arg1, %c0_i32 : i32, i32, i32
  }
  func.func @transform_1(%arg0: i32, %arg1: i32) -> (i32, i32) {
    %c0_i32 = arith.constant 0 : i32
    %c0_i32_0 = arith.constant 0 : i32
    %c0_i32_1 = arith.constant 0 : i32
    return %c0_i32, %c0_i32_0 : i32, i32
  }
  func.func @transform_2(%arg0: i32, %arg1: i32) -> (i32, i32) {
    %c0_i32 = arith.constant 0 : i32
    %c0_i32_0 = arith.constant 0 : i32
    %c0_i32_1 = arith.constant 0 : i32
    return %c0_i32, %c0_i32_0 : i32, i32
  }
  func.func @transform_3(%arg0: i32, %arg1: i32) -> (i32, i32, i32) {
    %c0_i32 = arith.constant 0 : i32
    %c0_i32_0 = arith.constant 0 : i32
    %c0_i32_1 = arith.constant 0 : i32
    return %arg0, %c0_i32, %c0_i32_0 : i32, i32, i32
  }
  func.func @transform_4(%arg0: i32, %arg1: i32) -> (i32, i32) {
    %c0_i32 = arith.constant 0 : i32
    %c0_i32_0 = arith.constant 0 : i32
    %c0_i32_1 = arith.constant 0 : i32
    return %c0_i32, %c0_i32_0 : i32, i32
  }
  func.func @transform_5(%arg0: i32, %arg1: i32) -> (i32, i32, i32) {
    %c0_i32 = arith.constant 0 : i32
    %c0_i32_0 = arith.constant 0 : i32
    return %arg0, %arg1, %c0_i32 : i32, i32, i32
  }
}

module attributes {stable_mosaic.version = 11 : i64} {
  func.func @_se_mlp_kernel(%arg0: memref<2x128xf32, #tpu.memory_space<vmem>>, %arg1: memref<128x8xf32, #tpu.memory_space<vmem>>, %arg2: memref<8x128xf32, #tpu.memory_space<vmem>>, %arg3: memref<2x128xf32, #tpu.memory_space<vmem>>) attributes {dimension_semantics = [], scalar_prefetch = 0 : i64, scratch_operands = 0 : i64, tpu.core_type = #tpu.core_type<tc>} {
    %c0 = arith.constant 0 : index
    %c0_0 = arith.constant 0 : index
    %0 = vector.load %arg0[%c0, %c0_0] : memref<2x128xf32, #tpu.memory_space<vmem>>, vector<2x128xf32>
    %c0_1 = arith.constant 0 : index
    %c0_2 = arith.constant 0 : index
    %1 = vector.load %arg1[%c0_1, %c0_2] : memref<128x8xf32, #tpu.memory_space<vmem>>, vector<128x8xf32>
    %cst = arith.constant dense<0.000000e+00> : vector<2x8xf32>
    %2 = tpu.matmul %0, %1, %cst {dimension_numbers = #tpu.dot_dimension_numbers<[1], [0], [0], [1], [0, 0, 1, 1], [], []>} : vector<2x128xf32>, vector<128x8xf32>, vector<2x8xf32> -> vector<2x8xf32>
    %cst_3 = arith.constant 5.000000e-01 : f32
    %3 = vector.broadcast %cst_3 : f32 to vector<2x8xf32>
    %4 = arith.mulf %3, %2 : vector<2x8xf32>
    %cst_4 = arith.constant 1.41421354 : f32
    %5 = vector.broadcast %cst_4 : f32 to vector<2x8xf32>
    %6 = arith.divf %2, %5 : vector<2x8xf32>
    %7 = math.erf %6 : vector<2x8xf32>
    %cst_5 = arith.constant 1.000000e+00 : f32
    %8 = vector.broadcast %cst_5 : f32 to vector<2x8xf32>
    %9 = arith.addf %8, %7 : vector<2x8xf32>
    %10 = arith.mulf %4, %9 : vector<2x8xf32>
    %c0_6 = arith.constant 0 : index
    %c0_7 = arith.constant 0 : index
    %11 = vector.load %arg2[%c0_6, %c0_7] : memref<8x128xf32, #tpu.memory_space<vmem>>, vector<8x128xf32>
    %cst_8 = arith.constant dense<0.000000e+00> : vector<2x128xf32>
    %12 = tpu.matmul %10, %11, %cst_8 {dimension_numbers = #tpu.dot_dimension_numbers<[1], [0], [0], [1], [0, 0, 1, 1], [], []>} : vector<2x8xf32>, vector<8x128xf32>, vector<2x128xf32> -> vector<2x128xf32>
    %cst_9 = arith.constant 0.000000e+00 : f32
    %13 = vector.broadcast %cst_9 : f32 to vector<2x128xf32>
    %14 = arith.subf %13, %12 : vector<2x128xf32>
    %15 = math.exp %14 : vector<2x128xf32>
    %cst_10 = arith.constant 1.000000e+00 : f32
    %16 = vector.broadcast %cst_10 : f32 to vector<2x128xf32>
    %17 = arith.addf %16, %15 : vector<2x128xf32>
    %cst_11 = arith.constant 1.000000e+00 : f32
    %18 = vector.broadcast %cst_11 : f32 to vector<2x128xf32>
    %19 = arith.divf %18, %17 : vector<2x128xf32>
    %c0_12 = arith.constant 0 : index
    %c0_13 = arith.constant 0 : index
    %20 = vector.load %arg3[%c0_12, %c0_13] : memref<2x128xf32, #tpu.memory_space<vmem>>, vector<2x128xf32>
    tpu.vector_store %arg3[%c0_12, %c0_13], %19 {strides = array<i32>} : memref<2x128xf32, #tpu.memory_space<vmem>>, vector<2x128xf32>,
    return
  }
}

module attributes {stable_mosaic.version = 11 : i64} {
  func.func @_stats_kernel(%arg0: i32, %arg1: memref<512x32xf32, #tpu.memory_space<vmem>>, %arg2: memref<1x32xf32, #tpu.memory_space<vmem>>, %arg3: memref<1x32xf32, #tpu.memory_space<vmem>>) attributes {dimension_semantics = [#tpu.dimension_semantics<arbitrary>], iteration_bounds = array<i64: 1>, scalar_prefetch = 0 : i64, scratch_operands = 0 : i64, tpu.core_type = #tpu.core_type<tc>, window_params = [{transform_indices = @transform_0, window_bounds = array<i64: 512, 32>}, {pipeline_mode = #tpu.pipeline_mode<synchronous>, transform_indices = @transform_1, window_bounds = array<i64: 1, 32>}, {pipeline_mode = #tpu.pipeline_mode<synchronous>, transform_indices = @transform_2, window_bounds = array<i64: 1, 32>}]} {
    %c0_i32 = arith.constant 0 : i32
    %0 = arith.cmpi eq, %arg0, %c0_i32 : i32
    %1 = arith.extui %0 : i1 to i32
    %c0_i32_0 = arith.constant 0 : i32
    %2 = arith.cmpi ne, %1, %c0_i32_0 : i32
    scf.if %2 {
      %cst_11 = arith.constant 0.000000e+00 : f32
      %15 = vector.broadcast %cst_11 : f32 to vector<1x32xf32>
      %c0_12 = arith.constant 0 : index
      %c0_13 = arith.constant 0 : index
      %16 = vector.load %arg2[%c0_12, %c0_13] : memref<1x32xf32, #tpu.memory_space<vmem>>, vector<1x32xf32>
      tpu.vector_store %arg2[%c0_12, %c0_13], %15 {strides = array<i32>} : memref<1x32xf32, #tpu.memory_space<vmem>>, vector<1x32xf32>,
      %cst_14 = arith.constant 0.000000e+00 : f32
      %17 = vector.broadcast %cst_14 : f32 to vector<1x32xf32>
      %c0_15 = arith.constant 0 : index
      %c0_16 = arith.constant 0 : index
      %18 = vector.load %arg3[%c0_15, %c0_16] : memref<1x32xf32, #tpu.memory_space<vmem>>, vector<1x32xf32>
      tpu.vector_store %arg3[%c0_15, %c0_16], %17 {strides = array<i32>} : memref<1x32xf32, #tpu.memory_space<vmem>>, vector<1x32xf32>,
    } else {
    }
    %c0 = arith.constant 0 : index
    %c0_1 = arith.constant 0 : index
    %3 = vector.load %arg1[%c0, %c0_1] : memref<512x32xf32, #tpu.memory_space<vmem>>, vector<512x32xf32>
    %c0_2 = arith.constant 0 : index
    %c0_3 = arith.constant 0 : index
    %4 = vector.load %arg2[%c0_2, %c0_3] : memref<1x32xf32, #tpu.memory_space<vmem>>, vector<1x32xf32>
    %cst = arith.constant dense<0.000000e+00> : vector<32xf32>
    %5 = vector.multi_reduction <add>, %3, %cst [0] : vector<512x32xf32> to vector<32xf32>
    %6 = vector.shape_cast %5 : vector<32xf32> to vector<1x32xf32>
    %7 = arith.addf %4, %6 : vector<1x32xf32>
    %c0_4 = arith.constant 0 : index
    %c0_5 = arith.constant 0 : index
    %8 = vector.load %arg2[%c0_4, %c0_5] : memref<1x32xf32, #tpu.memory_space<vmem>>, vector<1x32xf32>
    tpu.vector_store %arg2[%c0_4, %c0_5], %7 {strides = array<i32>} : memref<1x32xf32, #tpu.memory_space<vmem>>, vector<1x32xf32>,
    %c0_6 = arith.constant 0 : index
    %c0_7 = arith.constant 0 : index
    %9 = vector.load %arg3[%c0_6, %c0_7] : memref<1x32xf32, #tpu.memory_space<vmem>>, vector<1x32xf32>
    %10 = arith.mulf %3, %3 : vector<512x32xf32>
    %cst_8 = arith.constant dense<0.000000e+00> : vector<32xf32>
    %11 = vector.multi_reduction <add>, %10, %cst_8 [0] : vector<512x32xf32> to vector<32xf32>
    %12 = vector.shape_cast %11 : vector<32xf32> to vector<1x32xf32>
    %13 = arith.addf %9, %12 : vector<1x32xf32>
    %c0_9 = arith.constant 0 : index
    %c0_10 = arith.constant 0 : index
    %14 = vector.load %arg3[%c0_9, %c0_10] : memref<1x32xf32, #tpu.memory_space<vmem>>, vector<1x32xf32>
    tpu.vector_store %arg3[%c0_9, %c0_10], %13 {strides = array<i32>} : memref<1x32xf32, #tpu.memory_space<vmem>>, vector<1x32xf32>,
    return
  }
  func.func @transform_0(%arg0: i32) -> (i32, i32) {
    %c0_i32 = arith.constant 0 : i32
    %c0_i32_0 = arith.constant 0 : i32
    return %arg0, %c0_i32 : i32, i32
  }
  func.func @transform_1(%arg0: i32) -> (i32, i32) {
    %c0_i32 = arith.constant 0 : i32
    %c0_i32_0 = arith.constant 0 : i32
    %c0_i32_1 = arith.constant 0 : i32
    return %c0_i32, %c0_i32_0 : i32, i32
  }
  func.func @transform_2(%arg0: i32) -> (i32, i32) {
    %c0_i32 = arith.constant 0 : i32
    %c0_i32_0 = arith.constant 0 : i32
    %c0_i32_1 = arith.constant 0 : i32
    return %c0_i32, %c0_i32_0 : i32, i32
  }
}

module attributes {stable_mosaic.version = 11 : i64} {
  func.func @_residual_bn_kernel(%arg0: i32, %arg1: memref<32x512xf32, #tpu.memory_space<vmem>>, %arg2: memref<32x512xf32, #tpu.memory_space<vmem>>, %arg3: memref<1x512xf32, #tpu.memory_space<vmem>>, %arg4: memref<1x512xf32, #tpu.memory_space<vmem>>, %arg5: memref<32x512xf32, #tpu.memory_space<vmem>>) attributes {dimension_semantics = [#tpu.dimension_semantics<parallel>], iteration_bounds = array<i64: 1>, scalar_prefetch = 0 : i64, scratch_operands = 0 : i64, tpu.core_type = #tpu.core_type<tc>, window_params = [{transform_indices = @transform_0, window_bounds = array<i64: 32, 512>}, {transform_indices = @transform_1, window_bounds = array<i64: 32, 512>}, {pipeline_mode = #tpu.pipeline_mode<synchronous>, transform_indices = @transform_2, window_bounds = array<i64: 1, 512>}, {pipeline_mode = #tpu.pipeline_mode<synchronous>, transform_indices = @transform_3, window_bounds = array<i64: 1, 512>}, {transform_indices = @transform_4, window_bounds = array<i64: 32, 512>}]} {
    %c0 = arith.constant 0 : index
    %c0_0 = arith.constant 0 : index
    %0 = vector.load %arg1[%c0, %c0_0] : memref<32x512xf32, #tpu.memory_space<vmem>>, vector<32x512xf32>
    %c0_1 = arith.constant 0 : index
    %c0_2 = arith.constant 0 : index
    %1 = vector.load %arg2[%c0_1, %c0_2] : memref<32x512xf32, #tpu.memory_space<vmem>>, vector<32x512xf32>
    %c0_3 = arith.constant 0 : index
    %c0_4 = arith.constant 0 : index
    %2 = vector.load %arg3[%c0_3, %c0_4] : memref<1x512xf32, #tpu.memory_space<vmem>>, vector<1x512xf32>
    %3 = vector.broadcast %2 : vector<1x512xf32> to vector<32x512xf32>
    %4 = arith.mulf %1, %3 : vector<32x512xf32>
    %5 = arith.addf %0, %4 : vector<32x512xf32>
    %c0_5 = arith.constant 0 : index
    %c0_6 = arith.constant 0 : index
    %6 = vector.load %arg4[%c0_5, %c0_6] : memref<1x512xf32, #tpu.memory_space<vmem>>, vector<1x512xf32>
    %7 = vector.broadcast %6 : vector<1x512xf32> to vector<32x512xf32>
    %8 = arith.addf %5, %7 : vector<32x512xf32>
    %c0_7 = arith.constant 0 : index
    %c0_8 = arith.constant 0 : index
    %9 = vector.load %arg5[%c0_7, %c0_8] : memref<32x512xf32, #tpu.memory_space<vmem>>, vector<32x512xf32>
    tpu.vector_store %arg5[%c0_7, %c0_8], %8 {strides = array<i32>} : memref<32x512xf32, #tpu.memory_space<vmem>>, vector<32x512xf32>,
    return
  }
  func.func @transform_0(%arg0: i32) -> (i32, i32) {
    %c0_i32 = arith.constant 0 : i32
    %c0_i32_0 = arith.constant 0 : i32
    return %arg0, %c0_i32 : i32, i32
  }
  func.func @transform_1(%arg0: i32) -> (i32, i32) {
    %c0_i32 = arith.constant 0 : i32
    %c0_i32_0 = arith.constant 0 : i32
    return %arg0, %c0_i32 : i32, i32
  }
  func.func @transform_2(%arg0: i32) -> (i32, i32) {
    %c0_i32 = arith.constant 0 : i32
    %c0_i32_0 = arith.constant 0 : i32
    %c0_i32_1 = arith.constant 0 : i32
    return %c0_i32, %c0_i32_0 : i32, i32
  }
  func.func @transform_3(%arg0: i32) -> (i32, i32) {
    %c0_i32 = arith.constant 0 : i32
    %c0_i32_0 = arith.constant 0 : i32
    %c0_i32_1 = arith.constant 0 : i32
    return %c0_i32, %c0_i32_0 : i32, i32
  }
  func.func @transform_4(%arg0: i32) -> (i32, i32) {
    %c0_i32 = arith.constant 0 : i32
    %c0_i32_0 = arith.constant 0 : i32
    return %arg0, %c0_i32 : i32, i32
  }
}

</mosaic_0001>

<llo_original>
// kernel: mbconv_forward.10
$region0: #{mbconv_forward.10}
  #allocation0 [shape = 'u32[]', space=smem, size = 0x4, offset = 0x4, fixed_abs, tag = 'smem constant byte address 0x4 - core index']
  #allocation1 [shape = 'u32[72,128]{1,0:T(1,128)}', space=vmem, size = 0x9000, scoped, tag = 'internal scratch']
  %s0 = inlined_call_operand.hbm [shape: f32[512,32], index: 0, kind: input, shape index: {}]
  %s1 = inlined_call_operand.vmem [shape: f32[1,32], index: 1, kind: output, shape index: {0}]
  %s2 = inlined_call_operand.vmem [shape: f32[1,32], index: 2, kind: output, shape index: {1}]
  %3 = xla_tuple %s1, %s2
  %s4 = sld [smem:[#allocation0]]
  $region30: #{mbconv_forward.10} parent=0
    _
  %s6 = ssub.s32 1, %s4
  %s7 = scalar_select 0, %s6, %s4
  $region1: #{mbconv_forward.10} parent=0
    #allocation2 [shape = 'u8[262144]{0}', space=vmem, size = 0x40000, scoped, tag = 'input window, operand 0, single buffered']
    #allocation3 [shape = 's32[1]{0}', space=sflag, size = 0x4, scoped, tag = 'scoped memory for mbconv_forward.10']
    %8 = vsyncpa [#allocation3], 0
    // Predicated region
    $region2: #{mbconv_forward.10} parent=1 // pred_check
      _
    $region3: #{mbconv_forward.10} parent=1 // pred_check_branch
      %10 = sbr.rel (0) target = $region5
    $region4: #{mbconv_forward.10} parent=1 // pred_region
      %12 = vsyncadd [#allocation3], 0
      %s13 = sshll.u32 %s0, 4
      %s14 = int_to_ptr.hbm [resolvable:$true] %s13
      %s15 = sshll.u32 [#allocation2], 4
      %s16 = int_to_ptr.vmem [resolvable:$true] %s15
      %21 = dma.hbm_to_vmem [thread:$0]  %s14, 8192, %s16, [#allocation3], 128, 128, 8
    $region5: #{mbconv_forward.10} parent=1 // pred_fallthru
      _
    // Predicated region
    $region6: #{mbconv_forward.10} parent=1 // pred_check
      _
    $region7: #{mbconv_forward.10} parent=1 // pred_check_branch
      %23 = sbr.rel (0) target = $region9
    $region8: #{mbconv_forward.10} parent=1 // pred_region
      %25 = dma.done [#allocation3], 8192
    $region9: #{mbconv_forward.10} parent=1 // pred_fallthru
      _
    %p26 = scmp.eq.s32.totalorder 0, 0
    // Predicated region
    $region10: #{mbconv_forward.10} parent=1 // pred_check
      %p27 = pneg %p26
    $region11: #{mbconv_forward.10} parent=1 // pred_check_branch
      %29 = sbr.rel (%p27) target = $region13
    $region12: #{mbconv_forward.10} parent=1 // pred_region
      %vm30 = vcmask 253952
      %31 = vst.msk [vmem:[%s1] sm:$0x1] %vm30, 0.0
      %32 = vst.msk [vmem:[%s2] sm:$0x1] %vm30, 0.0
    $region13: #{mbconv_forward.10} parent=1 // pred_fallthru
      _
    %v33 = vld [vmem:[#allocation2] sm:$0xff]
    %v34 = vld [vmem:[#allocation2 + $0x8] sm:$0xff]
    %v35 = vld [vmem:[#allocation2 + $0x10] sm:$0xff]
    %v36 = vld [vmem:[#allocation2 + $0x18] sm:$0xff]
    %v37 = vld [vmem:[#allocation2 + $0x20] sm:$0xff]
    %v38 = vld [vmem:[#allocation2 + $0x28] sm:$0xff]
    %v39 = vld [vmem:[#allocation2 + $0x30] sm:$0xff]
    %v40 = vld [vmem:[#allocation2 + $0x38] sm:$0xff]
    %v41 = vld [vmem:[#allocation2 + $0x40] sm:$0xff]
    %v42 = vld [vmem:[#allocation2 + $0x48] sm:$0xff]
    %v43 = vld [vmem:[#allocation2 + $0x50] sm:$0xff]
    %v44 = vld [vmem:[#allocation2 + $0x58] sm:$0xff]
    %v45 = vld [vmem:[#allocation2 + $0x60] sm:$0xff]
    %v46 = vld [vmem:[#allocation2 + $0x68] sm:$0xff]
    %v47 = vld [vmem:[#allocation2 + $0x70] sm:$0xff]
    %v48 = vld [vmem:[#allocation2 + $0x78] sm:$0xff]
    %v49 = vld [vmem:[#allocation2 + $0x80] sm:$0xff]
    %v50 = vld [vmem:[#allocation2 + $0x88] sm:$0xff]
    %v51 = vld [vmem:[#allocation2 + $0x90] sm:$0xff]
    %v52 = vld [vmem:[#allocation2 + $0x98] sm:$0xff]
    %v53 = vld [vmem:[#allocation2 + $0xa0] sm:$0xff]
    %v54 = vld [vmem:[#allocation2 + $0xa8] sm:$0xff]
    %v55 = vld [vmem:[#allocation2 + $0xb0] sm:$0xff]
    %v56 = vld [vmem:[#allocation2 + $0xb8] sm:$0xff]
    %v57 = vld [vmem:[#allocation2 + $0xc0] sm:$0xff]
    %v58 = vld [vmem:[#allocation2 + $0xc8] sm:$0xff]
    %v59 = vld [vmem:[#allocation2 + $0xd0] sm:$0xff]
    %v60 = vld [vmem:[#allocation2 + $0xd8] sm:$0xff]
    %v61 = vld [vmem:[#allocation2 + $0xe0] sm:$0xff]
    %v62 = vld [vmem:[#allocation2 + $0xe8] sm:$0xff]
    %v63 = vld [vmem:[#allocation2 + $0xf0] sm:$0xff]
    %v64 = vld [vmem:[#allocation2 + $0xf8] sm:$0xff]
    %v65 = vld [vmem:[#allocation2 + $0x100] sm:$0xff]
    %v66 = vld [vmem:[#allocation2 + $0x108] sm:$0xff]
    %v67 = vld [vmem:[#allocation2 + $0x110] sm:$0xff]
    %v68 = vld [vmem:[#allocation2 + $0x118] sm:$0xff]
    %v69 = vld [vmem:[#allocation2 + $0x120] sm:$0xff]
    %v70 = vld [vmem:[#allocation2 + $0x128] sm:$0xff]
    %v71 = vld [vmem:[#allocation2 + $0x130] sm:$0xff]
    %v72 = vld [vmem:[#allocation2 + $0x138] sm:$0xff]
    %v73 = vld [vmem:[#allocation2 + $0x140] sm:$0xff]
    %v74 = vld [vmem:[#allocation2 + $0x148] sm:$0xff]
    %v75 = vld [vmem:[#allocation2 + $0x150] sm:$0xff]
    %v76 = vld [vmem:[#allocation2 + $0x158] sm:$0xff]
    %v77 = vld [vmem:[#allocation2 + $0x160] sm:$0xff]
    %v78 = vld [vmem:[#allocation2 + $0x168] sm:$0xff]
    %v79 = vld [vmem:[#allocation2 + $0x170] sm:$0xff]
    %v80 = vld [vmem:[#allocation2 + $0x178] sm:$0xff]
    %v81 = vld [vmem:[#allocation2 + $0x180] sm:$0xff]
    %v82 = vld [vmem:[#allocation2 + $0x188] sm:$0xff]
    %v83 = vld [vmem:[#allocation2 + $0x190] sm:$0xff]
    %v84 = vld [vmem:[#allocation2 + $0x198] sm:$0xff]
    %v85 = vld [vmem:[#allocation2 + $0x1a0] sm:$0xff]
    %v86 = vld [vmem:[#allocation2 + $0x1a8] sm:$0xff]
    %v87 = vld [vmem:[#allocation2 + $0x1b0] sm:$0xff]
    %v88 = vld [vmem:[#allocation2 + $0x1b8] sm:$0xff]
    %v89 = vld [vmem:[#allocation2 + $0x1c0] sm:$0xff]
    %v90 = vld [vmem:[#allocation2 + $0x1c8] sm:$0xff]
    %v91 = vld [vmem:[#allocation2 + $0x1d0] sm:$0xff]
    %v92 = vld [vmem:[#allocation2 + $0x1d8] sm:$0xff]
    %v93 = vld [vmem:[#allocation2 + $0x1e0] sm:$0xff]
    %v94 = vld [vmem:[#allocation2 + $0x1e8] sm:$0xff]
    %v95 = vld [vmem:[#allocation2 + $0x1f0] sm:$0xff]
    %v96 = vld [vmem:[#allocation2 + $0x1f8] sm:$0xff]
    %v97 = vld [vmem:[%s1] sm:$0x1]
    %vm98 = vcmask 261120
    %v99 = vsel %vm98, %v33, 0.0
    %v100 = vsel %vm98, %v34, 0.0
    %v101 = vadd.f32 %v99, %v100
    %v102 = vsel %vm98, %v35, 0.0
    %v103 = vadd.f32 %v101, %v102
    %v104 = vsel %vm98, %v36, 0.0
    %v105 = vadd.f32 %v103, %v104
    %v106 = vsel %vm98, %v37, 0.0
    %v107 = vadd.f32 %v105, %v106
    %v108 = vsel %vm98, %v38, 0.0
    %v109 = vadd.f32 %v107, %v108
    %v110 = vsel %vm98, %v39, 0.0
    %v111 = vadd.f32 %v109, %v110
    %v112 = vsel %vm98, %v40, 0.0
    %v113 = vadd.f32 %v111, %v112
    %v114 = vsel %vm98, %v41, 0.0
    %v115 = vadd.f32 %v113, %v114
    %v116 = vsel %vm98, %v42, 0.0
    %v117 = vadd.f32 %v115, %v116
    %v118 = vsel %vm98, %v43, 0.0
    %v119 = vadd.f32 %v117, %v118
    %v120 = vsel %vm98, %v44, 0.0
    %v121 = vadd.f32 %v119, %v120
    %v122 = vsel %vm98, %v45, 0.0
    %v123 = vadd.f32 %v121, %v122
    %v124 = vsel %vm98, %v46, 0.0
    %v125 = vadd.f32 %v123, %v124
    %v126 = vsel %vm98, %v47, 0.0
    %v127 = vadd.f32 %v125, %v126
    %v128 = vsel %vm98, %v48, 0.0
    %v129 = vadd.f32 %v127, %v128
    %v130 = vsel %vm98, %v49, 0.0
    %v131 = vadd.f32 %v129, %v130
    %v132 = vsel %vm98, %v50, 0.0
    %v133 = vadd.f32 %v131, %v132
    %v134 = vsel %vm98, %v51, 0.0
    %v135 = vadd.f32 %v133, %v134
    %v136 = vsel %vm98, %v52, 0.0
    %v137 = vadd.f32 %v135, %v136
    %v138 = vsel %vm98, %v53, 0.0
    %v139 = vadd.f32 %v137, %v138
    %v140 = vsel %vm98, %v54, 0.0
    %v141 = vadd.f32 %v139, %v140
    %v142 = vsel %vm98, %v55, 0.0
    %v143 = vadd.f32 %v141, %v142
    %v144 = vsel %vm98, %v56, 0.0
    %v145 = vadd.f32 %v143, %v144
    %v146 = vsel %vm98, %v57, 0.0
    %v147 = vadd.f32 %v145, %v146
    %v148 = vsel %vm98, %v58, 0.0
    %v149 = vadd.f32 %v147, %v148
    %v150 = vsel %vm98, %v59, 0.0
    %v151 = vadd.f32 %v149, %v150
    %v152 = vsel %vm98, %v60, 0.0
    %v153 = vadd.f32 %v151, %v152
    %v154 = vsel %vm98, %v61, 0.0
    %v155 = vadd.f32 %v153, %v154
    %v156 = vsel %vm98, %v62, 0.0
    %v157 = vadd.f32 %v155, %v156
    %v158 = vsel %vm98, %v63, 0.0
    %v159 = vadd.f32 %v157, %v158
    %v160 = vsel %vm98, %v64, 0.0
    %v161 = vadd.f32 %v159, %v160
    %v162 = vsel %vm98, %v65, 0.0
    %v163 = vadd.f32 %v161, %v162
    %v164 = vsel %vm98, %v66, 0.0
    %v165 = vadd.f32 %v163, %v164
    %v166 = vsel %vm98, %v67, 0.0
    %v167 = vadd.f32 %v165, %v166
    %v168 = vsel %vm98, %v68, 0.0
    %v169 = vadd.f32 %v167, %v168
    %v170 = vsel %vm98, %v69, 0.0
    %v171 = vadd.f32 %v169, %v170
    %v172 = vsel %vm98, %v70, 0.0
    %v173 = vadd.f32 %v171, %v172
    %v174 = vsel %vm98, %v71, 0.0
    %v175 = vadd.f32 %v173, %v174
    %v176 = vsel %vm98, %v72, 0.0
    %v177 = vadd.f32 %v175, %v176
    %v178 = vsel %vm98, %v73, 0.0
    %v179 = vadd.f32 %v177, %v178
    %v180 = vsel %vm98, %v74, 0.0
    %v181 = vadd.f32 %v179, %v180
    %v182 = vsel %vm98, %v75, 0.0
    %v183 = vadd.f32 %v181, %v182
    %v184 = vsel %vm98, %v76, 0.0
    %v185 = vadd.f32 %v183, %v184
    %v186 = vsel %vm98, %v77, 0.0
    %v187 = vadd.f32 %v185, %v186
    %v188 = vsel %vm98, %v78, 0.0
    %v189 = vadd.f32 %v187, %v188
    %v190 = vsel %vm98, %v79, 0.0
    %v191 = vadd.f32 %v189, %v190
    %v192 = vsel %vm98, %v80, 0.0
    %v193 = vadd.f32 %v191, %v192
    %v194 = vsel %vm98, %v81, 0.0
    %v195 = vadd.f32 %v193, %v194
    %v196 = vsel %vm98, %v82, 0.0
    %v197 = vadd.f32 %v195, %v196
    %v198 = vsel %vm98, %v83, 0.0
    %v199 = vadd.f32 %v197, %v198
    %v200 = vsel %vm98, %v84, 0.0
    %v201 = vadd.f32 %v199, %v200
    %v202 = vsel %vm98, %v85, 0.0
    %v203 = vadd.f32 %v201, %v202
    %v204 = vsel %vm98, %v86, 0.0
    %v205 = vadd.f32 %v203, %v204
    %v206 = vsel %vm98, %v87, 0.0
    %v207 = vadd.f32 %v205, %v206
    %v208 = vsel %vm98, %v88, 0.0
    %v209 = vadd.f32 %v207, %v208
    %v210 = vsel %vm98, %v89, 0.0
    %v211 = vadd.f32 %v209, %v210
    %v212 = vsel %vm98, %v90, 0.0
    %v213 = vadd.f32 %v211, %v212
    %v214 = vsel %vm98, %v91, 0.0
    %v215 = vadd.f32 %v213, %v214
    %v216 = vsel %vm98, %v92, 0.0
    %v217 = vadd.f32 %v215, %v216
    %v218 = vsel %vm98, %v93, 0.0
    %v219 = vadd.f32 %v217, %v218
    %v220 = vsel %vm98, %v94, 0.0
    %v221 = vadd.f32 %v219, %v220
    %v222 = vsel %vm98, %v95, 0.0
    %v223 = vadd.f32 %v221, %v222
    %v224 = vsel %vm98, %v96, 0.0
    %v225 = vadd.f32 %v223, %v224
    %v226 = vrot.slane %v225, 4
    %v227 = vadd.f32 %v225, %v226
    %v228 = vrot.slane %v227, 2
    %v229 = vadd.f32 %v227, %v228
    %v230 = vrot.slane %v229, 1
    %v231 = vadd.f32 %v229, %v230
    %v232 = vadd.f32 %v97, %v231
    %vm233 = vcmask 253952
    %234 = vst.msk [vmem:[%s1] sm:$0x1] %vm233, %v232
    %v235 = vld [vmem:[%s2] sm:$0x1]
    %v236 = vmul.f32 %v33, %v33
    %v237 = vmul.f32 %v34, %v34
    %v238 = vmul.f32 %v35, %v35
    %v239 = vmul.f32 %v36, %v36
    %v240 = vmul.f32 %v37, %v37
    %v241 = vmul.f32 %v38, %v38
    %v242 = vmul.f32 %v39, %v39
    %v243 = vmul.f32 %v40, %v40
    %v244 = vmul.f32 %v41, %v41
    %v245 = vmul.f32 %v42, %v42
    %v246 = vmul.f32 %v43, %v43
    %v247 = vmul.f32 %v44, %v44
    %v248 = vmul.f32 %v45, %v45
    %v249 = vmul.f32 %v46, %v46
    %v250 = vmul.f32 %v47, %v47
    %v251 = vmul.f32 %v48, %v48
    %v252 = vmul.f32 %v49, %v49
    %v253 = vmul.f32 %v50, %v50
    %v254 = vmul.f32 %v51, %v51
    %v255 = vmul.f32 %v52, %v52
    %v256 = vmul.f32 %v53, %v53
    %v257 = vmul.f32 %v54, %v54
    %v258 = vmul.f32 %v55, %v55
    %v259 = vmul.f32 %v56, %v56
    %v260 = vmul.f32 %v57, %v57
    %v261 = vmul.f32 %v58, %v58
    %v262 = vmul.f32 %v59, %v59
    %v263 = vmul.f32 %v60, %v60
    %v264 = vmul.f32 %v61, %v61
    %v265 = vmul.f32 %v62, %v62
    %v266 = vmul.f32 %v63, %v63
    %v267 = vmul.f32 %v64, %v64
    %v268 = vmul.f32 %v65, %v65
    %v269 = vmul.f32 %v66, %v66
    %v270 = vmul.f32 %v67, %v67
    %v271 = vmul.f32 %v68, %v68
    %v272 = vmul.f32 %v69, %v69
    %v273 = vmul.f32 %v70, %v70
    %v274 = vmul.f32 %v71, %v71
    %v275 = vmul.f32 %v72, %v72
    %v276 = vmul.f32 %v73, %v73
    %v277 = vmul.f32 %v74, %v74
    %v278 = vmul.f32 %v75, %v75
    %v279 = vmul.f32 %v76, %v76
    %v280 = vmul.f32 %v77, %v77
    %v281 = vmul.f32 %v78, %v78
    %v282 = vmul.f32 %v79, %v79
    %v283 = vmul.f32 %v80, %v80
    %v284 = vmul.f32 %v81, %v81
    %v285 = vmul.f32 %v82, %v82
    %v286 = vmul.f32 %v83, %v83
    %v287 = vmul.f32 %v84, %v84
    %v288 = vmul.f32 %v85, %v85
    %v289 = vmul.f32 %v86, %v86
    %v290 = vmul.f32 %v87, %v87
    %v291 = vmul.f32 %v88, %v88
    %v292 = vmul.f32 %v89, %v89
    %v293 = vmul.f32 %v90, %v90
    %v294 = vmul.f32 %v91, %v91
    %v295 = vmul.f32 %v92, %v92
    %v296 = vmul.f32 %v93, %v93
    %v297 = vmul.f32 %v94, %v94
    %v298 = vmul.f32 %v95, %v95
    %v299 = vmul.f32 %v96, %v96
    %v300 = vsel %vm98, %v236, 0.0
    %v301 = vsel %vm98, %v237, 0.0
    %v302 = vadd.f32 %v300, %v301
    %v303 = vsel %vm98, %v238, 0.0
    %v304 = vadd.f32 %v302, %v303
    %v305 = vsel %vm98, %v239, 0.0
    %v306 = vadd.f32 %v304, %v305
    %v307 = vsel %vm98, %v240, 0.0
    %v308 = vadd.f32 %v306, %v307
    %v309 = vsel %vm98, %v241, 0.0
    %v310 = vadd.f32 %v308, %v309
    %v311 = vsel %vm98, %v242, 0.0
    %v312 = vadd.f32 %v310, %v311
    %v313 = vsel %vm98, %v243, 0.0
    %v314 = vadd.f32 %v312, %v313
    %v315 = vsel %vm98, %v244, 0.0
    %v316 = vadd.f32 %v314, %v315
    %v317 = vsel %vm98, %v245, 0.0
    %v318 = vadd.f32 %v316, %v317
    %v319 = vsel %vm98, %v246, 0.0
    %v320 = vadd.f32 %v318, %v319
    %v321 = vsel %vm98, %v247, 0.0
    %v322 = vadd.f32 %v320, %v321
    %v323 = vsel %vm98, %v248, 0.0
    %v324 = vadd.f32 %v322, %v323
    %v325 = vsel %vm98, %v249, 0.0
    %v326 = vadd.f32 %v324, %v325
    %v327 = vsel %vm98, %v250, 0.0
    %v328 = vadd.f32 %v326, %v327
    %v329 = vsel %vm98, %v251, 0.0
    %v330 = vadd.f32 %v328, %v329
    %v331 = vsel %vm98, %v252, 0.0
    %v332 = vadd.f32 %v330, %v331
    %v333 = vsel %vm98, %v253, 0.0
    %v334 = vadd.f32 %v332, %v333
    %v335 = vsel %vm98, %v254, 0.0
    %v336 = vadd.f32 %v334, %v335
    %v337 = vsel %vm98, %v255, 0.0
    %v338 = vadd.f32 %v336, %v337
    %v339 = vsel %vm98, %v256, 0.0
    %v340 = vadd.f32 %v338, %v339
    %v341 = vsel %vm98, %v257, 0.0
    %v342 = vadd.f32 %v340, %v341
    %v343 = vsel %vm98, %v258, 0.0
    %v344 = vadd.f32 %v342, %v343
    %v345 = vsel %vm98, %v259, 0.0
    %v346 = vadd.f32 %v344, %v345
    %v347 = vsel %vm98, %v260, 0.0
    %v348 = vadd.f32 %v346, %v347
    %v349 = vsel %vm98, %v261, 0.0
    %v350 = vadd.f32 %v348, %v349
    %v351 = vsel %vm98, %v262, 0.0
    %v352 = vadd.f32 %v350, %v351
    %v353 = vsel %vm98, %v263, 0.0
    %v354 = vadd.f32 %v352, %v353
    %v355 = vsel %vm98, %v264, 0.0
    %v356 = vadd.f32 %v354, %v355
    %v357 = vsel %vm98, %v265, 0.0
    %v358 = vadd.f32 %v356, %v357
    %v359 = vsel %vm98, %v266, 0.0
    %v360 = vadd.f32 %v358, %v359
    %v361 = vsel %vm98, %v267, 0.0
    %v362 = vadd.f32 %v360, %v361
    %v363 = vsel %vm98, %v268, 0.0
    %v364 = vadd.f32 %v362, %v363
    %v365 = vsel %vm98, %v269, 0.0
    %v366 = vadd.f32 %v364, %v365
    %v367 = vsel %vm98, %v270, 0.0
    %v368 = vadd.f32 %v366, %v367
    %v369 = vsel %vm98, %v271, 0.0
    %v370 = vadd.f32 %v368, %v369
    %v371 = vsel %vm98, %v272, 0.0
    %v372 = vadd.f32 %v370, %v371
    %v373 = vsel %vm98, %v273, 0.0
    %v374 = vadd.f32 %v372, %v373
    %v375 = vsel %vm98, %v274, 0.0
    %v376 = vadd.f32 %v374, %v375
    %v377 = vsel %vm98, %v275, 0.0
    %v378 = vadd.f32 %v376, %v377
    %v379 = vsel %vm98, %v276, 0.0
    %v380 = vadd.f32 %v378, %v379
    %v381 = vsel %vm98, %v277, 0.0
    %v382 = vadd.f32 %v380, %v381
    %v383 = vsel %vm98, %v278, 0.0
    %v384 = vadd.f32 %v382, %v383
    %v385 = vsel %vm98, %v279, 0.0
    %v386 = vadd.f32 %v384, %v385
    %v387 = vsel %vm98, %v280, 0.0
    %v388 = vadd.f32 %v386, %v387
    %v389 = vsel %vm98, %v281, 0.0
    %v390 = vadd.f32 %v388, %v389
    %v391 = vsel %vm98, %v282, 0.0
    %v392 = vadd.f32 %v390, %v391
    %v393 = vsel %vm98, %v283, 0.0
    %v394 = vadd.f32 %v392, %v393
    %v395 = vsel %vm98, %v284, 0.0
    %v396 = vadd.f32 %v394, %v395
    %v397 = vsel %vm98, %v285, 0.0
    %v398 = vadd.f32 %v396, %v397
    %v399 = vsel %vm98, %v286, 0.0
    %v400 = vadd.f32 %v398, %v399
    %v401 = vsel %vm98, %v287, 0.0
    %v402 = vadd.f32 %v400, %v401
    %v403 = vsel %vm98, %v288, 0.0
    %v404 = vadd.f32 %v402, %v403
    %v405 = vsel %vm98, %v289, 0.0
    %v406 = vadd.f32 %v404, %v405
    %v407 = vsel %vm98, %v290, 0.0
    %v408 = vadd.f32 %v406, %v407
    %v409 = vsel %vm98, %v291, 0.0
    %v410 = vadd.f32 %v408, %v409
    %v411 = vsel %vm98, %v292, 0.0
    %v412 = vadd.f32 %v410, %v411
    %v413 = vsel %vm98, %v293, 0.0
    %v414 = vadd.f32 %v412, %v413
    %v415 = vsel %vm98, %v294, 0.0
    %v416 = vadd.f32 %v414, %v415
    %v417 = vsel %vm98, %v295, 0.0
    %v418 = vadd.f32 %v416, %v417
    %v419 = vsel %vm98, %v296, 0.0
    %v420 = vadd.f32 %v418, %v419
    %v421 = vsel %vm98, %v297, 0.0
    %v422 = vadd.f32 %v420, %v421
    %v423 = vsel %vm98, %v298, 0.0
    %v424 = vadd.f32 %v422, %v423
    %v425 = vsel %vm98, %v299, 0.0
    %v426 = vadd.f32 %v424, %v425
    %v427 = vrot.slane %v426, 4
    %v428 = vadd.f32 %v426, %v427
    %v429 = vrot.slane %v428, 2
    %v430 = vadd.f32 %v428, %v429
    %v431 = vrot.slane %v430, 1
    %v432 = vadd.f32 %v430, %v431
    %v433 = vadd.f32 %v235, %v432
    %434 = vst.msk [vmem:[%s2] sm:$0x1] %vm233, %v433
    // Predicated region
    $region14: #{mbconv_forward.10} parent=1 // pred_check
      _
    $region15: #{mbconv_forward.10} parent=1 // pred_check_branch
      %436 = sbr.rel (0) target = $region17
    $region16: #{mbconv_forward.10} parent=1 // pred_region
      _
    $region17: #{mbconv_forward.10} parent=1 // pred_fallthru
      _
    // Predicated region
    $region18: #{mbconv_forward.10} parent=1 // pred_check
      _
    $region19: #{mbconv_forward.10} parent=1 // pred_check_branch
      %438 = sbr.rel (0) target = $region21
    $region20: #{mbconv_forward.10} parent=1 // pred_region
      _
    $region21: #{mbconv_forward.10} parent=1 // pred_fallthru
      _
    // Predicated region
    $region22: #{mbconv_forward.10} parent=1 // pred_check
      _
    $region23: #{mbconv_forward.10} parent=1 // pred_check_branch
      %440 = sbr.rel (0) target = $region25
    $region24: #{mbconv_forward.10} parent=1 // pred_region
      _
    $region25: #{mbconv_forward.10} parent=1 // pred_fallthru
      _
    // Predicated region
    $region26: #{mbconv_forward.10} parent=1 // pred_check
      _
    $region27: #{mbconv_forward.10} parent=1 // pred_check_branch
      %442 = sbr.rel (0) target = $region29
    $region28: #{mbconv_forward.10} parent=1 // pred_region
      _
    $region29: #{mbconv_forward.10} parent=1 // pred_fallthru
      _
    %443 = vsyncpa [#allocation3], 1

// kernel: mbconv_forward.11
$region0: #{mbconv_forward.11}
  #allocation0 [shape = 'u32[]', space=smem, size = 0x4, offset = 0x4, fixed_abs, tag = 'smem constant byte address 0x4 - core index']
  #allocation1 [shape = 'u32[72,128]{1,0:T(1,128)}', space=vmem, size = 0x9000, scoped, tag = 'internal scratch']
  %s0 = inlined_call_operand.hbm [shape: f32[512,32], index: 0, kind: input, shape index: {}]
  %s1 = inlined_call_operand.vmem [shape: bf16[32,128], index: 1, kind: input, shape index: {}]
  %s2 = inlined_call_operand.vmem [shape: f32[1,128], index: 2, kind: input, shape index: {}]
  %s3 = inlined_call_operand.vmem [shape: f32[512,128], index: 3, kind: output, shape index: {}]
  %s4 = sld [smem:[#allocation0]]
  $region26: #{mbconv_forward.11} parent=0
    _
  %s6 = ssub.s32 1, %s4
  %s7 = scalar_select 0, %s6, %s4
  $region1: #{mbconv_forward.11} parent=0
    #allocation2 [shape = 'u8[262144]{0}', space=vmem, size = 0x40000, scoped, tag = 'input window, operand 0, single buffered']
    #allocation3 [shape = 's32[1]{0}', space=sflag, size = 0x4, scoped, tag = 'scoped memory for mbconv_forward.11']
    %8 = vsyncpa [#allocation3], 0
    // Predicated region
    $region2: #{mbconv_forward.11} parent=1 // pred_check
      _
    $region3: #{mbconv_forward.11} parent=1 // pred_check_branch
      %10 = sbr.rel (0) target = $region5
    $region4: #{mbconv_forward.11} parent=1 // pred_region
      %12 = vsyncadd [#allocation3], 0
      %s13 = sshll.u32 %s0, 4
      %s14 = int_to_ptr.hbm [resolvable:$true] %s13
      %s15 = sshll.u32 [#allocation2], 4
      %s16 = int_to_ptr.vmem [resolvable:$true] %s15
      %21 = dma.hbm_to_vmem [thread:$0]  %s14, 8192, %s16, [#allocation3], 128, 128, 8
    $region5: #{mbconv_forward.11} parent=1 // pred_fallthru
      _
    // Predicated region
    $region6: #{mbconv_forward.11} parent=1 // pred_check
      _
    $region7: #{mbconv_forward.11} parent=1 // pred_check_branch
      %23 = sbr.rel (0) target = $region9
    $region8: #{mbconv_forward.11} parent=1 // pred_region
      _
    $region9: #{mbconv_forward.11} parent=1 // pred_fallthru
      _
    // Predicated region
    $region10: #{mbconv_forward.11} parent=1 // pred_check
      _
    $region11: #{mbconv_forward.11} parent=1 // pred_check_branch
      %25 = sbr.rel (0) target = $region13
    $region12: #{mbconv_forward.11} parent=1 // pred_region
      _
    $region13: #{mbconv_forward.11} parent=1 // pred_fallthru
      _
    // Predicated region
    $region14: #{mbconv_forward.11} parent=1 // pred_check
      _
    $region15: #{mbconv_forward.11} parent=1 // pred_check_branch
      %27 = sbr.rel (0) target = $region17
    $region16: #{mbconv_forward.11} parent=1 // pred_region
      %29 = dma.done [#allocation3], 8192
    $region17: #{mbconv_forward.11} parent=1 // pred_fallthru
      _
    %v31 = vld [vmem:[#allocation2] sm:$0xff]
    %v32 = vld [vmem:[#allocation2 + $0x8] sm:$0xff]
    %v33 = vld [vmem:[#allocation2 + $0x10] sm:$0xff]
    %v34 = vld [vmem:[#allocation2 + $0x18] sm:$0xff]
    %v35 = vld [vmem:[#allocation2 + $0x20] sm:$0xff]
    %v36 = vld [vmem:[#allocation2 + $0x28] sm:$0xff]
    %v37 = vld [vmem:[#allocation2 + $0x30] sm:$0xff]
    %v38 = vld [vmem:[#allocation2 + $0x38] sm:$0xff]
    %v39 = vld [vmem:[#allocation2 + $0x40] sm:$0xff]
    %v40 = vld [vmem:[#allocation2 + $0x48] sm:$0xff]
    %v41 = vld [vmem:[#allocation2 + $0x50] sm:$0xff]
    %v42 = vld [vmem:[#allocation2 + $0x58] sm:$0xff]
    %v43 = vld [vmem:[#allocation2 + $0x60] sm:$0xff]
    %v44 = vld [vmem:[#allocation2 + $0x68] sm:$0xff]
    %v45 = vld [vmem:[#allocation2 + $0x70] sm:$0xff]
    %v46 = vld [vmem:[#allocation2 + $0x78] sm:$0xff]
    %v47 = vld [vmem:[#allocation2 + $0x80] sm:$0xff]
    %v48 = vld [vmem:[#allocation2 + $0x88] sm:$0xff]
    %v49 = vld [vmem:[#allocation2 + $0x90] sm:$0xff]
    %v50 = vld [vmem:[#allocation2 + $0x98] sm:$0xff]
    %v51 = vld [vmem:[#allocation2 + $0xa0] sm:$0xff]
    %v52 = vld [vmem:[#allocation2 + $0xa8] sm:$0xff]
    %v53 = vld [vmem:[#allocation2 + $0xb0] sm:$0xff]
    %v54 = vld [vmem:[#allocation2 + $0xb8] sm:$0xff]
    %v55 = vld [vmem:[#allocation2 + $0xc0] sm:$0xff]
    %v56 = vld [vmem:[#allocation2 + $0xc8] sm:$0xff]
    %v57 = vld [vmem:[#allocation2 + $0xd0] sm:$0xff]
    %v58 = vld [vmem:[#allocation2 + $0xd8] sm:$0xff]
    %v59 = vld [vmem:[#allocation2 + $0xe0] sm:$0xff]
    %v60 = vld [vmem:[#allocation2 + $0xe8] sm:$0xff]
    %v61 = vld [vmem:[#allocation2 + $0xf0] sm:$0xff]
    %v62 = vld [vmem:[#allocation2 + $0xf8] sm:$0xff]
    %v63 = vld [vmem:[#allocation2 + $0x100] sm:$0xff]
    %v64 = vld [vmem:[#allocation2 + $0x108] sm:$0xff]
    %v65 = vld [vmem:[#allocation2 + $0x110] sm:$0xff]
    %v66 = vld [vmem:[#allocation2 + $0x118] sm:$0xff]
    %v67 = vld [vmem:[#allocation2 + $0x120] sm:$0xff]
    %v68 = vld [vmem:[#allocation2 + $0x128] sm:$0xff]
    %v69 = vld [vmem:[#allocation2 + $0x130] sm:$0xff]
    %v70 = vld [vmem:[#allocation2 + $0x138] sm:$0xff]
    %v71 = vld [vmem:[#allocation2 + $0x140] sm:$0xff]
    %v72 = vld [vmem:[#allocation2 + $0x148] sm:$0xff]
    %v73 = vld [vmem:[#allocation2 + $0x150] sm:$0xff]
    %v74 = vld [vmem:[#allocation2 + $0x158] sm:$0xff]
    %v75 = vld [vmem:[#allocation2 + $0x160] sm:$0xff]
    %v76 = vld [vmem:[#allocation2 + $0x168] sm:$0xff]
    %v77 = vld [vmem:[#allocation2 + $0x170] sm:$0xff]
    %v78 = vld [vmem:[#allocation2 + $0x178] sm:$0xff]
    %v79 = vld [vmem:[#allocation2 + $0x180] sm:$0xff]
    %v80 = vld [vmem:[#allocation2 + $0x188] sm:$0xff]
    %v81 = vld [vmem:[#allocation2 + $0x190] sm:$0xff]
    %v82 = vld [vmem:[#allocation2 + $0x198] sm:$0xff]
    %v83 = vld [vmem:[#allocation2 + $0x1a0] sm:$0xff]
    %v84 = vld [vmem:[#allocation2 + $0x1a8] sm:$0xff]
    %v85 = vld [vmem:[#allocation2 + $0x1b0] sm:$0xff]
    %v86 = vld [vmem:[#allocation2 + $0x1b8] sm:$0xff]
    %v87 = vld [vmem:[#allocation2 + $0x1c0] sm:$0xff]
    %v88 = vld [vmem:[#allocation2 + $0x1c8] sm:$0xff]
    %v89 = vld [vmem:[#allocation2 + $0x1d0] sm:$0xff]
    %v90 = vld [vmem:[#allocation2 + $0x1d8] sm:$0xff]
    %v91 = vld [vmem:[#allocation2 + $0x1e0] sm:$0xff]
    %v92 = vld [vmem:[#allocation2 + $0x1e8] sm:$0xff]
    %v93 = vld [vmem:[#allocation2 + $0x1f0] sm:$0xff]
    %v94 = vld [vmem:[#allocation2 + $0x1f8] sm:$0xff]
    %v95 = vpack.c.bf16 %v32, %v31
    %v96 = vpack.c.bf16 %v34, %v33
    %v97 = vpack.c.bf16 %v36, %v35
    %v98 = vpack.c.bf16 %v38, %v37
    %v99 = vpack.c.bf16 %v40, %v39
    %v100 = vpack.c.bf16 %v42, %v41
    %v101 = vpack.c.bf16 %v44, %v43
    %v102 = vpack.c.bf16 %v46, %v45
    %v103 = vpack.c.bf16 %v48, %v47
    %v104 = vpack.c.bf16 %v50, %v49
    %v105 = vpack.c.bf16 %v52, %v51
    %v106 = vpack.c.bf16 %v54, %v53
    %v107 = vpack.c.bf16 %v56, %v55
    %v108 = vpack.c.bf16 %v58, %v57
    %v109 = vpack.c.bf16 %v60, %v59
    %v110 = vpack.c.bf16 %v62, %v61
    %v111 = vpack.c.bf16 %v64, %v63
    %v112 = vpack.c.bf16 %v66, %v65
    %v113 = vpack.c.bf16 %v68, %v67
    %v114 = vpack.c.bf16 %v70, %v69
    %v115 = vpack.c.bf16 %v72, %v71
    %v116 = vpack.c.bf16 %v74, %v73
    %v117 = vpack.c.bf16 %v76, %v75
    %v118 = vpack.c.bf16 %v78, %v77
    %v119 = vpack.c.bf16 %v80, %v79
    %v120 = vpack.c.bf16 %v82, %v81
    %v121 = vpack.c.bf16 %v84, %v83
    %v122 = vpack.c.bf16 %v86, %v85
    %v123 = vpack.c.bf16 %v88, %v87
    %v124 = vpack.c.bf16 %v90, %v89
    %v125 = vpack.c.bf16 %v92, %v91
    %v126 = vpack.c.bf16 %v94, %v93
    %v127 = vld [vmem:[%s1] sm:$0xf]
    %v128 = vld [vmem:[%s1 + $0x4] sm:$0xf]
    %v129 = vld [vmem:[%s1 + $0x8] sm:$0xf]
    %v130 = vld [vmem:[%s1 + $0xc] sm:$0xf]
    %v131 = vld [vmem:[%s2] sm:$0x1]
    %v133 = vperm.slane %v131, 0
    %v139 = vunpack.c.l.b16 %v127
    %v140 = vunpack.c.l.b16 %v128
    %v141 = vunpack.c.l.b16 %v129
    %v142 = vunpack.c.l.b16 %v130
    %v143 = vpack.c.b16 %v140, %v139
    %v144 = vpack.c.b16 %v142, %v141
    %vm147 = vcmask 261120
    %v149 = vsel %vm147, %v95, 0
    %v152 = vsel %vm147, %v96, 0
    %v155 = vsel %vm147, %v97, 0
    %v158 = vsel %vm147, %v98, 0
    %v161 = vsel %vm147, %v99, 0
    %v164 = vsel %vm147, %v100, 0
    %v167 = vsel %vm147, %v101, 0
    %v170 = vsel %vm147, %v102, 0
    %v173 = vsel %vm147, %v103, 0
    %v176 = vsel %vm147, %v104, 0
    %v179 = vsel %vm147, %v105, 0
    %v182 = vsel %vm147, %v106, 0
    %v185 = vsel %vm147, %v107, 0
    %v188 = vsel %vm147, %v108, 0
    %v191 = vsel %vm147, %v109, 0
    %v194 = vsel %vm147, %v110, 0
    %v197 = vsel %vm147, %v111, 0
    %v200 = vsel %vm147, %v112, 0
    %v203 = vsel %vm147, %v113, 0
    %v206 = vsel %vm147, %v114, 0
    %v209 = vsel %vm147, %v115, 0
    %v212 = vsel %vm147, %v116, 0
    %v215 = vsel %vm147, %v117, 0
    %v218 = vsel %vm147, %v118, 0
    %v221 = vsel %vm147, %v119, 0
    %v224 = vsel %vm147, %v120, 0
    %v227 = vsel %vm147, %v121, 0
    %v230 = vsel %vm147, %v122, 0
    %v233 = vsel %vm147, %v123, 0
    %v236 = vsel %vm147, %v124, 0
    %v239 = vsel %vm147, %v125, 0
    %v242 = vsel %vm147, %v126, 0
    %244 = vmatpush.bf16.msra.mxu0 0
    %245 = vmatpush.bf16.msra.mxu0 0
    %246 = vmatpush.bf16.msra.mxu0 0
    %247 = vmatpush.bf16.msra.mxu0 0
    %248 = vmatpush.bf16.msra.mxu0 0
    %249 = vmatpush.bf16.msra.mxu0 0
    %250 = vmatpush.bf16.msra.mxu0 %v144
    %251 = vmatpush.bf16.msra.mxu0 %v143
    %252 = vmatmul.bf16.gmra.mxu0 %v149
    %v253 = vpop.f32.mrf.mxu0
    %v254 = vadd.f32 %v133, %v253
    %v255 = vpop.f32.mrf.mxu0
    %v256 = vadd.f32 %v133, %v255
    %257 = vmatmul.bf16.gmra.mxu0 %v152
    %v258 = vpop.f32.mrf.mxu0
    %v259 = vadd.f32 %v133, %v258
    %v260 = vpop.f32.mrf.mxu0
    %v261 = vadd.f32 %v133, %v260
    %262 = vmatmul.bf16.gmra.mxu0 %v155
    %v263 = vpop.f32.mrf.mxu0
    %v264 = vadd.f32 %v133, %v263
    %v265 = vpop.f32.mrf.mxu0
    %v266 = vadd.f32 %v133, %v265
    %267 = vmatmul.bf16.gmra.mxu0 %v158
    %v268 = vpop.f32.mrf.mxu0
    %v269 = vadd.f32 %v133, %v268
    %v270 = vpop.f32.mrf.mxu0
    %v271 = vadd.f32 %v133, %v270
    %272 = vmatmul.bf16.gmra.mxu0 %v161
    %v273 = vpop.f32.mrf.mxu0
    %v274 = vadd.f32 %v133, %v273
    %v275 = vpop.f32.mrf.mxu0
    %v276 = vadd.f32 %v133, %v275
    %277 = vmatmul.bf16.gmra.mxu0 %v164
    %v278 = vpop.f32.mrf.mxu0
    %v279 = vadd.f32 %v133, %v278
    %v280 = vpop.f32.mrf.mxu0
    %v281 = vadd.f32 %v133, %v280
    %282 = vmatmul.bf16.gmra.mxu0 %v167
    %v283 = vpop.f32.mrf.mxu0
    %v284 = vadd.f32 %v133, %v283
    %v285 = vpop.f32.mrf.mxu0
    %v286 = vadd.f32 %v133, %v285
    %287 = vmatmul.bf16.gmra.mxu0 %v170
    %v288 = vpop.f32.mrf.mxu0
    %v289 = vadd.f32 %v133, %v288
    %v290 = vpop.f32.mrf.mxu0
    %v291 = vadd.f32 %v133, %v290
    %292 = vmatmul.bf16.gmra.mxu0 %v173
    %v293 = vpop.f32.mrf.mxu0
    %v294 = vadd.f32 %v133, %v293
    %v295 = vpop.f32.mrf.mxu0
    %v296 = vadd.f32 %v133, %v295
    %297 = vmatmul.bf16.gmra.mxu0 %v176
    %v298 = vpop.f32.mrf.mxu0
    %v299 = vadd.f32 %v133, %v298
    %v300 = vpop.f32.mrf.mxu0
    %v301 = vadd.f32 %v133, %v300
    %302 = vmatmul.bf16.gmra.mxu0 %v179
    %v303 = vpop.f32.mrf.mxu0
    %v304 = vadd.f32 %v133, %v303
    %v305 = vpop.f32.mrf.mxu0
    %v306 = vadd.f32 %v133, %v305
    %307 = vmatmul.bf16.gmra.mxu0 %v182
    %v308 = vpop.f32.mrf.mxu0
    %v309 = vadd.f32 %v133, %v308
    %v310 = vpop.f32.mrf.mxu0
    %v311 = vadd.f32 %v133, %v310
    %312 = vmatmul.bf16.gmra.mxu0 %v185
    %v313 = vpop.f32.mrf.mxu0
    %v314 = vadd.f32 %v133, %v313
    %v315 = vpop.f32.mrf.mxu0
    %v316 = vadd.f32 %v133, %v315
    %317 = vmatmul.bf16.gmra.mxu0 %v188
    %v318 = vpop.f32.mrf.mxu0
    %v319 = vadd.f32 %v133, %v318
    %v320 = vpop.f32.mrf.mxu0
    %v321 = vadd.f32 %v133, %v320
    %322 = vmatmul.bf16.gmra.mxu0 %v191
    %v323 = vpop.f32.mrf.mxu0
    %v324 = vadd.f32 %v133, %v323
    %v325 = vpop.f32.mrf.mxu0
    %v326 = vadd.f32 %v133, %v325
    %327 = vmatmul.bf16.gmra.mxu0 %v194
    %v328 = vpop.f32.mrf.mxu0
    %v329 = vadd.f32 %v133, %v328
    %v330 = vpop.f32.mrf.mxu0
    %v331 = vadd.f32 %v133, %v330
    %332 = vmatmul.bf16.gmra.mxu0 %v197
    %v333 = vpop.f32.mrf.mxu0
    %v334 = vadd.f32 %v133, %v333
    %v335 = vpop.f32.mrf.mxu0
    %v336 = vadd.f32 %v133, %v335
    %337 = vmatmul.bf16.gmra.mxu0 %v200
    %v338 = vpop.f32.mrf.mxu0
    %v339 = vadd.f32 %v133, %v338
    %v340 = vpop.f32.mrf.mxu0
    %v341 = vadd.f32 %v133, %v340
    %342 = vmatmul.bf16.gmra.mxu0 %v203
    %v343 = vpop.f32.mrf.mxu0
    %v344 = vadd.f32 %v133, %v343
    %v345 = vpop.f32.mrf.mxu0
    %v346 = vadd.f32 %v133, %v345
    %347 = vmatmul.bf16.gmra.mxu0 %v206
    %v348 = vpop.f32.mrf.mxu0
    %v349 = vadd.f32 %v133, %v348
    %v350 = vpop.f32.mrf.mxu0
    %v351 = vadd.f32 %v133, %v350
    %352 = vmatmul.bf16.gmra.mxu0 %v209
    %v353 = vpop.f32.mrf.mxu0
    %v354 = vadd.f32 %v133, %v353
    %v355 = vpop.f32.mrf.mxu0
    %v356 = vadd.f32 %v133, %v355
    %357 = vmatmul.bf16.gmra.mxu0 %v212
    %v358 = vpop.f32.mrf.mxu0
    %v359 = vadd.f32 %v133, %v358
    %v360 = vpop.f32.mrf.mxu0
    %v361 = vadd.f32 %v133, %v360
    %362 = vmatmul.bf16.gmra.mxu0 %v215
    %v363 = vpop.f32.mrf.mxu0
    %v364 = vadd.f32 %v133, %v363
    %v365 = vpop.f32.mrf.mxu0
    %v366 = vadd.f32 %v133, %v365
    %367 = vmatmul.bf16.gmra.mxu0 %v218
    %v368 = vpop.f32.mrf.mxu0
    %v369 = vadd.f32 %v133, %v368
    %v370 = vpop.f32.mrf.mxu0
    %v371 = vadd.f32 %v133, %v370
    %372 = vmatmul.bf16.gmra.mxu0 %v221
    %v373 = vpop.f32.mrf.mxu0
    %v374 = vadd.f32 %v133, %v373
    %v375 = vpop.f32.mrf.mxu0
    %v376 = vadd.f32 %v133, %v375
    %377 = vmatmul.bf16.gmra.mxu0 %v224
    %v378 = vpop.f32.mrf.mxu0
    %v379 = vadd.f32 %v133, %v378
    %v380 = vpop.f32.mrf.mxu0
    %v381 = vadd.f32 %v133, %v380
    %382 = vmatmul.bf16.gmra.mxu0 %v227
    %v383 = vpop.f32.mrf.mxu0
    %v384 = vadd.f32 %v133, %v383
    %v385 = vpop.f32.mrf.mxu0
    %v386 = vadd.f32 %v133, %v385
    %387 = vmatmul.bf16.gmra.mxu0 %v230
    %v388 = vpop.f32.mrf.mxu0
    %v389 = vadd.f32 %v133, %v388
    %v390 = vpop.f32.mrf.mxu0
    %v391 = vadd.f32 %v133, %v390
    %392 = vmatmul.bf16.gmra.mxu0 %v233
    %v393 = vpop.f32.mrf.mxu0
    %v394 = vadd.f32 %v133, %v393
    %v395 = vpop.f32.mrf.mxu0
    %v396 = vadd.f32 %v133, %v395
    %397 = vmatmul.bf16.gmra.mxu0 %v236
    %v398 = vpop.f32.mrf.mxu0
    %v399 = vadd.f32 %v133, %v398
    %v400 = vpop.f32.mrf.mxu0
    %v401 = vadd.f32 %v133, %v400
    %402 = vmatmul.bf16.gmra.mxu0 %v239
    %v403 = vpop.f32.mrf.mxu0
    %v404 = vadd.f32 %v133, %v403
    %v405 = vpop.f32.mrf.mxu0
    %v406 = vadd.f32 %v133, %v405
    %407 = vmatmul.bf16.gmra.mxu0 %v242
    %v408 = vpop.f32.mrf.mxu0
    %v409 = vadd.f32 %v133, %v408
    %v410 = vpop.f32.mrf.mxu0
    %v411 = vadd.f32 %v133, %v410
    %412 = vdwg.mxu0
    %413 = vst [vmem:[%s3] sm:$0xff] %v254
    %414 = vst [vmem:[%s3 + $0x8] sm:$0xff] %v256
    %415 = vst [vmem:[%s3 + $0x10] sm:$0xff] %v259
    %416 = vst [vmem:[%s3 + $0x18] sm:$0xff] %v261
    %417 = vst [vmem:[%s3 + $0x20] sm:$0xff] %v264
    %418 = vst [vmem:[%s3 + $0x28] sm:$0xff] %v266
    %419 = vst [vmem:[%s3 + $0x30] sm:$0xff] %v269
    %420 = vst [vmem:[%s3 + $0x38] sm:$0xff] %v271
    %421 = vst [vmem:[%s3 + $0x40] sm:$0xff] %v274
    %422 = vst [vmem:[%s3 + $0x48] sm:$0xff] %v276
    %423 = vst [vmem:[%s3 + $0x50] sm:$0xff] %v279
    %424 = vst [vmem:[%s3 + $0x58] sm:$0xff] %v281
    %425 = vst [vmem:[%s3 + $0x60] sm:$0xff] %v284
    %426 = vst [vmem:[%s3 + $0x68] sm:$0xff] %v286
    %427 = vst [vmem:[%s3 + $0x70] sm:$0xff] %v289
    %428 = vst [vmem:[%s3 + $0x78] sm:$0xff] %v291
    %429 = vst [vmem:[%s3 + $0x80] sm:$0xff] %v294
    %430 = vst [vmem:[%s3 + $0x88] sm:$0xff] %v296
    %431 = vst [vmem:[%s3 + $0x90] sm:$0xff] %v299
    %432 = vst [vmem:[%s3 + $0x98] sm:$0xff] %v301
    %433 = vst [vmem:[%s3 + $0xa0] sm:$0xff] %v304
    %434 = vst [vmem:[%s3 + $0xa8] sm:$0xff] %v306
    %435 = vst [vmem:[%s3 + $0xb0] sm:$0xff] %v309
    %436 = vst [vmem:[%s3 + $0xb8] sm:$0xff] %v311
    %437 = vst [vmem:[%s3 + $0xc0] sm:$0xff] %v314
    %438 = vst [vmem:[%s3 + $0xc8] sm:$0xff] %v316
    %439 = vst [vmem:[%s3 + $0xd0] sm:$0xff] %v319
    %440 = vst [vmem:[%s3 + $0xd8] sm:$0xff] %v321
    %441 = vst [vmem:[%s3 + $0xe0] sm:$0xff] %v324
    %442 = vst [vmem:[%s3 + $0xe8] sm:$0xff] %v326
    %443 = vst [vmem:[%s3 + $0xf0] sm:$0xff] %v329
    %444 = vst [vmem:[%s3 + $0xf8] sm:$0xff] %v331
    %445 = vst [vmem:[%s3 + $0x100] sm:$0xff] %v334
    %446 = vst [vmem:[%s3 + $0x108] sm:$0xff] %v336
    %447 = vst [vmem:[%s3 + $0x110] sm:$0xff] %v339
    %448 = vst [vmem:[%s3 + $0x118] sm:$0xff] %v341
    %449 = vst [vmem:[%s3 + $0x120] sm:$0xff] %v344
    %450 = vst [vmem:[%s3 + $0x128] sm:$0xff] %v346
    %451 = vst [vmem:[%s3 + $0x130] sm:$0xff] %v349
    %452 = vst [vmem:[%s3 + $0x138] sm:$0xff] %v351
    %453 = vst [vmem:[%s3 + $0x140] sm:$0xff] %v354
    %454 = vst [vmem:[%s3 + $0x148] sm:$0xff] %v356
    %455 = vst [vmem:[%s3 + $0x150] sm:$0xff] %v359
    %456 = vst [vmem:[%s3 + $0x158] sm:$0xff] %v361
    %457 = vst [vmem:[%s3 + $0x160] sm:$0xff] %v364
    %458 = vst [vmem:[%s3 + $0x168] sm:$0xff] %v366
    %459 = vst [vmem:[%s3 + $0x170] sm:$0xff] %v369
    %460 = vst [vmem:[%s3 + $0x178] sm:$0xff] %v371
    %461 = vst [vmem:[%s3 + $0x180] sm:$0xff] %v374
    %462 = vst [vmem:[%s3 + $0x188] sm:$0xff] %v376
    %463 = vst [vmem:[%s3 + $0x190] sm:$0xff] %v379
    %464 = vst [vmem:[%s3 + $0x198] sm:$0xff] %v381
    %465 = vst [vmem:[%s3 + $0x1a0] sm:$0xff] %v384
    %466 = vst [vmem:[%s3 + $0x1a8] sm:$0xff] %v386
    %467 = vst [vmem:[%s3 + $0x1b0] sm:$0xff] %v389
    %468 = vst [vmem:[%s3 + $0x1b8] sm:$0xff] %v391
    %469 = vst [vmem:[%s3 + $0x1c0] sm:$0xff] %v394
    %470 = vst [vmem:[%s3 + $0x1c8] sm:$0xff] %v396
    %471 = vst [vmem:[%s3 + $0x1d0] sm:$0xff] %v399
    %472 = vst [vmem:[%s3 + $0x1d8] sm:$0xff] %v401
    %473 = vst [vmem:[%s3 + $0x1e0] sm:$0xff] %v404
    %474 = vst [vmem:[%s3 + $0x1e8] sm:$0xff] %v406
    %475 = vst [vmem:[%s3 + $0x1f0] sm:$0xff] %v409
    %476 = vst [vmem:[%s3 + $0x1f8] sm:$0xff] %v411
    // Predicated region
    $region18: #{mbconv_forward.11} parent=1 // pred_check
      _
    $region19: #{mbconv_forward.11} parent=1 // pred_check_branch
      %478 = sbr.rel (0) target = $region21
    $region20: #{mbconv_forward.11} parent=1 // pred_region
      _
    $region21: #{mbconv_forward.11} parent=1 // pred_fallthru
      _
    // Predicated region
    $region22: #{mbconv_forward.11} parent=1 // pred_check
      _
    $region23: #{mbconv_forward.11} parent=1 // pred_check_branch
      %480 = sbr.rel (0) target = $region25
    $region24: #{mbconv_forward.11} parent=1 // pred_region
      _
    $region25: #{mbconv_forward.11} parent=1 // pred_fallthru
      _
    %481 = vsyncpa [#allocation3], 1

// kernel: mbconv_forward.12
$region0: #{mbconv_forward.12}
  #allocation0 [shape = 'u32[]', space=smem, size = 0x4, offset = 0x4, fixed_abs, tag = 'smem constant byte address 0x4 - core index']
  #allocation1 [shape = 'u32[72,128]{1,0:T(1,128)}', space=vmem, size = 0x9000, scoped, tag = 'internal scratch']
  %s0 = inlined_call_operand.vmem [shape: f32[512,128], index: 0, kind: input, shape index: {}]
  %s1 = inlined_call_operand.vmem [shape: f32[1,128], index: 1, kind: output, shape index: {0}]
  %s2 = inlined_call_operand.vmem [shape: f32[1,128], index: 2, kind: output, shape index: {1}]
  %3 = xla_tuple %s1, %s2
  %s4 = sld [smem:[#allocation0]]
  $region26: #{mbconv_forward.12} parent=0
    _
  %s6 = ssub.s32 1, %s4
  %s7 = scalar_select 0, %s6, %s4
  // Predicated region
  $region2: #{mbconv_forward.12} parent=0 // pred_check
    _
  $region3: #{mbconv_forward.12} parent=0 // pred_check_branch
    %9 = sbr.rel (0) target = $region5
  $region4: #{mbconv_forward.12} parent=0 // pred_region
    _
  $region5: #{mbconv_forward.12} parent=0 // pred_fallthru
    _
  %p10 = scmp.eq.s32.totalorder 0, 0
  // Predicated region
  $region6: #{mbconv_forward.12} parent=0 // pred_check
    %p11 = pneg %p10
  $region7: #{mbconv_forward.12} parent=0 // pred_check_branch
    %13 = sbr.rel (%p11) target = $region9
  $region8: #{mbconv_forward.12} parent=0 // pred_region
    %14 = vst [vmem:[%s1] sm:$0x1] 0.0
    %15 = vst [vmem:[%s2] sm:$0x1] 0.0
  $region9: #{mbconv_forward.12} parent=0 // pred_fallthru
    _
  %v16 = vld [vmem:[%s0] sm:$0xff]
  %v17 = vld [vmem:[%s0 + $0x8] sm:$0xff]
  %v18 = vld [vmem:[%s0 + $0x10] sm:$0xff]
  %v19 = vld [vmem:[%s0 + $0x18] sm:$0xff]
  %v20 = vld [vmem:[%s0 + $0x20] sm:$0xff]
  %v21 = vld [vmem:[%s0 + $0x28] sm:$0xff]
  %v22 = vld [vmem:[%s0 + $0x30] sm:$0xff]
  %v23 = vld [vmem:[%s0 + $0x38] sm:$0xff]
  %v24 = vld [vmem:[%s0 + $0x40] sm:$0xff]
  %v25 = vld [vmem:[%s0 + $0x48] sm:$0xff]
  %v26 = vld [vmem:[%s0 + $0x50] sm:$0xff]
  %v27 = vld [vmem:[%s0 + $0x58] sm:$0xff]
  %v28 = vld [vmem:[%s0 + $0x60] sm:$0xff]
  %v29 = vld [vmem:[%s0 + $0x68] sm:$0xff]
  %v30 = vld [vmem:[%s0 + $0x70] sm:$0xff]
  %v31 = vld [vmem:[%s0 + $0x78] sm:$0xff]
  %v32 = vld [vmem:[%s0 + $0x80] sm:$0xff]
  %v33 = vld [vmem:[%s0 + $0x88] sm:$0xff]
  %v34 = vld [vmem:[%s0 + $0x90] sm:$0xff]
  %v35 = vld [vmem:[%s0 + $0x98] sm:$0xff]
  %v36 = vld [vmem:[%s0 + $0xa0] sm:$0xff]
  %v37 = vld [vmem:[%s0 + $0xa8] sm:$0xff]
  %v38 = vld [vmem:[%s0 + $0xb0] sm:$0xff]
  %v39 = vld [vmem:[%s0 + $0xb8] sm:$0xff]
  %v40 = vld [vmem:[%s0 + $0xc0] sm:$0xff]
  %v41 = vld [vmem:[%s0 + $0xc8] sm:$0xff]
  %v42 = vld [vmem:[%s0 + $0xd0] sm:$0xff]
  %v43 = vld [vmem:[%s0 + $0xd8] sm:$0xff]
  %v44 = vld [vmem:[%s0 + $0xe0] sm:$0xff]
  %v45 = vld [vmem:[%s0 + $0xe8] sm:$0xff]
  %v46 = vld [vmem:[%s0 + $0xf0] sm:$0xff]
  %v47 = vld [vmem:[%s0 + $0xf8] sm:$0xff]
  %v48 = vld [vmem:[%s0 + $0x100] sm:$0xff]
  %v49 = vld [vmem:[%s0 + $0x108] sm:$0xff]
  %v50 = vld [vmem:[%s0 + $0x110] sm:$0xff]
  %v51 = vld [vmem:[%s0 + $0x118] sm:$0xff]
  %v52 = vld [vmem:[%s0 + $0x120] sm:$0xff]
  %v53 = vld [vmem:[%s0 + $0x128] sm:$0xff]
  %v54 = vld [vmem:[%s0 + $0x130] sm:$0xff]
  %v55 = vld [vmem:[%s0 + $0x138] sm:$0xff]
  %v56 = vld [vmem:[%s0 + $0x140] sm:$0xff]
  %v57 = vld [vmem:[%s0 + $0x148] sm:$0xff]
  %v58 = vld [vmem:[%s0 + $0x150] sm:$0xff]
  %v59 = vld [vmem:[%s0 + $0x158] sm:$0xff]
  %v60 = vld [vmem:[%s0 + $0x160] sm:$0xff]
  %v61 = vld [vmem:[%s0 + $0x168] sm:$0xff]
  %v62 = vld [vmem:[%s0 + $0x170] sm:$0xff]
  %v63 = vld [vmem:[%s0 + $0x178] sm:$0xff]
  %v64 = vld [vmem:[%s0 + $0x180] sm:$0xff]
  %v65 = vld [vmem:[%s0 + $0x188] sm:$0xff]
  %v66 = vld [vmem:[%s0 + $0x190] sm:$0xff]
  %v67 = vld [vmem:[%s0 + $0x198] sm:$0xff]
  %v68 = vld [vmem:[%s0 + $0x1a0] sm:$0xff]
  %v69 = vld [vmem:[%s0 + $0x1a8] sm:$0xff]
  %v70 = vld [vmem:[%s0 + $0x1b0] sm:$0xff]
  %v71 = vld [vmem:[%s0 + $0x1b8] sm:$0xff]
  %v72 = vld [vmem:[%s0 + $0x1c0] sm:$0xff]
  %v73 = vld [vmem:[%s0 + $0x1c8] sm:$0xff]
  %v74 = vld [vmem:[%s0 + $0x1d0] sm:$0xff]
  %v75 = vld [vmem:[%s0 + $0x1d8] sm:$0xff]
  %v76 = vld [vmem:[%s0 + $0x1e0] sm:$0xff]
  %v77 = vld [vmem:[%s0 + $0x1e8] sm:$0xff]
  %v78 = vld [vmem:[%s0 + $0x1f0] sm:$0xff]
  %v79 = vld [vmem:[%s0 + $0x1f8] sm:$0xff]
  %v80 = vld [vmem:[%s1] sm:$0x1]
  %v81 = vadd.f32 %v16, %v17
  %v82 = vadd.f32 %v81, %v18
  %v83 = vadd.f32 %v82, %v19
  %v84 = vadd.f32 %v83, %v20
  %v85 = vadd.f32 %v84, %v21
  %v86 = vadd.f32 %v85, %v22
  %v87 = vadd.f32 %v86, %v23
  %v88 = vadd.f32 %v87, %v24
  %v89 = vadd.f32 %v88, %v25
  %v90 = vadd.f32 %v89, %v26
  %v91 = vadd.f32 %v90, %v27
  %v92 = vadd.f32 %v91, %v28
  %v93 = vadd.f32 %v92, %v29
  %v94 = vadd.f32 %v93, %v30
  %v95 = vadd.f32 %v94, %v31
  %v96 = vadd.f32 %v95, %v32
  %v97 = vadd.f32 %v96, %v33
  %v98 = vadd.f32 %v97, %v34
  %v99 = vadd.f32 %v98, %v35
  %v100 = vadd.f32 %v99, %v36
  %v101 = vadd.f32 %v100, %v37
  %v102 = vadd.f32 %v101, %v38
  %v103 = vadd.f32 %v102, %v39
  %v104 = vadd.f32 %v103, %v40
  %v105 = vadd.f32 %v104, %v41
  %v106 = vadd.f32 %v105, %v42
  %v107 = vadd.f32 %v106, %v43
  %v108 = vadd.f32 %v107, %v44
  %v109 = vadd.f32 %v108, %v45
  %v110 = vadd.f32 %v109, %v46
  %v111 = vadd.f32 %v110, %v47
  %v112 = vadd.f32 %v111, %v48
  %v113 = vadd.f32 %v112, %v49
  %v114 = vadd.f32 %v113, %v50
  %v115 = vadd.f32 %v114, %v51
  %v116 = vadd.f32 %v115, %v52
  %v117 = vadd.f32 %v116, %v53
  %v118 = vadd.f32 %v117, %v54
  %v119 = vadd.f32 %v118, %v55
  %v120 = vadd.f32 %v119, %v56
  %v121 = vadd.f32 %v120, %v57
  %v122 = vadd.f32 %v121, %v58
  %v123 = vadd.f32 %v122, %v59
  %v124 = vadd.f32 %v123, %v60
  %v125 = vadd.f32 %v124, %v61
  %v126 = vadd.f32 %v125, %v62
  %v127 = vadd.f32 %v126, %v63
  %v128 = vadd.f32 %v127, %v64
  %v129 = vadd.f32 %v128, %v65
  %v130 = vadd.f32 %v129, %v66
  %v131 = vadd.f32 %v130, %v67
  %v132 = vadd.f32 %v131, %v68
  %v133 = vadd.f32 %v132, %v69
  %v134 = vadd.f32 %v133, %v70
  %v135 = vadd.f32 %v134, %v71
  %v136 = vadd.f32 %v135, %v72
  %v137 = vadd.f32 %v136, %v73
  %v138 = vadd.f32 %v137, %v74
  %v139 = vadd.f32 %v138, %v75
  %v140 = vadd.f32 %v139, %v76
  %v141 = vadd.f32 %v140, %v77
  %v142 = vadd.f32 %v141, %v78
  %v143 = vadd.f32 %v142, %v79
  %v144 = vrot.slane %v143, 4
  %v145 = vadd.f32 %v143, %v144
  %v146 = vrot.slane %v145, 2
  %v147 = vadd.f32 %v145, %v146
  %v148 = vrot.slane %v147, 1
  %v149 = vadd.f32 %v147, %v148
  %v150 = vadd.f32 %v80, %v149
  %151 = vst [vmem:[%s1] sm:$0x1] %v150
  %v152 = vld [vmem:[%s2] sm:$0x1]
  %v153 = vmul.f32 %v16, %v16
  %v154 = vmul.f32 %v17, %v17
  %v155 = vmul.f32 %v18, %v18
  %v156 = vmul.f32 %v19, %v19
  %v157 = vmul.f32 %v20, %v20
  %v158 = vmul.f32 %v21, %v21
  %v159 = vmul.f32 %v22, %v22
  %v160 = vmul.f32 %v23, %v23
  %v161 = vmul.f32 %v24, %v24
  %v162 = vmul.f32 %v25, %v25
  %v163 = vmul.f32 %v26, %v26
  %v164 = vmul.f32 %v27, %v27
  %v165 = vmul.f32 %v28, %v28
  %v166 = vmul.f32 %v29, %v29
  %v167 = vmul.f32 %v30, %v30
  %v168 = vmul.f32 %v31, %v31
  %v169 = vmul.f32 %v32, %v32
  %v170 = vmul.f32 %v33, %v33
  %v171 = vmul.f32 %v34, %v34
  %v172 = vmul.f32 %v35, %v35
  %v173 = vmul.f32 %v36, %v36
  %v174 = vmul.f32 %v37, %v37
  %v175 = vmul.f32 %v38, %v38
  %v176 = vmul.f32 %v39, %v39
  %v177 = vmul.f32 %v40, %v40
  %v178 = vmul.f32 %v41, %v41
  %v179 = vmul.f32 %v42, %v42
  %v180 = vmul.f32 %v43, %v43
  %v181 = vmul.f32 %v44, %v44
  %v182 = vmul.f32 %v45, %v45
  %v183 = vmul.f32 %v46, %v46
  %v184 = vmul.f32 %v47, %v47
  %v185 = vmul.f32 %v48, %v48
  %v186 = vmul.f32 %v49, %v49
  %v187 = vmul.f32 %v50, %v50
  %v188 = vmul.f32 %v51, %v51
  %v189 = vmul.f32 %v52, %v52
  %v190 = vmul.f32 %v53, %v53
  %v191 = vmul.f32 %v54, %v54
  %v192 = vmul.f32 %v55, %v55
  %v193 = vmul.f32 %v56, %v56
  %v194 = vmul.f32 %v57, %v57
  %v195 = vmul.f32 %v58, %v58
  %v196 = vmul.f32 %v59, %v59
  %v197 = vmul.f32 %v60, %v60
  %v198 = vmul.f32 %v61, %v61
  %v199 = vmul.f32 %v62, %v62
  %v200 = vmul.f32 %v63, %v63
  %v201 = vmul.f32 %v64, %v64
  %v202 = vmul.f32 %v65, %v65
  %v203 = vmul.f32 %v66, %v66
  %v204 = vmul.f32 %v67, %v67
  %v205 = vmul.f32 %v68, %v68
  %v206 = vmul.f32 %v69, %v69
  %v207 = vmul.f32 %v70, %v70
  %v208 = vmul.f32 %v71, %v71
  %v209 = vmul.f32 %v72, %v72
  %v210 = vmul.f32 %v73, %v73
  %v211 = vmul.f32 %v74, %v74
  %v212 = vmul.f32 %v75, %v75
  %v213 = vmul.f32 %v76, %v76
  %v214 = vmul.f32 %v77, %v77
  %v215 = vmul.f32 %v78, %v78
  %v216 = vmul.f32 %v79, %v79
  %v217 = vadd.f32 %v153, %v154
  %v218 = vadd.f32 %v217, %v155
  %v219 = vadd.f32 %v218, %v156
  %v220 = vadd.f32 %v219, %v157
  %v221 = vadd.f32 %v220, %v158
  %v222 = vadd.f32 %v221, %v159
  %v223 = vadd.f32 %v222, %v160
  %v224 = vadd.f32 %v223, %v161
  %v225 = vadd.f32 %v224, %v162
  %v226 = vadd.f32 %v225, %v163
  %v227 = vadd.f32 %v226, %v164
  %v228 = vadd.f32 %v227, %v165
  %v229 = vadd.f32 %v228, %v166
  %v230 = vadd.f32 %v229, %v167
  %v231 = vadd.f32 %v230, %v168
  %v232 = vadd.f32 %v231, %v169
  %v233 = vadd.f32 %v232, %v170
  %v234 = vadd.f32 %v233, %v171
  %v235 = vadd.f32 %v234, %v172
  %v236 = vadd.f32 %v235, %v173
  %v237 = vadd.f32 %v236, %v174
  %v238 = vadd.f32 %v237, %v175
  %v239 = vadd.f32 %v238, %v176
  %v240 = vadd.f32 %v239, %v177
  %v241 = vadd.f32 %v240, %v178
  %v242 = vadd.f32 %v241, %v179
  %v243 = vadd.f32 %v242, %v180
  %v244 = vadd.f32 %v243, %v181
  %v245 = vadd.f32 %v244, %v182
  %v246 = vadd.f32 %v245, %v183
  %v247 = vadd.f32 %v246, %v184
  %v248 = vadd.f32 %v247, %v185
  %v249 = vadd.f32 %v248, %v186
  %v250 = vadd.f32 %v249, %v187
  %v251 = vadd.f32 %v250, %v188
  %v252 = vadd.f32 %v251, %v189
  %v253 = vadd.f32 %v252, %v190
  %v254 = vadd.f32 %v253, %v191
  %v255 = vadd.f32 %v254, %v192
  %v256 = vadd.f32 %v255, %v193
  %v257 = vadd.f32 %v256, %v194
  %v258 = vadd.f32 %v257, %v195
  %v259 = vadd.f32 %v258, %v196
  %v260 = vadd.f32 %v259, %v197
  %v261 = vadd.f32 %v260, %v198
  %v262 = vadd.f32 %v261, %v199
  %v263 = vadd.f32 %v262, %v200
  %v264 = vadd.f32 %v263, %v201
  %v265 = vadd.f32 %v264, %v202
  %v266 = vadd.f32 %v265, %v203
  %v267 = vadd.f32 %v266, %v204
  %v268 = vadd.f32 %v267, %v205
  %v269 = vadd.f32 %v268, %v206
  %v270 = vadd.f32 %v269, %v207
  %v271 = vadd.f32 %v270, %v208
  %v272 = vadd.f32 %v271, %v209
  %v273 = vadd.f32 %v272, %v210
  %v274 = vadd.f32 %v273, %v211
  %v275 = vadd.f32 %v274, %v212
  %v276 = vadd.f32 %v275, %v213
  %v277 = vadd.f32 %v276, %v214
  %v278 = vadd.f32 %v277, %v215
  %v279 = vadd.f32 %v278, %v216
  %v280 = vrot.slane %v279, 4
  %v281 = vadd.f32 %v279, %v280
  %v282 = vrot.slane %v281, 2
  %v283 = vadd.f32 %v281, %v282
  %v284 = vrot.slane %v283, 1
  %v285 = vadd.f32 %v283, %v284
  %v286 = vadd.f32 %v152, %v285
  %287 = vst [vmem:[%s2] sm:$0x1] %v286
  // Predicated region
  $region10: #{mbconv_forward.12} parent=0 // pred_check
    _
  $region11: #{mbconv_forward.12} parent=0 // pred_check_branch
    %289 = sbr.rel (0) target = $region13
  $region12: #{mbconv_forward.12} parent=0 // pred_region
    _
  $region13: #{mbconv_forward.12} parent=0 // pred_fallthru
    _
  // Predicated region
  $region14: #{mbconv_forward.12} parent=0 // pred_check
    _
  $region15: #{mbconv_forward.12} parent=0 // pred_check_branch
    %291 = sbr.rel (0) target = $region17
  $region16: #{mbconv_forward.12} parent=0 // pred_region
    _
  $region17: #{mbconv_forward.12} parent=0 // pred_fallthru
    _
  // Predicated region
  $region18: #{mbconv_forward.12} parent=0 // pred_check
    _
  $region19: #{mbconv_forward.12} parent=0 // pred_check_branch
    %293 = sbr.rel (0) target = $region21
  $region20: #{mbconv_forward.12} parent=0 // pred_region
    _
  $region21: #{mbconv_forward.12} parent=0 // pred_fallthru
    _
  // Predicated region
  $region22: #{mbconv_forward.12} parent=0 // pred_check
    _
  $region23: #{mbconv_forward.12} parent=0 // pred_check_branch
    %295 = sbr.rel (0) target = $region25
  $region24: #{mbconv_forward.12} parent=0 // pred_region
    _
  $region25: #{mbconv_forward.12} parent=0 // pred_fallthru
    _

// kernel: mbconv_forward.16
$region0: #{mbconv_forward.16}
  #allocation0 [shape = 'u32[]', space=smem, size = 0x4, offset = 0x4, fixed_abs, tag = 'smem constant byte address 0x4 - core index']
  #allocation1 [shape = 'u32[72,128]{1,0:T(1,128)}', space=vmem, size = 0x9000, scoped, tag = 'internal scratch']
  %s0 = inlined_call_operand.vmem [shape: f32[2,128], index: 0, kind: input, shape index: {}]
  %s1 = inlined_call_operand.vmem [shape: f32[128,8], index: 1, kind: input, shape index: {}]
  %s2 = inlined_call_operand.hbm [shape: f32[8,128], index: 2, kind: input, shape index: {}]
  %s3 = inlined_call_operand.vmem [shape: f32[2,128], index: 3, kind: output, shape index: {}]
  %s4 = sld [smem:[#allocation0]]
  $region26: #{mbconv_forward.16} parent=0
    _
  %s6 = ssub.s32 1, %s4
  %s7 = scalar_select 0, %s6, %s4
  $region1: #{mbconv_forward.16} parent=0
    #allocation2 [shape = 'u8[4096]{0}', space=vmem, size = 0x1000, scoped, tag = 'input window, operand 2, single buffered']
    #allocation3 [shape = 's32[1]{0}', space=sflag, size = 0x4, scoped, tag = 'scoped memory for mbconv_forward.16']
    %8 = vsyncpa [#allocation3], 0
    // Predicated region
    $region2: #{mbconv_forward.16} parent=1 // pred_check
      _
    $region3: #{mbconv_forward.16} parent=1 // pred_check_branch
      %10 = sbr.rel (0) target = $region5
    $region4: #{mbconv_forward.16} parent=1 // pred_region
      _
    $region5: #{mbconv_forward.16} parent=1 // pred_fallthru
      _
    // Predicated region
    $region6: #{mbconv_forward.16} parent=1 // pred_check
      _
    $region7: #{mbconv_forward.16} parent=1 // pred_check_branch
      %12 = sbr.rel (0) target = $region9
    $region8: #{mbconv_forward.16} parent=1 // pred_region
      _
    $region9: #{mbconv_forward.16} parent=1 // pred_fallthru
      _
    // Predicated region
    $region10: #{mbconv_forward.16} parent=1 // pred_check
      _
    $region11: #{mbconv_forward.16} parent=1 // pred_check_branch
      %14 = sbr.rel (0) target = $region13
    $region12: #{mbconv_forward.16} parent=1 // pred_region
      %16 = vsyncadd [#allocation3], 0
      %s18 = sshll.u32 %s2, 4
      %s19 = int_to_ptr.hbm [resolvable:$true] %s18
      %s20 = sshll.u32 [#allocation2], 4
      %s21 = int_to_ptr.vmem [resolvable:$true] %s20
      %23 = dma.hbm_to_vmem [thread:$0]  %s19, 128, %s21, [#allocation3]
    $region13: #{mbconv_forward.16} parent=1 // pred_fallthru
      _
    // Predicated region
    $region14: #{mbconv_forward.16} parent=1 // pred_check
      _
    $region15: #{mbconv_forward.16} parent=1 // pred_check_branch
      %25 = sbr.rel (0) target = $region17
    $region16: #{mbconv_forward.16} parent=1 // pred_region
      %27 = dma.done [#allocation3], 128
    $region17: #{mbconv_forward.16} parent=1 // pred_fallthru
      _
    %v28 = vld [vmem:[%s0] sm:$0x3]
    %v29 = vld [vmem:[%s1] sm:$0xff]
    %v30 = vld [vmem:[%s1 + $0x8] sm:$0xff]
    %v31 = vld [vmem:[%s1 + $0x10] sm:$0xff]
    %v32 = vld [vmem:[%s1 + $0x18] sm:$0xff]
    %v33 = vld [vmem:[%s1 + $0x20] sm:$0xff]
    %v34 = vld [vmem:[%s1 + $0x28] sm:$0xff]
    %v35 = vld [vmem:[%s1 + $0x30] sm:$0xff]
    %v36 = vld [vmem:[%s1 + $0x38] sm:$0xff]
    %v37 = vld [vmem:[%s1 + $0x40] sm:$0xff]
    %v38 = vld [vmem:[%s1 + $0x48] sm:$0xff]
    %v39 = vld [vmem:[%s1 + $0x50] sm:$0xff]
    %v40 = vld [vmem:[%s1 + $0x58] sm:$0xff]
    %v41 = vld [vmem:[%s1 + $0x60] sm:$0xff]
    %v42 = vld [vmem:[%s1 + $0x68] sm:$0xff]
    %v43 = vld [vmem:[%s1 + $0x70] sm:$0xff]
    %v44 = vld [vmem:[%s1 + $0x78] sm:$0xff]
    %45 = vmatpush.msra.mxu0 %v44
    %46 = vmatpush.msra.mxu0 %v43
    %47 = vmatpush.msra.mxu0 %v42
    %48 = vmatpush.msra.mxu0 %v41
    %49 = vmatpush.msra.mxu0 %v40
    %50 = vmatpush.msra.mxu0 %v39
    %51 = vmatpush.msra.mxu0 %v38
    %52 = vmatpush.msra.mxu0 %v37
    %53 = vmatpush.msra.mxu0 %v36
    %54 = vmatpush.msra.mxu0 %v35
    %55 = vmatpush.msra.mxu0 %v34
    %56 = vmatpush.msra.mxu0 %v33
    %57 = vmatpush.msra.mxu0 %v32
    %58 = vmatpush.msra.mxu0 %v31
    %59 = vmatpush.msra.mxu0 %v30
    %60 = vmatpush.msra.mxu0 %v29
    %61 = vmatmul.f32.gmra.mxu0 %v28
    %v62 = vpop.f32.mrf.mxu0
    %v63 = vadd.f32 0.0, %v62
    %64 = vdwg.mxu0
    %v65 = vmul.f32 %v63, 0.5
    %v66 = vrcp.pop 1.4142135
    %v67 = vmul.f32 1.4142135, %v66
    %v68 = vsub.f32 1.0, %v67
    %v69 = vmul.f32 %v66, %v68
    %v70 = vadd.f32 %v66, %v69
    %vm71 = vweird.f32 %v66
    %v72 = vsel %vm71, %v66, %v70
    %v73 = vmul.f32 %v63, %v72
    %v74 = vmul.f32 %v73, %v73
    %v75 = vmin.f32 16.0, %v74
    %v76 = vmul.f32 %v75, 2.1237322e-06
    %v77 = vadd.f32 %v76, 0.00028619796
    %v78 = vmul.f32 %v75, %v77
    %v79 = vadd.f32 %v78, 0.0036580483
    %v80 = vmul.f32 %v75, %v79
    %v81 = vadd.f32 %v80, 0.05243302
    %v82 = vmul.f32 %v75, %v81
    %v83 = vadd.f32 %v82, 0.18741608
    %v84 = vmul.f32 %v75, %v83
    %v85 = vadd.f32 %v84, 1.1283791
    %v86 = vmul.f32 %v73, %v85
    %v87 = vmul.f32 %v75, 3.8918573e-05
    %v88 = vadd.f32 %v87, 0.001143296
    %v89 = vmul.f32 %v75, %v88
    %v90 = vadd.f32 %v89, 0.014752088
    %v91 = vmul.f32 %v75, %v90
    %v92 = vadd.f32 %v91, 0.112945676
    %v93 = vmul.f32 %v75, %v92
    %v94 = vadd.f32 %v93, 0.4994258
    %v95 = vmul.f32 %v75, %v94
    %v96 = vadd.f32 %v95, 1.0
    %v97 = vrcp.pop %v96
    %v98 = vmul.f32 %v96, %v97
    %v99 = vsub.f32 1.0, %v98
    %v100 = vmul.f32 %v97, %v99
    %v101 = vadd.f32 %v97, %v100
    %vm102 = vweird.f32 %v96
    %vm103 = vweird.f32 %v97
    %vm104 = vmor %vm102, %vm103
    %v105 = vsel %vm104, %v97, %v101
    %v106 = vand.u32 2147483647, %v96
    %vm107 = vcmp.eq.f32.partialorder %v106, 8.507059e+37
    %v108 = vand.u32 %v96, 2147483648
    %v109 = vor.u32 1.1754944e-38, %v108
    %v110 = vsel %vm107, %v109, %v105
    %v111 = vmul.f32 %v86, %v110
    %v112 = vmin.f32 %v111, 1.0
    %v113 = vmax.f32 %v112, -1.0
    %v114 = vadd.f32 %v113, 1.0
    %v115 = vmul.f32 %v65, %v114
    %v116 = vld [vmem:[#allocation2] sm:$0xff]
    %vm117 = vcmask 64512
    %v119 = vsel %vm117, %v115, 0
    %121 = vmatpush.msra.mxu0 0.0
    %122 = vmatpush.msra.mxu0 0.0
    %123 = vmatpush.msra.mxu0 0.0
    %124 = vmatpush.msra.mxu0 0.0
    %125 = vmatpush.msra.mxu0 0.0
    %126 = vmatpush.msra.mxu0 0.0
    %127 = vmatpush.msra.mxu0 0.0
    %128 = vmatpush.msra.mxu0 0.0
    %129 = vmatpush.msra.mxu0 0.0
    %130 = vmatpush.msra.mxu0 0.0
    %131 = vmatpush.msra.mxu0 0.0
    %132 = vmatpush.msra.mxu0 0.0
    %133 = vmatpush.msra.mxu0 0.0
    %134 = vmatpush.msra.mxu0 0.0
    %135 = vmatpush.msra.mxu0 0.0
    %136 = vmatpush.msra.mxu0 %v116
    %137 = vmatmul.f32.gmra.mxu0 %v119
    %v138 = vpop.f32.mrf.mxu0
    %v139 = vadd.f32 0.0, %v138
    %140 = vdwg.mxu0
    %v141 = vsub.f32 0.0, %v139
    %v142 = vmul.f32 %v141, 1.442695
    %v143 = vpow.pop %v142
    %v144 = vadd.f32 %v143, 1.0
    %v145 = vrcp.pop %v144
    %v146 = vmul.f32 %v144, %v145
    %v147 = vsub.f32 1.0, %v146
    %v148 = vmul.f32 %v145, %v147
    %v149 = vadd.f32 %v145, %v148
    %vm150 = vweird.f32 %v144
    %vm151 = vweird.f32 %v145
    %vm152 = vmor %vm150, %vm151
    %v153 = vsel %vm152, %v145, %v149
    %v154 = vand.u32 2147483647, %v144
    %vm155 = vcmp.eq.f32.partialorder %v154, 8.507059e+37
    %v156 = vand.u32 %v144, 2147483648
    %v157 = vor.u32 1.1754944e-38, %v156
    %v158 = vsel %vm155, %v157, %v153
    %v159 = vmul.f32 1.0, %v158
    %160 = vst [vmem:[%s3] sm:$0x3] %v159
    // Predicated region
    $region18: #{mbconv_forward.16} parent=1 // pred_check
      _
    $region19: #{mbconv_forward.16} parent=1 // pred_check_branch
      %162 = sbr.rel (0) target = $region21
    $region20: #{mbconv_forward.16} parent=1 // pred_region
      _
    $region21: #{mbconv_forward.16} parent=1 // pred_fallthru
      _
    // Predicated region
    $region22: #{mbconv_forward.16} parent=1 // pred_check
      _
    $region23: #{mbconv_forward.16} parent=1 // pred_check_branch
      %164 = sbr.rel (0) target = $region25
    $region24: #{mbconv_forward.16} parent=1 // pred_region
      _
    $region25: #{mbconv_forward.16} parent=1 // pred_fallthru
      _
    %165 = vsyncpa [#allocation3], 1

// kernel: mbconv_forward.15
$region0: #{mbconv_forward.15}
  #allocation0 [shape = 'u32[]', space=smem, size = 0x4, offset = 0x4, fixed_abs, tag = 'smem constant byte address 0x4 - core index']
  #allocation1 [shape = 'u32[72,128]{1,0:T(1,128)}', space=vmem, size = 0x9000, scoped, tag = 'internal scratch']
  %s0 = inlined_call_operand.vmem [shape: f32[2,256,128], index: 0, kind: input, shape index: {}]
  %s1 = inlined_call_operand.vmem [shape: f32[1,128], index: 1, kind: input, shape index: {}]
  %s2 = inlined_call_operand.vmem [shape: f32[1,128], index: 2, kind: input, shape index: {}]
  %s3 = inlined_call_operand.vmem [shape: f32[2,1,128], index: 3, kind: output, shape index: {}]
  %s4 = sld [smem:[#allocation0]]
  $region49: #{mbconv_forward.15} parent=0
    _
  %s6 = ssub.s32 1, %s4
  %s7 = scalar_select 0, %s6, %s4
  loop: start=0, step=1, limit=4
  $region2: #{mbconv_forward.15} parent=0 // loop_pre_header
    _
  $region3: #{mbconv_forward.15} parent=0 // loop_header
    %s9 = sphi 0, %s13
    %p10 = scmp.ge.s32.totalorder %s9, 4
    %s16 = sphi 0, %s28
    %s17 = sphi 0, %s24
    %s18 = sphi 0, %s16
    %s19 = sphi 0, %s17
    %s20 = sphi 0, %s18
    %s21 = sphi 0, %s19
    %s33 = sphi 0, %s35
    %s36 = sphi 0, %s33
    %s37 = sphi 0, %s36
    %s53 = sphi 0, %s37
    %s57 = sphi 0, %s57
    %s59 = sphi 0, %s57
    %s60 = sphi 0, %s59
    %s74 = sphi 0, %s60
    %s78 = sphi 0, %s78
    %s80 = sphi 0, %s78
    %s81 = sphi 0, %s80
    %s95 = sphi 0, %s81
    %s101 = sphi 0, %s103
    %s104 = sphi 0, %s101
    %s105 = sphi 0, %s104
    %s121 = sphi 0, %s105
  $region4: #{mbconv_forward.15} parent=0 // loop_header_branch
    %12 = sbr.rel (%p10) target = $region8
  $region5: #{mbconv_forward.15} parent=0 // loop_body
    %s14 = ssub.s32 %s9, 1
    %s15 = ssub.s32 %s9, 2
    %s22 = sadd.s32 1, %s17
    %p23 = scmp.ge.s32.totalorder %s22, 1
    %s24 = scalar_select %p23, 0, %s22
    %s25 = sadd.s32 1, %s16
    %s26 = scalar_select %p23, %s25, %s16
    %p27 = scmp.ge.s32.totalorder %s26, 2
    %s28 = scalar_select %p27, 0, %s26
    %s29 = ssub.s32 %s16, %s28
    %s30 = ssub.s32 %s17, %s24
    %s31 = sor.u32 %s29, %s30
    %p32 = scmp.eq.s32.totalorder %s31, 0
    %s34 = sadd.s32 %s33, 1
    %s35 = scalar_select %p32, %s33, %s34
    %p38 = pneg %p32
    %p39 = scmp.eq.s32.totalorder %s9, 1
    %p40 = por %p38, %p39
    %p41 = scmp.ne.s32.totalorder %s33, %s36
    %p42 = scmp.eq.s32.totalorder %s9, 0
    %p43 = por %p41, %p42
    %p44 = scmp.ne.s32.totalorder %s33, %s36
    %p45 = scmp.eq.s32.totalorder %s14, 1
    %p46 = por %p44, %p45
    %p47 = scmp.ne.s32.totalorder %s36, %s37
    %p48 = scmp.eq.s32.totalorder %s14, 0
    %p49 = por %p47, %p48
    %p50 = scmp.ne.s32.totalorder %s36, %s37
    %p51 = scmp.eq.s32.totalorder %s15, 1
    %p52 = por %p50, %p51
    %p54 = scmp.ne.s32.totalorder %s37, %s53
    %p55 = scmp.eq.s32.totalorder %s15, 0
    %p56 = por %p54, %p55
    %s58 = sadd.s32 %s57, 1
    %p61 = scmp.eq.s32.totalorder %s9, 1
    %p62 = scmp.ne.s32.totalorder %s57, %s59
    %p63 = scmp.eq.s32.totalorder %s9, 0
    %p64 = por %p62, %p63
    %p65 = scmp.ne.s32.totalorder %s57, %s59
    %p66 = scmp.eq.s32.totalorder %s14, 1
    %p67 = por %p65, %p66
    %p68 = scmp.ne.s32.totalorder %s59, %s60
    %p69 = scmp.eq.s32.totalorder %s14, 0
    %p70 = por %p68, %p69
    %p71 = scmp.ne.s32.totalorder %s59, %s60
    %p72 = scmp.eq.s32.totalorder %s15, 1
    %p73 = por %p71, %p72
    %p75 = scmp.ne.s32.totalorder %s60, %s74
    %p76 = scmp.eq.s32.totalorder %s15, 0
    %p77 = por %p75, %p76
    %s79 = sadd.s32 %s78, 1
    %p82 = scmp.eq.s32.totalorder %s9, 1
    %p83 = scmp.ne.s32.totalorder %s78, %s80
    %p84 = scmp.eq.s32.totalorder %s9, 0
    %p85 = por %p83, %p84
    %p86 = scmp.ne.s32.totalorder %s78, %s80
    %p87 = scmp.eq.s32.totalorder %s14, 1
    %p88 = por %p86, %p87
    %p89 = scmp.ne.s32.totalorder %s80, %s81
    %p90 = scmp.eq.s32.totalorder %s14, 0
    %p91 = por %p89, %p90
    %p92 = scmp.ne.s32.totalorder %s80, %s81
    %p93 = scmp.eq.s32.totalorder %s15, 1
    %p94 = por %p92, %p93
    %p96 = scmp.ne.s32.totalorder %s81, %s95
    %p97 = scmp.eq.s32.totalorder %s15, 0
    %p98 = por %p96, %p97
    %s99 = ssub.s32 %s16, %s28
    %p100 = scmp.eq.s32.totalorder %s99, 0
    %s102 = sadd.s32 %s101, 1
    %s103 = scalar_select %p100, %s101, %s102
    %p106 = pneg %p100
    %p107 = scmp.eq.s32.totalorder %s9, 1
    %p108 = por %p106, %p107
    %p109 = scmp.ne.s32.totalorder %s101, %s104
    %p110 = scmp.eq.s32.totalorder %s9, 0
    %p111 = por %p109, %p110
    %p112 = scmp.ne.s32.totalorder %s101, %s104
    %p113 = scmp.eq.s32.totalorder %s14, 1
    %p114 = por %p112, %p113
    %p115 = scmp.ne.s32.totalorder %s104, %s105
    %p116 = scmp.eq.s32.totalorder %s14, 0
    %p117 = por %p115, %p116
    %p118 = scmp.ne.s32.totalorder %s104, %s105
    %p119 = scmp.eq.s32.totalorder %s15, 1
    %p120 = por %p118, %p119
    %p122 = scmp.ne.s32.totalorder %s105, %s121
    %p123 = scmp.eq.s32.totalorder %s15, 0
    %p124 = por %p122, %p123
    %p125 = scmp.le.s32.totalorder 1, %s9
    %p126 = scmp.lt.s32.totalorder %s9, 3
    %p127 = pnand %p125, %p126
    %p128 = pneg %p127
    // Predicated region
    $region9: #{mbconv_forward.15} parent=5 // pred_check
      _
    $region10: #{mbconv_forward.15} parent=5 // pred_check_branch
      %130 = sbr.rel (%p127) target = $region12
    $region11: #{mbconv_forward.15} parent=5 // pred_region
      %s131 = ssub.s32 %s9, 1
      // Predicated region
      $region13: #{mbconv_forward.15} parent=11 // pred_check
        %p132 = pneg %p70
      $region14: #{mbconv_forward.15} parent=11 // pred_check_branch
        %134 = sbr.rel (%p132) target = $region16
      $region15: #{mbconv_forward.15} parent=11 // pred_region
        _
      $region16: #{mbconv_forward.15} parent=11 // pred_fallthru
        _
      // Predicated region
      $region17: #{mbconv_forward.15} parent=11 // pred_check
        %p135 = pneg %p91
      $region18: #{mbconv_forward.15} parent=11 // pred_check_branch
        %137 = sbr.rel (%p135) target = $region20
      $region19: #{mbconv_forward.15} parent=11 // pred_region
        _
      $region20: #{mbconv_forward.15} parent=11 // pred_fallthru
        _
    $region12: #{mbconv_forward.15} parent=5 // pred_fallthru
      _
    %p138 = scmp.lt.s32.totalorder %s9, 2
    // Predicated region
    $region21: #{mbconv_forward.15} parent=5 // pred_check
      %p139 = pneg %p138
    $region22: #{mbconv_forward.15} parent=5 // pred_check_branch
      %141 = sbr.rel (%p139) target = $region24
    $region23: #{mbconv_forward.15} parent=5 // pred_region
      // Predicated region
      $region25: #{mbconv_forward.15} parent=23 // pred_check
        %p142 = pneg %p43
      $region26: #{mbconv_forward.15} parent=23 // pred_check_branch
        %144 = sbr.rel (%p142) target = $region28
      $region27: #{mbconv_forward.15} parent=23 // pred_region
        %s145 = smul.u32 32, %s17
        %p146 = scmp.lt.s32.totalorder %s16, 1
        %s147 = scalar_select %p146, %s16, 1
        %p148 = scmp.lt.s32.totalorder %s145, 31
        %s149 = scalar_select %p148, %s145, 31
        %s150 = smul.addr %s147, 32
        %s151 = sadd.s32 %s149, %s150
        %s152 = smul.addr %s151, 8
        %s153 = scalar_lea.vmem %s0, %s152
        %s154 = smul.u32 32, %s17
      $region28: #{mbconv_forward.15} parent=23 // pred_fallthru
        _
    $region24: #{mbconv_forward.15} parent=5 // pred_fallthru
      _
    %p155 = scmp.le.s32.totalorder 1, %s9
    %p156 = scmp.lt.s32.totalorder %s9, 3
    %p157 = pnand %p155, %p156
    %p158 = pneg %p157
    // Predicated region
    $region29: #{mbconv_forward.15} parent=5 // pred_check
      _
    $region30: #{mbconv_forward.15} parent=5 // pred_check_branch
      %160 = sbr.rel (%p157) target = $region32
    $region31: #{mbconv_forward.15} parent=5 // pred_region
      %s161 = ssub.s32 %s9, 1
      %s162 = smul.u32 32, %s19
      %p163 = scmp.lt.s32.totalorder %s18, 1
      %s164 = scalar_select %p163, %s18, 1
      %p165 = scmp.lt.s32.totalorder %s162, 31
      %s166 = scalar_select %p165, %s162, 31
      %s167 = smul.addr %s164, 32
      %s168 = sadd.s32 %s166, %s167
      %s169 = smul.addr %s168, 8
      %s170 = scalar_lea.vmem %s0, %s169
      %p171 = pneg %p49
      %p172 = pneg %p46
      %p173 = pneg %p70
      %p174 = pneg %p67
      %p175 = pneg %p91
      %p176 = pneg %p88
      %p177 = pneg %p117
      %p178 = pneg %p114
      %p179 = scmp.lt.s32.totalorder %s18, 1
      %s180 = scalar_select %p179, %s18, 1
      %s181 = scalar_lea.vmem %s3, %s180
      %s182 = smul.u32 32, %s19
      %p183 = scmp.lt.s32.totalorder %s18, 1
      %s184 = scalar_select %p183, %s18, 1
      %p185 = scmp.lt.s32.totalorder %s182, 31
      %s186 = scalar_select %p185, %s182, 31
      %s187 = smul.addr %s184, 32
      %s188 = sadd.s32 %s186, %s187
      %s189 = smul.addr %s188, 8
      %s190 = scalar_lea.vmem %s0, %s189
      %s191 = smul.u32 32, %s19
      %p192 = scmp.lt.s32.totalorder %s18, 1
      %s193 = scalar_select %p192, %s18, 1
      %s194 = scalar_lea.vmem %s3, %s193
      %p195 = scmp.eq.s32.totalorder %s19, 0
      // Predicated region
      $region33: #{mbconv_forward.15} parent=31 // pred_check
        %p196 = pneg %p195
      $region34: #{mbconv_forward.15} parent=31 // pred_check_branch
        %198 = sbr.rel (%p196) target = $region36
      $region35: #{mbconv_forward.15} parent=31 // pred_region
        %199 = vst [vmem:[%s194] sm:$0x1] 0.0
      $region36: #{mbconv_forward.15} parent=31 // pred_fallthru
        _
      %v200 = vld [vmem:[%s190] sm:$0xff]
      %v201 = vld [vmem:[%s190 + $0x8] sm:$0xff]
      %v202 = vld [vmem:[%s190 + $0x10] sm:$0xff]
      %v203 = vld [vmem:[%s190 + $0x18] sm:$0xff]
      %v204 = vld [vmem:[%s190 + $0x20] sm:$0xff]
      %v205 = vld [vmem:[%s190 + $0x28] sm:$0xff]
      %v206 = vld [vmem:[%s190 + $0x30] sm:$0xff]
      %v207 = vld [vmem:[%s190 + $0x38] sm:$0xff]
      %v208 = vld [vmem:[%s190 + $0x40] sm:$0xff]
      %v209 = vld [vmem:[%s190 + $0x48] sm:$0xff]
      %v210 = vld [vmem:[%s190 + $0x50] sm:$0xff]
      %v211 = vld [vmem:[%s190 + $0x58] sm:$0xff]
      %v212 = vld [vmem:[%s190 + $0x60] sm:$0xff]
      %v213 = vld [vmem:[%s190 + $0x68] sm:$0xff]
      %v214 = vld [vmem:[%s190 + $0x70] sm:$0xff]
      %v215 = vld [vmem:[%s190 + $0x78] sm:$0xff]
      %v216 = vld [vmem:[%s190 + $0x80] sm:$0xff]
      %v217 = vld [vmem:[%s190 + $0x88] sm:$0xff]
      %v218 = vld [vmem:[%s190 + $0x90] sm:$0xff]
      %v219 = vld [vmem:[%s190 + $0x98] sm:$0xff]
      %v220 = vld [vmem:[%s190 + $0xa0] sm:$0xff]
      %v221 = vld [vmem:[%s190 + $0xa8] sm:$0xff]
      %v222 = vld [vmem:[%s190 + $0xb0] sm:$0xff]
      %v223 = vld [vmem:[%s190 + $0xb8] sm:$0xff]
      %v224 = vld [vmem:[%s190 + $0xc0] sm:$0xff]
      %v225 = vld [vmem:[%s190 + $0xc8] sm:$0xff]
      %v226 = vld [vmem:[%s190 + $0xd0] sm:$0xff]
      %v227 = vld [vmem:[%s190 + $0xd8] sm:$0xff]
      %v228 = vld [vmem:[%s190 + $0xe0] sm:$0xff]
      %v229 = vld [vmem:[%s190 + $0xe8] sm:$0xff]
      %v230 = vld [vmem:[%s190 + $0xf0] sm:$0xff]
      %v231 = vld [vmem:[%s190 + $0xf8] sm:$0xff]
      %v232 = vld [vmem:[%s1] sm:$0x1]
      %v234 = vperm.slane %v232, 0
      %v236 = vmul.f32 %v200, %v234
      %v237 = vmul.f32 %v201, %v234
      %v238 = vmul.f32 %v202, %v234
      %v239 = vmul.f32 %v203, %v234
      %v240 = vmul.f32 %v204, %v234
      %v241 = vmul.f32 %v205, %v234
      %v242 = vmul.f32 %v206, %v234
      %v243 = vmul.f32 %v207, %v234
      %v244 = vmul.f32 %v208, %v234
      %v245 = vmul.f32 %v209, %v234
      %v246 = vmul.f32 %v210, %v234
      %v247 = vmul.f32 %v211, %v234
      %v248 = vmul.f32 %v212, %v234
      %v249 = vmul.f32 %v213, %v234
      %v250 = vmul.f32 %v214, %v234
      %v251 = vmul.f32 %v215, %v234
      %v252 = vmul.f32 %v216, %v234
      %v253 = vmul.f32 %v217, %v234
      %v254 = vmul.f32 %v218, %v234
      %v255 = vmul.f32 %v219, %v234
      %v256 = vmul.f32 %v220, %v234
      %v257 = vmul.f32 %v221, %v234
      %v258 = vmul.f32 %v222, %v234
      %v259 = vmul.f32 %v223, %v234
      %v260 = vmul.f32 %v224, %v234
      %v261 = vmul.f32 %v225, %v234
      %v262 = vmul.f32 %v226, %v234
      %v263 = vmul.f32 %v227, %v234
      %v264 = vmul.f32 %v228, %v234
      %v265 = vmul.f32 %v229, %v234
      %v266 = vmul.f32 %v230, %v234
      %v267 = vmul.f32 %v231, %v234
      %v268 = vld [vmem:[%s2] sm:$0x1]
      %v270 = vperm.slane %v268, 0
      %v272 = vadd.f32 %v236, %v270
      %v273 = vadd.f32 %v237, %v270
      %v274 = vadd.f32 %v238, %v270
      %v275 = vadd.f32 %v239, %v270
      %v276 = vadd.f32 %v240, %v270
      %v277 = vadd.f32 %v241, %v270
      %v278 = vadd.f32 %v242, %v270
      %v279 = vadd.f32 %v243, %v270
      %v280 = vadd.f32 %v244, %v270
      %v281 = vadd.f32 %v245, %v270
      %v282 = vadd.f32 %v246, %v270
      %v283 = vadd.f32 %v247, %v270
      %v284 = vadd.f32 %v248, %v270
      %v285 = vadd.f32 %v249, %v270
      %v286 = vadd.f32 %v250, %v270
      %v287 = vadd.f32 %v251, %v270
      %v288 = vadd.f32 %v252, %v270
      %v289 = vadd.f32 %v253, %v270
      %v290 = vadd.f32 %v254, %v270
      %v291 = vadd.f32 %v255, %v270
      %v292 = vadd.f32 %v256, %v270
      %v293 = vadd.f32 %v257, %v270
      %v294 = vadd.f32 %v258, %v270
      %v295 = vadd.f32 %v259, %v270
      %v296 = vadd.f32 %v260, %v270
      %v297 = vadd.f32 %v261, %v270
      %v298 = vadd.f32 %v262, %v270
      %v299 = vadd.f32 %v263, %v270
      %v300 = vadd.f32 %v264, %v270
      %v301 = vadd.f32 %v265, %v270
      %v302 = vadd.f32 %v266, %v270
      %v303 = vadd.f32 %v267, %v270
      %v304 = vmul.f32 %v272, 0.5
      %v305 = vmul.f32 %v273, 0.5
      %v306 = vmul.f32 %v274, 0.5
      %v307 = vmul.f32 %v275, 0.5
      %v308 = vmul.f32 %v276, 0.5
      %v309 = vmul.f32 %v277, 0.5
      %v310 = vmul.f32 %v278, 0.5
      %v311 = vmul.f32 %v279, 0.5
      %v312 = vmul.f32 %v280, 0.5
      %v313 = vmul.f32 %v281, 0.5
      %v314 = vmul.f32 %v282, 0.5
      %v315 = vmul.f32 %v283, 0.5
      %v316 = vmul.f32 %v284, 0.5
      %v317 = vmul.f32 %v285, 0.5
      %v318 = vmul.f32 %v286, 0.5
      %v319 = vmul.f32 %v287, 0.5
      %v320 = vmul.f32 %v288, 0.5
      %v321 = vmul.f32 %v289, 0.5
      %v322 = vmul.f32 %v290, 0.5
      %v323 = vmul.f32 %v291, 0.5
      %v324 = vmul.f32 %v292, 0.5
      %v325 = vmul.f32 %v293, 0.5
      %v326 = vmul.f32 %v294, 0.5
      %v327 = vmul.f32 %v295, 0.5
      %v328 = vmul.f32 %v296, 0.5
      %v329 = vmul.f32 %v297, 0.5
      %v330 = vmul.f32 %v298, 0.5
      %v331 = vmul.f32 %v299, 0.5
      %v332 = vmul.f32 %v300, 0.5
      %v333 = vmul.f32 %v301, 0.5
      %v334 = vmul.f32 %v302, 0.5
      %v335 = vmul.f32 %v303, 0.5
      %v336 = vrcp.pop 1.4142135
      %v337 = vmul.f32 1.4142135, %v336
      %v338 = vsub.f32 1.0, %v337
      %v339 = vmul.f32 %v336, %v338
      %v340 = vadd.f32 %v336, %v339
      %vm341 = vweird.f32 %v336
      %v342 = vsel %vm341, %v336, %v340
      %v343 = vmul.f32 %v272, %v342
      %v344 = vmul.f32 %v273, %v342
      %v345 = vmul.f32 %v274, %v342
      %v346 = vmul.f32 %v275, %v342
      %v347 = vmul.f32 %v276, %v342
      %v348 = vmul.f32 %v277, %v342
      %v349 = vmul.f32 %v278, %v342
      %v350 = vmul.f32 %v279, %v342
      %v351 = vmul.f32 %v280, %v342
      %v352 = vmul.f32 %v281, %v342
      %v353 = vmul.f32 %v282, %v342
      %v354 = vmul.f32 %v283, %v342
      %v355 = vmul.f32 %v284, %v342
      %v356 = vmul.f32 %v285, %v342
      %v357 = vmul.f32 %v286, %v342
      %v358 = vmul.f32 %v287, %v342
      %v359 = vmul.f32 %v288, %v342
      %v360 = vmul.f32 %v289, %v342
      %v361 = vmul.f32 %v290, %v342
      %v362 = vmul.f32 %v291, %v342
      %v363 = vmul.f32 %v292, %v342
      %v364 = vmul.f32 %v293, %v342
      %v365 = vmul.f32 %v294, %v342
      %v366 = vmul.f32 %v295, %v342
      %v367 = vmul.f32 %v296, %v342
      %v368 = vmul.f32 %v297, %v342
      %v369 = vmul.f32 %v298, %v342
      %v370 = vmul.f32 %v299, %v342
      %v371 = vmul.f32 %v300, %v342
      %v372 = vmul.f32 %v301, %v342
      %v373 = vmul.f32 %v302, %v342
      %v374 = vmul.f32 %v303, %v342
      %v375 = vmul.f32 %v343, %v343
      %v376 = vmin.f32 16.0, %v375
      %v377 = vmul.f32 %v376, 2.1237322e-06
      %v378 = vadd.f32 %v377, 0.00028619796
      %v379 = vmul.f32 %v376, %v378
      %v380 = vadd.f32 %v379, 0.0036580483
      %v381 = vmul.f32 %v376, %v380
      %v382 = vadd.f32 %v381, 0.05243302
      %v383 = vmul.f32 %v376, %v382
      %v384 = vadd.f32 %v383, 0.18741608
      %v385 = vmul.f32 %v376, %v384
      %v386 = vadd.f32 %v385, 1.1283791
      %v387 = vmul.f32 %v343, %v386
      %v388 = vmul.f32 %v376, 3.8918573e-05
      %v389 = vadd.f32 %v388, 0.001143296
      %v390 = vmul.f32 %v376, %v389
      %v391 = vadd.f32 %v390, 0.014752088
      %v392 = vmul.f32 %v376, %v391
      %v393 = vadd.f32 %v392, 0.112945676
      %v394 = vmul.f32 %v376, %v393
      %v395 = vadd.f32 %v394, 0.4994258
      %v396 = vmul.f32 %v376, %v395
      %v397 = vadd.f32 %v396, 1.0
      %v398 = vrcp.pop %v397
      %v399 = vmul.f32 %v397, %v398
      %v400 = vsub.f32 1.0, %v399
      %v401 = vmul.f32 %v398, %v400
      %v402 = vadd.f32 %v398, %v401
      %vm403 = vweird.f32 %v397
      %vm404 = vweird.f32 %v398
      %vm405 = vmor %vm403, %vm404
      %v406 = vsel %vm405, %v398, %v402
      %v407 = vand.u32 2147483647, %v397
      %vm408 = vcmp.eq.f32.partialorder %v407, 8.507059e+37
      %v409 = vand.u32 %v397, 2147483648
      %v410 = vor.u32 1.1754944e-38, %v409
      %v411 = vsel %vm408, %v410, %v406
      %v412 = vmul.f32 %v387, %v411
      %v413 = vmin.f32 %v412, 1.0
      %v414 = vmax.f32 %v413, -1.0
      %v415 = vmul.f32 %v344, %v344
      %v416 = vmin.f32 16.0, %v415
      %v417 = vmul.f32 %v416, 2.1237322e-06
      %v418 = vadd.f32 %v417, 0.00028619796
      %v419 = vmul.f32 %v416, %v418
      %v420 = vadd.f32 %v419, 0.0036580483
      %v421 = vmul.f32 %v416, %v420
      %v422 = vadd.f32 %v421, 0.05243302
      %v423 = vmul.f32 %v416, %v422
      %v424 = vadd.f32 %v423, 0.18741608
      %v425 = vmul.f32 %v416, %v424
      %v426 = vadd.f32 %v425, 1.1283791
      %v427 = vmul.f32 %v344, %v426
      %v428 = vmul.f32 %v416, 3.8918573e-05
      %v429 = vadd.f32 %v428, 0.001143296
      %v430 = vmul.f32 %v416, %v429
      %v431 = vadd.f32 %v430, 0.014752088
      %v432 = vmul.f32 %v416, %v431
      %v433 = vadd.f32 %v432, 0.112945676
      %v434 = vmul.f32 %v416, %v433
      %v435 = vadd.f32 %v434, 0.4994258
      %v436 = vmul.f32 %v416, %v435
      %v437 = vadd.f32 %v436, 1.0
      %v438 = vrcp.pop %v437
      %v439 = vmul.f32 %v437, %v438
      %v440 = vsub.f32 1.0, %v439
      %v441 = vmul.f32 %v438, %v440
      %v442 = vadd.f32 %v438, %v441
      %vm443 = vweird.f32 %v437
      %vm444 = vweird.f32 %v438
      %vm445 = vmor %vm443, %vm444
      %v446 = vsel %vm445, %v438, %v442
      %v447 = vand.u32 2147483647, %v437
      %vm448 = vcmp.eq.f32.partialorder %v447, 8.507059e+37
      %v449 = vand.u32 %v437, 2147483648
      %v450 = vor.u32 1.1754944e-38, %v449
      %v451 = vsel %vm448, %v450, %v446
      %v452 = vmul.f32 %v427, %v451
      %v453 = vmin.f32 %v452, 1.0
      %v454 = vmax.f32 %v453, -1.0
      %v455 = vmul.f32 %v345, %v345
      %v456 = vmin.f32 16.0, %v455
      %v457 = vmul.f32 %v456, 2.1237322e-06
      %v458 = vadd.f32 %v457, 0.00028619796
      %v459 = vmul.f32 %v456, %v458
      %v460 = vadd.f32 %v459, 0.0036580483
      %v461 = vmul.f32 %v456, %v460
      %v462 = vadd.f32 %v461, 0.05243302
      %v463 = vmul.f32 %v456, %v462
      %v464 = vadd.f32 %v463, 0.18741608
      %v465 = vmul.f32 %v456, %v464
      %v466 = vadd.f32 %v465, 1.1283791
      %v467 = vmul.f32 %v345, %v466
      %v468 = vmul.f32 %v456, 3.8918573e-05
      %v469 = vadd.f32 %v468, 0.001143296
      %v470 = vmul.f32 %v456, %v469
      %v471 = vadd.f32 %v470, 0.014752088
      %v472 = vmul.f32 %v456, %v471
      %v473 = vadd.f32 %v472, 0.112945676
      %v474 = vmul.f32 %v456, %v473
      %v475 = vadd.f32 %v474, 0.4994258
      %v476 = vmul.f32 %v456, %v475
      %v477 = vadd.f32 %v476, 1.0
      %v478 = vrcp.pop %v477
      %v479 = vmul.f32 %v477, %v478
      %v480 = vsub.f32 1.0, %v479
      %v481 = vmul.f32 %v478, %v480
      %v482 = vadd.f32 %v478, %v481
      %vm483 = vweird.f32 %v477
      %vm484 = vweird.f32 %v478
      %vm485 = vmor %vm483, %vm484
      %v486 = vsel %vm485, %v478, %v482
      %v487 = vand.u32 2147483647, %v477
      %vm488 = vcmp.eq.f32.partialorder %v487, 8.507059e+37
      %v489 = vand.u32 %v477, 2147483648
      %v490 = vor.u32 1.1754944e-38, %v489
      %v491 = vsel %vm488, %v490, %v486
      %v492 = vmul.f32 %v467, %v491
      %v493 = vmin.f32 %v492, 1.0
      %v494 = vmax.f32 %v493, -1.0
      %v495 = vmul.f32 %v346, %v346
      %v496 = vmin.f32 16.0, %v495
      %v497 = vmul.f32 %v496, 2.1237322e-06
      %v498 = vadd.f32 %v497, 0.00028619796
      %v499 = vmul.f32 %v496, %v498
      %v500 = vadd.f32 %v499, 0.0036580483
      %v501 = vmul.f32 %v496, %v500
      %v502 = vadd.f32 %v501, 0.05243302
      %v503 = vmul.f32 %v496, %v502
      %v504 = vadd.f32 %v503, 0.18741608
      %v505 = vmul.f32 %v496, %v504
      %v506 = vadd.f32 %v505, 1.1283791
      %v507 = vmul.f32 %v346, %v506
      %v508 = vmul.f32 %v496, 3.8918573e-05
      %v509 = vadd.f32 %v508, 0.001143296
      %v510 = vmul.f32 %v496, %v509
      %v511 = vadd.f32 %v510, 0.014752088
      %v512 = vmul.f32 %v496, %v511
      %v513 = vadd.f32 %v512, 0.112945676
      %v514 = vmul.f32 %v496, %v513
      %v515 = vadd.f32 %v514, 0.4994258
      %v516 = vmul.f32 %v496, %v515
      %v517 = vadd.f32 %v516, 1.0
      %v518 = vrcp.pop %v517
      %v519 = vmul.f32 %v517, %v518
      %v520 = vsub.f32 1.0, %v519
      %v521 = vmul.f32 %v518, %v520
      %v522 = vadd.f32 %v518, %v521
      %vm523 = vweird.f32 %v517
      %vm524 = vweird.f32 %v518
      %vm525 = vmor %vm523, %vm524
      %v526 = vsel %vm525, %v518, %v522
      %v527 = vand.u32 2147483647, %v517
      %vm528 = vcmp.eq.f32.partialorder %v527, 8.507059e+37
      %v529 = vand.u32 %v517, 2147483648
      %v530 = vor.u32 1.1754944e-38, %v529
      %v531 = vsel %vm528, %v530, %v526
      %v532 = vmul.f32 %v507, %v531
      %v533 = vmin.f32 %v532, 1.0
      %v534 = vmax.f32 %v533, -1.0
      %v535 = vmul.f32 %v347, %v347
      %v536 = vmin.f32 16.0, %v535
      %v537 = vmul.f32 %v536, 2.1237322e-06
      %v538 = vadd.f32 %v537, 0.00028619796
      %v539 = vmul.f32 %v536, %v538
      %v540 = vadd.f32 %v539, 0.0036580483
      %v541 = vmul.f32 %v536, %v540
      %v542 = vadd.f32 %v541, 0.05243302
      %v543 = vmul.f32 %v536, %v542
      %v544 = vadd.f32 %v543, 0.18741608
      %v545 = vmul.f32 %v536, %v544
      %v546 = vadd.f32 %v545, 1.1283791
      %v547 = vmul.f32 %v347, %v546
      %v548 = vmul.f32 %v536, 3.8918573e-05
      %v549 = vadd.f32 %v548, 0.001143296
      %v550 = vmul.f32 %v536, %v549
      %v551 = vadd.f32 %v550, 0.014752088
      %v552 = vmul.f32 %v536, %v551
      %v553 = vadd.f32 %v552, 0.112945676
      %v554 = vmul.f32 %v536, %v553
      %v555 = vadd.f32 %v554, 0.4994258
      %v556 = vmul.f32 %v536, %v555
      %v557 = vadd.f32 %v556, 1.0
      %v558 = vrcp.pop %v557
      %v559 = vmul.f32 %v557, %v558
      %v560 = vsub.f32 1.0, %v559
      %v561 = vmul.f32 %v558, %v560
      %v562 = vadd.f32 %v558, %v561
      %vm563 = vweird.f32 %v557
      %vm564 = vweird.f32 %v558
      %vm565 = vmor %vm563, %vm564
      %v566 = vsel %vm565, %v558, %v562
      %v567 = vand.u32 2147483647, %v557
      %vm568 = vcmp.eq.f32.partialorder %v567, 8.507059e+37
      %v569 = vand.u32 %v557, 2147483648
      %v570 = vor.u32 1.1754944e-38, %v569
      %v571 = vsel %vm568, %v570, %v566
      %v572 = vmul.f32 %v547, %v571
      %v573 = vmin.f32 %v572, 1.0
      %v574 = vmax.f32 %v573, -1.0
      %v575 = vmul.f32 %v348, %v348
      %v576 = vmin.f32 16.0, %v575
      %v577 = vmul.f32 %v576, 2.1237322e-06
      %v578 = vadd.f32 %v577, 0.00028619796
      %v579 = vmul.f32 %v576, %v578
      %v580 = vadd.f32 %v579, 0.0036580483
      %v581 = vmul.f32 %v576, %v580
      %v582 = vadd.f32 %v581, 0.05243302
      %v583 = vmul.f32 %v576, %v582
      %v584 = vadd.f32 %v583, 0.18741608
      %v585 = vmul.f32 %v576, %v584
      %v586 = vadd.f32 %v585, 1.1283791
      %v587 = vmul.f32 %v348, %v586
      %v588 = vmul.f32 %v576, 3.8918573e-05
      %v589 = vadd.f32 %v588, 0.001143296
      %v590 = vmul.f32 %v576, %v589
      %v591 = vadd.f32 %v590, 0.014752088
      %v592 = vmul.f32 %v576, %v591
      %v593 = vadd.f32 %v592, 0.112945676
      %v594 = vmul.f32 %v576, %v593
      %v595 = vadd.f32 %v594, 0.4994258
      %v596 = vmul.f32 %v576, %v595
      %v597 = vadd.f32 %v596, 1.0
      %v598 = vrcp.pop %v597
      %v599 = vmul.f32 %v597, %v598
      %v600 = vsub.f32 1.0, %v599
      %v601 = vmul.f32 %v598, %v600
      %v602 = vadd.f32 %v598, %v601
      %vm603 = vweird.f32 %v597
      %vm604 = vweird.f32 %v598
      %vm605 = vmor %vm603, %vm604
      %v606 = vsel %vm605, %v598, %v602
      %v607 = vand.u32 2147483647, %v597
      %vm608 = vcmp.eq.f32.partialorder %v607, 8.507059e+37
      %v609 = vand.u32 %v597, 2147483648
      %v610 = vor.u32 1.1754944e-38, %v609
      %v611 = vsel %vm608, %v610, %v606
      %v612 = vmul.f32 %v587, %v611
      %v613 = vmin.f32 %v612, 1.0
      %v614 = vmax.f32 %v613, -1.0
      %v615 = vmul.f32 %v349, %v349
      %v616 = vmin.f32 16.0, %v615
      %v617 = vmul.f32 %v616, 2.1237322e-06
      %v618 = vadd.f32 %v617, 0.00028619796
      %v619 = vmul.f32 %v616, %v618
      %v620 = vadd.f32 %v619, 0.0036580483
      %v621 = vmul.f32 %v616, %v620
      %v622 = vadd.f32 %v621, 0.05243302
      %v623 = vmul.f32 %v616, %v622
      %v624 = vadd.f32 %v623, 0.18741608
      %v625 = vmul.f32 %v616, %v624
      %v626 = vadd.f32 %v625, 1.1283791
      %v627 = vmul.f32 %v349, %v626
      %v628 = vmul.f32 %v616, 3.8918573e-05
      %v629 = vadd.f32 %v628, 0.001143296
      %v630 = vmul.f32 %v616, %v629
      %v631 = vadd.f32 %v630, 0.014752088
      %v632 = vmul.f32 %v616, %v631
      %v633 = vadd.f32 %v632, 0.112945676
      %v634 = vmul.f32 %v616, %v633
      %v635 = vadd.f32 %v634, 0.4994258
      %v636 = vmul.f32 %v616, %v635
      %v637 = vadd.f32 %v636, 1.0
      %v638 = vrcp.pop %v637
      %v639 = vmul.f32 %v637, %v638
      %v640 = vsub.f32 1.0, %v639
      %v641 = vmul.f32 %v638, %v640
      %v642 = vadd.f32 %v638, %v641
      %vm643 = vweird.f32 %v637
      %vm644 = vweird.f32 %v638
      %vm645 = vmor %vm643, %vm644
      %v646 = vsel %vm645, %v638, %v642
      %v647 = vand.u32 2147483647, %v637
      %vm648 = vcmp.eq.f32.partialorder %v647, 8.507059e+37
      %v649 = vand.u32 %v637, 2147483648
      %v650 = vor.u32 1.1754944e-38, %v649
      %v651 = vsel %vm648, %v650, %v646
      %v652 = vmul.f32 %v627, %v651
      %v653 = vmin.f32 %v652, 1.0
      %v654 = vmax.f32 %v653, -1.0
      %v655 = vmul.f32 %v350, %v350
      %v656 = vmin.f32 16.0, %v655
      %v657 = vmul.f32 %v656, 2.1237322e-06
      %v658 = vadd.f32 %v657, 0.00028619796
      %v659 = vmul.f32 %v656, %v658
      %v660 = vadd.f32 %v659, 0.0036580483
      %v661 = vmul.f32 %v656, %v660
      %v662 = vadd.f32 %v661, 0.05243302
      %v663 = vmul.f32 %v656, %v662
      %v664 = vadd.f32 %v663, 0.18741608
      %v665 = vmul.f32 %v656, %v664
      %v666 = vadd.f32 %v665, 1.1283791
      %v667 = vmul.f32 %v350, %v666
      %v668 = vmul.f32 %v656, 3.8918573e-05
      %v669 = vadd.f32 %v668, 0.001143296
      %v670 = vmul.f32 %v656, %v669
      %v671 = vadd.f32 %v670, 0.014752088
      %v672 = vmul.f32 %v656, %v671
      %v673 = vadd.f32 %v672, 0.112945676
      %v674 = vmul.f32 %v656, %v673
      %v675 = vadd.f32 %v674, 0.4994258
      %v676 = vmul.f32 %v656, %v675
      %v677 = vadd.f32 %v676, 1.0
      %v678 = vrcp.pop %v677
      %v679 = vmul.f32 %v677, %v678
      %v680 = vsub.f32 1.0, %v679
      %v681 = vmul.f32 %v678, %v680
      %v682 = vadd.f32 %v678, %v681
      %vm683 = vweird.f32 %v677
      %vm684 = vweird.f32 %v678
      %vm685 = vmor %vm683, %vm684
      %v686 = vsel %vm685, %v678, %v682
      %v687 = vand.u32 2147483647, %v677
      %vm688 = vcmp.eq.f32.partialorder %v687, 8.507059e+37
      %v689 = vand.u32 %v677, 2147483648
      %v690 = vor.u32 1.1754944e-38, %v689
      %v691 = vsel %vm688, %v690, %v686
      %v692 = vmul.f32 %v667, %v691
      %v693 = vmin.f32 %v692, 1.0
      %v694 = vmax.f32 %v693, -1.0
      %v695 = vmul.f32 %v351, %v351
      %v696 = vmin.f32 16.0, %v695
      %v697 = vmul.f32 %v696, 2.1237322e-06
      %v698 = vadd.f32 %v697, 0.00028619796
      %v699 = vmul.f32 %v696, %v698
      %v700 = vadd.f32 %v699, 0.0036580483
      %v701 = vmul.f32 %v696, %v700
      %v702 = vadd.f32 %v701, 0.05243302
      %v703 = vmul.f32 %v696, %v702
      %v704 = vadd.f32 %v703, 0.18741608
      %v705 = vmul.f32 %v696, %v704
      %v706 = vadd.f32 %v705, 1.1283791
      %v707 = vmul.f32 %v351, %v706
      %v708 = vmul.f32 %v696, 3.8918573e-05
      %v709 = vadd.f32 %v708, 0.001143296
      %v710 = vmul.f32 %v696, %v709
      %v711 = vadd.f32 %v710, 0.014752088
      %v712 = vmul.f32 %v696, %v711
      %v713 = vadd.f32 %v712, 0.112945676
      %v714 = vmul.f32 %v696, %v713
      %v715 = vadd.f32 %v714, 0.4994258
      %v716 = vmul.f32 %v696, %v715
      %v717 = vadd.f32 %v716, 1.0
      %v718 = vrcp.pop %v717
      %v719 = vmul.f32 %v717, %v718
      %v720 = vsub.f32 1.0, %v719
      %v721 = vmul.f32 %v718, %v720
      %v722 = vadd.f32 %v718, %v721
      %vm723 = vweird.f32 %v717
      %vm724 = vweird.f32 %v718
      %vm725 = vmor %vm723, %vm724
      %v726 = vsel %vm725, %v718, %v722
      %v727 = vand.u32 2147483647, %v717
      %vm728 = vcmp.eq.f32.partialorder %v727, 8.507059e+37
      %v729 = vand.u32 %v717, 2147483648
      %v730 = vor.u32 1.1754944e-38, %v729
      %v731 = vsel %vm728, %v730, %v726
      %v732 = vmul.f32 %v707, %v731
      %v733 = vmin.f32 %v732, 1.0
      %v734 = vmax.f32 %v733, -1.0
      %v735 = vmul.f32 %v352, %v352
      %v736 = vmin.f32 16.0, %v735
      %v737 = vmul.f32 %v736, 2.1237322e-06
      %v738 = vadd.f32 %v737, 0.00028619796
      %v739 = vmul.f32 %v736, %v738
      %v740 = vadd.f32 %v739, 0.0036580483
      %v741 = vmul.f32 %v736, %v740
      %v742 = vadd.f32 %v741, 0.05243302
      %v743 = vmul.f32 %v736, %v742
      %v744 = vadd.f32 %v743, 0.18741608
      %v745 = vmul.f32 %v736, %v744
      %v746 = vadd.f32 %v745, 1.1283791
      %v747 = vmul.f32 %v352, %v746
      %v748 = vmul.f32 %v736, 3.8918573e-05
      %v749 = vadd.f32 %v748, 0.001143296
      %v750 = vmul.f32 %v736, %v749
      %v751 = vadd.f32 %v750, 0.014752088
      %v752 = vmul.f32 %v736, %v751
      %v753 = vadd.f32 %v752, 0.112945676
      %v754 = vmul.f32 %v736, %v753
      %v755 = vadd.f32 %v754, 0.4994258
      %v756 = vmul.f32 %v736, %v755
      %v757 = vadd.f32 %v756, 1.0
      %v758 = vrcp.pop %v757
      %v759 = vmul.f32 %v757, %v758
      %v760 = vsub.f32 1.0, %v759
      %v761 = vmul.f32 %v758, %v760
      %v762 = vadd.f32 %v758, %v761
      %vm763 = vweird.f32 %v757
      %vm764 = vweird.f32 %v758
      %vm765 = vmor %vm763, %vm764
      %v766 = vsel %vm765, %v758, %v762
      %v767 = vand.u32 2147483647, %v757
      %vm768 = vcmp.eq.f32.partialorder %v767, 8.507059e+37
      %v769 = vand.u32 %v757, 2147483648
      %v770 = vor.u32 1.1754944e-38, %v769
      %v771 = vsel %vm768, %v770, %v766
      %v772 = vmul.f32 %v747, %v771
      %v773 = vmin.f32 %v772, 1.0
      %v774 = vmax.f32 %v773, -1.0
      %v775 = vmul.f32 %v353, %v353
      %v776 = vmin.f32 16.0, %v775
      %v777 = vmul.f32 %v776, 2.1237322e-06
      %v778 = vadd.f32 %v777, 0.00028619796
      %v779 = vmul.f32 %v776, %v778
      %v780 = vadd.f32 %v779, 0.0036580483
      %v781 = vmul.f32 %v776, %v780
      %v782 = vadd.f32 %v781, 0.05243302
      %v783 = vmul.f32 %v776, %v782
      %v784 = vadd.f32 %v783, 0.18741608
      %v785 = vmul.f32 %v776, %v784
      %v786 = vadd.f32 %v785, 1.1283791
      %v787 = vmul.f32 %v353, %v786
      %v788 = vmul.f32 %v776, 3.8918573e-05
      %v789 = vadd.f32 %v788, 0.001143296
      %v790 = vmul.f32 %v776, %v789
      %v791 = vadd.f32 %v790, 0.014752088
      %v792 = vmul.f32 %v776, %v791
      %v793 = vadd.f32 %v792, 0.112945676
      %v794 = vmul.f32 %v776, %v793
      %v795 = vadd.f32 %v794, 0.4994258
      %v796 = vmul.f32 %v776, %v795
      %v797 = vadd.f32 %v796, 1.0
      %v798 = vrcp.pop %v797
      %v799 = vmul.f32 %v797, %v798
      %v800 = vsub.f32 1.0, %v799
      %v801 = vmul.f32 %v798, %v800
      %v802 = vadd.f32 %v798, %v801
      %vm803 = vweird.f32 %v797
      %vm804 = vweird.f32 %v798
      %vm805 = vmor %vm803, %vm804
      %v806 = vsel %vm805, %v798, %v802
      %v807 = vand.u32 2147483647, %v797
      %vm808 = vcmp.eq.f32.partialorder %v807, 8.507059e+37
      %v809 = vand.u32 %v797, 2147483648
      %v810 = vor.u32 1.1754944e-38, %v809
      %v811 = vsel %vm808, %v810, %v806
      %v812 = vmul.f32 %v787, %v811
      %v813 = vmin.f32 %v812, 1.0
      %v814 = vmax.f32 %v813, -1.0
      %v815 = vmul.f32 %v354, %v354
      %v816 = vmin.f32 16.0, %v815
      %v817 = vmul.f32 %v816, 2.1237322e-06
      %v818 = vadd.f32 %v817, 0.00028619796
      %v819 = vmul.f32 %v816, %v818
      %v820 = vadd.f32 %v819, 0.0036580483
      %v821 = vmul.f32 %v816, %v820
      %v822 = vadd.f32 %v821, 0.05243302
      %v823 = vmul.f32 %v816, %v822
      %v824 = vadd.f32 %v823, 0.18741608
      %v825 = vmul.f32 %v816, %v824
      %v826 = vadd.f32 %v825, 1.1283791
      %v827 = vmul.f32 %v354, %v826
      %v828 = vmul.f32 %v816, 3.8918573e-05
      %v829 = vadd.f32 %v828, 0.001143296
      %v830 = vmul.f32 %v816, %v829
      %v831 = vadd.f32 %v830, 0.014752088
      %v832 = vmul.f32 %v816, %v831
      %v833 = vadd.f32 %v832, 0.112945676
      %v834 = vmul.f32 %v816, %v833
      %v835 = vadd.f32 %v834, 0.4994258
      %v836 = vmul.f32 %v816, %v835
      %v837 = vadd.f32 %v836, 1.0
      %v838 = vrcp.pop %v837
      %v839 = vmul.f32 %v837, %v838
      %v840 = vsub.f32 1.0, %v839
      %v841 = vmul.f32 %v838, %v840
      %v842 = vadd.f32 %v838, %v841
      %vm843 = vweird.f32 %v837
      %vm844 = vweird.f32 %v838
      %vm845 = vmor %vm843, %vm844
      %v846 = vsel %vm845, %v838, %v842
      %v847 = vand.u32 2147483647, %v837
      %vm848 = vcmp.eq.f32.partialorder %v847, 8.507059e+37
      %v849 = vand.u32 %v837, 2147483648
      %v850 = vor.u32 1.1754944e-38, %v849
      %v851 = vsel %vm848, %v850, %v846
      %v852 = vmul.f32 %v827, %v851
      %v853 = vmin.f32 %v852, 1.0
      %v854 = vmax.f32 %v853, -1.0
      %v855 = vmul.f32 %v355, %v355
      %v856 = vmin.f32 16.0, %v855
      %v857 = vmul.f32 %v856, 2.1237322e-06
      %v858 = vadd.f32 %v857, 0.00028619796
      %v859 = vmul.f32 %v856, %v858
      %v860 = vadd.f32 %v859, 0.0036580483
      %v861 = vmul.f32 %v856, %v860
      %v862 = vadd.f32 %v861, 0.05243302
      %v863 = vmul.f32 %v856, %v862
      %v864 = vadd.f32 %v863, 0.18741608
      %v865 = vmul.f32 %v856, %v864
      %v866 = vadd.f32 %v865, 1.1283791
      %v867 = vmul.f32 %v355, %v866
      %v868 = vmul.f32 %v856, 3.8918573e-05
      %v869 = vadd.f32 %v868, 0.001143296
      %v870 = vmul.f32 %v856, %v869
      %v871 = vadd.f32 %v870, 0.014752088
      %v872 = vmul.f32 %v856, %v871
      %v873 = vadd.f32 %v872, 0.112945676
      %v874 = vmul.f32 %v856, %v873
      %v875 = vadd.f32 %v874, 0.4994258
      %v876 = vmul.f32 %v856, %v875
      %v877 = vadd.f32 %v876, 1.0
      %v878 = vrcp.pop %v877
      %v879 = vmul.f32 %v877, %v878
      %v880 = vsub.f32 1.0, %v879
      %v881 = vmul.f32 %v878, %v880
      %v882 = vadd.f32 %v878, %v881
      %vm883 = vweird.f32 %v877
      %vm884 = vweird.f32 %v878
      %vm885 = vmor %vm883, %vm884
      %v886 = vsel %vm885, %v878, %v882
      %v887 = vand.u32 2147483647, %v877
      %vm888 = vcmp.eq.f32.partialorder %v887, 8.507059e+37
      %v889 = vand.u32 %v877, 2147483648
      %v890 = vor.u32 1.1754944e-38, %v889
      %v891 = vsel %vm888, %v890, %v886
      %v892 = vmul.f32 %v867, %v891
      %v893 = vmin.f32 %v892, 1.0
      %v894 = vmax.f32 %v893, -1.0
      %v895 = vmul.f32 %v356, %v356
      %v896 = vmin.f32 16.0, %v895
      %v897 = vmul.f32 %v896, 2.1237322e-06
      %v898 = vadd.f32 %v897, 0.00028619796
      %v899 = vmul.f32 %v896, %v898
      %v900 = vadd.f32 %v899, 0.0036580483
      %v901 = vmul.f32 %v896, %v900
      %v902 = vadd.f32 %v901, 0.05243302
      %v903 = vmul.f32 %v896, %v902
      %v904 = vadd.f32 %v903, 0.18741608
      %v905 = vmul.f32 %v896, %v904
      %v906 = vadd.f32 %v905, 1.1283791
      %v907 = vmul.f32 %v356, %v906
      %v908 = vmul.f32 %v896, 3.8918573e-05
      %v909 = vadd.f32 %v908, 0.001143296
      %v910 = vmul.f32 %v896, %v909
      %v911 = vadd.f32 %v910, 0.014752088
      %v912 = vmul.f32 %v896, %v911
      %v913 = vadd.f32 %v912, 0.112945676
      %v914 = vmul.f32 %v896, %v913
      %v915 = vadd.f32 %v914, 0.4994258
      %v916 = vmul.f32 %v896, %v915
      %v917 = vadd.f32 %v916, 1.0
      %v918 = vrcp.pop %v917
      %v919 = vmul.f32 %v917, %v918
      %v920 = vsub.f32 1.0, %v919
      %v921 = vmul.f32 %v918, %v920
      %v922 = vadd.f32 %v918, %v921
      %vm923 = vweird.f32 %v917
      %vm924 = vweird.f32 %v918
      %vm925 = vmor %vm923, %vm924
      %v926 = vsel %vm925, %v918, %v922
      %v927 = vand.u32 2147483647, %v917
      %vm928 = vcmp.eq.f32.partialorder %v927, 8.507059e+37
      %v929 = vand.u32 %v917, 2147483648
      %v930 = vor.u32 1.1754944e-38, %v929
      %v931 = vsel %vm928, %v930, %v926
      %v932 = vmul.f32 %v907, %v931
      %v933 = vmin.f32 %v932, 1.0
      %v934 = vmax.f32 %v933, -1.0
      %v935 = vmul.f32 %v357, %v357
      %v936 = vmin.f32 16.0, %v935
      %v937 = vmul.f32 %v936, 2.1237322e-06
      %v938 = vadd.f32 %v937, 0.00028619796
      %v939 = vmul.f32 %v936, %v938
      %v940 = vadd.f32 %v939, 0.0036580483
      %v941 = vmul.f32 %v936, %v940
      %v942 = vadd.f32 %v941, 0.05243302
      %v943 = vmul.f32 %v936, %v942
      %v944 = vadd.f32 %v943, 0.18741608
      %v945 = vmul.f32 %v936, %v944
      %v946 = vadd.f32 %v945, 1.1283791
      %v947 = vmul.f32 %v357, %v946
      %v948 = vmul.f32 %v936, 3.8918573e-05
      %v949 = vadd.f32 %v948, 0.001143296
      %v950 = vmul.f32 %v936, %v949
      %v951 = vadd.f32 %v950, 0.014752088
      %v952 = vmul.f32 %v936, %v951
      %v953 = vadd.f32 %v952, 0.112945676
      %v954 = vmul.f32 %v936, %v953
      %v955 = vadd.f32 %v954, 0.4994258
      %v956 = vmul.f32 %v936, %v955
      %v957 = vadd.f32 %v956, 1.0
      %v958 = vrcp.pop %v957
      %v959 = vmul.f32 %v957, %v958
      %v960 = vsub.f32 1.0, %v959
      %v961 = vmul.f32 %v958, %v960
      %v962 = vadd.f32 %v958, %v961
      %vm963 = vweird.f32 %v957
      %vm964 = vweird.f32 %v958
      %vm965 = vmor %vm963, %vm964
      %v966 = vsel %vm965, %v958, %v962
      %v967 = vand.u32 2147483647, %v957
      %vm968 = vcmp.eq.f32.partialorder %v967, 8.507059e+37
      %v969 = vand.u32 %v957, 2147483648
      %v970 = vor.u32 1.1754944e-38, %v969
      %v971 = vsel %vm968, %v970, %v966
      %v972 = vmul.f32 %v947, %v971
      %v973 = vmin.f32 %v972, 1.0
      %v974 = vmax.f32 %v973, -1.0
      %v975 = vmul.f32 %v358, %v358
      %v976 = vmin.f32 16.0, %v975
      %v977 = vmul.f32 %v976, 2.1237322e-06
      %v978 = vadd.f32 %v977, 0.00028619796
      %v979 = vmul.f32 %v976, %v978
      %v980 = vadd.f32 %v979, 0.0036580483
      %v981 = vmul.f32 %v976, %v980
      %v982 = vadd.f32 %v981, 0.05243302
      %v983 = vmul.f32 %v976, %v982
      %v984 = vadd.f32 %v983, 0.18741608
      %v985 = vmul.f32 %v976, %v984
      %v986 = vadd.f32 %v985, 1.1283791
      %v987 = vmul.f32 %v358, %v986
      %v988 = vmul.f32 %v976, 3.8918573e-05
      %v989 = vadd.f32 %v988, 0.001143296
      %v990 = vmul.f32 %v976, %v989
      %v991 = vadd.f32 %v990, 0.014752088
      %v992 = vmul.f32 %v976, %v991
      %v993 = vadd.f32 %v992, 0.112945676
      %v994 = vmul.f32 %v976, %v993
      %v995 = vadd.f32 %v994, 0.4994258
      %v996 = vmul.f32 %v976, %v995
      %v997 = vadd.f32 %v996, 1.0
      %v998 = vrcp.pop %v997
      %v999 = vmul.f32 %v997, %v998
      %v1000 = vsub.f32 1.0, %v999
      %v1001 = vmul.f32 %v998, %v1000
      %v1002 = vadd.f32 %v998, %v1001
      %vm1003 = vweird.f32 %v997
      %vm1004 = vweird.f32 %v998
      %vm1005 = vmor %vm1003, %vm1004
      %v1006 = vsel %vm1005, %v998, %v1002
      %v1007 = vand.u32 2147483647, %v997
      %vm1008 = vcmp.eq.f32.partialorder %v1007, 8.507059e+37
      %v1009 = vand.u32 %v997, 2147483648
      %v1010 = vor.u32 1.1754944e-38, %v1009
      %v1011 = vsel %vm1008, %v1010, %v1006
      %v1012 = vmul.f32 %v987, %v1011
      %v1013 = vmin.f32 %v1012, 1.0
      %v1014 = vmax.f32 %v1013, -1.0
      %v1015 = vmul.f32 %v359, %v359
      %v1016 = vmin.f32 16.0, %v1015
      %v1017 = vmul.f32 %v1016, 2.1237322e-06
      %v1018 = vadd.f32 %v1017, 0.00028619796
      %v1019 = vmul.f32 %v1016, %v1018
      %v1020 = vadd.f32 %v1019, 0.0036580483
      %v1021 = vmul.f32 %v1016, %v1020
      %v1022 = vadd.f32 %v1021, 0.05243302
      %v1023 = vmul.f32 %v1016, %v1022
      %v1024 = vadd.f32 %v1023, 0.18741608
      %v1025 = vmul.f32 %v1016, %v1024
      %v1026 = vadd.f32 %v1025, 1.1283791
      %v1027 = vmul.f32 %v359, %v1026
      %v1028 = vmul.f32 %v1016, 3.8918573e-05
      %v1029 = vadd.f32 %v1028, 0.001143296
      %v1030 = vmul.f32 %v1016, %v1029
      %v1031 = vadd.f32 %v1030, 0.014752088
      %v1032 = vmul.f32 %v1016, %v1031
      %v1033 = vadd.f32 %v1032, 0.112945676
      %v1034 = vmul.f32 %v1016, %v1033
      %v1035 = vadd.f32 %v1034, 0.4994258
      %v1036 = vmul.f32 %v1016, %v1035
      %v1037 = vadd.f32 %v1036, 1.0
      %v1038 = vrcp.pop %v1037
      %v1039 = vmul.f32 %v1037, %v1038
      %v1040 = vsub.f32 1.0, %v1039
      %v1041 = vmul.f32 %v1038, %v1040
      %v1042 = vadd.f32 %v1038, %v1041
      %vm1043 = vweird.f32 %v1037
      %vm1044 = vweird.f32 %v1038
      %vm1045 = vmor %vm1043, %vm1044
      %v1046 = vsel %vm1045, %v1038, %v1042
      %v1047 = vand.u32 2147483647, %v1037
      %vm1048 = vcmp.eq.f32.partialorder %v1047, 8.507059e+37
      %v1049 = vand.u32 %v1037, 2147483648
      %v1050 = vor.u32 1.1754944e-38, %v1049
      %v1051 = vsel %vm1048, %v1050, %v1046
      %v1052 = vmul.f32 %v1027, %v1051
      %v1053 = vmin.f32 %v1052, 1.0
      %v1054 = vmax.f32 %v1053, -1.0
      %v1055 = vmul.f32 %v360, %v360
      %v1056 = vmin.f32 16.0, %v1055
      %v1057 = vmul.f32 %v1056, 2.1237322e-06
      %v1058 = vadd.f32 %v1057, 0.00028619796
      %v1059 = vmul.f32 %v1056, %v1058
      %v1060 = vadd.f32 %v1059, 0.0036580483
      %v1061 = vmul.f32 %v1056, %v1060
      %v1062 = vadd.f32 %v1061, 0.05243302
      %v1063 = vmul.f32 %v1056, %v1062
      %v1064 = vadd.f32 %v1063, 0.18741608
      %v1065 = vmul.f32 %v1056, %v1064
      %v1066 = vadd.f32 %v1065, 1.1283791
      %v1067 = vmul.f32 %v360, %v1066
      %v1068 = vmul.f32 %v1056, 3.8918573e-05
      %v1069 = vadd.f32 %v1068, 0.001143296
      %v1070 = vmul.f32 %v1056, %v1069
      %v1071 = vadd.f32 %v1070, 0.014752088
      %v1072 = vmul.f32 %v1056, %v1071
      %v1073 = vadd.f32 %v1072, 0.112945676
      %v1074 = vmul.f32 %v1056, %v1073
      %v1075 = vadd.f32 %v1074, 0.4994258
      %v1076 = vmul.f32 %v1056, %v1075
      %v1077 = vadd.f32 %v1076, 1.0
      %v1078 = vrcp.pop %v1077
      %v1079 = vmul.f32 %v1077, %v1078
      %v1080 = vsub.f32 1.0, %v1079
      %v1081 = vmul.f32 %v1078, %v1080
      %v1082 = vadd.f32 %v1078, %v1081
      %vm1083 = vweird.f32 %v1077
      %vm1084 = vweird.f32 %v1078
      %vm1085 = vmor %vm1083, %vm1084
      %v1086 = vsel %vm1085, %v1078, %v1082
      %v1087 = vand.u32 2147483647, %v1077
      %vm1088 = vcmp.eq.f32.partialorder %v1087, 8.507059e+37
      %v1089 = vand.u32 %v1077, 2147483648
      %v1090 = vor.u32 1.1754944e-38, %v1089
      %v1091 = vsel %vm1088, %v1090, %v1086
      %v1092 = vmul.f32 %v1067, %v1091
      %v1093 = vmin.f32 %v1092, 1.0
      %v1094 = vmax.f32 %v1093, -1.0
      %v1095 = vmul.f32 %v361, %v361
      %v1096 = vmin.f32 16.0, %v1095
      %v1097 = vmul.f32 %v1096, 2.1237322e-06
      %v1098 = vadd.f32 %v1097, 0.00028619796
      %v1099 = vmul.f32 %v1096, %v1098
      %v1100 = vadd.f32 %v1099, 0.0036580483
      %v1101 = vmul.f32 %v1096, %v1100
      %v1102 = vadd.f32 %v1101, 0.05243302
      %v1103 = vmul.f32 %v1096, %v1102
      %v1104 = vadd.f32 %v1103, 0.18741608
      %v1105 = vmul.f32 %v1096, %v1104
      %v1106 = vadd.f32 %v1105, 1.1283791
      %v1107 = vmul.f32 %v361, %v1106
      %v1108 = vmul.f32 %v1096, 3.8918573e-05
      %v1109 = vadd.f32 %v1108, 0.001143296
      %v1110 = vmul.f32 %v1096, %v1109
      %v1111 = vadd.f32 %v1110, 0.014752088
      %v1112 = vmul.f32 %v1096, %v1111
      %v1113 = vadd.f32 %v1112, 0.112945676
      %v1114 = vmul.f32 %v1096, %v1113
      %v1115 = vadd.f32 %v1114, 0.4994258
      %v1116 = vmul.f32 %v1096, %v1115
      %v1117 = vadd.f32 %v1116, 1.0
      %v1118 = vrcp.pop %v1117
      %v1119 = vmul.f32 %v1117, %v1118
      %v1120 = vsub.f32 1.0, %v1119
      %v1121 = vmul.f32 %v1118, %v1120
      %v1122 = vadd.f32 %v1118, %v1121
      %vm1123 = vweird.f32 %v1117
      %vm1124 = vweird.f32 %v1118
      %vm1125 = vmor %vm1123, %vm1124
      %v1126 = vsel %vm1125, %v1118, %v1122
      %v1127 = vand.u32 2147483647, %v1117
      %vm1128 = vcmp.eq.f32.partialorder %v1127, 8.507059e+37
      %v1129 = vand.u32 %v1117, 2147483648
      %v1130 = vor.u32 1.1754944e-38, %v1129
      %v1131 = vsel %vm1128, %v1130, %v1126
      %v1132 = vmul.f32 %v1107, %v1131
      %v1133 = vmin.f32 %v1132, 1.0
      %v1134 = vmax.f32 %v1133, -1.0
      %v1135 = vmul.f32 %v362, %v362
      %v1136 = vmin.f32 16.0, %v1135
      %v1137 = vmul.f32 %v1136, 2.1237322e-06
      %v1138 = vadd.f32 %v1137, 0.00028619796
      %v1139 = vmul.f32 %v1136, %v1138
      %v1140 = vadd.f32 %v1139, 0.0036580483
      %v1141 = vmul.f32 %v1136, %v1140
      %v1142 = vadd.f32 %v1141, 0.05243302
      %v1143 = vmul.f32 %v1136, %v1142
      %v1144 = vadd.f32 %v1143, 0.18741608
      %v1145 = vmul.f32 %v1136, %v1144
      %v1146 = vadd.f32 %v1145, 1.1283791
      %v1147 = vmul.f32 %v362, %v1146
      %v1148 = vmul.f32 %v1136, 3.8918573e-05
      %v1149 = vadd.f32 %v1148, 0.001143296
      %v1150 = vmul.f32 %v1136, %v1149
      %v1151 = vadd.f32 %v1150, 0.014752088
      %v1152 = vmul.f32 %v1136, %v1151
      %v1153 = vadd.f32 %v1152, 0.112945676
      %v1154 = vmul.f32 %v1136, %v1153
      %v1155 = vadd.f32 %v1154, 0.4994258
      %v1156 = vmul.f32 %v1136, %v1155
      %v1157 = vadd.f32 %v1156, 1.0
      %v1158 = vrcp.pop %v1157
      %v1159 = vmul.f32 %v1157, %v1158
      %v1160 = vsub.f32 1.0, %v1159
      %v1161 = vmul.f32 %v1158, %v1160
      %v1162 = vadd.f32 %v1158, %v1161
      %vm1163 = vweird.f32 %v1157
      %vm1164 = vweird.f32 %v1158
      %vm1165 = vmor %vm1163, %vm1164
      %v1166 = vsel %vm1165, %v1158, %v1162
      %v1167 = vand.u32 2147483647, %v1157
      %vm1168 = vcmp.eq.f32.partialorder %v1167, 8.507059e+37
      %v1169 = vand.u32 %v1157, 2147483648
      %v1170 = vor.u32 1.1754944e-38, %v1169
      %v1171 = vsel %vm1168, %v1170, %v1166
      %v1172 = vmul.f32 %v1147, %v1171
      %v1173 = vmin.f32 %v1172, 1.0
      %v1174 = vmax.f32 %v1173, -1.0
      %v1175 = vmul.f32 %v363, %v363
      %v1176 = vmin.f32 16.0, %v1175
      %v1177 = vmul.f32 %v1176, 2.1237322e-06
      %v1178 = vadd.f32 %v1177, 0.00028619796
      %v1179 = vmul.f32 %v1176, %v1178
      %v1180 = vadd.f32 %v1179, 0.0036580483
      %v1181 = vmul.f32 %v1176, %v1180
      %v1182 = vadd.f32 %v1181, 0.05243302
      %v1183 = vmul.f32 %v1176, %v1182
      %v1184 = vadd.f32 %v1183, 0.18741608
      %v1185 = vmul.f32 %v1176, %v1184
      %v1186 = vadd.f32 %v1185, 1.1283791
      %v1187 = vmul.f32 %v363, %v1186
      %v1188 = vmul.f32 %v1176, 3.8918573e-05
      %v1189 = vadd.f32 %v1188, 0.001143296
      %v1190 = vmul.f32 %v1176, %v1189
      %v1191 = vadd.f32 %v1190, 0.014752088
      %v1192 = vmul.f32 %v1176, %v1191
      %v1193 = vadd.f32 %v1192, 0.112945676
      %v1194 = vmul.f32 %v1176, %v1193
      %v1195 = vadd.f32 %v1194, 0.4994258
      %v1196 = vmul.f32 %v1176, %v1195
      %v1197 = vadd.f32 %v1196, 1.0
      %v1198 = vrcp.pop %v1197
      %v1199 = vmul.f32 %v1197, %v1198
      %v1200 = vsub.f32 1.0, %v1199
      %v1201 = vmul.f32 %v1198, %v1200
      %v1202 = vadd.f32 %v1198, %v1201
      %vm1203 = vweird.f32 %v1197
      %vm1204 = vweird.f32 %v1198
      %vm1205 = vmor %vm1203, %vm1204
      %v1206 = vsel %vm1205, %v1198, %v1202
      %v1207 = vand.u32 2147483647, %v1197
      %vm1208 = vcmp.eq.f32.partialorder %v1207, 8.507059e+37
      %v1209 = vand.u32 %v1197, 2147483648
      %v1210 = vor.u32 1.1754944e-38, %v1209
      %v1211 = vsel %vm1208, %v1210, %v1206
      %v1212 = vmul.f32 %v1187, %v1211
      %v1213 = vmin.f32 %v1212, 1.0
      %v1214 = vmax.f32 %v1213, -1.0
      %v1215 = vmul.f32 %v364, %v364
      %v1216 = vmin.f32 16.0, %v1215
      %v1217 = vmul.f32 %v1216, 2.1237322e-06
      %v1218 = vadd.f32 %v1217, 0.00028619796
      %v1219 = vmul.f32 %v1216, %v1218
      %v1220 = vadd.f32 %v1219, 0.0036580483
      %v1221 = vmul.f32 %v1216, %v1220
      %v1222 = vadd.f32 %v1221, 0.05243302
      %v1223 = vmul.f32 %v1216, %v1222
      %v1224 = vadd.f32 %v1223, 0.18741608
      %v1225 = vmul.f32 %v1216, %v1224
      %v1226 = vadd.f32 %v1225, 1.1283791
      %v1227 = vmul.f32 %v364, %v1226
      %v1228 = vmul.f32 %v1216, 3.8918573e-05
      %v1229 = vadd.f32 %v1228, 0.001143296
      %v1230 = vmul.f32 %v1216, %v1229
      %v1231 = vadd.f32 %v1230, 0.014752088
      %v1232 = vmul.f32 %v1216, %v1231
      %v1233 = vadd.f32 %v1232, 0.112945676
      %v1234 = vmul.f32 %v1216, %v1233
      %v1235 = vadd.f32 %v1234, 0.4994258
      %v1236 = vmul.f32 %v1216, %v1235
      %v1237 = vadd.f32 %v1236, 1.0
      %v1238 = vrcp.pop %v1237
      %v1239 = vmul.f32 %v1237, %v1238
      %v1240 = vsub.f32 1.0, %v1239
      %v1241 = vmul.f32 %v1238, %v1240
      %v1242 = vadd.f32 %v1238, %v1241
      %vm1243 = vweird.f32 %v1237
      %vm1244 = vweird.f32 %v1238
      %vm1245 = vmor %vm1243, %vm1244
      %v1246 = vsel %vm1245, %v1238, %v1242
      %v1247 = vand.u32 2147483647, %v1237
      %vm1248 = vcmp.eq.f32.partialorder %v1247, 8.507059e+37
      %v1249 = vand.u32 %v1237, 2147483648
      %v1250 = vor.u32 1.1754944e-38, %v1249
      %v1251 = vsel %vm1248, %v1250, %v1246
      %v1252 = vmul.f32 %v1227, %v1251
      %v1253 = vmin.f32 %v1252, 1.0
      %v1254 = vmax.f32 %v1253, -1.0
      %v1255 = vmul.f32 %v365, %v365
      %v1256 = vmin.f32 16.0, %v1255
      %v1257 = vmul.f32 %v1256, 2.1237322e-06
      %v1258 = vadd.f32 %v1257, 0.00028619796
      %v1259 = vmul.f32 %v1256, %v1258
      %v1260 = vadd.f32 %v1259, 0.0036580483
      %v1261 = vmul.f32 %v1256, %v1260
      %v1262 = vadd.f32 %v1261, 0.05243302
      %v1263 = vmul.f32 %v1256, %v1262
      %v1264 = vadd.f32 %v1263, 0.18741608
      %v1265 = vmul.f32 %v1256, %v1264
      %v1266 = vadd.f32 %v1265, 1.1283791
      %v1267 = vmul.f32 %v365, %v1266
      %v1268 = vmul.f32 %v1256, 3.8918573e-05
      %v1269 = vadd.f32 %v1268, 0.001143296
      %v1270 = vmul.f32 %v1256, %v1269
      %v1271 = vadd.f32 %v1270, 0.014752088
      %v1272 = vmul.f32 %v1256, %v1271
      %v1273 = vadd.f32 %v1272, 0.112945676
      %v1274 = vmul.f32 %v1256, %v1273
      %v1275 = vadd.f32 %v1274, 0.4994258
      %v1276 = vmul.f32 %v1256, %v1275
      %v1277 = vadd.f32 %v1276, 1.0
      %v1278 = vrcp.pop %v1277
      %v1279 = vmul.f32 %v1277, %v1278
      %v1280 = vsub.f32 1.0, %v1279
      %v1281 = vmul.f32 %v1278, %v1280
      %v1282 = vadd.f32 %v1278, %v1281
      %vm1283 = vweird.f32 %v1277
      %vm1284 = vweird.f32 %v1278
      %vm1285 = vmor %vm1283, %vm1284
      %v1286 = vsel %vm1285, %v1278, %v1282
      %v1287 = vand.u32 2147483647, %v1277
      %vm1288 = vcmp.eq.f32.partialorder %v1287, 8.507059e+37
      %v1289 = vand.u32 %v1277, 2147483648
      %v1290 = vor.u32 1.1754944e-38, %v1289
      %v1291 = vsel %vm1288, %v1290, %v1286
      %v1292 = vmul.f32 %v1267, %v1291
      %v1293 = vmin.f32 %v1292, 1.0
      %v1294 = vmax.f32 %v1293, -1.0
      %v1295 = vmul.f32 %v366, %v366
      %v1296 = vmin.f32 16.0, %v1295
      %v1297 = vmul.f32 %v1296, 2.1237322e-06
      %v1298 = vadd.f32 %v1297, 0.00028619796
      %v1299 = vmul.f32 %v1296, %v1298
      %v1300 = vadd.f32 %v1299, 0.0036580483
      %v1301 = vmul.f32 %v1296, %v1300
      %v1302 = vadd.f32 %v1301, 0.05243302
      %v1303 = vmul.f32 %v1296, %v1302
      %v1304 = vadd.f32 %v1303, 0.18741608
      %v1305 = vmul.f32 %v1296, %v1304
      %v1306 = vadd.f32 %v1305, 1.1283791
      %v1307 = vmul.f32 %v366, %v1306
      %v1308 = vmul.f32 %v1296, 3.8918573e-05
      %v1309 = vadd.f32 %v1308, 0.001143296
      %v1310 = vmul.f32 %v1296, %v1309
      %v1311 = vadd.f32 %v1310, 0.014752088
      %v1312 = vmul.f32 %v1296, %v1311
      %v1313 = vadd.f32 %v1312, 0.112945676
      %v1314 = vmul.f32 %v1296, %v1313
      %v1315 = vadd.f32 %v1314, 0.4994258
      %v1316 = vmul.f32 %v1296, %v1315
      %v1317 = vadd.f32 %v1316, 1.0
      %v1318 = vrcp.pop %v1317
      %v1319 = vmul.f32 %v1317, %v1318
      %v1320 = vsub.f32 1.0, %v1319
      %v1321 = vmul.f32 %v1318, %v1320
      %v1322 = vadd.f32 %v1318, %v1321
      %vm1323 = vweird.f32 %v1317
      %vm1324 = vweird.f32 %v1318
      %vm1325 = vmor %vm1323, %vm1324
      %v1326 = vsel %vm1325, %v1318, %v1322
      %v1327 = vand.u32 2147483647, %v1317
      %vm1328 = vcmp.eq.f32.partialorder %v1327, 8.507059e+37
      %v1329 = vand.u32 %v1317, 2147483648
      %v1330 = vor.u32 1.1754944e-38, %v1329
      %v1331 = vsel %vm1328, %v1330, %v1326
      %v1332 = vmul.f32 %v1307, %v1331
      %v1333 = vmin.f32 %v1332, 1.0
      %v1334 = vmax.f32 %v1333, -1.0
      %v1335 = vmul.f32 %v367, %v367
      %v1336 = vmin.f32 16.0, %v1335
      %v1337 = vmul.f32 %v1336, 2.1237322e-06
      %v1338 = vadd.f32 %v1337, 0.00028619796
      %v1339 = vmul.f32 %v1336, %v1338
      %v1340 = vadd.f32 %v1339, 0.0036580483
      %v1341 = vmul.f32 %v1336, %v1340
      %v1342 = vadd.f32 %v1341, 0.05243302
      %v1343 = vmul.f32 %v1336, %v1342
      %v1344 = vadd.f32 %v1343, 0.18741608
      %v1345 = vmul.f32 %v1336, %v1344
      %v1346 = vadd.f32 %v1345, 1.1283791
      %v1347 = vmul.f32 %v367, %v1346
      %v1348 = vmul.f32 %v1336, 3.8918573e-05
      %v1349 = vadd.f32 %v1348, 0.001143296
      %v1350 = vmul.f32 %v1336, %v1349
      %v1351 = vadd.f32 %v1350, 0.014752088
      %v1352 = vmul.f32 %v1336, %v1351
      %v1353 = vadd.f32 %v1352, 0.112945676
      %v1354 = vmul.f32 %v1336, %v1353
      %v1355 = vadd.f32 %v1354, 0.4994258
      %v1356 = vmul.f32 %v1336, %v1355
      %v1357 = vadd.f32 %v1356, 1.0
      %v1358 = vrcp.pop %v1357
      %v1359 = vmul.f32 %v1357, %v1358
      %v1360 = vsub.f32 1.0, %v1359
      %v1361 = vmul.f32 %v1358, %v1360
      %v1362 = vadd.f32 %v1358, %v1361
      %vm1363 = vweird.f32 %v1357
      %vm1364 = vweird.f32 %v1358
      %vm1365 = vmor %vm1363, %vm1364
      %v1366 = vsel %vm1365, %v1358, %v1362
      %v1367 = vand.u32 2147483647, %v1357
      %vm1368 = vcmp.eq.f32.partialorder %v1367, 8.507059e+37
      %v1369 = vand.u32 %v1357, 2147483648
      %v1370 = vor.u32 1.1754944e-38, %v1369
      %v1371 = vsel %vm1368, %v1370, %v1366
      %v1372 = vmul.f32 %v1347, %v1371
      %v1373 = vmin.f32 %v1372, 1.0
      %v1374 = vmax.f32 %v1373, -1.0
      %v1375 = vmul.f32 %v368, %v368
      %v1376 = vmin.f32 16.0, %v1375
      %v1377 = vmul.f32 %v1376, 2.1237322e-06
      %v1378 = vadd.f32 %v1377, 0.00028619796
      %v1379 = vmul.f32 %v1376, %v1378
      %v1380 = vadd.f32 %v1379, 0.0036580483
      %v1381 = vmul.f32 %v1376, %v1380
      %v1382 = vadd.f32 %v1381, 0.05243302
      %v1383 = vmul.f32 %v1376, %v1382
      %v1384 = vadd.f32 %v1383, 0.18741608
      %v1385 = vmul.f32 %v1376, %v1384
      %v1386 = vadd.f32 %v1385, 1.1283791
      %v1387 = vmul.f32 %v368, %v1386
      %v1388 = vmul.f32 %v1376, 3.8918573e-05
      %v1389 = vadd.f32 %v1388, 0.001143296
      %v1390 = vmul.f32 %v1376, %v1389
      %v1391 = vadd.f32 %v1390, 0.014752088
      %v1392 = vmul.f32 %v1376, %v1391
      %v1393 = vadd.f32 %v1392, 0.112945676
      %v1394 = vmul.f32 %v1376, %v1393
      %v1395 = vadd.f32 %v1394, 0.4994258
      %v1396 = vmul.f32 %v1376, %v1395
      %v1397 = vadd.f32 %v1396, 1.0
      %v1398 = vrcp.pop %v1397
      %v1399 = vmul.f32 %v1397, %v1398
      %v1400 = vsub.f32 1.0, %v1399
      %v1401 = vmul.f32 %v1398, %v1400
      %v1402 = vadd.f32 %v1398, %v1401
      %vm1403 = vweird.f32 %v1397
      %vm1404 = vweird.f32 %v1398
      %vm1405 = vmor %vm1403, %vm1404
      %v1406 = vsel %vm1405, %v1398, %v1402
      %v1407 = vand.u32 2147483647, %v1397
      %vm1408 = vcmp.eq.f32.partialorder %v1407, 8.507059e+37
      %v1409 = vand.u32 %v1397, 2147483648
      %v1410 = vor.u32 1.1754944e-38, %v1409
      %v1411 = vsel %vm1408, %v1410, %v1406
      %v1412 = vmul.f32 %v1387, %v1411
      %v1413 = vmin.f32 %v1412, 1.0
      %v1414 = vmax.f32 %v1413, -1.0
      %v1415 = vmul.f32 %v369, %v369
      %v1416 = vmin.f32 16.0, %v1415
      %v1417 = vmul.f32 %v1416, 2.1237322e-06
      %v1418 = vadd.f32 %v1417, 0.00028619796
      %v1419 = vmul.f32 %v1416, %v1418
      %v1420 = vadd.f32 %v1419, 0.0036580483
      %v1421 = vmul.f32 %v1416, %v1420
      %v1422 = vadd.f32 %v1421, 0.05243302
      %v1423 = vmul.f32 %v1416, %v1422
      %v1424 = vadd.f32 %v1423, 0.18741608
      %v1425 = vmul.f32 %v1416, %v1424
      %v1426 = vadd.f32 %v1425, 1.1283791
      %v1427 = vmul.f32 %v369, %v1426
      %v1428 = vmul.f32 %v1416, 3.8918573e-05
      %v1429 = vadd.f32 %v1428, 0.001143296
      %v1430 = vmul.f32 %v1416, %v1429
      %v1431 = vadd.f32 %v1430, 0.014752088
      %v1432 = vmul.f32 %v1416, %v1431
      %v1433 = vadd.f32 %v1432, 0.112945676
      %v1434 = vmul.f32 %v1416, %v1433
      %v1435 = vadd.f32 %v1434, 0.4994258
      %v1436 = vmul.f32 %v1416, %v1435
      %v1437 = vadd.f32 %v1436, 1.0
      %v1438 = vrcp.pop %v1437
      %v1439 = vmul.f32 %v1437, %v1438
      %v1440 = vsub.f32 1.0, %v1439
      %v1441 = vmul.f32 %v1438, %v1440
      %v1442 = vadd.f32 %v1438, %v1441
      %vm1443 = vweird.f32 %v1437
      %vm1444 = vweird.f32 %v1438
      %vm1445 = vmor %vm1443, %vm1444
      %v1446 = vsel %vm1445, %v1438, %v1442
      %v1447 = vand.u32 2147483647, %v1437
      %vm1448 = vcmp.eq.f32.partialorder %v1447, 8.507059e+37
      %v1449 = vand.u32 %v1437, 2147483648
      %v1450 = vor.u32 1.1754944e-38, %v1449
      %v1451 = vsel %vm1448, %v1450, %v1446
      %v1452 = vmul.f32 %v1427, %v1451
      %v1453 = vmin.f32 %v1452, 1.0
      %v1454 = vmax.f32 %v1453, -1.0
      %v1455 = vmul.f32 %v370, %v370
      %v1456 = vmin.f32 16.0, %v1455
      %v1457 = vmul.f32 %v1456, 2.1237322e-06
      %v1458 = vadd.f32 %v1457, 0.00028619796
      %v1459 = vmul.f32 %v1456, %v1458
      %v1460 = vadd.f32 %v1459, 0.0036580483
      %v1461 = vmul.f32 %v1456, %v1460
      %v1462 = vadd.f32 %v1461, 0.05243302
      %v1463 = vmul.f32 %v1456, %v1462
      %v1464 = vadd.f32 %v1463, 0.18741608
      %v1465 = vmul.f32 %v1456, %v1464
      %v1466 = vadd.f32 %v1465, 1.1283791
      %v1467 = vmul.f32 %v370, %v1466
      %v1468 = vmul.f32 %v1456, 3.8918573e-05
      %v1469 = vadd.f32 %v1468, 0.001143296
      %v1470 = vmul.f32 %v1456, %v1469
      %v1471 = vadd.f32 %v1470, 0.014752088
      %v1472 = vmul.f32 %v1456, %v1471
      %v1473 = vadd.f32 %v1472, 0.112945676
      %v1474 = vmul.f32 %v1456, %v1473
      %v1475 = vadd.f32 %v1474, 0.4994258
      %v1476 = vmul.f32 %v1456, %v1475
      %v1477 = vadd.f32 %v1476, 1.0
      %v1478 = vrcp.pop %v1477
      %v1479 = vmul.f32 %v1477, %v1478
      %v1480 = vsub.f32 1.0, %v1479
      %v1481 = vmul.f32 %v1478, %v1480
      %v1482 = vadd.f32 %v1478, %v1481
      %vm1483 = vweird.f32 %v1477
      %vm1484 = vweird.f32 %v1478
      %vm1485 = vmor %vm1483, %vm1484
      %v1486 = vsel %vm1485, %v1478, %v1482
      %v1487 = vand.u32 2147483647, %v1477
      %vm1488 = vcmp.eq.f32.partialorder %v1487, 8.507059e+37
      %v1489 = vand.u32 %v1477, 2147483648
      %v1490 = vor.u32 1.1754944e-38, %v1489
      %v1491 = vsel %vm1488, %v1490, %v1486
      %v1492 = vmul.f32 %v1467, %v1491
      %v1493 = vmin.f32 %v1492, 1.0
      %v1494 = vmax.f32 %v1493, -1.0
      %v1495 = vmul.f32 %v371, %v371
      %v1496 = vmin.f32 16.0, %v1495
      %v1497 = vmul.f32 %v1496, 2.1237322e-06
      %v1498 = vadd.f32 %v1497, 0.00028619796
      %v1499 = vmul.f32 %v1496, %v1498
      %v1500 = vadd.f32 %v1499, 0.0036580483
      %v1501 = vmul.f32 %v1496, %v1500
      %v1502 = vadd.f32 %v1501, 0.05243302
      %v1503 = vmul.f32 %v1496, %v1502
      %v1504 = vadd.f32 %v1503, 0.18741608
      %v1505 = vmul.f32 %v1496, %v1504
      %v1506 = vadd.f32 %v1505, 1.1283791
      %v1507 = vmul.f32 %v371, %v1506
      %v1508 = vmul.f32 %v1496, 3.8918573e-05
      %v1509 = vadd.f32 %v1508, 0.001143296
      %v1510 = vmul.f32 %v1496, %v1509
      %v1511 = vadd.f32 %v1510, 0.014752088
      %v1512 = vmul.f32 %v1496, %v1511
      %v1513 = vadd.f32 %v1512, 0.112945676
      %v1514 = vmul.f32 %v1496, %v1513
      %v1515 = vadd.f32 %v1514, 0.4994258
      %v1516 = vmul.f32 %v1496, %v1515
      %v1517 = vadd.f32 %v1516, 1.0
      %v1518 = vrcp.pop %v1517
      %v1519 = vmul.f32 %v1517, %v1518
      %v1520 = vsub.f32 1.0, %v1519
      %v1521 = vmul.f32 %v1518, %v1520
      %v1522 = vadd.f32 %v1518, %v1521
      %vm1523 = vweird.f32 %v1517
      %vm1524 = vweird.f32 %v1518
      %vm1525 = vmor %vm1523, %vm1524
      %v1526 = vsel %vm1525, %v1518, %v1522
      %v1527 = vand.u32 2147483647, %v1517
      %vm1528 = vcmp.eq.f32.partialorder %v1527, 8.507059e+37
      %v1529 = vand.u32 %v1517, 2147483648
      %v1530 = vor.u32 1.1754944e-38, %v1529
      %v1531 = vsel %vm1528, %v1530, %v1526
      %v1532 = vmul.f32 %v1507, %v1531
      %v1533 = vmin.f32 %v1532, 1.0
      %v1534 = vmax.f32 %v1533, -1.0
      %v1535 = vmul.f32 %v372, %v372
      %v1536 = vmin.f32 16.0, %v1535
      %v1537 = vmul.f32 %v1536, 2.1237322e-06
      %v1538 = vadd.f32 %v1537, 0.00028619796
      %v1539 = vmul.f32 %v1536, %v1538
      %v1540 = vadd.f32 %v1539, 0.0036580483
      %v1541 = vmul.f32 %v1536, %v1540
      %v1542 = vadd.f32 %v1541, 0.05243302
      %v1543 = vmul.f32 %v1536, %v1542
      %v1544 = vadd.f32 %v1543, 0.18741608
      %v1545 = vmul.f32 %v1536, %v1544
      %v1546 = vadd.f32 %v1545, 1.1283791
      %v1547 = vmul.f32 %v372, %v1546
      %v1548 = vmul.f32 %v1536, 3.8918573e-05
      %v1549 = vadd.f32 %v1548, 0.001143296
      %v1550 = vmul.f32 %v1536, %v1549
      %v1551 = vadd.f32 %v1550, 0.014752088
      %v1552 = vmul.f32 %v1536, %v1551
      %v1553 = vadd.f32 %v1552, 0.112945676
      %v1554 = vmul.f32 %v1536, %v1553
      %v1555 = vadd.f32 %v1554, 0.4994258
      %v1556 = vmul.f32 %v1536, %v1555
      %v1557 = vadd.f32 %v1556, 1.0
      %v1558 = vrcp.pop %v1557
      %v1559 = vmul.f32 %v1557, %v1558
      %v1560 = vsub.f32 1.0, %v1559
      %v1561 = vmul.f32 %v1558, %v1560
      %v1562 = vadd.f32 %v1558, %v1561
      %vm1563 = vweird.f32 %v1557
      %vm1564 = vweird.f32 %v1558
      %vm1565 = vmor %vm1563, %vm1564
      %v1566 = vsel %vm1565, %v1558, %v1562
      %v1567 = vand.u32 2147483647, %v1557
      %vm1568 = vcmp.eq.f32.partialorder %v1567, 8.507059e+37
      %v1569 = vand.u32 %v1557, 2147483648
      %v1570 = vor.u32 1.1754944e-38, %v1569
      %v1571 = vsel %vm1568, %v1570, %v1566
      %v1572 = vmul.f32 %v1547, %v1571
      %v1573 = vmin.f32 %v1572, 1.0
      %v1574 = vmax.f32 %v1573, -1.0
      %v1575 = vmul.f32 %v373, %v373
      %v1576 = vmin.f32 16.0, %v1575
      %v1577 = vmul.f32 %v1576, 2.1237322e-06
      %v1578 = vadd.f32 %v1577, 0.00028619796
      %v1579 = vmul.f32 %v1576, %v1578
      %v1580 = vadd.f32 %v1579, 0.0036580483
      %v1581 = vmul.f32 %v1576, %v1580
      %v1582 = vadd.f32 %v1581, 0.05243302
      %v1583 = vmul.f32 %v1576, %v1582
      %v1584 = vadd.f32 %v1583, 0.18741608
      %v1585 = vmul.f32 %v1576, %v1584
      %v1586 = vadd.f32 %v1585, 1.1283791
      %v1587 = vmul.f32 %v373, %v1586
      %v1588 = vmul.f32 %v1576, 3.8918573e-05
      %v1589 = vadd.f32 %v1588, 0.001143296
      %v1590 = vmul.f32 %v1576, %v1589
      %v1591 = vadd.f32 %v1590, 0.014752088
      %v1592 = vmul.f32 %v1576, %v1591
      %v1593 = vadd.f32 %v1592, 0.112945676
      %v1594 = vmul.f32 %v1576, %v1593
      %v1595 = vadd.f32 %v1594, 0.4994258
      %v1596 = vmul.f32 %v1576, %v1595
      %v1597 = vadd.f32 %v1596, 1.0
      %v1598 = vrcp.pop %v1597
      %v1599 = vmul.f32 %v1597, %v1598
      %v1600 = vsub.f32 1.0, %v1599
      %v1601 = vmul.f32 %v1598, %v1600
      %v1602 = vadd.f32 %v1598, %v1601
      %vm1603 = vweird.f32 %v1597
      %vm1604 = vweird.f32 %v1598
      %vm1605 = vmor %vm1603, %vm1604
      %v1606 = vsel %vm1605, %v1598, %v1602
      %v1607 = vand.u32 2147483647, %v1597
      %vm1608 = vcmp.eq.f32.partialorder %v1607, 8.507059e+37
      %v1609 = vand.u32 %v1597, 2147483648
      %v1610 = vor.u32 1.1754944e-38, %v1609
      %v1611 = vsel %vm1608, %v1610, %v1606
      %v1612 = vmul.f32 %v1587, %v1611
      %v1613 = vmin.f32 %v1612, 1.0
      %v1614 = vmax.f32 %v1613, -1.0
      %v1615 = vmul.f32 %v374, %v374
      %v1616 = vmin.f32 16.0, %v1615
      %v1617 = vmul.f32 %v1616, 2.1237322e-06
      %v1618 = vadd.f32 %v1617, 0.00028619796
      %v1619 = vmul.f32 %v1616, %v1618
      %v1620 = vadd.f32 %v1619, 0.0036580483
      %v1621 = vmul.f32 %v1616, %v1620
      %v1622 = vadd.f32 %v1621, 0.05243302
      %v1623 = vmul.f32 %v1616, %v1622
      %v1624 = vadd.f32 %v1623, 0.18741608
      %v1625 = vmul.f32 %v1616, %v1624
      %v1626 = vadd.f32 %v1625, 1.1283791
      %v1627 = vmul.f32 %v374, %v1626
      %v1628 = vmul.f32 %v1616, 3.8918573e-05
      %v1629 = vadd.f32 %v1628, 0.001143296
      %v1630 = vmul.f32 %v1616, %v1629
      %v1631 = vadd.f32 %v1630, 0.014752088
      %v1632 = vmul.f32 %v1616, %v1631
      %v1633 = vadd.f32 %v1632, 0.112945676
      %v1634 = vmul.f32 %v1616, %v1633
      %v1635 = vadd.f32 %v1634, 0.4994258
      %v1636 = vmul.f32 %v1616, %v1635
      %v1637 = vadd.f32 %v1636, 1.0
      %v1638 = vrcp.pop %v1637
      %v1639 = vmul.f32 %v1637, %v1638
      %v1640 = vsub.f32 1.0, %v1639
      %v1641 = vmul.f32 %v1638, %v1640
      %v1642 = vadd.f32 %v1638, %v1641
      %vm1643 = vweird.f32 %v1637
      %vm1644 = vweird.f32 %v1638
      %vm1645 = vmor %vm1643, %vm1644
      %v1646 = vsel %vm1645, %v1638, %v1642
      %v1647 = vand.u32 2147483647, %v1637
      %vm1648 = vcmp.eq.f32.partialorder %v1647, 8.507059e+37
      %v1649 = vand.u32 %v1637, 2147483648
      %v1650 = vor.u32 1.1754944e-38, %v1649
      %v1651 = vsel %vm1648, %v1650, %v1646
      %v1652 = vmul.f32 %v1627, %v1651
      %v1653 = vmin.f32 %v1652, 1.0
      %v1654 = vmax.f32 %v1653, -1.0
      %v1655 = vadd.f32 %v414, 1.0
      %v1656 = vadd.f32 %v454, 1.0
      %v1657 = vadd.f32 %v494, 1.0
      %v1658 = vadd.f32 %v534, 1.0
      %v1659 = vadd.f32 %v574, 1.0
      %v1660 = vadd.f32 %v614, 1.0
      %v1661 = vadd.f32 %v654, 1.0
      %v1662 = vadd.f32 %v694, 1.0
      %v1663 = vadd.f32 %v734, 1.0
      %v1664 = vadd.f32 %v774, 1.0
      %v1665 = vadd.f32 %v814, 1.0
      %v1666 = vadd.f32 %v854, 1.0
      %v1667 = vadd.f32 %v894, 1.0
      %v1668 = vadd.f32 %v934, 1.0
      %v1669 = vadd.f32 %v974, 1.0
      %v1670 = vadd.f32 %v1014, 1.0
      %v1671 = vadd.f32 %v1054, 1.0
      %v1672 = vadd.f32 %v1094, 1.0
      %v1673 = vadd.f32 %v1134, 1.0
      %v1674 = vadd.f32 %v1174, 1.0
      %v1675 = vadd.f32 %v1214, 1.0
      %v1676 = vadd.f32 %v1254, 1.0
      %v1677 = vadd.f32 %v1294, 1.0
      %v1678 = vadd.f32 %v1334, 1.0
      %v1679 = vadd.f32 %v1374, 1.0
      %v1680 = vadd.f32 %v1414, 1.0
      %v1681 = vadd.f32 %v1454, 1.0
      %v1682 = vadd.f32 %v1494, 1.0
      %v1683 = vadd.f32 %v1534, 1.0
      %v1684 = vadd.f32 %v1574, 1.0
      %v1685 = vadd.f32 %v1614, 1.0
      %v1686 = vadd.f32 %v1654, 1.0
      %v1687 = vmul.f32 %v304, %v1655
      %v1688 = vmul.f32 %v305, %v1656
      %v1689 = vmul.f32 %v306, %v1657
      %v1690 = vmul.f32 %v307, %v1658
      %v1691 = vmul.f32 %v308, %v1659
      %v1692 = vmul.f32 %v309, %v1660
      %v1693 = vmul.f32 %v310, %v1661
      %v1694 = vmul.f32 %v311, %v1662
      %v1695 = vmul.f32 %v312, %v1663
      %v1696 = vmul.f32 %v313, %v1664
      %v1697 = vmul.f32 %v314, %v1665
      %v1698 = vmul.f32 %v315, %v1666
      %v1699 = vmul.f32 %v316, %v1667
      %v1700 = vmul.f32 %v317, %v1668
      %v1701 = vmul.f32 %v318, %v1669
      %v1702 = vmul.f32 %v319, %v1670
      %v1703 = vmul.f32 %v320, %v1671
      %v1704 = vmul.f32 %v321, %v1672
      %v1705 = vmul.f32 %v322, %v1673
      %v1706 = vmul.f32 %v323, %v1674
      %v1707 = vmul.f32 %v324, %v1675
      %v1708 = vmul.f32 %v325, %v1676
      %v1709 = vmul.f32 %v326, %v1677
      %v1710 = vmul.f32 %v327, %v1678
      %v1711 = vmul.f32 %v328, %v1679
      %v1712 = vmul.f32 %v329, %v1680
      %v1713 = vmul.f32 %v330, %v1681
      %v1714 = vmul.f32 %v331, %v1682
      %v1715 = vmul.f32 %v332, %v1683
      %v1716 = vmul.f32 %v333, %v1684
      %v1717 = vmul.f32 %v334, %v1685
      %v1718 = vmul.f32 %v335, %v1686
      %v1719 = vld [vmem:[%s194] sm:$0x1]
      %v1720 = vadd.f32 %v1687, %v1688
      %v1721 = vadd.f32 %v1720, %v1689
      %v1722 = vadd.f32 %v1721, %v1690
      %v1723 = vadd.f32 %v1722, %v1691
      %v1724 = vadd.f32 %v1723, %v1692
      %v1725 = vadd.f32 %v1724, %v1693
      %v1726 = vadd.f32 %v1725, %v1694
      %v1727 = vadd.f32 %v1726, %v1695
      %v1728 = vadd.f32 %v1727, %v1696
      %v1729 = vadd.f32 %v1728, %v1697
      %v1730 = vadd.f32 %v1729, %v1698
      %v1731 = vadd.f32 %v1730, %v1699
      %v1732 = vadd.f32 %v1731, %v1700
      %v1733 = vadd.f32 %v1732, %v1701
      %v1734 = vadd.f32 %v1733, %v1702
      %v1735 = vadd.f32 %v1734, %v1703
      %v1736 = vadd.f32 %v1735, %v1704
      %v1737 = vadd.f32 %v1736, %v1705
      %v1738 = vadd.f32 %v1737, %v1706
      %v1739 = vadd.f32 %v1738, %v1707
      %v1740 = vadd.f32 %v1739, %v1708
      %v1741 = vadd.f32 %v1740, %v1709
      %v1742 = vadd.f32 %v1741, %v1710
      %v1743 = vadd.f32 %v1742, %v1711
      %v1744 = vadd.f32 %v1743, %v1712
      %v1745 = vadd.f32 %v1744, %v1713
      %v1746 = vadd.f32 %v1745, %v1714
      %v1747 = vadd.f32 %v1746, %v1715
      %v1748 = vadd.f32 %v1747, %v1716
      %v1749 = vadd.f32 %v1748, %v1717
      %v1750 = vadd.f32 %v1749, %v1718
      %v1751 = vrot.slane %v1750, 4
      %v1752 = vadd.f32 %v1750, %v1751
      %v1753 = vrot.slane %v1752, 2
      %v1754 = vadd.f32 %v1752, %v1753
      %v1755 = vrot.slane %v1754, 1
      %v1756 = vadd.f32 %v1754, %v1755
      %v1757 = vmul.f32 %v1756, 0.00390625
      %v1758 = vadd.f32 %v1719, %v1757
      %1759 = vst [vmem:[%s194] sm:$0x1] %v1758
      %p1760 = scmp.lt.s32.totalorder %s18, 1
      %s1761 = scalar_select %p1760, %s18, 1
      %s1762 = scalar_lea.vmem %s3, %s1761
      // Predicated region
      $region37: #{mbconv_forward.15} parent=31 // pred_check
        %p1763 = pneg %p114
      $region38: #{mbconv_forward.15} parent=31 // pred_check_branch
        %1765 = sbr.rel (%p1763) target = $region40
      $region39: #{mbconv_forward.15} parent=31 // pred_region
        _
      $region40: #{mbconv_forward.15} parent=31 // pred_fallthru
        _
    $region32: #{mbconv_forward.15} parent=5 // pred_fallthru
      _
    %p1766 = scmp.le.s32.totalorder 2, %s9
    // Predicated region
    $region41: #{mbconv_forward.15} parent=5 // pred_check
      %p1767 = pneg %p1766
    $region42: #{mbconv_forward.15} parent=5 // pred_check_branch
      %1769 = sbr.rel (%p1767) target = $region44
    $region43: #{mbconv_forward.15} parent=5 // pred_region
      %s1770 = ssub.s32 %s9, 2
      // Predicated region
      $region45: #{mbconv_forward.15} parent=43 // pred_check
        %p1771 = pneg %p120
      $region46: #{mbconv_forward.15} parent=43 // pred_check_branch
        %1773 = sbr.rel (%p1771) target = $region48
      $region47: #{mbconv_forward.15} parent=43 // pred_region
        %p1774 = scmp.lt.s32.totalorder %s20, 1
        %s1775 = scalar_select %p1774, %s20, 1
        %s1776 = scalar_lea.vmem %s3, %s1775
      $region48: #{mbconv_forward.15} parent=43 // pred_fallthru
        _
    $region44: #{mbconv_forward.15} parent=5 // pred_fallthru
      _
  $region6: #{mbconv_forward.15} parent=0 // loop_footer
    %s13 = sadd.s32 1, %s9
  $region7: #{mbconv_forward.15} parent=0 // loop_footer_branch
    %8 = sbr.rel target = $region3
  $region8: #{mbconv_forward.15} parent=0 // loop_exit
    _

// kernel: mbconv_forward.17
$region0: #{mbconv_forward.17}
  #allocation0 [shape = 'u32[]', space=smem, size = 0x4, offset = 0x4, fixed_abs, tag = 'smem constant byte address 0x4 - core index']
  #allocation1 [shape = 'u32[72,128]{1,0:T(1,128)}', space=vmem, size = 0x9000, scoped, tag = 'internal scratch']
  %s0 = inlined_call_operand.vmem [shape: f32[2,256,128], index: 0, kind: input, shape index: {}]
  %s1 = inlined_call_operand.vmem [shape: f32[1,128], index: 1, kind: input, shape index: {}]
  %s2 = inlined_call_operand.vmem [shape: f32[1,128], index: 2, kind: input, shape index: {}]
  %s3 = inlined_call_operand.vmem [shape: f32[2,1,128], index: 3, kind: input, shape index: {}]
  %s4 = inlined_call_operand.vmem [shape: bf16[128,32], index: 4, kind: input, shape index: {}]
  %s5 = inlined_call_operand.vmem [shape: f32[2,256,32], index: 5, kind: output, shape index: {}]
  %s6 = sld [smem:[#allocation0]]
  $region53: #{mbconv_forward.17} parent=0
    _
  %s8 = ssub.s32 1, %s6
  %s9 = scalar_select 0, %s8, %s6
  loop: start=0, step=1, limit=4
  $region2: #{mbconv_forward.17} parent=0 // loop_pre_header
    _
  $region3: #{mbconv_forward.17} parent=0 // loop_header
    %s11 = sphi 0, %s15
    %p12 = scmp.ge.s32.totalorder %s11, 4
    %s18 = sphi 0, %s30
    %s19 = sphi 0, %s26
    %s20 = sphi 0, %s18
    %s21 = sphi 0, %s19
    %s22 = sphi 0, %s20
    %s23 = sphi 0, %s21
    %s35 = sphi 0, %s37
    %s38 = sphi 0, %s35
    %s39 = sphi 0, %s38
    %s55 = sphi 0, %s39
    %s59 = sphi 0, %s59
    %s61 = sphi 0, %s59
    %s62 = sphi 0, %s61
    %s76 = sphi 0, %s62
    %s80 = sphi 0, %s80
    %s82 = sphi 0, %s80
    %s83 = sphi 0, %s82
    %s97 = sphi 0, %s83
    %s103 = sphi 0, %s105
    %s106 = sphi 0, %s103
    %s107 = sphi 0, %s106
    %s123 = sphi 0, %s107
    %s127 = sphi 0, %s127
    %s129 = sphi 0, %s127
    %s130 = sphi 0, %s129
    %s144 = sphi 0, %s130
    %s152 = sphi 0, %s154
    %s155 = sphi 0, %s152
    %s156 = sphi 0, %s155
    %s172 = sphi 0, %s156
  $region4: #{mbconv_forward.17} parent=0 // loop_header_branch
    %14 = sbr.rel (%p12) target = $region8
  $region5: #{mbconv_forward.17} parent=0 // loop_body
    %s16 = ssub.s32 %s11, 1
    %s17 = ssub.s32 %s11, 2
    %s24 = sadd.s32 1, %s19
    %p25 = scmp.ge.s32.totalorder %s24, 1
    %s26 = scalar_select %p25, 0, %s24
    %s27 = sadd.s32 1, %s18
    %s28 = scalar_select %p25, %s27, %s18
    %p29 = scmp.ge.s32.totalorder %s28, 2
    %s30 = scalar_select %p29, 0, %s28
    %s31 = ssub.s32 %s18, %s30
    %s32 = ssub.s32 %s19, %s26
    %s33 = sor.u32 %s31, %s32
    %p34 = scmp.eq.s32.totalorder %s33, 0
    %s36 = sadd.s32 %s35, 1
    %s37 = scalar_select %p34, %s35, %s36
    %p40 = pneg %p34
    %p41 = scmp.eq.s32.totalorder %s11, 1
    %p42 = por %p40, %p41
    %p43 = scmp.ne.s32.totalorder %s35, %s38
    %p44 = scmp.eq.s32.totalorder %s11, 0
    %p45 = por %p43, %p44
    %p46 = scmp.ne.s32.totalorder %s35, %s38
    %p47 = scmp.eq.s32.totalorder %s16, 1
    %p48 = por %p46, %p47
    %p49 = scmp.ne.s32.totalorder %s38, %s39
    %p50 = scmp.eq.s32.totalorder %s16, 0
    %p51 = por %p49, %p50
    %p52 = scmp.ne.s32.totalorder %s38, %s39
    %p53 = scmp.eq.s32.totalorder %s17, 1
    %p54 = por %p52, %p53
    %p56 = scmp.ne.s32.totalorder %s39, %s55
    %p57 = scmp.eq.s32.totalorder %s17, 0
    %p58 = por %p56, %p57
    %s60 = sadd.s32 %s59, 1
    %p63 = scmp.eq.s32.totalorder %s11, 1
    %p64 = scmp.ne.s32.totalorder %s59, %s61
    %p65 = scmp.eq.s32.totalorder %s11, 0
    %p66 = por %p64, %p65
    %p67 = scmp.ne.s32.totalorder %s59, %s61
    %p68 = scmp.eq.s32.totalorder %s16, 1
    %p69 = por %p67, %p68
    %p70 = scmp.ne.s32.totalorder %s61, %s62
    %p71 = scmp.eq.s32.totalorder %s16, 0
    %p72 = por %p70, %p71
    %p73 = scmp.ne.s32.totalorder %s61, %s62
    %p74 = scmp.eq.s32.totalorder %s17, 1
    %p75 = por %p73, %p74
    %p77 = scmp.ne.s32.totalorder %s62, %s76
    %p78 = scmp.eq.s32.totalorder %s17, 0
    %p79 = por %p77, %p78
    %s81 = sadd.s32 %s80, 1
    %p84 = scmp.eq.s32.totalorder %s11, 1
    %p85 = scmp.ne.s32.totalorder %s80, %s82
    %p86 = scmp.eq.s32.totalorder %s11, 0
    %p87 = por %p85, %p86
    %p88 = scmp.ne.s32.totalorder %s80, %s82
    %p89 = scmp.eq.s32.totalorder %s16, 1
    %p90 = por %p88, %p89
    %p91 = scmp.ne.s32.totalorder %s82, %s83
    %p92 = scmp.eq.s32.totalorder %s16, 0
    %p93 = por %p91, %p92
    %p94 = scmp.ne.s32.totalorder %s82, %s83
    %p95 = scmp.eq.s32.totalorder %s17, 1
    %p96 = por %p94, %p95
    %p98 = scmp.ne.s32.totalorder %s83, %s97
    %p99 = scmp.eq.s32.totalorder %s17, 0
    %p100 = por %p98, %p99
    %s101 = ssub.s32 %s18, %s30
    %p102 = scmp.eq.s32.totalorder %s101, 0
    %s104 = sadd.s32 %s103, 1
    %s105 = scalar_select %p102, %s103, %s104
    %p108 = pneg %p102
    %p109 = scmp.eq.s32.totalorder %s11, 1
    %p110 = por %p108, %p109
    %p111 = scmp.ne.s32.totalorder %s103, %s106
    %p112 = scmp.eq.s32.totalorder %s11, 0
    %p113 = por %p111, %p112
    %p114 = scmp.ne.s32.totalorder %s103, %s106
    %p115 = scmp.eq.s32.totalorder %s16, 1
    %p116 = por %p114, %p115
    %p117 = scmp.ne.s32.totalorder %s106, %s107
    %p118 = scmp.eq.s32.totalorder %s16, 0
    %p119 = por %p117, %p118
    %p120 = scmp.ne.s32.totalorder %s106, %s107
    %p121 = scmp.eq.s32.totalorder %s17, 1
    %p122 = por %p120, %p121
    %p124 = scmp.ne.s32.totalorder %s107, %s123
    %p125 = scmp.eq.s32.totalorder %s17, 0
    %p126 = por %p124, %p125
    %s128 = sadd.s32 %s127, 1
    %p131 = scmp.eq.s32.totalorder %s11, 1
    %p132 = scmp.ne.s32.totalorder %s127, %s129
    %p133 = scmp.eq.s32.totalorder %s11, 0
    %p134 = por %p132, %p133
    %p135 = scmp.ne.s32.totalorder %s127, %s129
    %p136 = scmp.eq.s32.totalorder %s16, 1
    %p137 = por %p135, %p136
    %p138 = scmp.ne.s32.totalorder %s129, %s130
    %p139 = scmp.eq.s32.totalorder %s16, 0
    %p140 = por %p138, %p139
    %p141 = scmp.ne.s32.totalorder %s129, %s130
    %p142 = scmp.eq.s32.totalorder %s17, 1
    %p143 = por %p141, %p142
    %p145 = scmp.ne.s32.totalorder %s130, %s144
    %p146 = scmp.eq.s32.totalorder %s17, 0
    %p147 = por %p145, %p146
    %s148 = ssub.s32 %s18, %s30
    %s149 = ssub.s32 %s19, %s26
    %s150 = sor.u32 %s148, %s149
    %p151 = scmp.eq.s32.totalorder %s150, 0
    %s153 = sadd.s32 %s152, 1
    %s154 = scalar_select %p151, %s152, %s153
    %p157 = pneg %p151
    %p158 = scmp.eq.s32.totalorder %s11, 1
    %p159 = por %p157, %p158
    %p160 = scmp.ne.s32.totalorder %s152, %s155
    %p161 = scmp.eq.s32.totalorder %s11, 0
    %p162 = por %p160, %p161
    %p163 = scmp.ne.s32.totalorder %s152, %s155
    %p164 = scmp.eq.s32.totalorder %s16, 1
    %p165 = por %p163, %p164
    %p166 = scmp.ne.s32.totalorder %s155, %s156
    %p167 = scmp.eq.s32.totalorder %s16, 0
    %p168 = por %p166, %p167
    %p169 = scmp.ne.s32.totalorder %s155, %s156
    %p170 = scmp.eq.s32.totalorder %s17, 1
    %p171 = por %p169, %p170
    %p173 = scmp.ne.s32.totalorder %s156, %s172
    %p174 = scmp.eq.s32.totalorder %s17, 0
    %p175 = por %p173, %p174
    %p176 = scmp.le.s32.totalorder 1, %s11
    %p177 = scmp.lt.s32.totalorder %s11, 3
    %p178 = pnand %p176, %p177
    %p179 = pneg %p178
    // Predicated region
    $region9: #{mbconv_forward.17} parent=5 // pred_check
      _
    $region10: #{mbconv_forward.17} parent=5 // pred_check_branch
      %181 = sbr.rel (%p178) target = $region12
    $region11: #{mbconv_forward.17} parent=5 // pred_region
      %s182 = ssub.s32 %s11, 1
      // Predicated region
      $region13: #{mbconv_forward.17} parent=11 // pred_check
        %p183 = pneg %p72
      $region14: #{mbconv_forward.17} parent=11 // pred_check_branch
        %185 = sbr.rel (%p183) target = $region16
      $region15: #{mbconv_forward.17} parent=11 // pred_region
        _
      $region16: #{mbconv_forward.17} parent=11 // pred_fallthru
        _
      // Predicated region
      $region17: #{mbconv_forward.17} parent=11 // pred_check
        %p186 = pneg %p93
      $region18: #{mbconv_forward.17} parent=11 // pred_check_branch
        %188 = sbr.rel (%p186) target = $region20
      $region19: #{mbconv_forward.17} parent=11 // pred_region
        _
      $region20: #{mbconv_forward.17} parent=11 // pred_fallthru
        _
      // Predicated region
      $region21: #{mbconv_forward.17} parent=11 // pred_check
        %p189 = pneg %p140
      $region22: #{mbconv_forward.17} parent=11 // pred_check_branch
        %191 = sbr.rel (%p189) target = $region24
      $region23: #{mbconv_forward.17} parent=11 // pred_region
        _
      $region24: #{mbconv_forward.17} parent=11 // pred_fallthru
        _
    $region12: #{mbconv_forward.17} parent=5 // pred_fallthru
      _
    %p192 = scmp.lt.s32.totalorder %s11, 2
    // Predicated region
    $region25: #{mbconv_forward.17} parent=5 // pred_check
      %p193 = pneg %p192
    $region26: #{mbconv_forward.17} parent=5 // pred_check_branch
      %195 = sbr.rel (%p193) target = $region28
    $region27: #{mbconv_forward.17} parent=5 // pred_region
      // Predicated region
      $region29: #{mbconv_forward.17} parent=27 // pred_check
        %p196 = pneg %p45
      $region30: #{mbconv_forward.17} parent=27 // pred_check_branch
        %198 = sbr.rel (%p196) target = $region32
      $region31: #{mbconv_forward.17} parent=27 // pred_region
        %s199 = smul.u32 32, %s19
        %p200 = scmp.lt.s32.totalorder %s18, 1
        %s201 = scalar_select %p200, %s18, 1
        %p202 = scmp.lt.s32.totalorder %s199, 31
        %s203 = scalar_select %p202, %s199, 31
        %s204 = smul.addr %s201, 32
        %s205 = sadd.s32 %s203, %s204
        %s206 = smul.addr %s205, 8
        %s207 = scalar_lea.vmem %s0, %s206
        %s208 = smul.u32 32, %s19
      $region32: #{mbconv_forward.17} parent=27 // pred_fallthru
        _
      // Predicated region
      $region33: #{mbconv_forward.17} parent=27 // pred_check
        %p209 = pneg %p113
      $region34: #{mbconv_forward.17} parent=27 // pred_check_branch
        %211 = sbr.rel (%p209) target = $region36
      $region35: #{mbconv_forward.17} parent=27 // pred_region
        %p212 = scmp.lt.s32.totalorder %s18, 1
        %s213 = scalar_select %p212, %s18, 1
        %s214 = scalar_lea.vmem %s3, %s213
      $region36: #{mbconv_forward.17} parent=27 // pred_fallthru
        _
    $region28: #{mbconv_forward.17} parent=5 // pred_fallthru
      _
    %p215 = scmp.le.s32.totalorder 1, %s11
    %p216 = scmp.lt.s32.totalorder %s11, 3
    %p217 = pnand %p215, %p216
    %p218 = pneg %p217
    // Predicated region
    $region37: #{mbconv_forward.17} parent=5 // pred_check
      _
    $region38: #{mbconv_forward.17} parent=5 // pred_check_branch
      %220 = sbr.rel (%p217) target = $region40
    $region39: #{mbconv_forward.17} parent=5 // pred_region
      %s221 = ssub.s32 %s11, 1
      %s222 = smul.u32 32, %s21
      %p223 = scmp.lt.s32.totalorder %s20, 1
      %s224 = scalar_select %p223, %s20, 1
      %p225 = scmp.lt.s32.totalorder %s222, 31
      %s226 = scalar_select %p225, %s222, 31
      %s227 = smul.addr %s224, 32
      %s228 = sadd.s32 %s226, %s227
      %s229 = smul.addr %s228, 8
      %s230 = scalar_lea.vmem %s0, %s229
      %p231 = pneg %p51
      %p232 = pneg %p48
      %p233 = pneg %p72
      %p234 = pneg %p69
      %p235 = pneg %p93
      %p236 = pneg %p90
      %p237 = scmp.lt.s32.totalorder %s20, 1
      %s238 = scalar_select %p237, %s20, 1
      %s239 = scalar_lea.vmem %s3, %s238
      %p240 = pneg %p119
      %p241 = pneg %p116
      %p242 = pneg %p140
      %p243 = pneg %p137
      %p244 = pneg %p168
      %p245 = pneg %p165
      %s246 = smul.u32 32, %s21
      %p247 = scmp.lt.s32.totalorder %s20, 1
      %s248 = scalar_select %p247, %s20, 1
      %p249 = scmp.lt.s32.totalorder %s246, 31
      %s250 = scalar_select %p249, %s246, 31
      %s251 = smul.addr %s248, 32
      %s252 = sadd.s32 %s250, %s251
      %s253 = smul.addr %s252, 8
      %s254 = scalar_lea.vmem %s5, %s253
      %s255 = smul.u32 32, %s21
      %p256 = scmp.lt.s32.totalorder %s20, 1
      %s257 = scalar_select %p256, %s20, 1
      %p258 = scmp.lt.s32.totalorder %s255, 31
      %s259 = scalar_select %p258, %s255, 31
      %s260 = smul.addr %s257, 32
      %s261 = sadd.s32 %s259, %s260
      %s262 = smul.addr %s261, 8
      %s263 = scalar_lea.vmem %s0, %s262
      %s264 = smul.u32 32, %s21
      %p265 = scmp.lt.s32.totalorder %s20, 1
      %s266 = scalar_select %p265, %s20, 1
      %s267 = scalar_lea.vmem %s3, %s266
      %s268 = smul.u32 32, %s21
      %p269 = scmp.lt.s32.totalorder %s20, 1
      %s270 = scalar_select %p269, %s20, 1
      %p271 = scmp.lt.s32.totalorder %s268, 31
      %s272 = scalar_select %p271, %s268, 31
      %s273 = smul.addr %s270, 32
      %s274 = sadd.s32 %s272, %s273
      %s275 = smul.addr %s274, 8
      %s276 = scalar_lea.vmem %s5, %s275
      %s277 = smul.u32 32, %s21
      %v278 = vld [vmem:[%s263] sm:$0xff]
      %v279 = vld [vmem:[%s263 + $0x8] sm:$0xff]
      %v280 = vld [vmem:[%s263 + $0x10] sm:$0xff]
      %v281 = vld [vmem:[%s263 + $0x18] sm:$0xff]
      %v282 = vld [vmem:[%s263 + $0x20] sm:$0xff]
      %v283 = vld [vmem:[%s263 + $0x28] sm:$0xff]
      %v284 = vld [vmem:[%s263 + $0x30] sm:$0xff]
      %v285 = vld [vmem:[%s263 + $0x38] sm:$0xff]
      %v286 = vld [vmem:[%s263 + $0x40] sm:$0xff]
      %v287 = vld [vmem:[%s263 + $0x48] sm:$0xff]
      %v288 = vld [vmem:[%s263 + $0x50] sm:$0xff]
      %v289 = vld [vmem:[%s263 + $0x58] sm:$0xff]
      %v290 = vld [vmem:[%s263 + $0x60] sm:$0xff]
      %v291 = vld [vmem:[%s263 + $0x68] sm:$0xff]
      %v292 = vld [vmem:[%s263 + $0x70] sm:$0xff]
      %v293 = vld [vmem:[%s263 + $0x78] sm:$0xff]
      %v294 = vld [vmem:[%s263 + $0x80] sm:$0xff]
      %v295 = vld [vmem:[%s263 + $0x88] sm:$0xff]
      %v296 = vld [vmem:[%s263 + $0x90] sm:$0xff]
      %v297 = vld [vmem:[%s263 + $0x98] sm:$0xff]
      %v298 = vld [vmem:[%s263 + $0xa0] sm:$0xff]
      %v299 = vld [vmem:[%s263 + $0xa8] sm:$0xff]
      %v300 = vld [vmem:[%s263 + $0xb0] sm:$0xff]
      %v301 = vld [vmem:[%s263 + $0xb8] sm:$0xff]
      %v302 = vld [vmem:[%s263 + $0xc0] sm:$0xff]
      %v303 = vld [vmem:[%s263 + $0xc8] sm:$0xff]
      %v304 = vld [vmem:[%s263 + $0xd0] sm:$0xff]
      %v305 = vld [vmem:[%s263 + $0xd8] sm:$0xff]
      %v306 = vld [vmem:[%s263 + $0xe0] sm:$0xff]
      %v307 = vld [vmem:[%s263 + $0xe8] sm:$0xff]
      %v308 = vld [vmem:[%s263 + $0xf0] sm:$0xff]
      %v309 = vld [vmem:[%s263 + $0xf8] sm:$0xff]
      %v310 = vld [vmem:[%s1] sm:$0x1]
      %v312 = vperm.slane %v310, 0
      %v314 = vmul.f32 %v278, %v312
      %v315 = vmul.f32 %v279, %v312
      %v316 = vmul.f32 %v280, %v312
      %v317 = vmul.f32 %v281, %v312
      %v318 = vmul.f32 %v282, %v312
      %v319 = vmul.f32 %v283, %v312
      %v320 = vmul.f32 %v284, %v312
      %v321 = vmul.f32 %v285, %v312
      %v322 = vmul.f32 %v286, %v312
      %v323 = vmul.f32 %v287, %v312
      %v324 = vmul.f32 %v288, %v312
      %v325 = vmul.f32 %v289, %v312
      %v326 = vmul.f32 %v290, %v312
      %v327 = vmul.f32 %v291, %v312
      %v328 = vmul.f32 %v292, %v312
      %v329 = vmul.f32 %v293, %v312
      %v330 = vmul.f32 %v294, %v312
      %v331 = vmul.f32 %v295, %v312
      %v332 = vmul.f32 %v296, %v312
      %v333 = vmul.f32 %v297, %v312
      %v334 = vmul.f32 %v298, %v312
      %v335 = vmul.f32 %v299, %v312
      %v336 = vmul.f32 %v300, %v312
      %v337 = vmul.f32 %v301, %v312
      %v338 = vmul.f32 %v302, %v312
      %v339 = vmul.f32 %v303, %v312
      %v340 = vmul.f32 %v304, %v312
      %v341 = vmul.f32 %v305, %v312
      %v342 = vmul.f32 %v306, %v312
      %v343 = vmul.f32 %v307, %v312
      %v344 = vmul.f32 %v308, %v312
      %v345 = vmul.f32 %v309, %v312
      %v346 = vld [vmem:[%s2] sm:$0x1]
      %v348 = vperm.slane %v346, 0
      %v350 = vadd.f32 %v314, %v348
      %v351 = vadd.f32 %v315, %v348
      %v352 = vadd.f32 %v316, %v348
      %v353 = vadd.f32 %v317, %v348
      %v354 = vadd.f32 %v318, %v348
      %v355 = vadd.f32 %v319, %v348
      %v356 = vadd.f32 %v320, %v348
      %v357 = vadd.f32 %v321, %v348
      %v358 = vadd.f32 %v322, %v348
      %v359 = vadd.f32 %v323, %v348
      %v360 = vadd.f32 %v324, %v348
      %v361 = vadd.f32 %v325, %v348
      %v362 = vadd.f32 %v326, %v348
      %v363 = vadd.f32 %v327, %v348
      %v364 = vadd.f32 %v328, %v348
      %v365 = vadd.f32 %v329, %v348
      %v366 = vadd.f32 %v330, %v348
      %v367 = vadd.f32 %v331, %v348
      %v368 = vadd.f32 %v332, %v348
      %v369 = vadd.f32 %v333, %v348
      %v370 = vadd.f32 %v334, %v348
      %v371 = vadd.f32 %v335, %v348
      %v372 = vadd.f32 %v336, %v348
      %v373 = vadd.f32 %v337, %v348
      %v374 = vadd.f32 %v338, %v348
      %v375 = vadd.f32 %v339, %v348
      %v376 = vadd.f32 %v340, %v348
      %v377 = vadd.f32 %v341, %v348
      %v378 = vadd.f32 %v342, %v348
      %v379 = vadd.f32 %v343, %v348
      %v380 = vadd.f32 %v344, %v348
      %v381 = vadd.f32 %v345, %v348
      %v382 = vmul.f32 %v350, 0.5
      %v383 = vmul.f32 %v351, 0.5
      %v384 = vmul.f32 %v352, 0.5
      %v385 = vmul.f32 %v353, 0.5
      %v386 = vmul.f32 %v354, 0.5
      %v387 = vmul.f32 %v355, 0.5
      %v388 = vmul.f32 %v356, 0.5
      %v389 = vmul.f32 %v357, 0.5
      %v390 = vmul.f32 %v358, 0.5
      %v391 = vmul.f32 %v359, 0.5
      %v392 = vmul.f32 %v360, 0.5
      %v393 = vmul.f32 %v361, 0.5
      %v394 = vmul.f32 %v362, 0.5
      %v395 = vmul.f32 %v363, 0.5
      %v396 = vmul.f32 %v364, 0.5
      %v397 = vmul.f32 %v365, 0.5
      %v398 = vmul.f32 %v366, 0.5
      %v399 = vmul.f32 %v367, 0.5
      %v400 = vmul.f32 %v368, 0.5
      %v401 = vmul.f32 %v369, 0.5
      %v402 = vmul.f32 %v370, 0.5
      %v403 = vmul.f32 %v371, 0.5
      %v404 = vmul.f32 %v372, 0.5
      %v405 = vmul.f32 %v373, 0.5
      %v406 = vmul.f32 %v374, 0.5
      %v407 = vmul.f32 %v375, 0.5
      %v408 = vmul.f32 %v376, 0.5
      %v409 = vmul.f32 %v377, 0.5
      %v410 = vmul.f32 %v378, 0.5
      %v411 = vmul.f32 %v379, 0.5
      %v412 = vmul.f32 %v380, 0.5
      %v413 = vmul.f32 %v381, 0.5
      %v414 = vrcp.pop 1.4142135
      %v415 = vmul.f32 1.4142135, %v414
      %v416 = vsub.f32 1.0, %v415
      %v417 = vmul.f32 %v414, %v416
      %v418 = vadd.f32 %v414, %v417
      %vm419 = vweird.f32 %v414
      %v420 = vsel %vm419, %v414, %v418
      %v421 = vmul.f32 %v350, %v420
      %v422 = vmul.f32 %v351, %v420
      %v423 = vmul.f32 %v352, %v420
      %v424 = vmul.f32 %v353, %v420
      %v425 = vmul.f32 %v354, %v420
      %v426 = vmul.f32 %v355, %v420
      %v427 = vmul.f32 %v356, %v420
      %v428 = vmul.f32 %v357, %v420
      %v429 = vmul.f32 %v358, %v420
      %v430 = vmul.f32 %v359, %v420
      %v431 = vmul.f32 %v360, %v420
      %v432 = vmul.f32 %v361, %v420
      %v433 = vmul.f32 %v362, %v420
      %v434 = vmul.f32 %v363, %v420
      %v435 = vmul.f32 %v364, %v420
      %v436 = vmul.f32 %v365, %v420
      %v437 = vmul.f32 %v366, %v420
      %v438 = vmul.f32 %v367, %v420
      %v439 = vmul.f32 %v368, %v420
      %v440 = vmul.f32 %v369, %v420
      %v441 = vmul.f32 %v370, %v420
      %v442 = vmul.f32 %v371, %v420
      %v443 = vmul.f32 %v372, %v420
      %v444 = vmul.f32 %v373, %v420
      %v445 = vmul.f32 %v374, %v420
      %v446 = vmul.f32 %v375, %v420
      %v447 = vmul.f32 %v376, %v420
      %v448 = vmul.f32 %v377, %v420
      %v449 = vmul.f32 %v378, %v420
      %v450 = vmul.f32 %v379, %v420
      %v451 = vmul.f32 %v380, %v420
      %v452 = vmul.f32 %v381, %v420
      %v453 = vmul.f32 %v421, %v421
      %v454 = vmin.f32 16.0, %v453
      %v455 = vmul.f32 %v454, 2.1237322e-06
      %v456 = vadd.f32 %v455, 0.00028619796
      %v457 = vmul.f32 %v454, %v456
      %v458 = vadd.f32 %v457, 0.0036580483
      %v459 = vmul.f32 %v454, %v458
      %v460 = vadd.f32 %v459, 0.05243302
      %v461 = vmul.f32 %v454, %v460
      %v462 = vadd.f32 %v461, 0.18741608
      %v463 = vmul.f32 %v454, %v462
      %v464 = vadd.f32 %v463, 1.1283791
      %v465 = vmul.f32 %v421, %v464
      %v466 = vmul.f32 %v454, 3.8918573e-05
      %v467 = vadd.f32 %v466, 0.001143296
      %v468 = vmul.f32 %v454, %v467
      %v469 = vadd.f32 %v468, 0.014752088
      %v470 = vmul.f32 %v454, %v469
      %v471 = vadd.f32 %v470, 0.112945676
      %v472 = vmul.f32 %v454, %v471
      %v473 = vadd.f32 %v472, 0.4994258
      %v474 = vmul.f32 %v454, %v473
      %v475 = vadd.f32 %v474, 1.0
      %v476 = vrcp.pop %v475
      %v477 = vmul.f32 %v475, %v476
      %v478 = vsub.f32 1.0, %v477
      %v479 = vmul.f32 %v476, %v478
      %v480 = vadd.f32 %v476, %v479
      %vm481 = vweird.f32 %v475
      %vm482 = vweird.f32 %v476
      %vm483 = vmor %vm481, %vm482
      %v484 = vsel %vm483, %v476, %v480
      %v485 = vand.u32 2147483647, %v475
      %vm486 = vcmp.eq.f32.partialorder %v485, 8.507059e+37
      %v487 = vand.u32 %v475, 2147483648
      %v488 = vor.u32 1.1754944e-38, %v487
      %v489 = vsel %vm486, %v488, %v484
      %v490 = vmul.f32 %v465, %v489
      %v491 = vmin.f32 %v490, 1.0
      %v492 = vmax.f32 %v491, -1.0
      %v493 = vmul.f32 %v422, %v422
      %v494 = vmin.f32 16.0, %v493
      %v495 = vmul.f32 %v494, 2.1237322e-06
      %v496 = vadd.f32 %v495, 0.00028619796
      %v497 = vmul.f32 %v494, %v496
      %v498 = vadd.f32 %v497, 0.0036580483
      %v499 = vmul.f32 %v494, %v498
      %v500 = vadd.f32 %v499, 0.05243302
      %v501 = vmul.f32 %v494, %v500
      %v502 = vadd.f32 %v501, 0.18741608
      %v503 = vmul.f32 %v494, %v502
      %v504 = vadd.f32 %v503, 1.1283791
      %v505 = vmul.f32 %v422, %v504
      %v506 = vmul.f32 %v494, 3.8918573e-05
      %v507 = vadd.f32 %v506, 0.001143296
      %v508 = vmul.f32 %v494, %v507
      %v509 = vadd.f32 %v508, 0.014752088
      %v510 = vmul.f32 %v494, %v509
      %v511 = vadd.f32 %v510, 0.112945676
      %v512 = vmul.f32 %v494, %v511
      %v513 = vadd.f32 %v512, 0.4994258
      %v514 = vmul.f32 %v494, %v513
      %v515 = vadd.f32 %v514, 1.0
      %v516 = vrcp.pop %v515
      %v517 = vmul.f32 %v515, %v516
      %v518 = vsub.f32 1.0, %v517
      %v519 = vmul.f32 %v516, %v518
      %v520 = vadd.f32 %v516, %v519
      %vm521 = vweird.f32 %v515
      %vm522 = vweird.f32 %v516
      %vm523 = vmor %vm521, %vm522
      %v524 = vsel %vm523, %v516, %v520
      %v525 = vand.u32 2147483647, %v515
      %vm526 = vcmp.eq.f32.partialorder %v525, 8.507059e+37
      %v527 = vand.u32 %v515, 2147483648
      %v528 = vor.u32 1.1754944e-38, %v527
      %v529 = vsel %vm526, %v528, %v524
      %v530 = vmul.f32 %v505, %v529
      %v531 = vmin.f32 %v530, 1.0
      %v532 = vmax.f32 %v531, -1.0
      %v533 = vmul.f32 %v423, %v423
      %v534 = vmin.f32 16.0, %v533
      %v535 = vmul.f32 %v534, 2.1237322e-06
      %v536 = vadd.f32 %v535, 0.00028619796
      %v537 = vmul.f32 %v534, %v536
      %v538 = vadd.f32 %v537, 0.0036580483
      %v539 = vmul.f32 %v534, %v538
      %v540 = vadd.f32 %v539, 0.05243302
      %v541 = vmul.f32 %v534, %v540
      %v542 = vadd.f32 %v541, 0.18741608
      %v543 = vmul.f32 %v534, %v542
      %v544 = vadd.f32 %v543, 1.1283791
      %v545 = vmul.f32 %v423, %v544
      %v546 = vmul.f32 %v534, 3.8918573e-05
      %v547 = vadd.f32 %v546, 0.001143296
      %v548 = vmul.f32 %v534, %v547
      %v549 = vadd.f32 %v548, 0.014752088
      %v550 = vmul.f32 %v534, %v549
      %v551 = vadd.f32 %v550, 0.112945676
      %v552 = vmul.f32 %v534, %v551
      %v553 = vadd.f32 %v552, 0.4994258
      %v554 = vmul.f32 %v534, %v553
      %v555 = vadd.f32 %v554, 1.0
      %v556 = vrcp.pop %v555
      %v557 = vmul.f32 %v555, %v556
      %v558 = vsub.f32 1.0, %v557
      %v559 = vmul.f32 %v556, %v558
      %v560 = vadd.f32 %v556, %v559
      %vm561 = vweird.f32 %v555
      %vm562 = vweird.f32 %v556
      %vm563 = vmor %vm561, %vm562
      %v564 = vsel %vm563, %v556, %v560
      %v565 = vand.u32 2147483647, %v555
      %vm566 = vcmp.eq.f32.partialorder %v565, 8.507059e+37
      %v567 = vand.u32 %v555, 2147483648
      %v568 = vor.u32 1.1754944e-38, %v567
      %v569 = vsel %vm566, %v568, %v564
      %v570 = vmul.f32 %v545, %v569
      %v571 = vmin.f32 %v570, 1.0
      %v572 = vmax.f32 %v571, -1.0
      %v573 = vmul.f32 %v424, %v424
      %v574 = vmin.f32 16.0, %v573
      %v575 = vmul.f32 %v574, 2.1237322e-06
      %v576 = vadd.f32 %v575, 0.00028619796
      %v577 = vmul.f32 %v574, %v576
      %v578 = vadd.f32 %v577, 0.0036580483
      %v579 = vmul.f32 %v574, %v578
      %v580 = vadd.f32 %v579, 0.05243302
      %v581 = vmul.f32 %v574, %v580
      %v582 = vadd.f32 %v581, 0.18741608
      %v583 = vmul.f32 %v574, %v582
      %v584 = vadd.f32 %v583, 1.1283791
      %v585 = vmul.f32 %v424, %v584
      %v586 = vmul.f32 %v574, 3.8918573e-05
      %v587 = vadd.f32 %v586, 0.001143296
      %v588 = vmul.f32 %v574, %v587
      %v589 = vadd.f32 %v588, 0.014752088
      %v590 = vmul.f32 %v574, %v589
      %v591 = vadd.f32 %v590, 0.112945676
      %v592 = vmul.f32 %v574, %v591
      %v593 = vadd.f32 %v592, 0.4994258
      %v594 = vmul.f32 %v574, %v593
      %v595 = vadd.f32 %v594, 1.0
      %v596 = vrcp.pop %v595
      %v597 = vmul.f32 %v595, %v596
      %v598 = vsub.f32 1.0, %v597
      %v599 = vmul.f32 %v596, %v598
      %v600 = vadd.f32 %v596, %v599
      %vm601 = vweird.f32 %v595
      %vm602 = vweird.f32 %v596
      %vm603 = vmor %vm601, %vm602
      %v604 = vsel %vm603, %v596, %v600
      %v605 = vand.u32 2147483647, %v595
      %vm606 = vcmp.eq.f32.partialorder %v605, 8.507059e+37
      %v607 = vand.u32 %v595, 2147483648
      %v608 = vor.u32 1.1754944e-38, %v607
      %v609 = vsel %vm606, %v608, %v604
      %v610 = vmul.f32 %v585, %v609
      %v611 = vmin.f32 %v610, 1.0
      %v612 = vmax.f32 %v611, -1.0
      %v613 = vmul.f32 %v425, %v425
      %v614 = vmin.f32 16.0, %v613
      %v615 = vmul.f32 %v614, 2.1237322e-06
      %v616 = vadd.f32 %v615, 0.00028619796
      %v617 = vmul.f32 %v614, %v616
      %v618 = vadd.f32 %v617, 0.0036580483
      %v619 = vmul.f32 %v614, %v618
      %v620 = vadd.f32 %v619, 0.05243302
      %v621 = vmul.f32 %v614, %v620
      %v622 = vadd.f32 %v621, 0.18741608
      %v623 = vmul.f32 %v614, %v622
      %v624 = vadd.f32 %v623, 1.1283791
      %v625 = vmul.f32 %v425, %v624
      %v626 = vmul.f32 %v614, 3.8918573e-05
      %v627 = vadd.f32 %v626, 0.001143296
      %v628 = vmul.f32 %v614, %v627
      %v629 = vadd.f32 %v628, 0.014752088
      %v630 = vmul.f32 %v614, %v629
      %v631 = vadd.f32 %v630, 0.112945676
      %v632 = vmul.f32 %v614, %v631
      %v633 = vadd.f32 %v632, 0.4994258
      %v634 = vmul.f32 %v614, %v633
      %v635 = vadd.f32 %v634, 1.0
      %v636 = vrcp.pop %v635
      %v637 = vmul.f32 %v635, %v636
      %v638 = vsub.f32 1.0, %v637
      %v639 = vmul.f32 %v636, %v638
      %v640 = vadd.f32 %v636, %v639
      %vm641 = vweird.f32 %v635
      %vm642 = vweird.f32 %v636
      %vm643 = vmor %vm641, %vm642
      %v644 = vsel %vm643, %v636, %v640
      %v645 = vand.u32 2147483647, %v635
      %vm646 = vcmp.eq.f32.partialorder %v645, 8.507059e+37
      %v647 = vand.u32 %v635, 2147483648
      %v648 = vor.u32 1.1754944e-38, %v647
      %v649 = vsel %vm646, %v648, %v644
      %v650 = vmul.f32 %v625, %v649
      %v651 = vmin.f32 %v650, 1.0
      %v652 = vmax.f32 %v651, -1.0
      %v653 = vmul.f32 %v426, %v426
      %v654 = vmin.f32 16.0, %v653
      %v655 = vmul.f32 %v654, 2.1237322e-06
      %v656 = vadd.f32 %v655, 0.00028619796
      %v657 = vmul.f32 %v654, %v656
      %v658 = vadd.f32 %v657, 0.0036580483
      %v659 = vmul.f32 %v654, %v658
      %v660 = vadd.f32 %v659, 0.05243302
      %v661 = vmul.f32 %v654, %v660
      %v662 = vadd.f32 %v661, 0.18741608
      %v663 = vmul.f32 %v654, %v662
      %v664 = vadd.f32 %v663, 1.1283791
      %v665 = vmul.f32 %v426, %v664
      %v666 = vmul.f32 %v654, 3.8918573e-05
      %v667 = vadd.f32 %v666, 0.001143296
      %v668 = vmul.f32 %v654, %v667
      %v669 = vadd.f32 %v668, 0.014752088
      %v670 = vmul.f32 %v654, %v669
      %v671 = vadd.f32 %v670, 0.112945676
      %v672 = vmul.f32 %v654, %v671
      %v673 = vadd.f32 %v672, 0.4994258
      %v674 = vmul.f32 %v654, %v673
      %v675 = vadd.f32 %v674, 1.0
      %v676 = vrcp.pop %v675
      %v677 = vmul.f32 %v675, %v676
      %v678 = vsub.f32 1.0, %v677
      %v679 = vmul.f32 %v676, %v678
      %v680 = vadd.f32 %v676, %v679
      %vm681 = vweird.f32 %v675
      %vm682 = vweird.f32 %v676
      %vm683 = vmor %vm681, %vm682
      %v684 = vsel %vm683, %v676, %v680
      %v685 = vand.u32 2147483647, %v675
      %vm686 = vcmp.eq.f32.partialorder %v685, 8.507059e+37
      %v687 = vand.u32 %v675, 2147483648
      %v688 = vor.u32 1.1754944e-38, %v687
      %v689 = vsel %vm686, %v688, %v684
      %v690 = vmul.f32 %v665, %v689
      %v691 = vmin.f32 %v690, 1.0
      %v692 = vmax.f32 %v691, -1.0
      %v693 = vmul.f32 %v427, %v427
      %v694 = vmin.f32 16.0, %v693
      %v695 = vmul.f32 %v694, 2.1237322e-06
      %v696 = vadd.f32 %v695, 0.00028619796
      %v697 = vmul.f32 %v694, %v696
      %v698 = vadd.f32 %v697, 0.0036580483
      %v699 = vmul.f32 %v694, %v698
      %v700 = vadd.f32 %v699, 0.05243302
      %v701 = vmul.f32 %v694, %v700
      %v702 = vadd.f32 %v701, 0.18741608
      %v703 = vmul.f32 %v694, %v702
      %v704 = vadd.f32 %v703, 1.1283791
      %v705 = vmul.f32 %v427, %v704
      %v706 = vmul.f32 %v694, 3.8918573e-05
      %v707 = vadd.f32 %v706, 0.001143296
      %v708 = vmul.f32 %v694, %v707
      %v709 = vadd.f32 %v708, 0.014752088
      %v710 = vmul.f32 %v694, %v709
      %v711 = vadd.f32 %v710, 0.112945676
      %v712 = vmul.f32 %v694, %v711
      %v713 = vadd.f32 %v712, 0.4994258
      %v714 = vmul.f32 %v694, %v713
      %v715 = vadd.f32 %v714, 1.0
      %v716 = vrcp.pop %v715
      %v717 = vmul.f32 %v715, %v716
      %v718 = vsub.f32 1.0, %v717
      %v719 = vmul.f32 %v716, %v718
      %v720 = vadd.f32 %v716, %v719
      %vm721 = vweird.f32 %v715
      %vm722 = vweird.f32 %v716
      %vm723 = vmor %vm721, %vm722
      %v724 = vsel %vm723, %v716, %v720
      %v725 = vand.u32 2147483647, %v715
      %vm726 = vcmp.eq.f32.partialorder %v725, 8.507059e+37
      %v727 = vand.u32 %v715, 2147483648
      %v728 = vor.u32 1.1754944e-38, %v727
      %v729 = vsel %vm726, %v728, %v724
      %v730 = vmul.f32 %v705, %v729
      %v731 = vmin.f32 %v730, 1.0
      %v732 = vmax.f32 %v731, -1.0
      %v733 = vmul.f32 %v428, %v428
      %v734 = vmin.f32 16.0, %v733
      %v735 = vmul.f32 %v734, 2.1237322e-06
      %v736 = vadd.f32 %v735, 0.00028619796
      %v737 = vmul.f32 %v734, %v736
      %v738 = vadd.f32 %v737, 0.0036580483
      %v739 = vmul.f32 %v734, %v738
      %v740 = vadd.f32 %v739, 0.05243302
      %v741 = vmul.f32 %v734, %v740
      %v742 = vadd.f32 %v741, 0.18741608
      %v743 = vmul.f32 %v734, %v742
      %v744 = vadd.f32 %v743, 1.1283791
      %v745 = vmul.f32 %v428, %v744
      %v746 = vmul.f32 %v734, 3.8918573e-05
      %v747 = vadd.f32 %v746, 0.001143296
      %v748 = vmul.f32 %v734, %v747
      %v749 = vadd.f32 %v748, 0.014752088
      %v750 = vmul.f32 %v734, %v749
      %v751 = vadd.f32 %v750, 0.112945676
      %v752 = vmul.f32 %v734, %v751
      %v753 = vadd.f32 %v752, 0.4994258
      %v754 = vmul.f32 %v734, %v753
      %v755 = vadd.f32 %v754, 1.0
      %v756 = vrcp.pop %v755
      %v757 = vmul.f32 %v755, %v756
      %v758 = vsub.f32 1.0, %v757
      %v759 = vmul.f32 %v756, %v758
      %v760 = vadd.f32 %v756, %v759
      %vm761 = vweird.f32 %v755
      %vm762 = vweird.f32 %v756
      %vm763 = vmor %vm761, %vm762
      %v764 = vsel %vm763, %v756, %v760
      %v765 = vand.u32 2147483647, %v755
      %vm766 = vcmp.eq.f32.partialorder %v765, 8.507059e+37
      %v767 = vand.u32 %v755, 2147483648
      %v768 = vor.u32 1.1754944e-38, %v767
      %v769 = vsel %vm766, %v768, %v764
      %v770 = vmul.f32 %v745, %v769
      %v771 = vmin.f32 %v770, 1.0
      %v772 = vmax.f32 %v771, -1.0
      %v773 = vmul.f32 %v429, %v429
      %v774 = vmin.f32 16.0, %v773
      %v775 = vmul.f32 %v774, 2.1237322e-06
      %v776 = vadd.f32 %v775, 0.00028619796
      %v777 = vmul.f32 %v774, %v776
      %v778 = vadd.f32 %v777, 0.0036580483
      %v779 = vmul.f32 %v774, %v778
      %v780 = vadd.f32 %v779, 0.05243302
      %v781 = vmul.f32 %v774, %v780
      %v782 = vadd.f32 %v781, 0.18741608
      %v783 = vmul.f32 %v774, %v782
      %v784 = vadd.f32 %v783, 1.1283791
      %v785 = vmul.f32 %v429, %v784
      %v786 = vmul.f32 %v774, 3.8918573e-05
      %v787 = vadd.f32 %v786, 0.001143296
      %v788 = vmul.f32 %v774, %v787
      %v789 = vadd.f32 %v788, 0.014752088
      %v790 = vmul.f32 %v774, %v789
      %v791 = vadd.f32 %v790, 0.112945676
      %v792 = vmul.f32 %v774, %v791
      %v793 = vadd.f32 %v792, 0.4994258
      %v794 = vmul.f32 %v774, %v793
      %v795 = vadd.f32 %v794, 1.0
      %v796 = vrcp.pop %v795
      %v797 = vmul.f32 %v795, %v796
      %v798 = vsub.f32 1.0, %v797
      %v799 = vmul.f32 %v796, %v798
      %v800 = vadd.f32 %v796, %v799
      %vm801 = vweird.f32 %v795
      %vm802 = vweird.f32 %v796
      %vm803 = vmor %vm801, %vm802
      %v804 = vsel %vm803, %v796, %v800
      %v805 = vand.u32 2147483647, %v795
      %vm806 = vcmp.eq.f32.partialorder %v805, 8.507059e+37
      %v807 = vand.u32 %v795, 2147483648
      %v808 = vor.u32 1.1754944e-38, %v807
      %v809 = vsel %vm806, %v808, %v804
      %v810 = vmul.f32 %v785, %v809
      %v811 = vmin.f32 %v810, 1.0
      %v812 = vmax.f32 %v811, -1.0
      %v813 = vmul.f32 %v430, %v430
      %v814 = vmin.f32 16.0, %v813
      %v815 = vmul.f32 %v814, 2.1237322e-06
      %v816 = vadd.f32 %v815, 0.00028619796
      %v817 = vmul.f32 %v814, %v816
      %v818 = vadd.f32 %v817, 0.0036580483
      %v819 = vmul.f32 %v814, %v818
      %v820 = vadd.f32 %v819, 0.05243302
      %v821 = vmul.f32 %v814, %v820
      %v822 = vadd.f32 %v821, 0.18741608
      %v823 = vmul.f32 %v814, %v822
      %v824 = vadd.f32 %v823, 1.1283791
      %v825 = vmul.f32 %v430, %v824
      %v826 = vmul.f32 %v814, 3.8918573e-05
      %v827 = vadd.f32 %v826, 0.001143296
      %v828 = vmul.f32 %v814, %v827
      %v829 = vadd.f32 %v828, 0.014752088
      %v830 = vmul.f32 %v814, %v829
      %v831 = vadd.f32 %v830, 0.112945676
      %v832 = vmul.f32 %v814, %v831
      %v833 = vadd.f32 %v832, 0.4994258
      %v834 = vmul.f32 %v814, %v833
      %v835 = vadd.f32 %v834, 1.0
      %v836 = vrcp.pop %v835
      %v837 = vmul.f32 %v835, %v836
      %v838 = vsub.f32 1.0, %v837
      %v839 = vmul.f32 %v836, %v838
      %v840 = vadd.f32 %v836, %v839
      %vm841 = vweird.f32 %v835
      %vm842 = vweird.f32 %v836
      %vm843 = vmor %vm841, %vm842
      %v844 = vsel %vm843, %v836, %v840
      %v845 = vand.u32 2147483647, %v835
      %vm846 = vcmp.eq.f32.partialorder %v845, 8.507059e+37
      %v847 = vand.u32 %v835, 2147483648
      %v848 = vor.u32 1.1754944e-38, %v847
      %v849 = vsel %vm846, %v848, %v844
      %v850 = vmul.f32 %v825, %v849
      %v851 = vmin.f32 %v850, 1.0
      %v852 = vmax.f32 %v851, -1.0
      %v853 = vmul.f32 %v431, %v431
      %v854 = vmin.f32 16.0, %v853
      %v855 = vmul.f32 %v854, 2.1237322e-06
      %v856 = vadd.f32 %v855, 0.00028619796
      %v857 = vmul.f32 %v854, %v856
      %v858 = vadd.f32 %v857, 0.0036580483
      %v859 = vmul.f32 %v854, %v858
      %v860 = vadd.f32 %v859, 0.05243302
      %v861 = vmul.f32 %v854, %v860
      %v862 = vadd.f32 %v861, 0.18741608
      %v863 = vmul.f32 %v854, %v862
      %v864 = vadd.f32 %v863, 1.1283791
      %v865 = vmul.f32 %v431, %v864
      %v866 = vmul.f32 %v854, 3.8918573e-05
      %v867 = vadd.f32 %v866, 0.001143296
      %v868 = vmul.f32 %v854, %v867
      %v869 = vadd.f32 %v868, 0.014752088
      %v870 = vmul.f32 %v854, %v869
      %v871 = vadd.f32 %v870, 0.112945676
      %v872 = vmul.f32 %v854, %v871
      %v873 = vadd.f32 %v872, 0.4994258
      %v874 = vmul.f32 %v854, %v873
      %v875 = vadd.f32 %v874, 1.0
      %v876 = vrcp.pop %v875
      %v877 = vmul.f32 %v875, %v876
      %v878 = vsub.f32 1.0, %v877
      %v879 = vmul.f32 %v876, %v878
      %v880 = vadd.f32 %v876, %v879
      %vm881 = vweird.f32 %v875
      %vm882 = vweird.f32 %v876
      %vm883 = vmor %vm881, %vm882
      %v884 = vsel %vm883, %v876, %v880
      %v885 = vand.u32 2147483647, %v875
      %vm886 = vcmp.eq.f32.partialorder %v885, 8.507059e+37
      %v887 = vand.u32 %v875, 2147483648
      %v888 = vor.u32 1.1754944e-38, %v887
      %v889 = vsel %vm886, %v888, %v884
      %v890 = vmul.f32 %v865, %v889
      %v891 = vmin.f32 %v890, 1.0
      %v892 = vmax.f32 %v891, -1.0
      %v893 = vmul.f32 %v432, %v432
      %v894 = vmin.f32 16.0, %v893
      %v895 = vmul.f32 %v894, 2.1237322e-06
      %v896 = vadd.f32 %v895, 0.00028619796
      %v897 = vmul.f32 %v894, %v896
      %v898 = vadd.f32 %v897, 0.0036580483
      %v899 = vmul.f32 %v894, %v898
      %v900 = vadd.f32 %v899, 0.05243302
      %v901 = vmul.f32 %v894, %v900
      %v902 = vadd.f32 %v901, 0.18741608
      %v903 = vmul.f32 %v894, %v902
      %v904 = vadd.f32 %v903, 1.1283791
      %v905 = vmul.f32 %v432, %v904
      %v906 = vmul.f32 %v894, 3.8918573e-05
      %v907 = vadd.f32 %v906, 0.001143296
      %v908 = vmul.f32 %v894, %v907
      %v909 = vadd.f32 %v908, 0.014752088
      %v910 = vmul.f32 %v894, %v909
      %v911 = vadd.f32 %v910, 0.112945676
      %v912 = vmul.f32 %v894, %v911
      %v913 = vadd.f32 %v912, 0.4994258
      %v914 = vmul.f32 %v894, %v913
      %v915 = vadd.f32 %v914, 1.0
      %v916 = vrcp.pop %v915
      %v917 = vmul.f32 %v915, %v916
      %v918 = vsub.f32 1.0, %v917
      %v919 = vmul.f32 %v916, %v918
      %v920 = vadd.f32 %v916, %v919
      %vm921 = vweird.f32 %v915
      %vm922 = vweird.f32 %v916
      %vm923 = vmor %vm921, %vm922
      %v924 = vsel %vm923, %v916, %v920
      %v925 = vand.u32 2147483647, %v915
      %vm926 = vcmp.eq.f32.partialorder %v925, 8.507059e+37
      %v927 = vand.u32 %v915, 2147483648
      %v928 = vor.u32 1.1754944e-38, %v927
      %v929 = vsel %vm926, %v928, %v924
      %v930 = vmul.f32 %v905, %v929
      %v931 = vmin.f32 %v930, 1.0
      %v932 = vmax.f32 %v931, -1.0
      %v933 = vmul.f32 %v433, %v433
      %v934 = vmin.f32 16.0, %v933
      %v935 = vmul.f32 %v934, 2.1237322e-06
      %v936 = vadd.f32 %v935, 0.00028619796
      %v937 = vmul.f32 %v934, %v936
      %v938 = vadd.f32 %v937, 0.0036580483
      %v939 = vmul.f32 %v934, %v938
      %v940 = vadd.f32 %v939, 0.05243302
      %v941 = vmul.f32 %v934, %v940
      %v942 = vadd.f32 %v941, 0.18741608
      %v943 = vmul.f32 %v934, %v942
      %v944 = vadd.f32 %v943, 1.1283791
      %v945 = vmul.f32 %v433, %v944
      %v946 = vmul.f32 %v934, 3.8918573e-05
      %v947 = vadd.f32 %v946, 0.001143296
      %v948 = vmul.f32 %v934, %v947
      %v949 = vadd.f32 %v948, 0.014752088
      %v950 = vmul.f32 %v934, %v949
      %v951 = vadd.f32 %v950, 0.112945676
      %v952 = vmul.f32 %v934, %v951
      %v953 = vadd.f32 %v952, 0.4994258
      %v954 = vmul.f32 %v934, %v953
      %v955 = vadd.f32 %v954, 1.0
      %v956 = vrcp.pop %v955
      %v957 = vmul.f32 %v955, %v956
      %v958 = vsub.f32 1.0, %v957
      %v959 = vmul.f32 %v956, %v958
      %v960 = vadd.f32 %v956, %v959
      %vm961 = vweird.f32 %v955
      %vm962 = vweird.f32 %v956
      %vm963 = vmor %vm961, %vm962
      %v964 = vsel %vm963, %v956, %v960
      %v965 = vand.u32 2147483647, %v955
      %vm966 = vcmp.eq.f32.partialorder %v965, 8.507059e+37
      %v967 = vand.u32 %v955, 2147483648
      %v968 = vor.u32 1.1754944e-38, %v967
      %v969 = vsel %vm966, %v968, %v964
      %v970 = vmul.f32 %v945, %v969
      %v971 = vmin.f32 %v970, 1.0
      %v972 = vmax.f32 %v971, -1.0
      %v973 = vmul.f32 %v434, %v434
      %v974 = vmin.f32 16.0, %v973
      %v975 = vmul.f32 %v974, 2.1237322e-06
      %v976 = vadd.f32 %v975, 0.00028619796
      %v977 = vmul.f32 %v974, %v976
      %v978 = vadd.f32 %v977, 0.0036580483
      %v979 = vmul.f32 %v974, %v978
      %v980 = vadd.f32 %v979, 0.05243302
      %v981 = vmul.f32 %v974, %v980
      %v982 = vadd.f32 %v981, 0.18741608
      %v983 = vmul.f32 %v974, %v982
      %v984 = vadd.f32 %v983, 1.1283791
      %v985 = vmul.f32 %v434, %v984
      %v986 = vmul.f32 %v974, 3.8918573e-05
      %v987 = vadd.f32 %v986, 0.001143296
      %v988 = vmul.f32 %v974, %v987
      %v989 = vadd.f32 %v988, 0.014752088
      %v990 = vmul.f32 %v974, %v989
      %v991 = vadd.f32 %v990, 0.112945676
      %v992 = vmul.f32 %v974, %v991
      %v993 = vadd.f32 %v992, 0.4994258
      %v994 = vmul.f32 %v974, %v993
      %v995 = vadd.f32 %v994, 1.0
      %v996 = vrcp.pop %v995
      %v997 = vmul.f32 %v995, %v996
      %v998 = vsub.f32 1.0, %v997
      %v999 = vmul.f32 %v996, %v998
      %v1000 = vadd.f32 %v996, %v999
      %vm1001 = vweird.f32 %v995
      %vm1002 = vweird.f32 %v996
      %vm1003 = vmor %vm1001, %vm1002
      %v1004 = vsel %vm1003, %v996, %v1000
      %v1005 = vand.u32 2147483647, %v995
      %vm1006 = vcmp.eq.f32.partialorder %v1005, 8.507059e+37
      %v1007 = vand.u32 %v995, 2147483648
      %v1008 = vor.u32 1.1754944e-38, %v1007
      %v1009 = vsel %vm1006, %v1008, %v1004
      %v1010 = vmul.f32 %v985, %v1009
      %v1011 = vmin.f32 %v1010, 1.0
      %v1012 = vmax.f32 %v1011, -1.0
      %v1013 = vmul.f32 %v435, %v435
      %v1014 = vmin.f32 16.0, %v1013
      %v1015 = vmul.f32 %v1014, 2.1237322e-06
      %v1016 = vadd.f32 %v1015, 0.00028619796
      %v1017 = vmul.f32 %v1014, %v1016
      %v1018 = vadd.f32 %v1017, 0.0036580483
      %v1019 = vmul.f32 %v1014, %v1018
      %v1020 = vadd.f32 %v1019, 0.05243302
      %v1021 = vmul.f32 %v1014, %v1020
      %v1022 = vadd.f32 %v1021, 0.18741608
      %v1023 = vmul.f32 %v1014, %v1022
      %v1024 = vadd.f32 %v1023, 1.1283791
      %v1025 = vmul.f32 %v435, %v1024
      %v1026 = vmul.f32 %v1014, 3.8918573e-05
      %v1027 = vadd.f32 %v1026, 0.001143296
      %v1028 = vmul.f32 %v1014, %v1027
      %v1029 = vadd.f32 %v1028, 0.014752088
      %v1030 = vmul.f32 %v1014, %v1029
      %v1031 = vadd.f32 %v1030, 0.112945676
      %v1032 = vmul.f32 %v1014, %v1031
      %v1033 = vadd.f32 %v1032, 0.4994258
      %v1034 = vmul.f32 %v1014, %v1033
      %v1035 = vadd.f32 %v1034, 1.0
      %v1036 = vrcp.pop %v1035
      %v1037 = vmul.f32 %v1035, %v1036
      %v1038 = vsub.f32 1.0, %v1037
      %v1039 = vmul.f32 %v1036, %v1038
      %v1040 = vadd.f32 %v1036, %v1039
      %vm1041 = vweird.f32 %v1035
      %vm1042 = vweird.f32 %v1036
      %vm1043 = vmor %vm1041, %vm1042
      %v1044 = vsel %vm1043, %v1036, %v1040
      %v1045 = vand.u32 2147483647, %v1035
      %vm1046 = vcmp.eq.f32.partialorder %v1045, 8.507059e+37
      %v1047 = vand.u32 %v1035, 2147483648
      %v1048 = vor.u32 1.1754944e-38, %v1047
      %v1049 = vsel %vm1046, %v1048, %v1044
      %v1050 = vmul.f32 %v1025, %v1049
      %v1051 = vmin.f32 %v1050, 1.0
      %v1052 = vmax.f32 %v1051, -1.0
      %v1053 = vmul.f32 %v436, %v436
      %v1054 = vmin.f32 16.0, %v1053
      %v1055 = vmul.f32 %v1054, 2.1237322e-06
      %v1056 = vadd.f32 %v1055, 0.00028619796
      %v1057 = vmul.f32 %v1054, %v1056
      %v1058 = vadd.f32 %v1057, 0.0036580483
      %v1059 = vmul.f32 %v1054, %v1058
      %v1060 = vadd.f32 %v1059, 0.05243302
      %v1061 = vmul.f32 %v1054, %v1060
      %v1062 = vadd.f32 %v1061, 0.18741608
      %v1063 = vmul.f32 %v1054, %v1062
      %v1064 = vadd.f32 %v1063, 1.1283791
      %v1065 = vmul.f32 %v436, %v1064
      %v1066 = vmul.f32 %v1054, 3.8918573e-05
      %v1067 = vadd.f32 %v1066, 0.001143296
      %v1068 = vmul.f32 %v1054, %v1067
      %v1069 = vadd.f32 %v1068, 0.014752088
      %v1070 = vmul.f32 %v1054, %v1069
      %v1071 = vadd.f32 %v1070, 0.112945676
      %v1072 = vmul.f32 %v1054, %v1071
      %v1073 = vadd.f32 %v1072, 0.4994258
      %v1074 = vmul.f32 %v1054, %v1073
      %v1075 = vadd.f32 %v1074, 1.0
      %v1076 = vrcp.pop %v1075
      %v1077 = vmul.f32 %v1075, %v1076
      %v1078 = vsub.f32 1.0, %v1077
      %v1079 = vmul.f32 %v1076, %v1078
      %v1080 = vadd.f32 %v1076, %v1079
      %vm1081 = vweird.f32 %v1075
      %vm1082 = vweird.f32 %v1076
      %vm1083 = vmor %vm1081, %vm1082
      %v1084 = vsel %vm1083, %v1076, %v1080
      %v1085 = vand.u32 2147483647, %v1075
      %vm1086 = vcmp.eq.f32.partialorder %v1085, 8.507059e+37
      %v1087 = vand.u32 %v1075, 2147483648
      %v1088 = vor.u32 1.1754944e-38, %v1087
      %v1089 = vsel %vm1086, %v1088, %v1084
      %v1090 = vmul.f32 %v1065, %v1089
      %v1091 = vmin.f32 %v1090, 1.0
      %v1092 = vmax.f32 %v1091, -1.0
      %v1093 = vmul.f32 %v437, %v437
      %v1094 = vmin.f32 16.0, %v1093
      %v1095 = vmul.f32 %v1094, 2.1237322e-06
      %v1096 = vadd.f32 %v1095, 0.00028619796
      %v1097 = vmul.f32 %v1094, %v1096
      %v1098 = vadd.f32 %v1097, 0.0036580483
      %v1099 = vmul.f32 %v1094, %v1098
      %v1100 = vadd.f32 %v1099, 0.05243302
      %v1101 = vmul.f32 %v1094, %v1100
      %v1102 = vadd.f32 %v1101, 0.18741608
      %v1103 = vmul.f32 %v1094, %v1102
      %v1104 = vadd.f32 %v1103, 1.1283791
      %v1105 = vmul.f32 %v437, %v1104
      %v1106 = vmul.f32 %v1094, 3.8918573e-05
      %v1107 = vadd.f32 %v1106, 0.001143296
      %v1108 = vmul.f32 %v1094, %v1107
      %v1109 = vadd.f32 %v1108, 0.014752088
      %v1110 = vmul.f32 %v1094, %v1109
      %v1111 = vadd.f32 %v1110, 0.112945676
      %v1112 = vmul.f32 %v1094, %v1111
      %v1113 = vadd.f32 %v1112, 0.4994258
      %v1114 = vmul.f32 %v1094, %v1113
      %v1115 = vadd.f32 %v1114, 1.0
      %v1116 = vrcp.pop %v1115
      %v1117 = vmul.f32 %v1115, %v1116
      %v1118 = vsub.f32 1.0, %v1117
      %v1119 = vmul.f32 %v1116, %v1118
      %v1120 = vadd.f32 %v1116, %v1119
      %vm1121 = vweird.f32 %v1115
      %vm1122 = vweird.f32 %v1116
      %vm1123 = vmor %vm1121, %vm1122
      %v1124 = vsel %vm1123, %v1116, %v1120
      %v1125 = vand.u32 2147483647, %v1115
      %vm1126 = vcmp.eq.f32.partialorder %v1125, 8.507059e+37
      %v1127 = vand.u32 %v1115, 2147483648
      %v1128 = vor.u32 1.1754944e-38, %v1127
      %v1129 = vsel %vm1126, %v1128, %v1124
      %v1130 = vmul.f32 %v1105, %v1129
      %v1131 = vmin.f32 %v1130, 1.0
      %v1132 = vmax.f32 %v1131, -1.0
      %v1133 = vmul.f32 %v438, %v438
      %v1134 = vmin.f32 16.0, %v1133
      %v1135 = vmul.f32 %v1134, 2.1237322e-06
      %v1136 = vadd.f32 %v1135, 0.00028619796
      %v1137 = vmul.f32 %v1134, %v1136
      %v1138 = vadd.f32 %v1137, 0.0036580483
      %v1139 = vmul.f32 %v1134, %v1138
      %v1140 = vadd.f32 %v1139, 0.05243302
      %v1141 = vmul.f32 %v1134, %v1140
      %v1142 = vadd.f32 %v1141, 0.18741608
      %v1143 = vmul.f32 %v1134, %v1142
      %v1144 = vadd.f32 %v1143, 1.1283791
      %v1145 = vmul.f32 %v438, %v1144
      %v1146 = vmul.f32 %v1134, 3.8918573e-05
      %v1147 = vadd.f32 %v1146, 0.001143296
      %v1148 = vmul.f32 %v1134, %v1147
      %v1149 = vadd.f32 %v1148, 0.014752088
      %v1150 = vmul.f32 %v1134, %v1149
      %v1151 = vadd.f32 %v1150, 0.112945676
      %v1152 = vmul.f32 %v1134, %v1151
      %v1153 = vadd.f32 %v1152, 0.4994258
      %v1154 = vmul.f32 %v1134, %v1153
      %v1155 = vadd.f32 %v1154, 1.0
      %v1156 = vrcp.pop %v1155
      %v1157 = vmul.f32 %v1155, %v1156
      %v1158 = vsub.f32 1.0, %v1157
      %v1159 = vmul.f32 %v1156, %v1158
      %v1160 = vadd.f32 %v1156, %v1159
      %vm1161 = vweird.f32 %v1155
      %vm1162 = vweird.f32 %v1156
      %vm1163 = vmor %vm1161, %vm1162
      %v1164 = vsel %vm1163, %v1156, %v1160
      %v1165 = vand.u32 2147483647, %v1155
      %vm1166 = vcmp.eq.f32.partialorder %v1165, 8.507059e+37
      %v1167 = vand.u32 %v1155, 2147483648
      %v1168 = vor.u32 1.1754944e-38, %v1167
      %v1169 = vsel %vm1166, %v1168, %v1164
      %v1170 = vmul.f32 %v1145, %v1169
      %v1171 = vmin.f32 %v1170, 1.0
      %v1172 = vmax.f32 %v1171, -1.0
      %v1173 = vmul.f32 %v439, %v439
      %v1174 = vmin.f32 16.0, %v1173
      %v1175 = vmul.f32 %v1174, 2.1237322e-06
      %v1176 = vadd.f32 %v1175, 0.00028619796
      %v1177 = vmul.f32 %v1174, %v1176
      %v1178 = vadd.f32 %v1177, 0.0036580483
      %v1179 = vmul.f32 %v1174, %v1178
      %v1180 = vadd.f32 %v1179, 0.05243302
      %v1181 = vmul.f32 %v1174, %v1180
      %v1182 = vadd.f32 %v1181, 0.18741608
      %v1183 = vmul.f32 %v1174, %v1182
      %v1184 = vadd.f32 %v1183, 1.1283791
      %v1185 = vmul.f32 %v439, %v1184
      %v1186 = vmul.f32 %v1174, 3.8918573e-05
      %v1187 = vadd.f32 %v1186, 0.001143296
      %v1188 = vmul.f32 %v1174, %v1187
      %v1189 = vadd.f32 %v1188, 0.014752088
      %v1190 = vmul.f32 %v1174, %v1189
      %v1191 = vadd.f32 %v1190, 0.112945676
      %v1192 = vmul.f32 %v1174, %v1191
      %v1193 = vadd.f32 %v1192, 0.4994258
      %v1194 = vmul.f32 %v1174, %v1193
      %v1195 = vadd.f32 %v1194, 1.0
      %v1196 = vrcp.pop %v1195
      %v1197 = vmul.f32 %v1195, %v1196
      %v1198 = vsub.f32 1.0, %v1197
      %v1199 = vmul.f32 %v1196, %v1198
      %v1200 = vadd.f32 %v1196, %v1199
      %vm1201 = vweird.f32 %v1195
      %vm1202 = vweird.f32 %v1196
      %vm1203 = vmor %vm1201, %vm1202
      %v1204 = vsel %vm1203, %v1196, %v1200
      %v1205 = vand.u32 2147483647, %v1195
      %vm1206 = vcmp.eq.f32.partialorder %v1205, 8.507059e+37
      %v1207 = vand.u32 %v1195, 2147483648
      %v1208 = vor.u32 1.1754944e-38, %v1207
      %v1209 = vsel %vm1206, %v1208, %v1204
      %v1210 = vmul.f32 %v1185, %v1209
      %v1211 = vmin.f32 %v1210, 1.0
      %v1212 = vmax.f32 %v1211, -1.0
      %v1213 = vmul.f32 %v440, %v440
      %v1214 = vmin.f32 16.0, %v1213
      %v1215 = vmul.f32 %v1214, 2.1237322e-06
      %v1216 = vadd.f32 %v1215, 0.00028619796
      %v1217 = vmul.f32 %v1214, %v1216
      %v1218 = vadd.f32 %v1217, 0.0036580483
      %v1219 = vmul.f32 %v1214, %v1218
      %v1220 = vadd.f32 %v1219, 0.05243302
      %v1221 = vmul.f32 %v1214, %v1220
      %v1222 = vadd.f32 %v1221, 0.18741608
      %v1223 = vmul.f32 %v1214, %v1222
      %v1224 = vadd.f32 %v1223, 1.1283791
      %v1225 = vmul.f32 %v440, %v1224
      %v1226 = vmul.f32 %v1214, 3.8918573e-05
      %v1227 = vadd.f32 %v1226, 0.001143296
      %v1228 = vmul.f32 %v1214, %v1227
      %v1229 = vadd.f32 %v1228, 0.014752088
      %v1230 = vmul.f32 %v1214, %v1229
      %v1231 = vadd.f32 %v1230, 0.112945676
      %v1232 = vmul.f32 %v1214, %v1231
      %v1233 = vadd.f32 %v1232, 0.4994258
      %v1234 = vmul.f32 %v1214, %v1233
      %v1235 = vadd.f32 %v1234, 1.0
      %v1236 = vrcp.pop %v1235
      %v1237 = vmul.f32 %v1235, %v1236
      %v1238 = vsub.f32 1.0, %v1237
      %v1239 = vmul.f32 %v1236, %v1238
      %v1240 = vadd.f32 %v1236, %v1239
      %vm1241 = vweird.f32 %v1235
      %vm1242 = vweird.f32 %v1236
      %vm1243 = vmor %vm1241, %vm1242
      %v1244 = vsel %vm1243, %v1236, %v1240
      %v1245 = vand.u32 2147483647, %v1235
      %vm1246 = vcmp.eq.f32.partialorder %v1245, 8.507059e+37
      %v1247 = vand.u32 %v1235, 2147483648
      %v1248 = vor.u32 1.1754944e-38, %v1247
      %v1249 = vsel %vm1246, %v1248, %v1244
      %v1250 = vmul.f32 %v1225, %v1249
      %v1251 = vmin.f32 %v1250, 1.0
      %v1252 = vmax.f32 %v1251, -1.0
      %v1253 = vmul.f32 %v441, %v441
      %v1254 = vmin.f32 16.0, %v1253
      %v1255 = vmul.f32 %v1254, 2.1237322e-06
      %v1256 = vadd.f32 %v1255, 0.00028619796
      %v1257 = vmul.f32 %v1254, %v1256
      %v1258 = vadd.f32 %v1257, 0.0036580483
      %v1259 = vmul.f32 %v1254, %v1258
      %v1260 = vadd.f32 %v1259, 0.05243302
      %v1261 = vmul.f32 %v1254, %v1260
      %v1262 = vadd.f32 %v1261, 0.18741608
      %v1263 = vmul.f32 %v1254, %v1262
      %v1264 = vadd.f32 %v1263, 1.1283791
      %v1265 = vmul.f32 %v441, %v1264
      %v1266 = vmul.f32 %v1254, 3.8918573e-05
      %v1267 = vadd.f32 %v1266, 0.001143296
      %v1268 = vmul.f32 %v1254, %v1267
      %v1269 = vadd.f32 %v1268, 0.014752088
      %v1270 = vmul.f32 %v1254, %v1269
      %v1271 = vadd.f32 %v1270, 0.112945676
      %v1272 = vmul.f32 %v1254, %v1271
      %v1273 = vadd.f32 %v1272, 0.4994258
      %v1274 = vmul.f32 %v1254, %v1273
      %v1275 = vadd.f32 %v1274, 1.0
      %v1276 = vrcp.pop %v1275
      %v1277 = vmul.f32 %v1275, %v1276
      %v1278 = vsub.f32 1.0, %v1277
      %v1279 = vmul.f32 %v1276, %v1278
      %v1280 = vadd.f32 %v1276, %v1279
      %vm1281 = vweird.f32 %v1275
      %vm1282 = vweird.f32 %v1276
      %vm1283 = vmor %vm1281, %vm1282
      %v1284 = vsel %vm1283, %v1276, %v1280
      %v1285 = vand.u32 2147483647, %v1275
      %vm1286 = vcmp.eq.f32.partialorder %v1285, 8.507059e+37
      %v1287 = vand.u32 %v1275, 2147483648
      %v1288 = vor.u32 1.1754944e-38, %v1287
      %v1289 = vsel %vm1286, %v1288, %v1284
      %v1290 = vmul.f32 %v1265, %v1289
      %v1291 = vmin.f32 %v1290, 1.0
      %v1292 = vmax.f32 %v1291, -1.0
      %v1293 = vmul.f32 %v442, %v442
      %v1294 = vmin.f32 16.0, %v1293
      %v1295 = vmul.f32 %v1294, 2.1237322e-06
      %v1296 = vadd.f32 %v1295, 0.00028619796
      %v1297 = vmul.f32 %v1294, %v1296
      %v1298 = vadd.f32 %v1297, 0.0036580483
      %v1299 = vmul.f32 %v1294, %v1298
      %v1300 = vadd.f32 %v1299, 0.05243302
      %v1301 = vmul.f32 %v1294, %v1300
      %v1302 = vadd.f32 %v1301, 0.18741608
      %v1303 = vmul.f32 %v1294, %v1302
      %v1304 = vadd.f32 %v1303, 1.1283791
      %v1305 = vmul.f32 %v442, %v1304
      %v1306 = vmul.f32 %v1294, 3.8918573e-05
      %v1307 = vadd.f32 %v1306, 0.001143296
      %v1308 = vmul.f32 %v1294, %v1307
      %v1309 = vadd.f32 %v1308, 0.014752088
      %v1310 = vmul.f32 %v1294, %v1309
      %v1311 = vadd.f32 %v1310, 0.112945676
      %v1312 = vmul.f32 %v1294, %v1311
      %v1313 = vadd.f32 %v1312, 0.4994258
      %v1314 = vmul.f32 %v1294, %v1313
      %v1315 = vadd.f32 %v1314, 1.0
      %v1316 = vrcp.pop %v1315
      %v1317 = vmul.f32 %v1315, %v1316
      %v1318 = vsub.f32 1.0, %v1317
      %v1319 = vmul.f32 %v1316, %v1318
      %v1320 = vadd.f32 %v1316, %v1319
      %vm1321 = vweird.f32 %v1315
      %vm1322 = vweird.f32 %v1316
      %vm1323 = vmor %vm1321, %vm1322
      %v1324 = vsel %vm1323, %v1316, %v1320
      %v1325 = vand.u32 2147483647, %v1315
      %vm1326 = vcmp.eq.f32.partialorder %v1325, 8.507059e+37
      %v1327 = vand.u32 %v1315, 2147483648
      %v1328 = vor.u32 1.1754944e-38, %v1327
      %v1329 = vsel %vm1326, %v1328, %v1324
      %v1330 = vmul.f32 %v1305, %v1329
      %v1331 = vmin.f32 %v1330, 1.0
      %v1332 = vmax.f32 %v1331, -1.0
      %v1333 = vmul.f32 %v443, %v443
      %v1334 = vmin.f32 16.0, %v1333
      %v1335 = vmul.f32 %v1334, 2.1237322e-06
      %v1336 = vadd.f32 %v1335, 0.00028619796
      %v1337 = vmul.f32 %v1334, %v1336
      %v1338 = vadd.f32 %v1337, 0.0036580483
      %v1339 = vmul.f32 %v1334, %v1338
      %v1340 = vadd.f32 %v1339, 0.05243302
      %v1341 = vmul.f32 %v1334, %v1340
      %v1342 = vadd.f32 %v1341, 0.18741608
      %v1343 = vmul.f32 %v1334, %v1342
      %v1344 = vadd.f32 %v1343, 1.1283791
      %v1345 = vmul.f32 %v443, %v1344
      %v1346 = vmul.f32 %v1334, 3.8918573e-05
      %v1347 = vadd.f32 %v1346, 0.001143296
      %v1348 = vmul.f32 %v1334, %v1347
      %v1349 = vadd.f32 %v1348, 0.014752088
      %v1350 = vmul.f32 %v1334, %v1349
      %v1351 = vadd.f32 %v1350, 0.112945676
      %v1352 = vmul.f32 %v1334, %v1351
      %v1353 = vadd.f32 %v1352, 0.4994258
      %v1354 = vmul.f32 %v1334, %v1353
      %v1355 = vadd.f32 %v1354, 1.0
      %v1356 = vrcp.pop %v1355
      %v1357 = vmul.f32 %v1355, %v1356
      %v1358 = vsub.f32 1.0, %v1357
      %v1359 = vmul.f32 %v1356, %v1358
      %v1360 = vadd.f32 %v1356, %v1359
      %vm1361 = vweird.f32 %v1355
      %vm1362 = vweird.f32 %v1356
      %vm1363 = vmor %vm1361, %vm1362
      %v1364 = vsel %vm1363, %v1356, %v1360
      %v1365 = vand.u32 2147483647, %v1355
      %vm1366 = vcmp.eq.f32.partialorder %v1365, 8.507059e+37
      %v1367 = vand.u32 %v1355, 2147483648
      %v1368 = vor.u32 1.1754944e-38, %v1367
      %v1369 = vsel %vm1366, %v1368, %v1364
      %v1370 = vmul.f32 %v1345, %v1369
      %v1371 = vmin.f32 %v1370, 1.0
      %v1372 = vmax.f32 %v1371, -1.0
      %v1373 = vmul.f32 %v444, %v444
      %v1374 = vmin.f32 16.0, %v1373
      %v1375 = vmul.f32 %v1374, 2.1237322e-06
      %v1376 = vadd.f32 %v1375, 0.00028619796
      %v1377 = vmul.f32 %v1374, %v1376
      %v1378 = vadd.f32 %v1377, 0.0036580483
      %v1379 = vmul.f32 %v1374, %v1378
      %v1380 = vadd.f32 %v1379, 0.05243302
      %v1381 = vmul.f32 %v1374, %v1380
      %v1382 = vadd.f32 %v1381, 0.18741608
      %v1383 = vmul.f32 %v1374, %v1382
      %v1384 = vadd.f32 %v1383, 1.1283791
      %v1385 = vmul.f32 %v444, %v1384
      %v1386 = vmul.f32 %v1374, 3.8918573e-05
      %v1387 = vadd.f32 %v1386, 0.001143296
      %v1388 = vmul.f32 %v1374, %v1387
      %v1389 = vadd.f32 %v1388, 0.014752088
      %v1390 = vmul.f32 %v1374, %v1389
      %v1391 = vadd.f32 %v1390, 0.112945676
      %v1392 = vmul.f32 %v1374, %v1391
      %v1393 = vadd.f32 %v1392, 0.4994258
      %v1394 = vmul.f32 %v1374, %v1393
      %v1395 = vadd.f32 %v1394, 1.0
      %v1396 = vrcp.pop %v1395
      %v1397 = vmul.f32 %v1395, %v1396
      %v1398 = vsub.f32 1.0, %v1397
      %v1399 = vmul.f32 %v1396, %v1398
      %v1400 = vadd.f32 %v1396, %v1399
      %vm1401 = vweird.f32 %v1395
      %vm1402 = vweird.f32 %v1396
      %vm1403 = vmor %vm1401, %vm1402
      %v1404 = vsel %vm1403, %v1396, %v1400
      %v1405 = vand.u32 2147483647, %v1395
      %vm1406 = vcmp.eq.f32.partialorder %v1405, 8.507059e+37
      %v1407 = vand.u32 %v1395, 2147483648
      %v1408 = vor.u32 1.1754944e-38, %v1407
      %v1409 = vsel %vm1406, %v1408, %v1404
      %v1410 = vmul.f32 %v1385, %v1409
      %v1411 = vmin.f32 %v1410, 1.0
      %v1412 = vmax.f32 %v1411, -1.0
      %v1413 = vmul.f32 %v445, %v445
      %v1414 = vmin.f32 16.0, %v1413
      %v1415 = vmul.f32 %v1414, 2.1237322e-06
      %v1416 = vadd.f32 %v1415, 0.00028619796
      %v1417 = vmul.f32 %v1414, %v1416
      %v1418 = vadd.f32 %v1417, 0.0036580483
      %v1419 = vmul.f32 %v1414, %v1418
      %v1420 = vadd.f32 %v1419, 0.05243302
      %v1421 = vmul.f32 %v1414, %v1420
      %v1422 = vadd.f32 %v1421, 0.18741608
      %v1423 = vmul.f32 %v1414, %v1422
      %v1424 = vadd.f32 %v1423, 1.1283791
      %v1425 = vmul.f32 %v445, %v1424
      %v1426 = vmul.f32 %v1414, 3.8918573e-05
      %v1427 = vadd.f32 %v1426, 0.001143296
      %v1428 = vmul.f32 %v1414, %v1427
      %v1429 = vadd.f32 %v1428, 0.014752088
      %v1430 = vmul.f32 %v1414, %v1429
      %v1431 = vadd.f32 %v1430, 0.112945676
      %v1432 = vmul.f32 %v1414, %v1431
      %v1433 = vadd.f32 %v1432, 0.4994258
      %v1434 = vmul.f32 %v1414, %v1433
      %v1435 = vadd.f32 %v1434, 1.0
      %v1436 = vrcp.pop %v1435
      %v1437 = vmul.f32 %v1435, %v1436
      %v1438 = vsub.f32 1.0, %v1437
      %v1439 = vmul.f32 %v1436, %v1438
      %v1440 = vadd.f32 %v1436, %v1439
      %vm1441 = vweird.f32 %v1435
      %vm1442 = vweird.f32 %v1436
      %vm1443 = vmor %vm1441, %vm1442
      %v1444 = vsel %vm1443, %v1436, %v1440
      %v1445 = vand.u32 2147483647, %v1435
      %vm1446 = vcmp.eq.f32.partialorder %v1445, 8.507059e+37
      %v1447 = vand.u32 %v1435, 2147483648
      %v1448 = vor.u32 1.1754944e-38, %v1447
      %v1449 = vsel %vm1446, %v1448, %v1444
      %v1450 = vmul.f32 %v1425, %v1449
      %v1451 = vmin.f32 %v1450, 1.0
      %v1452 = vmax.f32 %v1451, -1.0
      %v1453 = vmul.f32 %v446, %v446
      %v1454 = vmin.f32 16.0, %v1453
      %v1455 = vmul.f32 %v1454, 2.1237322e-06
      %v1456 = vadd.f32 %v1455, 0.00028619796
      %v1457 = vmul.f32 %v1454, %v1456
      %v1458 = vadd.f32 %v1457, 0.0036580483
      %v1459 = vmul.f32 %v1454, %v1458
      %v1460 = vadd.f32 %v1459, 0.05243302
      %v1461 = vmul.f32 %v1454, %v1460
      %v1462 = vadd.f32 %v1461, 0.18741608
      %v1463 = vmul.f32 %v1454, %v1462
      %v1464 = vadd.f32 %v1463, 1.1283791
      %v1465 = vmul.f32 %v446, %v1464
      %v1466 = vmul.f32 %v1454, 3.8918573e-05
      %v1467 = vadd.f32 %v1466, 0.001143296
      %v1468 = vmul.f32 %v1454, %v1467
      %v1469 = vadd.f32 %v1468, 0.014752088
      %v1470 = vmul.f32 %v1454, %v1469
      %v1471 = vadd.f32 %v1470, 0.112945676
      %v1472 = vmul.f32 %v1454, %v1471
      %v1473 = vadd.f32 %v1472, 0.4994258
      %v1474 = vmul.f32 %v1454, %v1473
      %v1475 = vadd.f32 %v1474, 1.0
      %v1476 = vrcp.pop %v1475
      %v1477 = vmul.f32 %v1475, %v1476
      %v1478 = vsub.f32 1.0, %v1477
      %v1479 = vmul.f32 %v1476, %v1478
      %v1480 = vadd.f32 %v1476, %v1479
      %vm1481 = vweird.f32 %v1475
      %vm1482 = vweird.f32 %v1476
      %vm1483 = vmor %vm1481, %vm1482
      %v1484 = vsel %vm1483, %v1476, %v1480
      %v1485 = vand.u32 2147483647, %v1475
      %vm1486 = vcmp.eq.f32.partialorder %v1485, 8.507059e+37
      %v1487 = vand.u32 %v1475, 2147483648
      %v1488 = vor.u32 1.1754944e-38, %v1487
      %v1489 = vsel %vm1486, %v1488, %v1484
      %v1490 = vmul.f32 %v1465, %v1489
      %v1491 = vmin.f32 %v1490, 1.0
      %v1492 = vmax.f32 %v1491, -1.0
      %v1493 = vmul.f32 %v447, %v447
      %v1494 = vmin.f32 16.0, %v1493
      %v1495 = vmul.f32 %v1494, 2.1237322e-06
      %v1496 = vadd.f32 %v1495, 0.00028619796
      %v1497 = vmul.f32 %v1494, %v1496
      %v1498 = vadd.f32 %v1497, 0.0036580483
      %v1499 = vmul.f32 %v1494, %v1498
      %v1500 = vadd.f32 %v1499, 0.05243302
      %v1501 = vmul.f32 %v1494, %v1500
      %v1502 = vadd.f32 %v1501, 0.18741608
      %v1503 = vmul.f32 %v1494, %v1502
      %v1504 = vadd.f32 %v1503, 1.1283791
      %v1505 = vmul.f32 %v447, %v1504
      %v1506 = vmul.f32 %v1494, 3.8918573e-05
      %v1507 = vadd.f32 %v1506, 0.001143296
      %v1508 = vmul.f32 %v1494, %v1507
      %v1509 = vadd.f32 %v1508, 0.014752088
      %v1510 = vmul.f32 %v1494, %v1509
      %v1511 = vadd.f32 %v1510, 0.112945676
      %v1512 = vmul.f32 %v1494, %v1511
      %v1513 = vadd.f32 %v1512, 0.4994258
      %v1514 = vmul.f32 %v1494, %v1513
      %v1515 = vadd.f32 %v1514, 1.0
      %v1516 = vrcp.pop %v1515
      %v1517 = vmul.f32 %v1515, %v1516
      %v1518 = vsub.f32 1.0, %v1517
      %v1519 = vmul.f32 %v1516, %v1518
      %v1520 = vadd.f32 %v1516, %v1519
      %vm1521 = vweird.f32 %v1515
      %vm1522 = vweird.f32 %v1516
      %vm1523 = vmor %vm1521, %vm1522
      %v1524 = vsel %vm1523, %v1516, %v1520
      %v1525 = vand.u32 2147483647, %v1515
      %vm1526 = vcmp.eq.f32.partialorder %v1525, 8.507059e+37
      %v1527 = vand.u32 %v1515, 2147483648
      %v1528 = vor.u32 1.1754944e-38, %v1527
      %v1529 = vsel %vm1526, %v1528, %v1524
      %v1530 = vmul.f32 %v1505, %v1529
      %v1531 = vmin.f32 %v1530, 1.0
      %v1532 = vmax.f32 %v1531, -1.0
      %v1533 = vmul.f32 %v448, %v448
      %v1534 = vmin.f32 16.0, %v1533
      %v1535 = vmul.f32 %v1534, 2.1237322e-06
      %v1536 = vadd.f32 %v1535, 0.00028619796
      %v1537 = vmul.f32 %v1534, %v1536
      %v1538 = vadd.f32 %v1537, 0.0036580483
      %v1539 = vmul.f32 %v1534, %v1538
      %v1540 = vadd.f32 %v1539, 0.05243302
      %v1541 = vmul.f32 %v1534, %v1540
      %v1542 = vadd.f32 %v1541, 0.18741608
      %v1543 = vmul.f32 %v1534, %v1542
      %v1544 = vadd.f32 %v1543, 1.1283791
      %v1545 = vmul.f32 %v448, %v1544
      %v1546 = vmul.f32 %v1534, 3.8918573e-05
      %v1547 = vadd.f32 %v1546, 0.001143296
      %v1548 = vmul.f32 %v1534, %v1547
      %v1549 = vadd.f32 %v1548, 0.014752088
      %v1550 = vmul.f32 %v1534, %v1549
      %v1551 = vadd.f32 %v1550, 0.112945676
      %v1552 = vmul.f32 %v1534, %v1551
      %v1553 = vadd.f32 %v1552, 0.4994258
      %v1554 = vmul.f32 %v1534, %v1553
      %v1555 = vadd.f32 %v1554, 1.0
      %v1556 = vrcp.pop %v1555
      %v1557 = vmul.f32 %v1555, %v1556
      %v1558 = vsub.f32 1.0, %v1557
      %v1559 = vmul.f32 %v1556, %v1558
      %v1560 = vadd.f32 %v1556, %v1559
      %vm1561 = vweird.f32 %v1555
      %vm1562 = vweird.f32 %v1556
      %vm1563 = vmor %vm1561, %vm1562
      %v1564 = vsel %vm1563, %v1556, %v1560
      %v1565 = vand.u32 2147483647, %v1555
      %vm1566 = vcmp.eq.f32.partialorder %v1565, 8.507059e+37
      %v1567 = vand.u32 %v1555, 2147483648
      %v1568 = vor.u32 1.1754944e-38, %v1567
      %v1569 = vsel %vm1566, %v1568, %v1564
      %v1570 = vmul.f32 %v1545, %v1569
      %v1571 = vmin.f32 %v1570, 1.0
      %v1572 = vmax.f32 %v1571, -1.0
      %v1573 = vmul.f32 %v449, %v449
      %v1574 = vmin.f32 16.0, %v1573
      %v1575 = vmul.f32 %v1574, 2.1237322e-06
      %v1576 = vadd.f32 %v1575, 0.00028619796
      %v1577 = vmul.f32 %v1574, %v1576
      %v1578 = vadd.f32 %v1577, 0.0036580483
      %v1579 = vmul.f32 %v1574, %v1578
      %v1580 = vadd.f32 %v1579, 0.05243302
      %v1581 = vmul.f32 %v1574, %v1580
      %v1582 = vadd.f32 %v1581, 0.18741608
      %v1583 = vmul.f32 %v1574, %v1582
      %v1584 = vadd.f32 %v1583, 1.1283791
      %v1585 = vmul.f32 %v449, %v1584
      %v1586 = vmul.f32 %v1574, 3.8918573e-05
      %v1587 = vadd.f32 %v1586, 0.001143296
      %v1588 = vmul.f32 %v1574, %v1587
      %v1589 = vadd.f32 %v1588, 0.014752088
      %v1590 = vmul.f32 %v1574, %v1589
      %v1591 = vadd.f32 %v1590, 0.112945676
      %v1592 = vmul.f32 %v1574, %v1591
      %v1593 = vadd.f32 %v1592, 0.4994258
      %v1594 = vmul.f32 %v1574, %v1593
      %v1595 = vadd.f32 %v1594, 1.0
      %v1596 = vrcp.pop %v1595
      %v1597 = vmul.f32 %v1595, %v1596
      %v1598 = vsub.f32 1.0, %v1597
      %v1599 = vmul.f32 %v1596, %v1598
      %v1600 = vadd.f32 %v1596, %v1599
      %vm1601 = vweird.f32 %v1595
      %vm1602 = vweird.f32 %v1596
      %vm1603 = vmor %vm1601, %vm1602
      %v1604 = vsel %vm1603, %v1596, %v1600
      %v1605 = vand.u32 2147483647, %v1595
      %vm1606 = vcmp.eq.f32.partialorder %v1605, 8.507059e+37
      %v1607 = vand.u32 %v1595, 2147483648
      %v1608 = vor.u32 1.1754944e-38, %v1607
      %v1609 = vsel %vm1606, %v1608, %v1604
      %v1610 = vmul.f32 %v1585, %v1609
      %v1611 = vmin.f32 %v1610, 1.0
      %v1612 = vmax.f32 %v1611, -1.0
      %v1613 = vmul.f32 %v450, %v450
      %v1614 = vmin.f32 16.0, %v1613
      %v1615 = vmul.f32 %v1614, 2.1237322e-06
      %v1616 = vadd.f32 %v1615, 0.00028619796
      %v1617 = vmul.f32 %v1614, %v1616
      %v1618 = vadd.f32 %v1617, 0.0036580483
      %v1619 = vmul.f32 %v1614, %v1618
      %v1620 = vadd.f32 %v1619, 0.05243302
      %v1621 = vmul.f32 %v1614, %v1620
      %v1622 = vadd.f32 %v1621, 0.18741608
      %v1623 = vmul.f32 %v1614, %v1622
      %v1624 = vadd.f32 %v1623, 1.1283791
      %v1625 = vmul.f32 %v450, %v1624
      %v1626 = vmul.f32 %v1614, 3.8918573e-05
      %v1627 = vadd.f32 %v1626, 0.001143296
      %v1628 = vmul.f32 %v1614, %v1627
      %v1629 = vadd.f32 %v1628, 0.014752088
      %v1630 = vmul.f32 %v1614, %v1629
      %v1631 = vadd.f32 %v1630, 0.112945676
      %v1632 = vmul.f32 %v1614, %v1631
      %v1633 = vadd.f32 %v1632, 0.4994258
      %v1634 = vmul.f32 %v1614, %v1633
      %v1635 = vadd.f32 %v1634, 1.0
      %v1636 = vrcp.pop %v1635
      %v1637 = vmul.f32 %v1635, %v1636
      %v1638 = vsub.f32 1.0, %v1637
      %v1639 = vmul.f32 %v1636, %v1638
      %v1640 = vadd.f32 %v1636, %v1639
      %vm1641 = vweird.f32 %v1635
      %vm1642 = vweird.f32 %v1636
      %vm1643 = vmor %vm1641, %vm1642
      %v1644 = vsel %vm1643, %v1636, %v1640
      %v1645 = vand.u32 2147483647, %v1635
      %vm1646 = vcmp.eq.f32.partialorder %v1645, 8.507059e+37
      %v1647 = vand.u32 %v1635, 2147483648
      %v1648 = vor.u32 1.1754944e-38, %v1647
      %v1649 = vsel %vm1646, %v1648, %v1644
      %v1650 = vmul.f32 %v1625, %v1649
      %v1651 = vmin.f32 %v1650, 1.0
      %v1652 = vmax.f32 %v1651, -1.0
      %v1653 = vmul.f32 %v451, %v451
      %v1654 = vmin.f32 16.0, %v1653
      %v1655 = vmul.f32 %v1654, 2.1237322e-06
      %v1656 = vadd.f32 %v1655, 0.00028619796
      %v1657 = vmul.f32 %v1654, %v1656
      %v1658 = vadd.f32 %v1657, 0.0036580483
      %v1659 = vmul.f32 %v1654, %v1658
      %v1660 = vadd.f32 %v1659, 0.05243302
      %v1661 = vmul.f32 %v1654, %v1660
      %v1662 = vadd.f32 %v1661, 0.18741608
      %v1663 = vmul.f32 %v1654, %v1662
      %v1664 = vadd.f32 %v1663, 1.1283791
      %v1665 = vmul.f32 %v451, %v1664
      %v1666 = vmul.f32 %v1654, 3.8918573e-05
      %v1667 = vadd.f32 %v1666, 0.001143296
      %v1668 = vmul.f32 %v1654, %v1667
      %v1669 = vadd.f32 %v1668, 0.014752088
      %v1670 = vmul.f32 %v1654, %v1669
      %v1671 = vadd.f32 %v1670, 0.112945676
      %v1672 = vmul.f32 %v1654, %v1671
      %v1673 = vadd.f32 %v1672, 0.4994258
      %v1674 = vmul.f32 %v1654, %v1673
      %v1675 = vadd.f32 %v1674, 1.0
      %v1676 = vrcp.pop %v1675
      %v1677 = vmul.f32 %v1675, %v1676
      %v1678 = vsub.f32 1.0, %v1677
      %v1679 = vmul.f32 %v1676, %v1678
      %v1680 = vadd.f32 %v1676, %v1679
      %vm1681 = vweird.f32 %v1675
      %vm1682 = vweird.f32 %v1676
      %vm1683 = vmor %vm1681, %vm1682
      %v1684 = vsel %vm1683, %v1676, %v1680
      %v1685 = vand.u32 2147483647, %v1675
      %vm1686 = vcmp.eq.f32.partialorder %v1685, 8.507059e+37
      %v1687 = vand.u32 %v1675, 2147483648
      %v1688 = vor.u32 1.1754944e-38, %v1687
      %v1689 = vsel %vm1686, %v1688, %v1684
      %v1690 = vmul.f32 %v1665, %v1689
      %v1691 = vmin.f32 %v1690, 1.0
      %v1692 = vmax.f32 %v1691, -1.0
      %v1693 = vmul.f32 %v452, %v452
      %v1694 = vmin.f32 16.0, %v1693
      %v1695 = vmul.f32 %v1694, 2.1237322e-06
      %v1696 = vadd.f32 %v1695, 0.00028619796
      %v1697 = vmul.f32 %v1694, %v1696
      %v1698 = vadd.f32 %v1697, 0.0036580483
      %v1699 = vmul.f32 %v1694, %v1698
      %v1700 = vadd.f32 %v1699, 0.05243302
      %v1701 = vmul.f32 %v1694, %v1700
      %v1702 = vadd.f32 %v1701, 0.18741608
      %v1703 = vmul.f32 %v1694, %v1702
      %v1704 = vadd.f32 %v1703, 1.1283791
      %v1705 = vmul.f32 %v452, %v1704
      %v1706 = vmul.f32 %v1694, 3.8918573e-05
      %v1707 = vadd.f32 %v1706, 0.001143296
      %v1708 = vmul.f32 %v1694, %v1707
      %v1709 = vadd.f32 %v1708, 0.014752088
      %v1710 = vmul.f32 %v1694, %v1709
      %v1711 = vadd.f32 %v1710, 0.112945676
      %v1712 = vmul.f32 %v1694, %v1711
      %v1713 = vadd.f32 %v1712, 0.4994258
      %v1714 = vmul.f32 %v1694, %v1713
      %v1715 = vadd.f32 %v1714, 1.0
      %v1716 = vrcp.pop %v1715
      %v1717 = vmul.f32 %v1715, %v1716
      %v1718 = vsub.f32 1.0, %v1717
      %v1719 = vmul.f32 %v1716, %v1718
      %v1720 = vadd.f32 %v1716, %v1719
      %vm1721 = vweird.f32 %v1715
      %vm1722 = vweird.f32 %v1716
      %vm1723 = vmor %vm1721, %vm1722
      %v1724 = vsel %vm1723, %v1716, %v1720
      %v1725 = vand.u32 2147483647, %v1715
      %vm1726 = vcmp.eq.f32.partialorder %v1725, 8.507059e+37
      %v1727 = vand.u32 %v1715, 2147483648
      %v1728 = vor.u32 1.1754944e-38, %v1727
      %v1729 = vsel %vm1726, %v1728, %v1724
      %v1730 = vmul.f32 %v1705, %v1729
      %v1731 = vmin.f32 %v1730, 1.0
      %v1732 = vmax.f32 %v1731, -1.0
      %v1733 = vadd.f32 %v492, 1.0
      %v1734 = vadd.f32 %v532, 1.0
      %v1735 = vadd.f32 %v572, 1.0
      %v1736 = vadd.f32 %v612, 1.0
      %v1737 = vadd.f32 %v652, 1.0
      %v1738 = vadd.f32 %v692, 1.0
      %v1739 = vadd.f32 %v732, 1.0
      %v1740 = vadd.f32 %v772, 1.0
      %v1741 = vadd.f32 %v812, 1.0
      %v1742 = vadd.f32 %v852, 1.0
      %v1743 = vadd.f32 %v892, 1.0
      %v1744 = vadd.f32 %v932, 1.0
      %v1745 = vadd.f32 %v972, 1.0
      %v1746 = vadd.f32 %v1012, 1.0
      %v1747 = vadd.f32 %v1052, 1.0
      %v1748 = vadd.f32 %v1092, 1.0
      %v1749 = vadd.f32 %v1132, 1.0
      %v1750 = vadd.f32 %v1172, 1.0
      %v1751 = vadd.f32 %v1212, 1.0
      %v1752 = vadd.f32 %v1252, 1.0
      %v1753 = vadd.f32 %v1292, 1.0
      %v1754 = vadd.f32 %v1332, 1.0
      %v1755 = vadd.f32 %v1372, 1.0
      %v1756 = vadd.f32 %v1412, 1.0
      %v1757 = vadd.f32 %v1452, 1.0
      %v1758 = vadd.f32 %v1492, 1.0
      %v1759 = vadd.f32 %v1532, 1.0
      %v1760 = vadd.f32 %v1572, 1.0
      %v1761 = vadd.f32 %v1612, 1.0
      %v1762 = vadd.f32 %v1652, 1.0
      %v1763 = vadd.f32 %v1692, 1.0
      %v1764 = vadd.f32 %v1732, 1.0
      %v1765 = vmul.f32 %v382, %v1733
      %v1766 = vmul.f32 %v383, %v1734
      %v1767 = vmul.f32 %v384, %v1735
      %v1768 = vmul.f32 %v385, %v1736
      %v1769 = vmul.f32 %v386, %v1737
      %v1770 = vmul.f32 %v387, %v1738
      %v1771 = vmul.f32 %v388, %v1739
      %v1772 = vmul.f32 %v389, %v1740
      %v1773 = vmul.f32 %v390, %v1741
      %v1774 = vmul.f32 %v391, %v1742
      %v1775 = vmul.f32 %v392, %v1743
      %v1776 = vmul.f32 %v393, %v1744
      %v1777 = vmul.f32 %v394, %v1745
      %v1778 = vmul.f32 %v395, %v1746
      %v1779 = vmul.f32 %v396, %v1747
      %v1780 = vmul.f32 %v397, %v1748
      %v1781 = vmul.f32 %v398, %v1749
      %v1782 = vmul.f32 %v399, %v1750
      %v1783 = vmul.f32 %v400, %v1751
      %v1784 = vmul.f32 %v401, %v1752
      %v1785 = vmul.f32 %v402, %v1753
      %v1786 = vmul.f32 %v403, %v1754
      %v1787 = vmul.f32 %v404, %v1755
      %v1788 = vmul.f32 %v405, %v1756
      %v1789 = vmul.f32 %v406, %v1757
      %v1790 = vmul.f32 %v407, %v1758
      %v1791 = vmul.f32 %v408, %v1759
      %v1792 = vmul.f32 %v409, %v1760
      %v1793 = vmul.f32 %v410, %v1761
      %v1794 = vmul.f32 %v411, %v1762
      %v1795 = vmul.f32 %v412, %v1763
      %v1796 = vmul.f32 %v413, %v1764
      %v1797 = vld [vmem:[%s267] sm:$0x1]
      %v1799 = vperm.slane %v1797, 0
      %v1801 = vmul.f32 %v1765, %v1799
      %v1802 = vmul.f32 %v1766, %v1799
      %v1803 = vmul.f32 %v1767, %v1799
      %v1804 = vmul.f32 %v1768, %v1799
      %v1805 = vmul.f32 %v1769, %v1799
      %v1806 = vmul.f32 %v1770, %v1799
      %v1807 = vmul.f32 %v1771, %v1799
      %v1808 = vmul.f32 %v1772, %v1799
      %v1809 = vmul.f32 %v1773, %v1799
      %v1810 = vmul.f32 %v1774, %v1799
      %v1811 = vmul.f32 %v1775, %v1799
      %v1812 = vmul.f32 %v1776, %v1799
      %v1813 = vmul.f32 %v1777, %v1799
      %v1814 = vmul.f32 %v1778, %v1799
      %v1815 = vmul.f32 %v1779, %v1799
      %v1816 = vmul.f32 %v1780, %v1799
      %v1817 = vmul.f32 %v1781, %v1799
      %v1818 = vmul.f32 %v1782, %v1799
      %v1819 = vmul.f32 %v1783, %v1799
      %v1820 = vmul.f32 %v1784, %v1799
      %v1821 = vmul.f32 %v1785, %v1799
      %v1822 = vmul.f32 %v1786, %v1799
      %v1823 = vmul.f32 %v1787, %v1799
      %v1824 = vmul.f32 %v1788, %v1799
      %v1825 = vmul.f32 %v1789, %v1799
      %v1826 = vmul.f32 %v1790, %v1799
      %v1827 = vmul.f32 %v1791, %v1799
      %v1828 = vmul.f32 %v1792, %v1799
      %v1829 = vmul.f32 %v1793, %v1799
      %v1830 = vmul.f32 %v1794, %v1799
      %v1831 = vmul.f32 %v1795, %v1799
      %v1832 = vmul.f32 %v1796, %v1799
      %v1833 = vpack.c.bf16 %v1802, %v1801
      %v1834 = vpack.c.bf16 %v1804, %v1803
      %v1835 = vpack.c.bf16 %v1806, %v1805
      %v1836 = vpack.c.bf16 %v1808, %v1807
      %v1837 = vpack.c.bf16 %v1810, %v1809
      %v1838 = vpack.c.bf16 %v1812, %v1811
      %v1839 = vpack.c.bf16 %v1814, %v1813
      %v1840 = vpack.c.bf16 %v1816, %v1815
      %v1841 = vpack.c.bf16 %v1818, %v1817
      %v1842 = vpack.c.bf16 %v1820, %v1819
      %v1843 = vpack.c.bf16 %v1822, %v1821
      %v1844 = vpack.c.bf16 %v1824, %v1823
      %v1845 = vpack.c.bf16 %v1826, %v1825
      %v1846 = vpack.c.bf16 %v1828, %v1827
      %v1847 = vpack.c.bf16 %v1830, %v1829
      %v1848 = vpack.c.bf16 %v1832, %v1831
      %v1849 = vld [vmem:[%s4] sm:$0xf]
      %v1850 = vld [vmem:[%s4 + $0x4] sm:$0xf]
      %v1851 = vld [vmem:[%s4 + $0x8] sm:$0xf]
      %v1852 = vld [vmem:[%s4 + $0xc] sm:$0xf]
      %v1853 = vld [vmem:[%s4 + $0x10] sm:$0xf]
      %v1854 = vld [vmem:[%s4 + $0x14] sm:$0xf]
      %v1855 = vld [vmem:[%s4 + $0x18] sm:$0xf]
      %v1856 = vld [vmem:[%s4 + $0x1c] sm:$0xf]
      %v1857 = vld [vmem:[%s4 + $0x20] sm:$0xf]
      %v1858 = vld [vmem:[%s4 + $0x24] sm:$0xf]
      %v1859 = vld [vmem:[%s4 + $0x28] sm:$0xf]
      %v1860 = vld [vmem:[%s4 + $0x2c] sm:$0xf]
      %v1861 = vld [vmem:[%s4 + $0x30] sm:$0xf]
      %v1862 = vld [vmem:[%s4 + $0x34] sm:$0xf]
      %v1863 = vld [vmem:[%s4 + $0x38] sm:$0xf]
      %v1864 = vld [vmem:[%s4 + $0x3c] sm:$0xf]
      %v1881 = vunpack.c.l.b16 %v1849
      %v1882 = vunpack.c.l.b16 %v1850
      %v1883 = vunpack.c.l.b16 %v1851
      %v1884 = vunpack.c.l.b16 %v1852
      %v1885 = vunpack.c.l.b16 %v1853
      %v1886 = vunpack.c.l.b16 %v1854
      %v1887 = vunpack.c.l.b16 %v1855
      %v1888 = vunpack.c.l.b16 %v1856
      %v1889 = vunpack.c.l.b16 %v1857
      %v1890 = vunpack.c.l.b16 %v1858
      %v1891 = vunpack.c.l.b16 %v1859
      %v1892 = vunpack.c.l.b16 %v1860
      %v1893 = vunpack.c.l.b16 %v1861
      %v1894 = vunpack.c.l.b16 %v1862
      %v1895 = vunpack.c.l.b16 %v1863
      %v1896 = vunpack.c.l.b16 %v1864
      %v1897 = vpack.c.b16 %v1882, %v1881
      %v1898 = vpack.c.b16 %v1884, %v1883
      %v1899 = vpack.c.b16 %v1886, %v1885
      %v1900 = vpack.c.b16 %v1888, %v1887
      %v1901 = vpack.c.b16 %v1890, %v1889
      %v1902 = vpack.c.b16 %v1892, %v1891
      %v1903 = vpack.c.b16 %v1894, %v1893
      %v1904 = vpack.c.b16 %v1896, %v1895
      %1913 = vmatpush.bf16.msra.mxu0 %v1904
      %1914 = vmatpush.bf16.msra.mxu0 %v1903
      %1915 = vmatpush.bf16.msra.mxu0 %v1902
      %1916 = vmatpush.bf16.msra.mxu0 %v1901
      %1917 = vmatpush.bf16.msra.mxu0 %v1900
      %1918 = vmatpush.bf16.msra.mxu0 %v1899
      %1919 = vmatpush.bf16.msra.mxu0 %v1898
      %1920 = vmatpush.bf16.msra.mxu0 %v1897
      %1921 = vmatmul.bf16.gmra.mxu0 %v1833
      %v1922 = vpop.f32.mrf.mxu0
      %v1923 = vadd.f32 0.0, %v1922
      %v1924 = vpop.f32.mrf.mxu0
      %v1925 = vadd.f32 0.0, %v1924
      %1926 = vmatmul.bf16.gmra.mxu0 %v1834
      %v1927 = vpop.f32.mrf.mxu0
      %v1928 = vadd.f32 0.0, %v1927
      %v1929 = vpop.f32.mrf.mxu0
      %v1930 = vadd.f32 0.0, %v1929
      %1931 = vmatmul.bf16.gmra.mxu0 %v1835
      %v1932 = vpop.f32.mrf.mxu0
      %v1933 = vadd.f32 0.0, %v1932
      %v1934 = vpop.f32.mrf.mxu0
      %v1935 = vadd.f32 0.0, %v1934
      %1936 = vmatmul.bf16.gmra.mxu0 %v1836
      %v1937 = vpop.f32.mrf.mxu0
      %v1938 = vadd.f32 0.0, %v1937
      %v1939 = vpop.f32.mrf.mxu0
      %v1940 = vadd.f32 0.0, %v1939
      %1941 = vmatmul.bf16.gmra.mxu0 %v1837
      %v1942 = vpop.f32.mrf.mxu0
      %v1943 = vadd.f32 0.0, %v1942
      %v1944 = vpop.f32.mrf.mxu0
      %v1945 = vadd.f32 0.0, %v1944
      %1946 = vmatmul.bf16.gmra.mxu0 %v1838
      %v1947 = vpop.f32.mrf.mxu0
      %v1948 = vadd.f32 0.0, %v1947
      %v1949 = vpop.f32.mrf.mxu0
      %v1950 = vadd.f32 0.0, %v1949
      %1951 = vmatmul.bf16.gmra.mxu0 %v1839
      %v1952 = vpop.f32.mrf.mxu0
      %v1953 = vadd.f32 0.0, %v1952
      %v1954 = vpop.f32.mrf.mxu0
      %v1955 = vadd.f32 0.0, %v1954
      %1956 = vmatmul.bf16.gmra.mxu0 %v1840
      %v1957 = vpop.f32.mrf.mxu0
      %v1958 = vadd.f32 0.0, %v1957
      %v1959 = vpop.f32.mrf.mxu0
      %v1960 = vadd.f32 0.0, %v1959
      %1961 = vmatmul.bf16.gmra.mxu0 %v1841
      %v1962 = vpop.f32.mrf.mxu0
      %v1963 = vadd.f32 0.0, %v1962
      %v1964 = vpop.f32.mrf.mxu0
      %v1965 = vadd.f32 0.0, %v1964
      %1966 = vmatmul.bf16.gmra.mxu0 %v1842
      %v1967 = vpop.f32.mrf.mxu0
      %v1968 = vadd.f32 0.0, %v1967
      %v1969 = vpop.f32.mrf.mxu0
      %v1970 = vadd.f32 0.0, %v1969
      %1971 = vmatmul.bf16.gmra.mxu0 %v1843
      %v1972 = vpop.f32.mrf.mxu0
      %v1973 = vadd.f32 0.0, %v1972
      %v1974 = vpop.f32.mrf.mxu0
      %v1975 = vadd.f32 0.0, %v1974
      %1976 = vmatmul.bf16.gmra.mxu0 %v1844
      %v1977 = vpop.f32.mrf.mxu0
      %v1978 = vadd.f32 0.0, %v1977
      %v1979 = vpop.f32.mrf.mxu0
      %v1980 = vadd.f32 0.0, %v1979
      %1981 = vmatmul.bf16.gmra.mxu0 %v1845
      %v1982 = vpop.f32.mrf.mxu0
      %v1983 = vadd.f32 0.0, %v1982
      %v1984 = vpop.f32.mrf.mxu0
      %v1985 = vadd.f32 0.0, %v1984
      %1986 = vmatmul.bf16.gmra.mxu0 %v1846
      %v1987 = vpop.f32.mrf.mxu0
      %v1988 = vadd.f32 0.0, %v1987
      %v1989 = vpop.f32.mrf.mxu0
      %v1990 = vadd.f32 0.0, %v1989
      %1991 = vmatmul.bf16.gmra.mxu0 %v1847
      %v1992 = vpop.f32.mrf.mxu0
      %v1993 = vadd.f32 0.0, %v1992
      %v1994 = vpop.f32.mrf.mxu0
      %v1995 = vadd.f32 0.0, %v1994
      %1996 = vmatmul.bf16.gmra.mxu0 %v1848
      %v1997 = vpop.f32.mrf.mxu0
      %v1998 = vadd.f32 0.0, %v1997
      %v1999 = vpop.f32.mrf.mxu0
      %v2000 = vadd.f32 0.0, %v1999
      %2001 = vdwg.mxu0
      %vm2002 = vcmask 261120
      %2003 = vst.msk [vmem:[%s276] sm:$0xff] %vm2002, %v1923
      %2004 = vst.msk [vmem:[%s276 + $0x8] sm:$0xff] %vm2002, %v1925
      %2005 = vst.msk [vmem:[%s276 + $0x10] sm:$0xff] %vm2002, %v1928
      %2006 = vst.msk [vmem:[%s276 + $0x18] sm:$0xff] %vm2002, %v1930
      %2007 = vst.msk [vmem:[%s276 + $0x20] sm:$0xff] %vm2002, %v1933
      %2008 = vst.msk [vmem:[%s276 + $0x28] sm:$0xff] %vm2002, %v1935
      %2009 = vst.msk [vmem:[%s276 + $0x30] sm:$0xff] %vm2002, %v1938
      %2010 = vst.msk [vmem:[%s276 + $0x38] sm:$0xff] %vm2002, %v1940
      %2011 = vst.msk [vmem:[%s276 + $0x40] sm:$0xff] %vm2002, %v1943
      %2012 = vst.msk [vmem:[%s276 + $0x48] sm:$0xff] %vm2002, %v1945
      %2013 = vst.msk [vmem:[%s276 + $0x50] sm:$0xff] %vm2002, %v1948
      %2014 = vst.msk [vmem:[%s276 + $0x58] sm:$0xff] %vm2002, %v1950
      %2015 = vst.msk [vmem:[%s276 + $0x60] sm:$0xff] %vm2002, %v1953
      %2016 = vst.msk [vmem:[%s276 + $0x68] sm:$0xff] %vm2002, %v1955
      %2017 = vst.msk [vmem:[%s276 + $0x70] sm:$0xff] %vm2002, %v1958
      %2018 = vst.msk [vmem:[%s276 + $0x78] sm:$0xff] %vm2002, %v1960
      %2019 = vst.msk [vmem:[%s276 + $0x80] sm:$0xff] %vm2002, %v1963
      %2020 = vst.msk [vmem:[%s276 + $0x88] sm:$0xff] %vm2002, %v1965
      %2021 = vst.msk [vmem:[%s276 + $0x90] sm:$0xff] %vm2002, %v1968
      %2022 = vst.msk [vmem:[%s276 + $0x98] sm:$0xff] %vm2002, %v1970
      %2023 = vst.msk [vmem:[%s276 + $0xa0] sm:$0xff] %vm2002, %v1973
      %2024 = vst.msk [vmem:[%s276 + $0xa8] sm:$0xff] %vm2002, %v1975
      %2025 = vst.msk [vmem:[%s276 + $0xb0] sm:$0xff] %vm2002, %v1978
      %2026 = vst.msk [vmem:[%s276 + $0xb8] sm:$0xff] %vm2002, %v1980
      %2027 = vst.msk [vmem:[%s276 + $0xc0] sm:$0xff] %vm2002, %v1983
      %2028 = vst.msk [vmem:[%s276 + $0xc8] sm:$0xff] %vm2002, %v1985
      %2029 = vst.msk [vmem:[%s276 + $0xd0] sm:$0xff] %vm2002, %v1988
      %2030 = vst.msk [vmem:[%s276 + $0xd8] sm:$0xff] %vm2002, %v1990
      %2031 = vst.msk [vmem:[%s276 + $0xe0] sm:$0xff] %vm2002, %v1993
      %2032 = vst.msk [vmem:[%s276 + $0xe8] sm:$0xff] %vm2002, %v1995
      %2033 = vst.msk [vmem:[%s276 + $0xf0] sm:$0xff] %vm2002, %v1998
      %2034 = vst.msk [vmem:[%s276 + $0xf8] sm:$0xff] %vm2002, %v2000
      %s2035 = smul.u32 32, %s21
      %p2036 = scmp.lt.s32.totalorder %s20, 1
      %s2037 = scalar_select %p2036, %s20, 1
      %p2038 = scmp.lt.s32.totalorder %s2035, 31
      %s2039 = scalar_select %p2038, %s2035, 31
      %s2040 = smul.addr %s2037, 32
      %s2041 = sadd.s32 %s2039, %s2040
      %s2042 = smul.addr %s2041, 8
      %s2043 = scalar_lea.vmem %s5, %s2042
      // Predicated region
      $region41: #{mbconv_forward.17} parent=39 // pred_check
        %p2044 = pneg %p165
      $region42: #{mbconv_forward.17} parent=39 // pred_check_branch
        %2046 = sbr.rel (%p2044) target = $region44
      $region43: #{mbconv_forward.17} parent=39 // pred_region
        %s2047 = smul.u32 32, %s21
      $region44: #{mbconv_forward.17} parent=39 // pred_fallthru
        _
    $region40: #{mbconv_forward.17} parent=5 // pred_fallthru
      _
    %p2048 = scmp.le.s32.totalorder 2, %s11
    // Predicated region
    $region45: #{mbconv_forward.17} parent=5 // pred_check
      %p2049 = pneg %p2048
    $region46: #{mbconv_forward.17} parent=5 // pred_check_branch
      %2051 = sbr.rel (%p2049) target = $region48
    $region47: #{mbconv_forward.17} parent=5 // pred_region
      %s2052 = ssub.s32 %s11, 2
      // Predicated region
      $region49: #{mbconv_forward.17} parent=47 // pred_check
        %p2053 = pneg %p171
      $region50: #{mbconv_forward.17} parent=47 // pred_check_branch
        %2055 = sbr.rel (%p2053) target = $region52
      $region51: #{mbconv_forward.17} parent=47 // pred_region
        %s2056 = smul.u32 32, %s23
        %p2057 = scmp.lt.s32.totalorder %s22, 1
        %s2058 = scalar_select %p2057, %s22, 1
        %p2059 = scmp.lt.s32.totalorder %s2056, 31
        %s2060 = scalar_select %p2059, %s2056, 31
        %s2061 = smul.addr %s2058, 32
        %s2062 = sadd.s32 %s2060, %s2061
        %s2063 = smul.addr %s2062, 8
        %s2064 = scalar_lea.vmem %s5, %s2063
      $region52: #{mbconv_forward.17} parent=47 // pred_fallthru
        _
    $region48: #{mbconv_forward.17} parent=5 // pred_fallthru
      _
  $region6: #{mbconv_forward.17} parent=0 // loop_footer
    %s15 = sadd.s32 1, %s11
  $region7: #{mbconv_forward.17} parent=0 // loop_footer_branch
    %10 = sbr.rel target = $region3
  $region8: #{mbconv_forward.17} parent=0 // loop_exit
    _

// kernel: mbconv_forward.18
$region0: #{mbconv_forward.18}
  #allocation0 [shape = 'u32[]', space=smem, size = 0x4, offset = 0x4, fixed_abs, tag = 'smem constant byte address 0x4 - core index']
  #allocation1 [shape = 'u32[72,128]{1,0:T(1,128)}', space=vmem, size = 0x9000, scoped, tag = 'internal scratch']
  %s0 = inlined_call_operand.vmem [shape: f32[512,32], index: 0, kind: input, shape index: {}]
  %s1 = inlined_call_operand.vmem [shape: f32[1,32], index: 1, kind: output, shape index: {0}]
  %s2 = inlined_call_operand.vmem [shape: f32[1,32], index: 2, kind: output, shape index: {1}]
  %3 = xla_tuple %s1, %s2
  %s4 = sld [smem:[#allocation0]]
  $region26: #{mbconv_forward.18} parent=0
    _
  %s6 = ssub.s32 1, %s4
  %s7 = scalar_select 0, %s6, %s4
  // Predicated region
  $region2: #{mbconv_forward.18} parent=0 // pred_check
    _
  $region3: #{mbconv_forward.18} parent=0 // pred_check_branch
    %9 = sbr.rel (0) target = $region5
  $region4: #{mbconv_forward.18} parent=0 // pred_region
    _
  $region5: #{mbconv_forward.18} parent=0 // pred_fallthru
    _
  %p10 = scmp.eq.s32.totalorder 0, 0
  // Predicated region
  $region6: #{mbconv_forward.18} parent=0 // pred_check
    %p11 = pneg %p10
  $region7: #{mbconv_forward.18} parent=0 // pred_check_branch
    %13 = sbr.rel (%p11) target = $region9
  $region8: #{mbconv_forward.18} parent=0 // pred_region
    %vm14 = vcmask 253952
    %15 = vst.msk [vmem:[%s1] sm:$0x1] %vm14, 0.0
    %16 = vst.msk [vmem:[%s2] sm:$0x1] %vm14, 0.0
  $region9: #{mbconv_forward.18} parent=0 // pred_fallthru
    _
  %v17 = vld [vmem:[%s0] sm:$0xff]
  %v18 = vld [vmem:[%s0 + $0x8] sm:$0xff]
  %v19 = vld [vmem:[%s0 + $0x10] sm:$0xff]
  %v20 = vld [vmem:[%s0 + $0x18] sm:$0xff]
  %v21 = vld [vmem:[%s0 + $0x20] sm:$0xff]
  %v22 = vld [vmem:[%s0 + $0x28] sm:$0xff]
  %v23 = vld [vmem:[%s0 + $0x30] sm:$0xff]
  %v24 = vld [vmem:[%s0 + $0x38] sm:$0xff]
  %v25 = vld [vmem:[%s0 + $0x40] sm:$0xff]
  %v26 = vld [vmem:[%s0 + $0x48] sm:$0xff]
  %v27 = vld [vmem:[%s0 + $0x50] sm:$0xff]
  %v28 = vld [vmem:[%s0 + $0x58] sm:$0xff]
  %v29 = vld [vmem:[%s0 + $0x60] sm:$0xff]
  %v30 = vld [vmem:[%s0 + $0x68] sm:$0xff]
  %v31 = vld [vmem:[%s0 + $0x70] sm:$0xff]
  %v32 = vld [vmem:[%s0 + $0x78] sm:$0xff]
  %v33 = vld [vmem:[%s0 + $0x80] sm:$0xff]
  %v34 = vld [vmem:[%s0 + $0x88] sm:$0xff]
  %v35 = vld [vmem:[%s0 + $0x90] sm:$0xff]
  %v36 = vld [vmem:[%s0 + $0x98] sm:$0xff]
  %v37 = vld [vmem:[%s0 + $0xa0] sm:$0xff]
  %v38 = vld [vmem:[%s0 + $0xa8] sm:$0xff]
  %v39 = vld [vmem:[%s0 + $0xb0] sm:$0xff]
  %v40 = vld [vmem:[%s0 + $0xb8] sm:$0xff]
  %v41 = vld [vmem:[%s0 + $0xc0] sm:$0xff]
  %v42 = vld [vmem:[%s0 + $0xc8] sm:$0xff]
  %v43 = vld [vmem:[%s0 + $0xd0] sm:$0xff]
  %v44 = vld [vmem:[%s0 + $0xd8] sm:$0xff]
  %v45 = vld [vmem:[%s0 + $0xe0] sm:$0xff]
  %v46 = vld [vmem:[%s0 + $0xe8] sm:$0xff]
  %v47 = vld [vmem:[%s0 + $0xf0] sm:$0xff]
  %v48 = vld [vmem:[%s0 + $0xf8] sm:$0xff]
  %v49 = vld [vmem:[%s0 + $0x100] sm:$0xff]
  %v50 = vld [vmem:[%s0 + $0x108] sm:$0xff]
  %v51 = vld [vmem:[%s0 + $0x110] sm:$0xff]
  %v52 = vld [vmem:[%s0 + $0x118] sm:$0xff]
  %v53 = vld [vmem:[%s0 + $0x120] sm:$0xff]
  %v54 = vld [vmem:[%s0 + $0x128] sm:$0xff]
  %v55 = vld [vmem:[%s0 + $0x130] sm:$0xff]
  %v56 = vld [vmem:[%s0 + $0x138] sm:$0xff]
  %v57 = vld [vmem:[%s0 + $0x140] sm:$0xff]
  %v58 = vld [vmem:[%s0 + $0x148] sm:$0xff]
  %v59 = vld [vmem:[%s0 + $0x150] sm:$0xff]
  %v60 = vld [vmem:[%s0 + $0x158] sm:$0xff]
  %v61 = vld [vmem:[%s0 + $0x160] sm:$0xff]
  %v62 = vld [vmem:[%s0 + $0x168] sm:$0xff]
  %v63 = vld [vmem:[%s0 + $0x170] sm:$0xff]
  %v64 = vld [vmem:[%s0 + $0x178] sm:$0xff]
  %v65 = vld [vmem:[%s0 + $0x180] sm:$0xff]
  %v66 = vld [vmem:[%s0 + $0x188] sm:$0xff]
  %v67 = vld [vmem:[%s0 + $0x190] sm:$0xff]
  %v68 = vld [vmem:[%s0 + $0x198] sm:$0xff]
  %v69 = vld [vmem:[%s0 + $0x1a0] sm:$0xff]
  %v70 = vld [vmem:[%s0 + $0x1a8] sm:$0xff]
  %v71 = vld [vmem:[%s0 + $0x1b0] sm:$0xff]
  %v72 = vld [vmem:[%s0 + $0x1b8] sm:$0xff]
  %v73 = vld [vmem:[%s0 + $0x1c0] sm:$0xff]
  %v74 = vld [vmem:[%s0 + $0x1c8] sm:$0xff]
  %v75 = vld [vmem:[%s0 + $0x1d0] sm:$0xff]
  %v76 = vld [vmem:[%s0 + $0x1d8] sm:$0xff]
  %v77 = vld [vmem:[%s0 + $0x1e0] sm:$0xff]
  %v78 = vld [vmem:[%s0 + $0x1e8] sm:$0xff]
  %v79 = vld [vmem:[%s0 + $0x1f0] sm:$0xff]
  %v80 = vld [vmem:[%s0 + $0x1f8] sm:$0xff]
  %v81 = vld [vmem:[%s1] sm:$0x1]
  %vm82 = vcmask 261120
  %v83 = vsel %vm82, %v17, 0.0
  %v84 = vsel %vm82, %v18, 0.0
  %v85 = vadd.f32 %v83, %v84
  %v86 = vsel %vm82, %v19, 0.0
  %v87 = vadd.f32 %v85, %v86
  %v88 = vsel %vm82, %v20, 0.0
  %v89 = vadd.f32 %v87, %v88
  %v90 = vsel %vm82, %v21, 0.0
  %v91 = vadd.f32 %v89, %v90
  %v92 = vsel %vm82, %v22, 0.0
  %v93 = vadd.f32 %v91, %v92
  %v94 = vsel %vm82, %v23, 0.0
  %v95 = vadd.f32 %v93, %v94
  %v96 = vsel %vm82, %v24, 0.0
  %v97 = vadd.f32 %v95, %v96
  %v98 = vsel %vm82, %v25, 0.0
  %v99 = vadd.f32 %v97, %v98
  %v100 = vsel %vm82, %v26, 0.0
  %v101 = vadd.f32 %v99, %v100
  %v102 = vsel %vm82, %v27, 0.0
  %v103 = vadd.f32 %v101, %v102
  %v104 = vsel %vm82, %v28, 0.0
  %v105 = vadd.f32 %v103, %v104
  %v106 = vsel %vm82, %v29, 0.0
  %v107 = vadd.f32 %v105, %v106
  %v108 = vsel %vm82, %v30, 0.0
  %v109 = vadd.f32 %v107, %v108
  %v110 = vsel %vm82, %v31, 0.0
  %v111 = vadd.f32 %v109, %v110
  %v112 = vsel %vm82, %v32, 0.0
  %v113 = vadd.f32 %v111, %v112
  %v114 = vsel %vm82, %v33, 0.0
  %v115 = vadd.f32 %v113, %v114
  %v116 = vsel %vm82, %v34, 0.0
  %v117 = vadd.f32 %v115, %v116
  %v118 = vsel %vm82, %v35, 0.0
  %v119 = vadd.f32 %v117, %v118
  %v120 = vsel %vm82, %v36, 0.0
  %v121 = vadd.f32 %v119, %v120
  %v122 = vsel %vm82, %v37, 0.0
  %v123 = vadd.f32 %v121, %v122
  %v124 = vsel %vm82, %v38, 0.0
  %v125 = vadd.f32 %v123, %v124
  %v126 = vsel %vm82, %v39, 0.0
  %v127 = vadd.f32 %v125, %v126
  %v128 = vsel %vm82, %v40, 0.0
  %v129 = vadd.f32 %v127, %v128
  %v130 = vsel %vm82, %v41, 0.0
  %v131 = vadd.f32 %v129, %v130
  %v132 = vsel %vm82, %v42, 0.0
  %v133 = vadd.f32 %v131, %v132
  %v134 = vsel %vm82, %v43, 0.0
  %v135 = vadd.f32 %v133, %v134
  %v136 = vsel %vm82, %v44, 0.0
  %v137 = vadd.f32 %v135, %v136
  %v138 = vsel %vm82, %v45, 0.0
  %v139 = vadd.f32 %v137, %v138
  %v140 = vsel %vm82, %v46, 0.0
  %v141 = vadd.f32 %v139, %v140
  %v142 = vsel %vm82, %v47, 0.0
  %v143 = vadd.f32 %v141, %v142
  %v144 = vsel %vm82, %v48, 0.0
  %v145 = vadd.f32 %v143, %v144
  %v146 = vsel %vm82, %v49, 0.0
  %v147 = vadd.f32 %v145, %v146
  %v148 = vsel %vm82, %v50, 0.0
  %v149 = vadd.f32 %v147, %v148
  %v150 = vsel %vm82, %v51, 0.0
  %v151 = vadd.f32 %v149, %v150
  %v152 = vsel %vm82, %v52, 0.0
  %v153 = vadd.f32 %v151, %v152
  %v154 = vsel %vm82, %v53, 0.0
  %v155 = vadd.f32 %v153, %v154
  %v156 = vsel %vm82, %v54, 0.0
  %v157 = vadd.f32 %v155, %v156
  %v158 = vsel %vm82, %v55, 0.0
  %v159 = vadd.f32 %v157, %v158
  %v160 = vsel %vm82, %v56, 0.0
  %v161 = vadd.f32 %v159, %v160
  %v162 = vsel %vm82, %v57, 0.0
  %v163 = vadd.f32 %v161, %v162
  %v164 = vsel %vm82, %v58, 0.0
  %v165 = vadd.f32 %v163, %v164
  %v166 = vsel %vm82, %v59, 0.0
  %v167 = vadd.f32 %v165, %v166
  %v168 = vsel %vm82, %v60, 0.0
  %v169 = vadd.f32 %v167, %v168
  %v170 = vsel %vm82, %v61, 0.0
  %v171 = vadd.f32 %v169, %v170
  %v172 = vsel %vm82, %v62, 0.0
  %v173 = vadd.f32 %v171, %v172
  %v174 = vsel %vm82, %v63, 0.0
  %v175 = vadd.f32 %v173, %v174
  %v176 = vsel %vm82, %v64, 0.0
  %v177 = vadd.f32 %v175, %v176
  %v178 = vsel %vm82, %v65, 0.0
  %v179 = vadd.f32 %v177, %v178
  %v180 = vsel %vm82, %v66, 0.0
  %v181 = vadd.f32 %v179, %v180
  %v182 = vsel %vm82, %v67, 0.0
  %v183 = vadd.f32 %v181, %v182
  %v184 = vsel %vm82, %v68, 0.0
  %v185 = vadd.f32 %v183, %v184
  %v186 = vsel %vm82, %v69, 0.0
  %v187 = vadd.f32 %v185, %v186
  %v188 = vsel %vm82, %v70, 0.0
  %v189 = vadd.f32 %v187, %v188
  %v190 = vsel %vm82, %v71, 0.0
  %v191 = vadd.f32 %v189, %v190
  %v192 = vsel %vm82, %v72, 0.0
  %v193 = vadd.f32 %v191, %v192
  %v194 = vsel %vm82, %v73, 0.0
  %v195 = vadd.f32 %v193, %v194
  %v196 = vsel %vm82, %v74, 0.0
  %v197 = vadd.f32 %v195, %v196
  %v198 = vsel %vm82, %v75, 0.0
  %v199 = vadd.f32 %v197, %v198
  %v200 = vsel %vm82, %v76, 0.0
  %v201 = vadd.f32 %v199, %v200
  %v202 = vsel %vm82, %v77, 0.0
  %v203 = vadd.f32 %v201, %v202
  %v204 = vsel %vm82, %v78, 0.0
  %v205 = vadd.f32 %v203, %v204
  %v206 = vsel %vm82, %v79, 0.0
  %v207 = vadd.f32 %v205, %v206
  %v208 = vsel %vm82, %v80, 0.0
  %v209 = vadd.f32 %v207, %v208
  %v210 = vrot.slane %v209, 4
  %v211 = vadd.f32 %v209, %v210
  %v212 = vrot.slane %v211, 2
  %v213 = vadd.f32 %v211, %v212
  %v214 = vrot.slane %v213, 1
  %v215 = vadd.f32 %v213, %v214
  %v216 = vadd.f32 %v81, %v215
  %vm217 = vcmask 253952
  %218 = vst.msk [vmem:[%s1] sm:$0x1] %vm217, %v216
  %v219 = vld [vmem:[%s2] sm:$0x1]
  %v220 = vmul.f32 %v17, %v17
  %v221 = vmul.f32 %v18, %v18
  %v222 = vmul.f32 %v19, %v19
  %v223 = vmul.f32 %v20, %v20
  %v224 = vmul.f32 %v21, %v21
  %v225 = vmul.f32 %v22, %v22
  %v226 = vmul.f32 %v23, %v23
  %v227 = vmul.f32 %v24, %v24
  %v228 = vmul.f32 %v25, %v25
  %v229 = vmul.f32 %v26, %v26
  %v230 = vmul.f32 %v27, %v27
  %v231 = vmul.f32 %v28, %v28
  %v232 = vmul.f32 %v29, %v29
  %v233 = vmul.f32 %v30, %v30
  %v234 = vmul.f32 %v31, %v31
  %v235 = vmul.f32 %v32, %v32
  %v236 = vmul.f32 %v33, %v33
  %v237 = vmul.f32 %v34, %v34
  %v238 = vmul.f32 %v35, %v35
  %v239 = vmul.f32 %v36, %v36
  %v240 = vmul.f32 %v37, %v37
  %v241 = vmul.f32 %v38, %v38
  %v242 = vmul.f32 %v39, %v39
  %v243 = vmul.f32 %v40, %v40
  %v244 = vmul.f32 %v41, %v41
  %v245 = vmul.f32 %v42, %v42
  %v246 = vmul.f32 %v43, %v43
  %v247 = vmul.f32 %v44, %v44
  %v248 = vmul.f32 %v45, %v45
  %v249 = vmul.f32 %v46, %v46
  %v250 = vmul.f32 %v47, %v47
  %v251 = vmul.f32 %v48, %v48
  %v252 = vmul.f32 %v49, %v49
  %v253 = vmul.f32 %v50, %v50
  %v254 = vmul.f32 %v51, %v51
  %v255 = vmul.f32 %v52, %v52
  %v256 = vmul.f32 %v53, %v53
  %v257 = vmul.f32 %v54, %v54
  %v258 = vmul.f32 %v55, %v55
  %v259 = vmul.f32 %v56, %v56
  %v260 = vmul.f32 %v57, %v57
  %v261 = vmul.f32 %v58, %v58
  %v262 = vmul.f32 %v59, %v59
  %v263 = vmul.f32 %v60, %v60
  %v264 = vmul.f32 %v61, %v61
  %v265 = vmul.f32 %v62, %v62
  %v266 = vmul.f32 %v63, %v63
  %v267 = vmul.f32 %v64, %v64
  %v268 = vmul.f32 %v65, %v65
  %v269 = vmul.f32 %v66, %v66
  %v270 = vmul.f32 %v67, %v67
  %v271 = vmul.f32 %v68, %v68
  %v272 = vmul.f32 %v69, %v69
  %v273 = vmul.f32 %v70, %v70
  %v274 = vmul.f32 %v71, %v71
  %v275 = vmul.f32 %v72, %v72
  %v276 = vmul.f32 %v73, %v73
  %v277 = vmul.f32 %v74, %v74
  %v278 = vmul.f32 %v75, %v75
  %v279 = vmul.f32 %v76, %v76
  %v280 = vmul.f32 %v77, %v77
  %v281 = vmul.f32 %v78, %v78
  %v282 = vmul.f32 %v79, %v79
  %v283 = vmul.f32 %v80, %v80
  %v284 = vsel %vm82, %v220, 0.0
  %v285 = vsel %vm82, %v221, 0.0
  %v286 = vadd.f32 %v284, %v285
  %v287 = vsel %vm82, %v222, 0.0
  %v288 = vadd.f32 %v286, %v287
  %v289 = vsel %vm82, %v223, 0.0
  %v290 = vadd.f32 %v288, %v289
  %v291 = vsel %vm82, %v224, 0.0
  %v292 = vadd.f32 %v290, %v291
  %v293 = vsel %vm82, %v225, 0.0
  %v294 = vadd.f32 %v292, %v293
  %v295 = vsel %vm82, %v226, 0.0
  %v296 = vadd.f32 %v294, %v295
  %v297 = vsel %vm82, %v227, 0.0
  %v298 = vadd.f32 %v296, %v297
  %v299 = vsel %vm82, %v228, 0.0
  %v300 = vadd.f32 %v298, %v299
  %v301 = vsel %vm82, %v229, 0.0
  %v302 = vadd.f32 %v300, %v301
  %v303 = vsel %vm82, %v230, 0.0
  %v304 = vadd.f32 %v302, %v303
  %v305 = vsel %vm82, %v231, 0.0
  %v306 = vadd.f32 %v304, %v305
  %v307 = vsel %vm82, %v232, 0.0
  %v308 = vadd.f32 %v306, %v307
  %v309 = vsel %vm82, %v233, 0.0
  %v310 = vadd.f32 %v308, %v309
  %v311 = vsel %vm82, %v234, 0.0
  %v312 = vadd.f32 %v310, %v311
  %v313 = vsel %vm82, %v235, 0.0
  %v314 = vadd.f32 %v312, %v313
  %v315 = vsel %vm82, %v236, 0.0
  %v316 = vadd.f32 %v314, %v315
  %v317 = vsel %vm82, %v237, 0.0
  %v318 = vadd.f32 %v316, %v317
  %v319 = vsel %vm82, %v238, 0.0
  %v320 = vadd.f32 %v318, %v319
  %v321 = vsel %vm82, %v239, 0.0
  %v322 = vadd.f32 %v320, %v321
  %v323 = vsel %vm82, %v240, 0.0
  %v324 = vadd.f32 %v322, %v323
  %v325 = vsel %vm82, %v241, 0.0
  %v326 = vadd.f32 %v324, %v325
  %v327 = vsel %vm82, %v242, 0.0
  %v328 = vadd.f32 %v326, %v327
  %v329 = vsel %vm82, %v243, 0.0
  %v330 = vadd.f32 %v328, %v329
  %v331 = vsel %vm82, %v244, 0.0
  %v332 = vadd.f32 %v330, %v331
  %v333 = vsel %vm82, %v245, 0.0
  %v334 = vadd.f32 %v332, %v333
  %v335 = vsel %vm82, %v246, 0.0
  %v336 = vadd.f32 %v334, %v335
  %v337 = vsel %vm82, %v247, 0.0
  %v338 = vadd.f32 %v336, %v337
  %v339 = vsel %vm82, %v248, 0.0
  %v340 = vadd.f32 %v338, %v339
  %v341 = vsel %vm82, %v249, 0.0
  %v342 = vadd.f32 %v340, %v341
  %v343 = vsel %vm82, %v250, 0.0
  %v344 = vadd.f32 %v342, %v343
  %v345 = vsel %vm82, %v251, 0.0
  %v346 = vadd.f32 %v344, %v345
  %v347 = vsel %vm82, %v252, 0.0
  %v348 = vadd.f32 %v346, %v347
  %v349 = vsel %vm82, %v253, 0.0
  %v350 = vadd.f32 %v348, %v349
  %v351 = vsel %vm82, %v254, 0.0
  %v352 = vadd.f32 %v350, %v351
  %v353 = vsel %vm82, %v255, 0.0
  %v354 = vadd.f32 %v352, %v353
  %v355 = vsel %vm82, %v256, 0.0
  %v356 = vadd.f32 %v354, %v355
  %v357 = vsel %vm82, %v257, 0.0
  %v358 = vadd.f32 %v356, %v357
  %v359 = vsel %vm82, %v258, 0.0
  %v360 = vadd.f32 %v358, %v359
  %v361 = vsel %vm82, %v259, 0.0
  %v362 = vadd.f32 %v360, %v361
  %v363 = vsel %vm82, %v260, 0.0
  %v364 = vadd.f32 %v362, %v363
  %v365 = vsel %vm82, %v261, 0.0
  %v366 = vadd.f32 %v364, %v365
  %v367 = vsel %vm82, %v262, 0.0
  %v368 = vadd.f32 %v366, %v367
  %v369 = vsel %vm82, %v263, 0.0
  %v370 = vadd.f32 %v368, %v369
  %v371 = vsel %vm82, %v264, 0.0
  %v372 = vadd.f32 %v370, %v371
  %v373 = vsel %vm82, %v265, 0.0
  %v374 = vadd.f32 %v372, %v373
  %v375 = vsel %vm82, %v266, 0.0
  %v376 = vadd.f32 %v374, %v375
  %v377 = vsel %vm82, %v267, 0.0
  %v378 = vadd.f32 %v376, %v377
  %v379 = vsel %vm82, %v268, 0.0
  %v380 = vadd.f32 %v378, %v379
  %v381 = vsel %vm82, %v269, 0.0
  %v382 = vadd.f32 %v380, %v381
  %v383 = vsel %vm82, %v270, 0.0
  %v384 = vadd.f32 %v382, %v383
  %v385 = vsel %vm82, %v271, 0.0
  %v386 = vadd.f32 %v384, %v385
  %v387 = vsel %vm82, %v272, 0.0
  %v388 = vadd.f32 %v386, %v387
  %v389 = vsel %vm82, %v273, 0.0
  %v390 = vadd.f32 %v388, %v389
  %v391 = vsel %vm82, %v274, 0.0
  %v392 = vadd.f32 %v390, %v391
  %v393 = vsel %vm82, %v275, 0.0
  %v394 = vadd.f32 %v392, %v393
  %v395 = vsel %vm82, %v276, 0.0
  %v396 = vadd.f32 %v394, %v395
  %v397 = vsel %vm82, %v277, 0.0
  %v398 = vadd.f32 %v396, %v397
  %v399 = vsel %vm82, %v278, 0.0
  %v400 = vadd.f32 %v398, %v399
  %v401 = vsel %vm82, %v279, 0.0
  %v402 = vadd.f32 %v400, %v401
  %v403 = vsel %vm82, %v280, 0.0
  %v404 = vadd.f32 %v402, %v403
  %v405 = vsel %vm82, %v281, 0.0
  %v406 = vadd.f32 %v404, %v405
  %v407 = vsel %vm82, %v282, 0.0
  %v408 = vadd.f32 %v406, %v407
  %v409 = vsel %vm82, %v283, 0.0
  %v410 = vadd.f32 %v408, %v409
  %v411 = vrot.slane %v410, 4
  %v412 = vadd.f32 %v410, %v411
  %v413 = vrot.slane %v412, 2
  %v414 = vadd.f32 %v412, %v413
  %v415 = vrot.slane %v414, 1
  %v416 = vadd.f32 %v414, %v415
  %v417 = vadd.f32 %v219, %v416
  %418 = vst.msk [vmem:[%s2] sm:$0x1] %vm217, %v417
  // Predicated region
  $region10: #{mbconv_forward.18} parent=0 // pred_check
    _
  $region11: #{mbconv_forward.18} parent=0 // pred_check_branch
    %420 = sbr.rel (0) target = $region13
  $region12: #{mbconv_forward.18} parent=0 // pred_region
    _
  $region13: #{mbconv_forward.18} parent=0 // pred_fallthru
    _
  // Predicated region
  $region14: #{mbconv_forward.18} parent=0 // pred_check
    _
  $region15: #{mbconv_forward.18} parent=0 // pred_check_branch
    %422 = sbr.rel (0) target = $region17
  $region16: #{mbconv_forward.18} parent=0 // pred_region
    _
  $region17: #{mbconv_forward.18} parent=0 // pred_fallthru
    _
  // Predicated region
  $region18: #{mbconv_forward.18} parent=0 // pred_check
    _
  $region19: #{mbconv_forward.18} parent=0 // pred_check_branch
    %424 = sbr.rel (0) target = $region21
  $region20: #{mbconv_forward.18} parent=0 // pred_region
    _
  $region21: #{mbconv_forward.18} parent=0 // pred_fallthru
    _
  // Predicated region
  $region22: #{mbconv_forward.18} parent=0 // pred_check
    _
  $region23: #{mbconv_forward.18} parent=0 // pred_check_branch
    %426 = sbr.rel (0) target = $region25
  $region24: #{mbconv_forward.18} parent=0 // pred_region
    _
  $region25: #{mbconv_forward.18} parent=0 // pred_fallthru
    _

// kernel: mbconv_forward.13
$region0: #{mbconv_forward.13}
  #allocation0 [shape = 'u32[]', space=smem, size = 0x4, offset = 0x4, fixed_abs, tag = 'smem constant byte address 0x4 - core index']
  #allocation1 [shape = 'u32[72,128]{1,0:T(1,128)}', space=vmem, size = 0x9000, scoped, tag = 'internal scratch']
  #allocation2 [shape = 'f32[1,18,18,128]{3,2,1,0:T(8,128)}', space=vmem, size = 0x36000, scoped, tag = 'scratch operand']
  %s0 = inlined_call_operand.vmem [shape: f32[2,16,16,128], index: 0, kind: input, shape index: {}]
  %s1 = inlined_call_operand.vmem [shape: f32[1,128], index: 1, kind: input, shape index: {}]
  %s2 = inlined_call_operand.vmem [shape: f32[1,128], index: 2, kind: input, shape index: {}]
  %s3 = inlined_call_operand.vmem [shape: f32[9,128], index: 3, kind: input, shape index: {}]
  %s4 = inlined_call_operand.vmem [shape: f32[2,16,16,128], index: 4, kind: output, shape index: {}]
  %s5 = sld [smem:[#allocation0]]
  $region49: #{mbconv_forward.13} parent=0
    _
  %s7 = ssub.s32 1, %s5
  %s8 = scalar_select 0, %s7, %s5
  loop: start=0, step=1, limit=4
  $region2: #{mbconv_forward.13} parent=0 // loop_pre_header
    _
  $region3: #{mbconv_forward.13} parent=0 // loop_header
    %s10 = sphi 0, %s14
    %p11 = scmp.ge.s32.totalorder %s10, 4
    %s20 = sphi 0, %s22
    %s23 = sphi 0, %s20
    %s24 = sphi 0, %s23
    %s40 = sphi 0, %s24
    %s44 = sphi 0, %s44
    %s46 = sphi 0, %s44
    %s47 = sphi 0, %s46
    %s61 = sphi 0, %s47
    %s65 = sphi 0, %s65
    %s67 = sphi 0, %s65
    %s68 = sphi 0, %s67
    %s82 = sphi 0, %s68
    %s86 = sphi 0, %s86
    %s88 = sphi 0, %s86
    %s89 = sphi 0, %s88
    %s103 = sphi 0, %s89
    %s109 = sphi 0, %s111
    %s112 = sphi 0, %s109
    %s113 = sphi 0, %s112
    %s129 = sphi 0, %s113
  $region4: #{mbconv_forward.13} parent=0 // loop_header_branch
    %13 = sbr.rel (%p11) target = $region8
  $region5: #{mbconv_forward.13} parent=0 // loop_body
    %s15 = ssub.s32 %s10, 1
    %s16 = ssub.s32 %s10, 2
    %s17 = sadd.s32 %s10, 1
    %s18 = ssub.s32 %s10, %s17
    %p19 = scmp.eq.s32.totalorder %s18, 0
    %s21 = sadd.s32 %s20, 1
    %s22 = scalar_select %p19, %s20, %s21
    %p25 = pneg %p19
    %p26 = scmp.eq.s32.totalorder %s10, 1
    %p27 = por %p25, %p26
    %p28 = scmp.ne.s32.totalorder %s20, %s23
    %p29 = scmp.eq.s32.totalorder %s10, 0
    %p30 = por %p28, %p29
    %p31 = scmp.ne.s32.totalorder %s20, %s23
    %p32 = scmp.eq.s32.totalorder %s15, 1
    %p33 = por %p31, %p32
    %p34 = scmp.ne.s32.totalorder %s23, %s24
    %p35 = scmp.eq.s32.totalorder %s15, 0
    %p36 = por %p34, %p35
    %p37 = scmp.ne.s32.totalorder %s23, %s24
    %p38 = scmp.eq.s32.totalorder %s16, 1
    %p39 = por %p37, %p38
    %p41 = scmp.ne.s32.totalorder %s24, %s40
    %p42 = scmp.eq.s32.totalorder %s16, 0
    %p43 = por %p41, %p42
    %s45 = sadd.s32 %s44, 1
    %p48 = scmp.eq.s32.totalorder %s10, 1
    %p49 = scmp.ne.s32.totalorder %s44, %s46
    %p50 = scmp.eq.s32.totalorder %s10, 0
    %p51 = por %p49, %p50
    %p52 = scmp.ne.s32.totalorder %s44, %s46
    %p53 = scmp.eq.s32.totalorder %s15, 1
    %p54 = por %p52, %p53
    %p55 = scmp.ne.s32.totalorder %s46, %s47
    %p56 = scmp.eq.s32.totalorder %s15, 0
    %p57 = por %p55, %p56
    %p58 = scmp.ne.s32.totalorder %s46, %s47
    %p59 = scmp.eq.s32.totalorder %s16, 1
    %p60 = por %p58, %p59
    %p62 = scmp.ne.s32.totalorder %s47, %s61
    %p63 = scmp.eq.s32.totalorder %s16, 0
    %p64 = por %p62, %p63
    %s66 = sadd.s32 %s65, 1
    %p69 = scmp.eq.s32.totalorder %s10, 1
    %p70 = scmp.ne.s32.totalorder %s65, %s67
    %p71 = scmp.eq.s32.totalorder %s10, 0
    %p72 = por %p70, %p71
    %p73 = scmp.ne.s32.totalorder %s65, %s67
    %p74 = scmp.eq.s32.totalorder %s15, 1
    %p75 = por %p73, %p74
    %p76 = scmp.ne.s32.totalorder %s67, %s68
    %p77 = scmp.eq.s32.totalorder %s15, 0
    %p78 = por %p76, %p77
    %p79 = scmp.ne.s32.totalorder %s67, %s68
    %p80 = scmp.eq.s32.totalorder %s16, 1
    %p81 = por %p79, %p80
    %p83 = scmp.ne.s32.totalorder %s68, %s82
    %p84 = scmp.eq.s32.totalorder %s16, 0
    %p85 = por %p83, %p84
    %s87 = sadd.s32 %s86, 1
    %p90 = scmp.eq.s32.totalorder %s10, 1
    %p91 = scmp.ne.s32.totalorder %s86, %s88
    %p92 = scmp.eq.s32.totalorder %s10, 0
    %p93 = por %p91, %p92
    %p94 = scmp.ne.s32.totalorder %s86, %s88
    %p95 = scmp.eq.s32.totalorder %s15, 1
    %p96 = por %p94, %p95
    %p97 = scmp.ne.s32.totalorder %s88, %s89
    %p98 = scmp.eq.s32.totalorder %s15, 0
    %p99 = por %p97, %p98
    %p100 = scmp.ne.s32.totalorder %s88, %s89
    %p101 = scmp.eq.s32.totalorder %s16, 1
    %p102 = por %p100, %p101
    %p104 = scmp.ne.s32.totalorder %s89, %s103
    %p105 = scmp.eq.s32.totalorder %s16, 0
    %p106 = por %p104, %p105
    %s107 = ssub.s32 %s10, %s17
    %p108 = scmp.eq.s32.totalorder %s107, 0
    %s110 = sadd.s32 %s109, 1
    %s111 = scalar_select %p108, %s109, %s110
    %p114 = pneg %p108
    %p115 = scmp.eq.s32.totalorder %s10, 1
    %p116 = por %p114, %p115
    %p117 = scmp.ne.s32.totalorder %s109, %s112
    %p118 = scmp.eq.s32.totalorder %s10, 0
    %p119 = por %p117, %p118
    %p120 = scmp.ne.s32.totalorder %s109, %s112
    %p121 = scmp.eq.s32.totalorder %s15, 1
    %p122 = por %p120, %p121
    %p123 = scmp.ne.s32.totalorder %s112, %s113
    %p124 = scmp.eq.s32.totalorder %s15, 0
    %p125 = por %p123, %p124
    %p126 = scmp.ne.s32.totalorder %s112, %s113
    %p127 = scmp.eq.s32.totalorder %s16, 1
    %p128 = por %p126, %p127
    %p130 = scmp.ne.s32.totalorder %s113, %s129
    %p131 = scmp.eq.s32.totalorder %s16, 0
    %p132 = por %p130, %p131
    %p133 = scmp.le.s32.totalorder 1, %s10
    %p134 = scmp.lt.s32.totalorder %s10, 3
    %p135 = pnand %p133, %p134
    %p136 = pneg %p135
    // Predicated region
    $region9: #{mbconv_forward.13} parent=5 // pred_check
      _
    $region10: #{mbconv_forward.13} parent=5 // pred_check_branch
      %138 = sbr.rel (%p135) target = $region12
    $region11: #{mbconv_forward.13} parent=5 // pred_region
      %s139 = ssub.s32 %s10, 1
      // Predicated region
      $region13: #{mbconv_forward.13} parent=11 // pred_check
        %p140 = pneg %p57
      $region14: #{mbconv_forward.13} parent=11 // pred_check_branch
        %142 = sbr.rel (%p140) target = $region16
      $region15: #{mbconv_forward.13} parent=11 // pred_region
        _
      $region16: #{mbconv_forward.13} parent=11 // pred_fallthru
        _
      // Predicated region
      $region17: #{mbconv_forward.13} parent=11 // pred_check
        %p143 = pneg %p78
      $region18: #{mbconv_forward.13} parent=11 // pred_check_branch
        %145 = sbr.rel (%p143) target = $region20
      $region19: #{mbconv_forward.13} parent=11 // pred_region
        _
      $region20: #{mbconv_forward.13} parent=11 // pred_fallthru
        _
      // Predicated region
      $region21: #{mbconv_forward.13} parent=11 // pred_check
        %p146 = pneg %p99
      $region22: #{mbconv_forward.13} parent=11 // pred_check_branch
        %148 = sbr.rel (%p146) target = $region24
      $region23: #{mbconv_forward.13} parent=11 // pred_region
        _
      $region24: #{mbconv_forward.13} parent=11 // pred_fallthru
        _
    $region12: #{mbconv_forward.13} parent=5 // pred_fallthru
      _
    %p149 = scmp.lt.s32.totalorder %s10, 2
    // Predicated region
    $region25: #{mbconv_forward.13} parent=5 // pred_check
      %p150 = pneg %p149
    $region26: #{mbconv_forward.13} parent=5 // pred_check_branch
      %152 = sbr.rel (%p150) target = $region28
    $region27: #{mbconv_forward.13} parent=5 // pred_region
      // Predicated region
      $region29: #{mbconv_forward.13} parent=27 // pred_check
        %p153 = pneg %p30
      $region30: #{mbconv_forward.13} parent=27 // pred_check_branch
        %155 = sbr.rel (%p153) target = $region32
      $region31: #{mbconv_forward.13} parent=27 // pred_region
        %p156 = scmp.lt.s32.totalorder %s10, 1
        %s157 = scalar_select %p156, %s10, 1
        %s158 = smul.addr %s157, 32
        %s159 = smul.addr %s158, 8
        %s160 = scalar_lea.vmem %s0, %s159
      $region32: #{mbconv_forward.13} parent=27 // pred_fallthru
        _
    $region28: #{mbconv_forward.13} parent=5 // pred_fallthru
      _
    %p161 = scmp.le.s32.totalorder 1, %s10
    %p162 = scmp.lt.s32.totalorder %s10, 3
    %p163 = pnand %p161, %p162
    %p164 = pneg %p163
    // Predicated region
    $region33: #{mbconv_forward.13} parent=5 // pred_check
      _
    $region34: #{mbconv_forward.13} parent=5 // pred_check_branch
      %166 = sbr.rel (%p163) target = $region36
    $region35: #{mbconv_forward.13} parent=5 // pred_region
      %s167 = ssub.s32 %s10, 1
      %p168 = scmp.lt.s32.totalorder %s15, 1
      %s169 = scalar_select %p168, %s15, 1
      %s170 = smul.addr %s169, 32
      %s171 = smul.addr %s170, 8
      %s172 = scalar_lea.vmem %s0, %s171
      %p173 = pneg %p36
      %p174 = pneg %p33
      %p175 = pneg %p57
      %p176 = pneg %p54
      %p177 = pneg %p78
      %p178 = pneg %p75
      %p179 = pneg %p99
      %p180 = pneg %p96
      %p181 = pneg %p125
      %p182 = pneg %p122
      %p183 = scmp.lt.s32.totalorder %s15, 1
      %s184 = scalar_select %p183, %s15, 1
      %s185 = smul.addr %s184, 32
      %s186 = smul.addr %s185, 8
      %s187 = scalar_lea.vmem %s4, %s186
      %p188 = scmp.lt.s32.totalorder %s15, 1
      %s189 = scalar_select %p188, %s15, 1
      %s190 = smul.addr %s189, 32
      %s191 = smul.addr %s190, 8
      %s192 = scalar_lea.vmem %s0, %s191
      %p193 = scmp.lt.s32.totalorder %s15, 1
      %s194 = scalar_select %p193, %s15, 1
      %s195 = smul.addr %s194, 32
      %s196 = smul.addr %s195, 8
      %s197 = scalar_lea.vmem %s4, %s196
      %v198 = vld [vmem:[%s192] sm:$0xff]
      %v199 = vld [vmem:[%s192 + $0x8] sm:$0xff]
      %v200 = vld [vmem:[%s192 + $0x10] sm:$0xff]
      %v201 = vld [vmem:[%s192 + $0x18] sm:$0xff]
      %v202 = vld [vmem:[%s192 + $0x20] sm:$0xff]
      %v203 = vld [vmem:[%s192 + $0x28] sm:$0xff]
      %v204 = vld [vmem:[%s192 + $0x30] sm:$0xff]
      %v205 = vld [vmem:[%s192 + $0x38] sm:$0xff]
      %v206 = vld [vmem:[%s192 + $0x40] sm:$0xff]
      %v207 = vld [vmem:[%s192 + $0x48] sm:$0xff]
      %v208 = vld [vmem:[%s192 + $0x50] sm:$0xff]
      %v209 = vld [vmem:[%s192 + $0x58] sm:$0xff]
      %v210 = vld [vmem:[%s192 + $0x60] sm:$0xff]
      %v211 = vld [vmem:[%s192 + $0x68] sm:$0xff]
      %v212 = vld [vmem:[%s192 + $0x70] sm:$0xff]
      %v213 = vld [vmem:[%s192 + $0x78] sm:$0xff]
      %v214 = vld [vmem:[%s192 + $0x80] sm:$0xff]
      %v215 = vld [vmem:[%s192 + $0x88] sm:$0xff]
      %v216 = vld [vmem:[%s192 + $0x90] sm:$0xff]
      %v217 = vld [vmem:[%s192 + $0x98] sm:$0xff]
      %v218 = vld [vmem:[%s192 + $0xa0] sm:$0xff]
      %v219 = vld [vmem:[%s192 + $0xa8] sm:$0xff]
      %v220 = vld [vmem:[%s192 + $0xb0] sm:$0xff]
      %v221 = vld [vmem:[%s192 + $0xb8] sm:$0xff]
      %v222 = vld [vmem:[%s192 + $0xc0] sm:$0xff]
      %v223 = vld [vmem:[%s192 + $0xc8] sm:$0xff]
      %v224 = vld [vmem:[%s192 + $0xd0] sm:$0xff]
      %v225 = vld [vmem:[%s192 + $0xd8] sm:$0xff]
      %v226 = vld [vmem:[%s192 + $0xe0] sm:$0xff]
      %v227 = vld [vmem:[%s192 + $0xe8] sm:$0xff]
      %v228 = vld [vmem:[%s192 + $0xf0] sm:$0xff]
      %v229 = vld [vmem:[%s192 + $0xf8] sm:$0xff]
      %v230 = vld [vmem:[%s1] sm:$0x1]
      %v232 = vperm.slane %v230, 0
      %v234 = vmul.f32 %v198, %v232
      %v235 = vmul.f32 %v199, %v232
      %v236 = vmul.f32 %v200, %v232
      %v237 = vmul.f32 %v201, %v232
      %v238 = vmul.f32 %v202, %v232
      %v239 = vmul.f32 %v203, %v232
      %v240 = vmul.f32 %v204, %v232
      %v241 = vmul.f32 %v205, %v232
      %v242 = vmul.f32 %v206, %v232
      %v243 = vmul.f32 %v207, %v232
      %v244 = vmul.f32 %v208, %v232
      %v245 = vmul.f32 %v209, %v232
      %v246 = vmul.f32 %v210, %v232
      %v247 = vmul.f32 %v211, %v232
      %v248 = vmul.f32 %v212, %v232
      %v249 = vmul.f32 %v213, %v232
      %v250 = vmul.f32 %v214, %v232
      %v251 = vmul.f32 %v215, %v232
      %v252 = vmul.f32 %v216, %v232
      %v253 = vmul.f32 %v217, %v232
      %v254 = vmul.f32 %v218, %v232
      %v255 = vmul.f32 %v219, %v232
      %v256 = vmul.f32 %v220, %v232
      %v257 = vmul.f32 %v221, %v232
      %v258 = vmul.f32 %v222, %v232
      %v259 = vmul.f32 %v223, %v232
      %v260 = vmul.f32 %v224, %v232
      %v261 = vmul.f32 %v225, %v232
      %v262 = vmul.f32 %v226, %v232
      %v263 = vmul.f32 %v227, %v232
      %v264 = vmul.f32 %v228, %v232
      %v265 = vmul.f32 %v229, %v232
      %v266 = vld [vmem:[%s2] sm:$0x1]
      %v268 = vperm.slane %v266, 0
      %v270 = vadd.f32 %v234, %v268
      %v271 = vadd.f32 %v235, %v268
      %v272 = vadd.f32 %v236, %v268
      %v273 = vadd.f32 %v237, %v268
      %v274 = vadd.f32 %v238, %v268
      %v275 = vadd.f32 %v239, %v268
      %v276 = vadd.f32 %v240, %v268
      %v277 = vadd.f32 %v241, %v268
      %v278 = vadd.f32 %v242, %v268
      %v279 = vadd.f32 %v243, %v268
      %v280 = vadd.f32 %v244, %v268
      %v281 = vadd.f32 %v245, %v268
      %v282 = vadd.f32 %v246, %v268
      %v283 = vadd.f32 %v247, %v268
      %v284 = vadd.f32 %v248, %v268
      %v285 = vadd.f32 %v249, %v268
      %v286 = vadd.f32 %v250, %v268
      %v287 = vadd.f32 %v251, %v268
      %v288 = vadd.f32 %v252, %v268
      %v289 = vadd.f32 %v253, %v268
      %v290 = vadd.f32 %v254, %v268
      %v291 = vadd.f32 %v255, %v268
      %v292 = vadd.f32 %v256, %v268
      %v293 = vadd.f32 %v257, %v268
      %v294 = vadd.f32 %v258, %v268
      %v295 = vadd.f32 %v259, %v268
      %v296 = vadd.f32 %v260, %v268
      %v297 = vadd.f32 %v261, %v268
      %v298 = vadd.f32 %v262, %v268
      %v299 = vadd.f32 %v263, %v268
      %v300 = vadd.f32 %v264, %v268
      %v301 = vadd.f32 %v265, %v268
      %v302 = vmul.f32 %v270, 0.5
      %v303 = vmul.f32 %v271, 0.5
      %v304 = vmul.f32 %v272, 0.5
      %v305 = vmul.f32 %v273, 0.5
      %v306 = vmul.f32 %v274, 0.5
      %v307 = vmul.f32 %v275, 0.5
      %v308 = vmul.f32 %v276, 0.5
      %v309 = vmul.f32 %v277, 0.5
      %v310 = vmul.f32 %v278, 0.5
      %v311 = vmul.f32 %v279, 0.5
      %v312 = vmul.f32 %v280, 0.5
      %v313 = vmul.f32 %v281, 0.5
      %v314 = vmul.f32 %v282, 0.5
      %v315 = vmul.f32 %v283, 0.5
      %v316 = vmul.f32 %v284, 0.5
      %v317 = vmul.f32 %v285, 0.5
      %v318 = vmul.f32 %v286, 0.5
      %v319 = vmul.f32 %v287, 0.5
      %v320 = vmul.f32 %v288, 0.5
      %v321 = vmul.f32 %v289, 0.5
      %v322 = vmul.f32 %v290, 0.5
      %v323 = vmul.f32 %v291, 0.5
      %v324 = vmul.f32 %v292, 0.5
      %v325 = vmul.f32 %v293, 0.5
      %v326 = vmul.f32 %v294, 0.5
      %v327 = vmul.f32 %v295, 0.5
      %v328 = vmul.f32 %v296, 0.5
      %v329 = vmul.f32 %v297, 0.5
      %v330 = vmul.f32 %v298, 0.5
      %v331 = vmul.f32 %v299, 0.5
      %v332 = vmul.f32 %v300, 0.5
      %v333 = vmul.f32 %v301, 0.5
      %v334 = vrcp.pop 1.4142135
      %v335 = vmul.f32 1.4142135, %v334
      %v336 = vsub.f32 1.0, %v335
      %v337 = vmul.f32 %v334, %v336
      %v338 = vadd.f32 %v334, %v337
      %vm339 = vweird.f32 %v334
      %v340 = vsel %vm339, %v334, %v338
      %v341 = vmul.f32 %v270, %v340
      %v342 = vmul.f32 %v271, %v340
      %v343 = vmul.f32 %v272, %v340
      %v344 = vmul.f32 %v273, %v340
      %v345 = vmul.f32 %v274, %v340
      %v346 = vmul.f32 %v275, %v340
      %v347 = vmul.f32 %v276, %v340
      %v348 = vmul.f32 %v277, %v340
      %v349 = vmul.f32 %v278, %v340
      %v350 = vmul.f32 %v279, %v340
      %v351 = vmul.f32 %v280, %v340
      %v352 = vmul.f32 %v281, %v340
      %v353 = vmul.f32 %v282, %v340
      %v354 = vmul.f32 %v283, %v340
      %v355 = vmul.f32 %v284, %v340
      %v356 = vmul.f32 %v285, %v340
      %v357 = vmul.f32 %v286, %v340
      %v358 = vmul.f32 %v287, %v340
      %v359 = vmul.f32 %v288, %v340
      %v360 = vmul.f32 %v289, %v340
      %v361 = vmul.f32 %v290, %v340
      %v362 = vmul.f32 %v291, %v340
      %v363 = vmul.f32 %v292, %v340
      %v364 = vmul.f32 %v293, %v340
      %v365 = vmul.f32 %v294, %v340
      %v366 = vmul.f32 %v295, %v340
      %v367 = vmul.f32 %v296, %v340
      %v368 = vmul.f32 %v297, %v340
      %v369 = vmul.f32 %v298, %v340
      %v370 = vmul.f32 %v299, %v340
      %v371 = vmul.f32 %v300, %v340
      %v372 = vmul.f32 %v301, %v340
      %v373 = vmul.f32 %v341, %v341
      %v374 = vmin.f32 16.0, %v373
      %v375 = vmul.f32 %v374, 2.1237322e-06
      %v376 = vadd.f32 %v375, 0.00028619796
      %v377 = vmul.f32 %v374, %v376
      %v378 = vadd.f32 %v377, 0.0036580483
      %v379 = vmul.f32 %v374, %v378
      %v380 = vadd.f32 %v379, 0.05243302
      %v381 = vmul.f32 %v374, %v380
      %v382 = vadd.f32 %v381, 0.18741608
      %v383 = vmul.f32 %v374, %v382
      %v384 = vadd.f32 %v383, 1.1283791
      %v385 = vmul.f32 %v341, %v384
      %v386 = vmul.f32 %v374, 3.8918573e-05
      %v387 = vadd.f32 %v386, 0.001143296
      %v388 = vmul.f32 %v374, %v387
      %v389 = vadd.f32 %v388, 0.014752088
      %v390 = vmul.f32 %v374, %v389
      %v391 = vadd.f32 %v390, 0.112945676
      %v392 = vmul.f32 %v374, %v391
      %v393 = vadd.f32 %v392, 0.4994258
      %v394 = vmul.f32 %v374, %v393
      %v395 = vadd.f32 %v394, 1.0
      %v396 = vrcp.pop %v395
      %v397 = vmul.f32 %v395, %v396
      %v398 = vsub.f32 1.0, %v397
      %v399 = vmul.f32 %v396, %v398
      %v400 = vadd.f32 %v396, %v399
      %vm401 = vweird.f32 %v395
      %vm402 = vweird.f32 %v396
      %vm403 = vmor %vm401, %vm402
      %v404 = vsel %vm403, %v396, %v400
      %v405 = vand.u32 2147483647, %v395
      %vm406 = vcmp.eq.f32.partialorder %v405, 8.507059e+37
      %v407 = vand.u32 %v395, 2147483648
      %v408 = vor.u32 1.1754944e-38, %v407
      %v409 = vsel %vm406, %v408, %v404
      %v410 = vmul.f32 %v385, %v409
      %v411 = vmin.f32 %v410, 1.0
      %v412 = vmax.f32 %v411, -1.0
      %v413 = vmul.f32 %v342, %v342
      %v414 = vmin.f32 16.0, %v413
      %v415 = vmul.f32 %v414, 2.1237322e-06
      %v416 = vadd.f32 %v415, 0.00028619796
      %v417 = vmul.f32 %v414, %v416
      %v418 = vadd.f32 %v417, 0.0036580483
      %v419 = vmul.f32 %v414, %v418
      %v420 = vadd.f32 %v419, 0.05243302
      %v421 = vmul.f32 %v414, %v420
      %v422 = vadd.f32 %v421, 0.18741608
      %v423 = vmul.f32 %v414, %v422
      %v424 = vadd.f32 %v423, 1.1283791
      %v425 = vmul.f32 %v342, %v424
      %v426 = vmul.f32 %v414, 3.8918573e-05
      %v427 = vadd.f32 %v426, 0.001143296
      %v428 = vmul.f32 %v414, %v427
      %v429 = vadd.f32 %v428, 0.014752088
      %v430 = vmul.f32 %v414, %v429
      %v431 = vadd.f32 %v430, 0.112945676
      %v432 = vmul.f32 %v414, %v431
      %v433 = vadd.f32 %v432, 0.4994258
      %v434 = vmul.f32 %v414, %v433
      %v435 = vadd.f32 %v434, 1.0
      %v436 = vrcp.pop %v435
      %v437 = vmul.f32 %v435, %v436
      %v438 = vsub.f32 1.0, %v437
      %v439 = vmul.f32 %v436, %v438
      %v440 = vadd.f32 %v436, %v439
      %vm441 = vweird.f32 %v435
      %vm442 = vweird.f32 %v436
      %vm443 = vmor %vm441, %vm442
      %v444 = vsel %vm443, %v436, %v440
      %v445 = vand.u32 2147483647, %v435
      %vm446 = vcmp.eq.f32.partialorder %v445, 8.507059e+37
      %v447 = vand.u32 %v435, 2147483648
      %v448 = vor.u32 1.1754944e-38, %v447
      %v449 = vsel %vm446, %v448, %v444
      %v450 = vmul.f32 %v425, %v449
      %v451 = vmin.f32 %v450, 1.0
      %v452 = vmax.f32 %v451, -1.0
      %v453 = vmul.f32 %v343, %v343
      %v454 = vmin.f32 16.0, %v453
      %v455 = vmul.f32 %v454, 2.1237322e-06
      %v456 = vadd.f32 %v455, 0.00028619796
      %v457 = vmul.f32 %v454, %v456
      %v458 = vadd.f32 %v457, 0.0036580483
      %v459 = vmul.f32 %v454, %v458
      %v460 = vadd.f32 %v459, 0.05243302
      %v461 = vmul.f32 %v454, %v460
      %v462 = vadd.f32 %v461, 0.18741608
      %v463 = vmul.f32 %v454, %v462
      %v464 = vadd.f32 %v463, 1.1283791
      %v465 = vmul.f32 %v343, %v464
      %v466 = vmul.f32 %v454, 3.8918573e-05
      %v467 = vadd.f32 %v466, 0.001143296
      %v468 = vmul.f32 %v454, %v467
      %v469 = vadd.f32 %v468, 0.014752088
      %v470 = vmul.f32 %v454, %v469
      %v471 = vadd.f32 %v470, 0.112945676
      %v472 = vmul.f32 %v454, %v471
      %v473 = vadd.f32 %v472, 0.4994258
      %v474 = vmul.f32 %v454, %v473
      %v475 = vadd.f32 %v474, 1.0
      %v476 = vrcp.pop %v475
      %v477 = vmul.f32 %v475, %v476
      %v478 = vsub.f32 1.0, %v477
      %v479 = vmul.f32 %v476, %v478
      %v480 = vadd.f32 %v476, %v479
      %vm481 = vweird.f32 %v475
      %vm482 = vweird.f32 %v476
      %vm483 = vmor %vm481, %vm482
      %v484 = vsel %vm483, %v476, %v480
      %v485 = vand.u32 2147483647, %v475
      %vm486 = vcmp.eq.f32.partialorder %v485, 8.507059e+37
      %v487 = vand.u32 %v475, 2147483648
      %v488 = vor.u32 1.1754944e-38, %v487
      %v489 = vsel %vm486, %v488, %v484
      %v490 = vmul.f32 %v465, %v489
      %v491 = vmin.f32 %v490, 1.0
      %v492 = vmax.f32 %v491, -1.0
      %v493 = vmul.f32 %v344, %v344
      %v494 = vmin.f32 16.0, %v493
      %v495 = vmul.f32 %v494, 2.1237322e-06
      %v496 = vadd.f32 %v495, 0.00028619796
      %v497 = vmul.f32 %v494, %v496
      %v498 = vadd.f32 %v497, 0.0036580483
      %v499 = vmul.f32 %v494, %v498
      %v500 = vadd.f32 %v499, 0.05243302
      %v501 = vmul.f32 %v494, %v500
      %v502 = vadd.f32 %v501, 0.18741608
      %v503 = vmul.f32 %v494, %v502
      %v504 = vadd.f32 %v503, 1.1283791
      %v505 = vmul.f32 %v344, %v504
      %v506 = vmul.f32 %v494, 3.8918573e-05
      %v507 = vadd.f32 %v506, 0.001143296
      %v508 = vmul.f32 %v494, %v507
      %v509 = vadd.f32 %v508, 0.014752088
      %v510 = vmul.f32 %v494, %v509
      %v511 = vadd.f32 %v510, 0.112945676
      %v512 = vmul.f32 %v494, %v511
      %v513 = vadd.f32 %v512, 0.4994258
      %v514 = vmul.f32 %v494, %v513
      %v515 = vadd.f32 %v514, 1.0
      %v516 = vrcp.pop %v515
      %v517 = vmul.f32 %v515, %v516
      %v518 = vsub.f32 1.0, %v517
      %v519 = vmul.f32 %v516, %v518
      %v520 = vadd.f32 %v516, %v519
      %vm521 = vweird.f32 %v515
      %vm522 = vweird.f32 %v516
      %vm523 = vmor %vm521, %vm522
      %v524 = vsel %vm523, %v516, %v520
      %v525 = vand.u32 2147483647, %v515
      %vm526 = vcmp.eq.f32.partialorder %v525, 8.507059e+37
      %v527 = vand.u32 %v515, 2147483648
      %v528 = vor.u32 1.1754944e-38, %v527
      %v529 = vsel %vm526, %v528, %v524
      %v530 = vmul.f32 %v505, %v529
      %v531 = vmin.f32 %v530, 1.0
      %v532 = vmax.f32 %v531, -1.0
      %v533 = vmul.f32 %v345, %v345
      %v534 = vmin.f32 16.0, %v533
      %v535 = vmul.f32 %v534, 2.1237322e-06
      %v536 = vadd.f32 %v535, 0.00028619796
      %v537 = vmul.f32 %v534, %v536
      %v538 = vadd.f32 %v537, 0.0036580483
      %v539 = vmul.f32 %v534, %v538
      %v540 = vadd.f32 %v539, 0.05243302
      %v541 = vmul.f32 %v534, %v540
      %v542 = vadd.f32 %v541, 0.18741608
      %v543 = vmul.f32 %v534, %v542
      %v544 = vadd.f32 %v543, 1.1283791
      %v545 = vmul.f32 %v345, %v544
      %v546 = vmul.f32 %v534, 3.8918573e-05
      %v547 = vadd.f32 %v546, 0.001143296
      %v548 = vmul.f32 %v534, %v547
      %v549 = vadd.f32 %v548, 0.014752088
      %v550 = vmul.f32 %v534, %v549
      %v551 = vadd.f32 %v550, 0.112945676
      %v552 = vmul.f32 %v534, %v551
      %v553 = vadd.f32 %v552, 0.4994258
      %v554 = vmul.f32 %v534, %v553
      %v555 = vadd.f32 %v554, 1.0
      %v556 = vrcp.pop %v555
      %v557 = vmul.f32 %v555, %v556
      %v558 = vsub.f32 1.0, %v557
      %v559 = vmul.f32 %v556, %v558
      %v560 = vadd.f32 %v556, %v559
      %vm561 = vweird.f32 %v555
      %vm562 = vweird.f32 %v556
      %vm563 = vmor %vm561, %vm562
      %v564 = vsel %vm563, %v556, %v560
      %v565 = vand.u32 2147483647, %v555
      %vm566 = vcmp.eq.f32.partialorder %v565, 8.507059e+37
      %v567 = vand.u32 %v555, 2147483648
      %v568 = vor.u32 1.1754944e-38, %v567
      %v569 = vsel %vm566, %v568, %v564
      %v570 = vmul.f32 %v545, %v569
      %v571 = vmin.f32 %v570, 1.0
      %v572 = vmax.f32 %v571, -1.0
      %v573 = vmul.f32 %v346, %v346
      %v574 = vmin.f32 16.0, %v573
      %v575 = vmul.f32 %v574, 2.1237322e-06
      %v576 = vadd.f32 %v575, 0.00028619796
      %v577 = vmul.f32 %v574, %v576
      %v578 = vadd.f32 %v577, 0.0036580483
      %v579 = vmul.f32 %v574, %v578
      %v580 = vadd.f32 %v579, 0.05243302
      %v581 = vmul.f32 %v574, %v580
      %v582 = vadd.f32 %v581, 0.18741608
      %v583 = vmul.f32 %v574, %v582
      %v584 = vadd.f32 %v583, 1.1283791
      %v585 = vmul.f32 %v346, %v584
      %v586 = vmul.f32 %v574, 3.8918573e-05
      %v587 = vadd.f32 %v586, 0.001143296
      %v588 = vmul.f32 %v574, %v587
      %v589 = vadd.f32 %v588, 0.014752088
      %v590 = vmul.f32 %v574, %v589
      %v591 = vadd.f32 %v590, 0.112945676
      %v592 = vmul.f32 %v574, %v591
      %v593 = vadd.f32 %v592, 0.4994258
      %v594 = vmul.f32 %v574, %v593
      %v595 = vadd.f32 %v594, 1.0
      %v596 = vrcp.pop %v595
      %v597 = vmul.f32 %v595, %v596
      %v598 = vsub.f32 1.0, %v597
      %v599 = vmul.f32 %v596, %v598
      %v600 = vadd.f32 %v596, %v599
      %vm601 = vweird.f32 %v595
      %vm602 = vweird.f32 %v596
      %vm603 = vmor %vm601, %vm602
      %v604 = vsel %vm603, %v596, %v600
      %v605 = vand.u32 2147483647, %v595
      %vm606 = vcmp.eq.f32.partialorder %v605, 8.507059e+37
      %v607 = vand.u32 %v595, 2147483648
      %v608 = vor.u32 1.1754944e-38, %v607
      %v609 = vsel %vm606, %v608, %v604
      %v610 = vmul.f32 %v585, %v609
      %v611 = vmin.f32 %v610, 1.0
      %v612 = vmax.f32 %v611, -1.0
      %v613 = vmul.f32 %v347, %v347
      %v614 = vmin.f32 16.0, %v613
      %v615 = vmul.f32 %v614, 2.1237322e-06
      %v616 = vadd.f32 %v615, 0.00028619796
      %v617 = vmul.f32 %v614, %v616
      %v618 = vadd.f32 %v617, 0.0036580483
      %v619 = vmul.f32 %v614, %v618
      %v620 = vadd.f32 %v619, 0.05243302
      %v621 = vmul.f32 %v614, %v620
      %v622 = vadd.f32 %v621, 0.18741608
      %v623 = vmul.f32 %v614, %v622
      %v624 = vadd.f32 %v623, 1.1283791
      %v625 = vmul.f32 %v347, %v624
      %v626 = vmul.f32 %v614, 3.8918573e-05
      %v627 = vadd.f32 %v626, 0.001143296
      %v628 = vmul.f32 %v614, %v627
      %v629 = vadd.f32 %v628, 0.014752088
      %v630 = vmul.f32 %v614, %v629
      %v631 = vadd.f32 %v630, 0.112945676
      %v632 = vmul.f32 %v614, %v631
      %v633 = vadd.f32 %v632, 0.4994258
      %v634 = vmul.f32 %v614, %v633
      %v635 = vadd.f32 %v634, 1.0
      %v636 = vrcp.pop %v635
      %v637 = vmul.f32 %v635, %v636
      %v638 = vsub.f32 1.0, %v637
      %v639 = vmul.f32 %v636, %v638
      %v640 = vadd.f32 %v636, %v639
      %vm641 = vweird.f32 %v635
      %vm642 = vweird.f32 %v636
      %vm643 = vmor %vm641, %vm642
      %v644 = vsel %vm643, %v636, %v640
      %v645 = vand.u32 2147483647, %v635
      %vm646 = vcmp.eq.f32.partialorder %v645, 8.507059e+37
      %v647 = vand.u32 %v635, 2147483648
      %v648 = vor.u32 1.1754944e-38, %v647
      %v649 = vsel %vm646, %v648, %v644
      %v650 = vmul.f32 %v625, %v649
      %v651 = vmin.f32 %v650, 1.0
      %v652 = vmax.f32 %v651, -1.0
      %v653 = vmul.f32 %v348, %v348
      %v654 = vmin.f32 16.0, %v653
      %v655 = vmul.f32 %v654, 2.1237322e-06
      %v656 = vadd.f32 %v655, 0.00028619796
      %v657 = vmul.f32 %v654, %v656
      %v658 = vadd.f32 %v657, 0.0036580483
      %v659 = vmul.f32 %v654, %v658
      %v660 = vadd.f32 %v659, 0.05243302
      %v661 = vmul.f32 %v654, %v660
      %v662 = vadd.f32 %v661, 0.18741608
      %v663 = vmul.f32 %v654, %v662
      %v664 = vadd.f32 %v663, 1.1283791
      %v665 = vmul.f32 %v348, %v664
      %v666 = vmul.f32 %v654, 3.8918573e-05
      %v667 = vadd.f32 %v666, 0.001143296
      %v668 = vmul.f32 %v654, %v667
      %v669 = vadd.f32 %v668, 0.014752088
      %v670 = vmul.f32 %v654, %v669
      %v671 = vadd.f32 %v670, 0.112945676
      %v672 = vmul.f32 %v654, %v671
      %v673 = vadd.f32 %v672, 0.4994258
      %v674 = vmul.f32 %v654, %v673
      %v675 = vadd.f32 %v674, 1.0
      %v676 = vrcp.pop %v675
      %v677 = vmul.f32 %v675, %v676
      %v678 = vsub.f32 1.0, %v677
      %v679 = vmul.f32 %v676, %v678
      %v680 = vadd.f32 %v676, %v679
      %vm681 = vweird.f32 %v675
      %vm682 = vweird.f32 %v676
      %vm683 = vmor %vm681, %vm682
      %v684 = vsel %vm683, %v676, %v680
      %v685 = vand.u32 2147483647, %v675
      %vm686 = vcmp.eq.f32.partialorder %v685, 8.507059e+37
      %v687 = vand.u32 %v675, 2147483648
      %v688 = vor.u32 1.1754944e-38, %v687
      %v689 = vsel %vm686, %v688, %v684
      %v690 = vmul.f32 %v665, %v689
      %v691 = vmin.f32 %v690, 1.0
      %v692 = vmax.f32 %v691, -1.0
      %v693 = vmul.f32 %v349, %v349
      %v694 = vmin.f32 16.0, %v693
      %v695 = vmul.f32 %v694, 2.1237322e-06
      %v696 = vadd.f32 %v695, 0.00028619796
      %v697 = vmul.f32 %v694, %v696
      %v698 = vadd.f32 %v697, 0.0036580483
      %v699 = vmul.f32 %v694, %v698
      %v700 = vadd.f32 %v699, 0.05243302
      %v701 = vmul.f32 %v694, %v700
      %v702 = vadd.f32 %v701, 0.18741608
      %v703 = vmul.f32 %v694, %v702
      %v704 = vadd.f32 %v703, 1.1283791
      %v705 = vmul.f32 %v349, %v704
      %v706 = vmul.f32 %v694, 3.8918573e-05
      %v707 = vadd.f32 %v706, 0.001143296
      %v708 = vmul.f32 %v694, %v707
      %v709 = vadd.f32 %v708, 0.014752088
      %v710 = vmul.f32 %v694, %v709
      %v711 = vadd.f32 %v710, 0.112945676
      %v712 = vmul.f32 %v694, %v711
      %v713 = vadd.f32 %v712, 0.4994258
      %v714 = vmul.f32 %v694, %v713
      %v715 = vadd.f32 %v714, 1.0
      %v716 = vrcp.pop %v715
      %v717 = vmul.f32 %v715, %v716
      %v718 = vsub.f32 1.0, %v717
      %v719 = vmul.f32 %v716, %v718
      %v720 = vadd.f32 %v716, %v719
      %vm721 = vweird.f32 %v715
      %vm722 = vweird.f32 %v716
      %vm723 = vmor %vm721, %vm722
      %v724 = vsel %vm723, %v716, %v720
      %v725 = vand.u32 2147483647, %v715
      %vm726 = vcmp.eq.f32.partialorder %v725, 8.507059e+37
      %v727 = vand.u32 %v715, 2147483648
      %v728 = vor.u32 1.1754944e-38, %v727
      %v729 = vsel %vm726, %v728, %v724
      %v730 = vmul.f32 %v705, %v729
      %v731 = vmin.f32 %v730, 1.0
      %v732 = vmax.f32 %v731, -1.0
      %v733 = vmul.f32 %v350, %v350
      %v734 = vmin.f32 16.0, %v733
      %v735 = vmul.f32 %v734, 2.1237322e-06
      %v736 = vadd.f32 %v735, 0.00028619796
      %v737 = vmul.f32 %v734, %v736
      %v738 = vadd.f32 %v737, 0.0036580483
      %v739 = vmul.f32 %v734, %v738
      %v740 = vadd.f32 %v739, 0.05243302
      %v741 = vmul.f32 %v734, %v740
      %v742 = vadd.f32 %v741, 0.18741608
      %v743 = vmul.f32 %v734, %v742
      %v744 = vadd.f32 %v743, 1.1283791
      %v745 = vmul.f32 %v350, %v744
      %v746 = vmul.f32 %v734, 3.8918573e-05
      %v747 = vadd.f32 %v746, 0.001143296
      %v748 = vmul.f32 %v734, %v747
      %v749 = vadd.f32 %v748, 0.014752088
      %v750 = vmul.f32 %v734, %v749
      %v751 = vadd.f32 %v750, 0.112945676
      %v752 = vmul.f32 %v734, %v751
      %v753 = vadd.f32 %v752, 0.4994258
      %v754 = vmul.f32 %v734, %v753
      %v755 = vadd.f32 %v754, 1.0
      %v756 = vrcp.pop %v755
      %v757 = vmul.f32 %v755, %v756
      %v758 = vsub.f32 1.0, %v757
      %v759 = vmul.f32 %v756, %v758
      %v760 = vadd.f32 %v756, %v759
      %vm761 = vweird.f32 %v755
      %vm762 = vweird.f32 %v756
      %vm763 = vmor %vm761, %vm762
      %v764 = vsel %vm763, %v756, %v760
      %v765 = vand.u32 2147483647, %v755
      %vm766 = vcmp.eq.f32.partialorder %v765, 8.507059e+37
      %v767 = vand.u32 %v755, 2147483648
      %v768 = vor.u32 1.1754944e-38, %v767
      %v769 = vsel %vm766, %v768, %v764
      %v770 = vmul.f32 %v745, %v769
      %v771 = vmin.f32 %v770, 1.0
      %v772 = vmax.f32 %v771, -1.0
      %v773 = vmul.f32 %v351, %v351
      %v774 = vmin.f32 16.0, %v773
      %v775 = vmul.f32 %v774, 2.1237322e-06
      %v776 = vadd.f32 %v775, 0.00028619796
      %v777 = vmul.f32 %v774, %v776
      %v778 = vadd.f32 %v777, 0.0036580483
      %v779 = vmul.f32 %v774, %v778
      %v780 = vadd.f32 %v779, 0.05243302
      %v781 = vmul.f32 %v774, %v780
      %v782 = vadd.f32 %v781, 0.18741608
      %v783 = vmul.f32 %v774, %v782
      %v784 = vadd.f32 %v783, 1.1283791
      %v785 = vmul.f32 %v351, %v784
      %v786 = vmul.f32 %v774, 3.8918573e-05
      %v787 = vadd.f32 %v786, 0.001143296
      %v788 = vmul.f32 %v774, %v787
      %v789 = vadd.f32 %v788, 0.014752088
      %v790 = vmul.f32 %v774, %v789
      %v791 = vadd.f32 %v790, 0.112945676
      %v792 = vmul.f32 %v774, %v791
      %v793 = vadd.f32 %v792, 0.4994258
      %v794 = vmul.f32 %v774, %v793
      %v795 = vadd.f32 %v794, 1.0
      %v796 = vrcp.pop %v795
      %v797 = vmul.f32 %v795, %v796
      %v798 = vsub.f32 1.0, %v797
      %v799 = vmul.f32 %v796, %v798
      %v800 = vadd.f32 %v796, %v799
      %vm801 = vweird.f32 %v795
      %vm802 = vweird.f32 %v796
      %vm803 = vmor %vm801, %vm802
      %v804 = vsel %vm803, %v796, %v800
      %v805 = vand.u32 2147483647, %v795
      %vm806 = vcmp.eq.f32.partialorder %v805, 8.507059e+37
      %v807 = vand.u32 %v795, 2147483648
      %v808 = vor.u32 1.1754944e-38, %v807
      %v809 = vsel %vm806, %v808, %v804
      %v810 = vmul.f32 %v785, %v809
      %v811 = vmin.f32 %v810, 1.0
      %v812 = vmax.f32 %v811, -1.0
      %v813 = vmul.f32 %v352, %v352
      %v814 = vmin.f32 16.0, %v813
      %v815 = vmul.f32 %v814, 2.1237322e-06
      %v816 = vadd.f32 %v815, 0.00028619796
      %v817 = vmul.f32 %v814, %v816
      %v818 = vadd.f32 %v817, 0.0036580483
      %v819 = vmul.f32 %v814, %v818
      %v820 = vadd.f32 %v819, 0.05243302
      %v821 = vmul.f32 %v814, %v820
      %v822 = vadd.f32 %v821, 0.18741608
      %v823 = vmul.f32 %v814, %v822
      %v824 = vadd.f32 %v823, 1.1283791
      %v825 = vmul.f32 %v352, %v824
      %v826 = vmul.f32 %v814, 3.8918573e-05
      %v827 = vadd.f32 %v826, 0.001143296
      %v828 = vmul.f32 %v814, %v827
      %v829 = vadd.f32 %v828, 0.014752088
      %v830 = vmul.f32 %v814, %v829
      %v831 = vadd.f32 %v830, 0.112945676
      %v832 = vmul.f32 %v814, %v831
      %v833 = vadd.f32 %v832, 0.4994258
      %v834 = vmul.f32 %v814, %v833
      %v835 = vadd.f32 %v834, 1.0
      %v836 = vrcp.pop %v835
      %v837 = vmul.f32 %v835, %v836
      %v838 = vsub.f32 1.0, %v837
      %v839 = vmul.f32 %v836, %v838
      %v840 = vadd.f32 %v836, %v839
      %vm841 = vweird.f32 %v835
      %vm842 = vweird.f32 %v836
      %vm843 = vmor %vm841, %vm842
      %v844 = vsel %vm843, %v836, %v840
      %v845 = vand.u32 2147483647, %v835
      %vm846 = vcmp.eq.f32.partialorder %v845, 8.507059e+37
      %v847 = vand.u32 %v835, 2147483648
      %v848 = vor.u32 1.1754944e-38, %v847
      %v849 = vsel %vm846, %v848, %v844
      %v850 = vmul.f32 %v825, %v849
      %v851 = vmin.f32 %v850, 1.0
      %v852 = vmax.f32 %v851, -1.0
      %v853 = vmul.f32 %v353, %v353
      %v854 = vmin.f32 16.0, %v853
      %v855 = vmul.f32 %v854, 2.1237322e-06
      %v856 = vadd.f32 %v855, 0.00028619796
      %v857 = vmul.f32 %v854, %v856
      %v858 = vadd.f32 %v857, 0.0036580483
      %v859 = vmul.f32 %v854, %v858
      %v860 = vadd.f32 %v859, 0.05243302
      %v861 = vmul.f32 %v854, %v860
      %v862 = vadd.f32 %v861, 0.18741608
      %v863 = vmul.f32 %v854, %v862
      %v864 = vadd.f32 %v863, 1.1283791
      %v865 = vmul.f32 %v353, %v864
      %v866 = vmul.f32 %v854, 3.8918573e-05
      %v867 = vadd.f32 %v866, 0.001143296
      %v868 = vmul.f32 %v854, %v867
      %v869 = vadd.f32 %v868, 0.014752088
      %v870 = vmul.f32 %v854, %v869
      %v871 = vadd.f32 %v870, 0.112945676
      %v872 = vmul.f32 %v854, %v871
      %v873 = vadd.f32 %v872, 0.4994258
      %v874 = vmul.f32 %v854, %v873
      %v875 = vadd.f32 %v874, 1.0
      %v876 = vrcp.pop %v875
      %v877 = vmul.f32 %v875, %v876
      %v878 = vsub.f32 1.0, %v877
      %v879 = vmul.f32 %v876, %v878
      %v880 = vadd.f32 %v876, %v879
      %vm881 = vweird.f32 %v875
      %vm882 = vweird.f32 %v876
      %vm883 = vmor %vm881, %vm882
      %v884 = vsel %vm883, %v876, %v880
      %v885 = vand.u32 2147483647, %v875
      %vm886 = vcmp.eq.f32.partialorder %v885, 8.507059e+37
      %v887 = vand.u32 %v875, 2147483648
      %v888 = vor.u32 1.1754944e-38, %v887
      %v889 = vsel %vm886, %v888, %v884
      %v890 = vmul.f32 %v865, %v889
      %v891 = vmin.f32 %v890, 1.0
      %v892 = vmax.f32 %v891, -1.0
      %v893 = vmul.f32 %v354, %v354
      %v894 = vmin.f32 16.0, %v893
      %v895 = vmul.f32 %v894, 2.1237322e-06
      %v896 = vadd.f32 %v895, 0.00028619796
      %v897 = vmul.f32 %v894, %v896
      %v898 = vadd.f32 %v897, 0.0036580483
      %v899 = vmul.f32 %v894, %v898
      %v900 = vadd.f32 %v899, 0.05243302
      %v901 = vmul.f32 %v894, %v900
      %v902 = vadd.f32 %v901, 0.18741608
      %v903 = vmul.f32 %v894, %v902
      %v904 = vadd.f32 %v903, 1.1283791
      %v905 = vmul.f32 %v354, %v904
      %v906 = vmul.f32 %v894, 3.8918573e-05
      %v907 = vadd.f32 %v906, 0.001143296
      %v908 = vmul.f32 %v894, %v907
      %v909 = vadd.f32 %v908, 0.014752088
      %v910 = vmul.f32 %v894, %v909
      %v911 = vadd.f32 %v910, 0.112945676
      %v912 = vmul.f32 %v894, %v911
      %v913 = vadd.f32 %v912, 0.4994258
      %v914 = vmul.f32 %v894, %v913
      %v915 = vadd.f32 %v914, 1.0
      %v916 = vrcp.pop %v915
      %v917 = vmul.f32 %v915, %v916
      %v918 = vsub.f32 1.0, %v917
      %v919 = vmul.f32 %v916, %v918
      %v920 = vadd.f32 %v916, %v919
      %vm921 = vweird.f32 %v915
      %vm922 = vweird.f32 %v916
      %vm923 = vmor %vm921, %vm922
      %v924 = vsel %vm923, %v916, %v920
      %v925 = vand.u32 2147483647, %v915
      %vm926 = vcmp.eq.f32.partialorder %v925, 8.507059e+37
      %v927 = vand.u32 %v915, 2147483648
      %v928 = vor.u32 1.1754944e-38, %v927
      %v929 = vsel %vm926, %v928, %v924
      %v930 = vmul.f32 %v905, %v929
      %v931 = vmin.f32 %v930, 1.0
      %v932 = vmax.f32 %v931, -1.0
      %v933 = vmul.f32 %v355, %v355
      %v934 = vmin.f32 16.0, %v933
      %v935 = vmul.f32 %v934, 2.1237322e-06
      %v936 = vadd.f32 %v935, 0.00028619796
      %v937 = vmul.f32 %v934, %v936
      %v938 = vadd.f32 %v937, 0.0036580483
      %v939 = vmul.f32 %v934, %v938
      %v940 = vadd.f32 %v939, 0.05243302
      %v941 = vmul.f32 %v934, %v940
      %v942 = vadd.f32 %v941, 0.18741608
      %v943 = vmul.f32 %v934, %v942
      %v944 = vadd.f32 %v943, 1.1283791
      %v945 = vmul.f32 %v355, %v944
      %v946 = vmul.f32 %v934, 3.8918573e-05
      %v947 = vadd.f32 %v946, 0.001143296
      %v948 = vmul.f32 %v934, %v947
      %v949 = vadd.f32 %v948, 0.014752088
      %v950 = vmul.f32 %v934, %v949
      %v951 = vadd.f32 %v950, 0.112945676
      %v952 = vmul.f32 %v934, %v951
      %v953 = vadd.f32 %v952, 0.4994258
      %v954 = vmul.f32 %v934, %v953
      %v955 = vadd.f32 %v954, 1.0
      %v956 = vrcp.pop %v955
      %v957 = vmul.f32 %v955, %v956
      %v958 = vsub.f32 1.0, %v957
      %v959 = vmul.f32 %v956, %v958
      %v960 = vadd.f32 %v956, %v959
      %vm961 = vweird.f32 %v955
      %vm962 = vweird.f32 %v956
      %vm963 = vmor %vm961, %vm962
      %v964 = vsel %vm963, %v956, %v960
      %v965 = vand.u32 2147483647, %v955
      %vm966 = vcmp.eq.f32.partialorder %v965, 8.507059e+37
      %v967 = vand.u32 %v955, 2147483648
      %v968 = vor.u32 1.1754944e-38, %v967
      %v969 = vsel %vm966, %v968, %v964
      %v970 = vmul.f32 %v945, %v969
      %v971 = vmin.f32 %v970, 1.0
      %v972 = vmax.f32 %v971, -1.0
      %v973 = vmul.f32 %v356, %v356
      %v974 = vmin.f32 16.0, %v973
      %v975 = vmul.f32 %v974, 2.1237322e-06
      %v976 = vadd.f32 %v975, 0.00028619796
      %v977 = vmul.f32 %v974, %v976
      %v978 = vadd.f32 %v977, 0.0036580483
      %v979 = vmul.f32 %v974, %v978
      %v980 = vadd.f32 %v979, 0.05243302
      %v981 = vmul.f32 %v974, %v980
      %v982 = vadd.f32 %v981, 0.18741608
      %v983 = vmul.f32 %v974, %v982
      %v984 = vadd.f32 %v983, 1.1283791
      %v985 = vmul.f32 %v356, %v984
      %v986 = vmul.f32 %v974, 3.8918573e-05
      %v987 = vadd.f32 %v986, 0.001143296
      %v988 = vmul.f32 %v974, %v987
      %v989 = vadd.f32 %v988, 0.014752088
      %v990 = vmul.f32 %v974, %v989
      %v991 = vadd.f32 %v990, 0.112945676
      %v992 = vmul.f32 %v974, %v991
      %v993 = vadd.f32 %v992, 0.4994258
      %v994 = vmul.f32 %v974, %v993
      %v995 = vadd.f32 %v994, 1.0
      %v996 = vrcp.pop %v995
      %v997 = vmul.f32 %v995, %v996
      %v998 = vsub.f32 1.0, %v997
      %v999 = vmul.f32 %v996, %v998
      %v1000 = vadd.f32 %v996, %v999
      %vm1001 = vweird.f32 %v995
      %vm1002 = vweird.f32 %v996
      %vm1003 = vmor %vm1001, %vm1002
      %v1004 = vsel %vm1003, %v996, %v1000
      %v1005 = vand.u32 2147483647, %v995
      %vm1006 = vcmp.eq.f32.partialorder %v1005, 8.507059e+37
      %v1007 = vand.u32 %v995, 2147483648
      %v1008 = vor.u32 1.1754944e-38, %v1007
      %v1009 = vsel %vm1006, %v1008, %v1004
      %v1010 = vmul.f32 %v985, %v1009
      %v1011 = vmin.f32 %v1010, 1.0
      %v1012 = vmax.f32 %v1011, -1.0
      %v1013 = vmul.f32 %v357, %v357
      %v1014 = vmin.f32 16.0, %v1013
      %v1015 = vmul.f32 %v1014, 2.1237322e-06
      %v1016 = vadd.f32 %v1015, 0.00028619796
      %v1017 = vmul.f32 %v1014, %v1016
      %v1018 = vadd.f32 %v1017, 0.0036580483
      %v1019 = vmul.f32 %v1014, %v1018
      %v1020 = vadd.f32 %v1019, 0.05243302
      %v1021 = vmul.f32 %v1014, %v1020
      %v1022 = vadd.f32 %v1021, 0.18741608
      %v1023 = vmul.f32 %v1014, %v1022
      %v1024 = vadd.f32 %v1023, 1.1283791
      %v1025 = vmul.f32 %v357, %v1024
      %v1026 = vmul.f32 %v1014, 3.8918573e-05
      %v1027 = vadd.f32 %v1026, 0.001143296
      %v1028 = vmul.f32 %v1014, %v1027
      %v1029 = vadd.f32 %v1028, 0.014752088
      %v1030 = vmul.f32 %v1014, %v1029
      %v1031 = vadd.f32 %v1030, 0.112945676
      %v1032 = vmul.f32 %v1014, %v1031
      %v1033 = vadd.f32 %v1032, 0.4994258
      %v1034 = vmul.f32 %v1014, %v1033
      %v1035 = vadd.f32 %v1034, 1.0
      %v1036 = vrcp.pop %v1035
      %v1037 = vmul.f32 %v1035, %v1036
      %v1038 = vsub.f32 1.0, %v1037
      %v1039 = vmul.f32 %v1036, %v1038
      %v1040 = vadd.f32 %v1036, %v1039
      %vm1041 = vweird.f32 %v1035
      %vm1042 = vweird.f32 %v1036
      %vm1043 = vmor %vm1041, %vm1042
      %v1044 = vsel %vm1043, %v1036, %v1040
      %v1045 = vand.u32 2147483647, %v1035
      %vm1046 = vcmp.eq.f32.partialorder %v1045, 8.507059e+37
      %v1047 = vand.u32 %v1035, 2147483648
      %v1048 = vor.u32 1.1754944e-38, %v1047
      %v1049 = vsel %vm1046, %v1048, %v1044
      %v1050 = vmul.f32 %v1025, %v1049
      %v1051 = vmin.f32 %v1050, 1.0
      %v1052 = vmax.f32 %v1051, -1.0
      %v1053 = vmul.f32 %v358, %v358
      %v1054 = vmin.f32 16.0, %v1053
      %v1055 = vmul.f32 %v1054, 2.1237322e-06
      %v1056 = vadd.f32 %v1055, 0.00028619796
      %v1057 = vmul.f32 %v1054, %v1056
      %v1058 = vadd.f32 %v1057, 0.0036580483
      %v1059 = vmul.f32 %v1054, %v1058
      %v1060 = vadd.f32 %v1059, 0.05243302
      %v1061 = vmul.f32 %v1054, %v1060
      %v1062 = vadd.f32 %v1061, 0.18741608
      %v1063 = vmul.f32 %v1054, %v1062
      %v1064 = vadd.f32 %v1063, 1.1283791
      %v1065 = vmul.f32 %v358, %v1064
      %v1066 = vmul.f32 %v1054, 3.8918573e-05
      %v1067 = vadd.f32 %v1066, 0.001143296
      %v1068 = vmul.f32 %v1054, %v1067
      %v1069 = vadd.f32 %v1068, 0.014752088
      %v1070 = vmul.f32 %v1054, %v1069
      %v1071 = vadd.f32 %v1070, 0.112945676
      %v1072 = vmul.f32 %v1054, %v1071
      %v1073 = vadd.f32 %v1072, 0.4994258
      %v1074 = vmul.f32 %v1054, %v1073
      %v1075 = vadd.f32 %v1074, 1.0
      %v1076 = vrcp.pop %v1075
      %v1077 = vmul.f32 %v1075, %v1076
      %v1078 = vsub.f32 1.0, %v1077
      %v1079 = vmul.f32 %v1076, %v1078
      %v1080 = vadd.f32 %v1076, %v1079
      %vm1081 = vweird.f32 %v1075
      %vm1082 = vweird.f32 %v1076
      %vm1083 = vmor %vm1081, %vm1082
      %v1084 = vsel %vm1083, %v1076, %v1080
      %v1085 = vand.u32 2147483647, %v1075
      %vm1086 = vcmp.eq.f32.partialorder %v1085, 8.507059e+37
      %v1087 = vand.u32 %v1075, 2147483648
      %v1088 = vor.u32 1.1754944e-38, %v1087
      %v1089 = vsel %vm1086, %v1088, %v1084
      %v1090 = vmul.f32 %v1065, %v1089
      %v1091 = vmin.f32 %v1090, 1.0
      %v1092 = vmax.f32 %v1091, -1.0
      %v1093 = vmul.f32 %v359, %v359
      %v1094 = vmin.f32 16.0, %v1093
      %v1095 = vmul.f32 %v1094, 2.1237322e-06
      %v1096 = vadd.f32 %v1095, 0.00028619796
      %v1097 = vmul.f32 %v1094, %v1096
      %v1098 = vadd.f32 %v1097, 0.0036580483
      %v1099 = vmul.f32 %v1094, %v1098
      %v1100 = vadd.f32 %v1099, 0.05243302
      %v1101 = vmul.f32 %v1094, %v1100
      %v1102 = vadd.f32 %v1101, 0.18741608
      %v1103 = vmul.f32 %v1094, %v1102
      %v1104 = vadd.f32 %v1103, 1.1283791
      %v1105 = vmul.f32 %v359, %v1104
      %v1106 = vmul.f32 %v1094, 3.8918573e-05
      %v1107 = vadd.f32 %v1106, 0.001143296
      %v1108 = vmul.f32 %v1094, %v1107
      %v1109 = vadd.f32 %v1108, 0.014752088
      %v1110 = vmul.f32 %v1094, %v1109
      %v1111 = vadd.f32 %v1110, 0.112945676
      %v1112 = vmul.f32 %v1094, %v1111
      %v1113 = vadd.f32 %v1112, 0.4994258
      %v1114 = vmul.f32 %v1094, %v1113
      %v1115 = vadd.f32 %v1114, 1.0
      %v1116 = vrcp.pop %v1115
      %v1117 = vmul.f32 %v1115, %v1116
      %v1118 = vsub.f32 1.0, %v1117
      %v1119 = vmul.f32 %v1116, %v1118
      %v1120 = vadd.f32 %v1116, %v1119
      %vm1121 = vweird.f32 %v1115
      %vm1122 = vweird.f32 %v1116
      %vm1123 = vmor %vm1121, %vm1122
      %v1124 = vsel %vm1123, %v1116, %v1120
      %v1125 = vand.u32 2147483647, %v1115
      %vm1126 = vcmp.eq.f32.partialorder %v1125, 8.507059e+37
      %v1127 = vand.u32 %v1115, 2147483648
      %v1128 = vor.u32 1.1754944e-38, %v1127
      %v1129 = vsel %vm1126, %v1128, %v1124
      %v1130 = vmul.f32 %v1105, %v1129
      %v1131 = vmin.f32 %v1130, 1.0
      %v1132 = vmax.f32 %v1131, -1.0
      %v1133 = vmul.f32 %v360, %v360
      %v1134 = vmin.f32 16.0, %v1133
      %v1135 = vmul.f32 %v1134, 2.1237322e-06
      %v1136 = vadd.f32 %v1135, 0.00028619796
      %v1137 = vmul.f32 %v1134, %v1136
      %v1138 = vadd.f32 %v1137, 0.0036580483
      %v1139 = vmul.f32 %v1134, %v1138
      %v1140 = vadd.f32 %v1139, 0.05243302
      %v1141 = vmul.f32 %v1134, %v1140
      %v1142 = vadd.f32 %v1141, 0.18741608
      %v1143 = vmul.f32 %v1134, %v1142
      %v1144 = vadd.f32 %v1143, 1.1283791
      %v1145 = vmul.f32 %v360, %v1144
      %v1146 = vmul.f32 %v1134, 3.8918573e-05
      %v1147 = vadd.f32 %v1146, 0.001143296
      %v1148 = vmul.f32 %v1134, %v1147
      %v1149 = vadd.f32 %v1148, 0.014752088
      %v1150 = vmul.f32 %v1134, %v1149
      %v1151 = vadd.f32 %v1150, 0.112945676
      %v1152 = vmul.f32 %v1134, %v1151
      %v1153 = vadd.f32 %v1152, 0.4994258
      %v1154 = vmul.f32 %v1134, %v1153
      %v1155 = vadd.f32 %v1154, 1.0
      %v1156 = vrcp.pop %v1155
      %v1157 = vmul.f32 %v1155, %v1156
      %v1158 = vsub.f32 1.0, %v1157
      %v1159 = vmul.f32 %v1156, %v1158
      %v1160 = vadd.f32 %v1156, %v1159
      %vm1161 = vweird.f32 %v1155
      %vm1162 = vweird.f32 %v1156
      %vm1163 = vmor %vm1161, %vm1162
      %v1164 = vsel %vm1163, %v1156, %v1160
      %v1165 = vand.u32 2147483647, %v1155
      %vm1166 = vcmp.eq.f32.partialorder %v1165, 8.507059e+37
      %v1167 = vand.u32 %v1155, 2147483648
      %v1168 = vor.u32 1.1754944e-38, %v1167
      %v1169 = vsel %vm1166, %v1168, %v1164
      %v1170 = vmul.f32 %v1145, %v1169
      %v1171 = vmin.f32 %v1170, 1.0
      %v1172 = vmax.f32 %v1171, -1.0
      %v1173 = vmul.f32 %v361, %v361
      %v1174 = vmin.f32 16.0, %v1173
      %v1175 = vmul.f32 %v1174, 2.1237322e-06
      %v1176 = vadd.f32 %v1175, 0.00028619796
      %v1177 = vmul.f32 %v1174, %v1176
      %v1178 = vadd.f32 %v1177, 0.0036580483
      %v1179 = vmul.f32 %v1174, %v1178
      %v1180 = vadd.f32 %v1179, 0.05243302
      %v1181 = vmul.f32 %v1174, %v1180
      %v1182 = vadd.f32 %v1181, 0.18741608
      %v1183 = vmul.f32 %v1174, %v1182
      %v1184 = vadd.f32 %v1183, 1.1283791
      %v1185 = vmul.f32 %v361, %v1184
      %v1186 = vmul.f32 %v1174, 3.8918573e-05
      %v1187 = vadd.f32 %v1186, 0.001143296
      %v1188 = vmul.f32 %v1174, %v1187
      %v1189 = vadd.f32 %v1188, 0.014752088
      %v1190 = vmul.f32 %v1174, %v1189
      %v1191 = vadd.f32 %v1190, 0.112945676
      %v1192 = vmul.f32 %v1174, %v1191
      %v1193 = vadd.f32 %v1192, 0.4994258
      %v1194 = vmul.f32 %v1174, %v1193
      %v1195 = vadd.f32 %v1194, 1.0
      %v1196 = vrcp.pop %v1195
      %v1197 = vmul.f32 %v1195, %v1196
      %v1198 = vsub.f32 1.0, %v1197
      %v1199 = vmul.f32 %v1196, %v1198
      %v1200 = vadd.f32 %v1196, %v1199
      %vm1201 = vweird.f32 %v1195
      %vm1202 = vweird.f32 %v1196
      %vm1203 = vmor %vm1201, %vm1202
      %v1204 = vsel %vm1203, %v1196, %v1200
      %v1205 = vand.u32 2147483647, %v1195
      %vm1206 = vcmp.eq.f32.partialorder %v1205, 8.507059e+37
      %v1207 = vand.u32 %v1195, 2147483648
      %v1208 = vor.u32 1.1754944e-38, %v1207
      %v1209 = vsel %vm1206, %v1208, %v1204
      %v1210 = vmul.f32 %v1185, %v1209
      %v1211 = vmin.f32 %v1210, 1.0
      %v1212 = vmax.f32 %v1211, -1.0
      %v1213 = vmul.f32 %v362, %v362
      %v1214 = vmin.f32 16.0, %v1213
      %v1215 = vmul.f32 %v1214, 2.1237322e-06
      %v1216 = vadd.f32 %v1215, 0.00028619796
      %v1217 = vmul.f32 %v1214, %v1216
      %v1218 = vadd.f32 %v1217, 0.0036580483
      %v1219 = vmul.f32 %v1214, %v1218
      %v1220 = vadd.f32 %v1219, 0.05243302
      %v1221 = vmul.f32 %v1214, %v1220
      %v1222 = vadd.f32 %v1221, 0.18741608
      %v1223 = vmul.f32 %v1214, %v1222
      %v1224 = vadd.f32 %v1223, 1.1283791
      %v1225 = vmul.f32 %v362, %v1224
      %v1226 = vmul.f32 %v1214, 3.8918573e-05
      %v1227 = vadd.f32 %v1226, 0.001143296
      %v1228 = vmul.f32 %v1214, %v1227
      %v1229 = vadd.f32 %v1228, 0.014752088
      %v1230 = vmul.f32 %v1214, %v1229
      %v1231 = vadd.f32 %v1230, 0.112945676
      %v1232 = vmul.f32 %v1214, %v1231
      %v1233 = vadd.f32 %v1232, 0.4994258
      %v1234 = vmul.f32 %v1214, %v1233
      %v1235 = vadd.f32 %v1234, 1.0
      %v1236 = vrcp.pop %v1235
      %v1237 = vmul.f32 %v1235, %v1236
      %v1238 = vsub.f32 1.0, %v1237
      %v1239 = vmul.f32 %v1236, %v1238
      %v1240 = vadd.f32 %v1236, %v1239
      %vm1241 = vweird.f32 %v1235
      %vm1242 = vweird.f32 %v1236
      %vm1243 = vmor %vm1241, %vm1242
      %v1244 = vsel %vm1243, %v1236, %v1240
      %v1245 = vand.u32 2147483647, %v1235
      %vm1246 = vcmp.eq.f32.partialorder %v1245, 8.507059e+37
      %v1247 = vand.u32 %v1235, 2147483648
      %v1248 = vor.u32 1.1754944e-38, %v1247
      %v1249 = vsel %vm1246, %v1248, %v1244
      %v1250 = vmul.f32 %v1225, %v1249
      %v1251 = vmin.f32 %v1250, 1.0
      %v1252 = vmax.f32 %v1251, -1.0
      %v1253 = vmul.f32 %v363, %v363
      %v1254 = vmin.f32 16.0, %v1253
      %v1255 = vmul.f32 %v1254, 2.1237322e-06
      %v1256 = vadd.f32 %v1255, 0.00028619796
      %v1257 = vmul.f32 %v1254, %v1256
      %v1258 = vadd.f32 %v1257, 0.0036580483
      %v1259 = vmul.f32 %v1254, %v1258
      %v1260 = vadd.f32 %v1259, 0.05243302
      %v1261 = vmul.f32 %v1254, %v1260
      %v1262 = vadd.f32 %v1261, 0.18741608
      %v1263 = vmul.f32 %v1254, %v1262
      %v1264 = vadd.f32 %v1263, 1.1283791
      %v1265 = vmul.f32 %v363, %v1264
      %v1266 = vmul.f32 %v1254, 3.8918573e-05
      %v1267 = vadd.f32 %v1266, 0.001143296
      %v1268 = vmul.f32 %v1254, %v1267
      %v1269 = vadd.f32 %v1268, 0.014752088
      %v1270 = vmul.f32 %v1254, %v1269
      %v1271 = vadd.f32 %v1270, 0.112945676
      %v1272 = vmul.f32 %v1254, %v1271
      %v1273 = vadd.f32 %v1272, 0.4994258
      %v1274 = vmul.f32 %v1254, %v1273
      %v1275 = vadd.f32 %v1274, 1.0
      %v1276 = vrcp.pop %v1275
      %v1277 = vmul.f32 %v1275, %v1276
      %v1278 = vsub.f32 1.0, %v1277
      %v1279 = vmul.f32 %v1276, %v1278
      %v1280 = vadd.f32 %v1276, %v1279
      %vm1281 = vweird.f32 %v1275
      %vm1282 = vweird.f32 %v1276
      %vm1283 = vmor %vm1281, %vm1282
      %v1284 = vsel %vm1283, %v1276, %v1280
      %v1285 = vand.u32 2147483647, %v1275
      %vm1286 = vcmp.eq.f32.partialorder %v1285, 8.507059e+37
      %v1287 = vand.u32 %v1275, 2147483648
      %v1288 = vor.u32 1.1754944e-38, %v1287
      %v1289 = vsel %vm1286, %v1288, %v1284
      %v1290 = vmul.f32 %v1265, %v1289
      %v1291 = vmin.f32 %v1290, 1.0
      %v1292 = vmax.f32 %v1291, -1.0
      %v1293 = vmul.f32 %v364, %v364
      %v1294 = vmin.f32 16.0, %v1293
      %v1295 = vmul.f32 %v1294, 2.1237322e-06
      %v1296 = vadd.f32 %v1295, 0.00028619796
      %v1297 = vmul.f32 %v1294, %v1296
      %v1298 = vadd.f32 %v1297, 0.0036580483
      %v1299 = vmul.f32 %v1294, %v1298
      %v1300 = vadd.f32 %v1299, 0.05243302
      %v1301 = vmul.f32 %v1294, %v1300
      %v1302 = vadd.f32 %v1301, 0.18741608
      %v1303 = vmul.f32 %v1294, %v1302
      %v1304 = vadd.f32 %v1303, 1.1283791
      %v1305 = vmul.f32 %v364, %v1304
      %v1306 = vmul.f32 %v1294, 3.8918573e-05
      %v1307 = vadd.f32 %v1306, 0.001143296
      %v1308 = vmul.f32 %v1294, %v1307
      %v1309 = vadd.f32 %v1308, 0.014752088
      %v1310 = vmul.f32 %v1294, %v1309
      %v1311 = vadd.f32 %v1310, 0.112945676
      %v1312 = vmul.f32 %v1294, %v1311
      %v1313 = vadd.f32 %v1312, 0.4994258
      %v1314 = vmul.f32 %v1294, %v1313
      %v1315 = vadd.f32 %v1314, 1.0
      %v1316 = vrcp.pop %v1315
      %v1317 = vmul.f32 %v1315, %v1316
      %v1318 = vsub.f32 1.0, %v1317
      %v1319 = vmul.f32 %v1316, %v1318
      %v1320 = vadd.f32 %v1316, %v1319
      %vm1321 = vweird.f32 %v1315
      %vm1322 = vweird.f32 %v1316
      %vm1323 = vmor %vm1321, %vm1322
      %v1324 = vsel %vm1323, %v1316, %v1320
      %v1325 = vand.u32 2147483647, %v1315
      %vm1326 = vcmp.eq.f32.partialorder %v1325, 8.507059e+37
      %v1327 = vand.u32 %v1315, 2147483648
      %v1328 = vor.u32 1.1754944e-38, %v1327
      %v1329 = vsel %vm1326, %v1328, %v1324
      %v1330 = vmul.f32 %v1305, %v1329
      %v1331 = vmin.f32 %v1330, 1.0
      %v1332 = vmax.f32 %v1331, -1.0
      %v1333 = vmul.f32 %v365, %v365
      %v1334 = vmin.f32 16.0, %v1333
      %v1335 = vmul.f32 %v1334, 2.1237322e-06
      %v1336 = vadd.f32 %v1335, 0.00028619796
      %v1337 = vmul.f32 %v1334, %v1336
      %v1338 = vadd.f32 %v1337, 0.0036580483
      %v1339 = vmul.f32 %v1334, %v1338
      %v1340 = vadd.f32 %v1339, 0.05243302
      %v1341 = vmul.f32 %v1334, %v1340
      %v1342 = vadd.f32 %v1341, 0.18741608
      %v1343 = vmul.f32 %v1334, %v1342
      %v1344 = vadd.f32 %v1343, 1.1283791
      %v1345 = vmul.f32 %v365, %v1344
      %v1346 = vmul.f32 %v1334, 3.8918573e-05
      %v1347 = vadd.f32 %v1346, 0.001143296
      %v1348 = vmul.f32 %v1334, %v1347
      %v1349 = vadd.f32 %v1348, 0.014752088
      %v1350 = vmul.f32 %v1334, %v1349
      %v1351 = vadd.f32 %v1350, 0.112945676
      %v1352 = vmul.f32 %v1334, %v1351
      %v1353 = vadd.f32 %v1352, 0.4994258
      %v1354 = vmul.f32 %v1334, %v1353
      %v1355 = vadd.f32 %v1354, 1.0
      %v1356 = vrcp.pop %v1355
      %v1357 = vmul.f32 %v1355, %v1356
      %v1358 = vsub.f32 1.0, %v1357
      %v1359 = vmul.f32 %v1356, %v1358
      %v1360 = vadd.f32 %v1356, %v1359
      %vm1361 = vweird.f32 %v1355
      %vm1362 = vweird.f32 %v1356
      %vm1363 = vmor %vm1361, %vm1362
      %v1364 = vsel %vm1363, %v1356, %v1360
      %v1365 = vand.u32 2147483647, %v1355
      %vm1366 = vcmp.eq.f32.partialorder %v1365, 8.507059e+37
      %v1367 = vand.u32 %v1355, 2147483648
      %v1368 = vor.u32 1.1754944e-38, %v1367
      %v1369 = vsel %vm1366, %v1368, %v1364
      %v1370 = vmul.f32 %v1345, %v1369
      %v1371 = vmin.f32 %v1370, 1.0
      %v1372 = vmax.f32 %v1371, -1.0
      %v1373 = vmul.f32 %v366, %v366
      %v1374 = vmin.f32 16.0, %v1373
      %v1375 = vmul.f32 %v1374, 2.1237322e-06
      %v1376 = vadd.f32 %v1375, 0.00028619796
      %v1377 = vmul.f32 %v1374, %v1376
      %v1378 = vadd.f32 %v1377, 0.0036580483
      %v1379 = vmul.f32 %v1374, %v1378
      %v1380 = vadd.f32 %v1379, 0.05243302
      %v1381 = vmul.f32 %v1374, %v1380
      %v1382 = vadd.f32 %v1381, 0.18741608
      %v1383 = vmul.f32 %v1374, %v1382
      %v1384 = vadd.f32 %v1383, 1.1283791
      %v1385 = vmul.f32 %v366, %v1384
      %v1386 = vmul.f32 %v1374, 3.8918573e-05
      %v1387 = vadd.f32 %v1386, 0.001143296
      %v1388 = vmul.f32 %v1374, %v1387
      %v1389 = vadd.f32 %v1388, 0.014752088
      %v1390 = vmul.f32 %v1374, %v1389
      %v1391 = vadd.f32 %v1390, 0.112945676
      %v1392 = vmul.f32 %v1374, %v1391
      %v1393 = vadd.f32 %v1392, 0.4994258
      %v1394 = vmul.f32 %v1374, %v1393
      %v1395 = vadd.f32 %v1394, 1.0
      %v1396 = vrcp.pop %v1395
      %v1397 = vmul.f32 %v1395, %v1396
      %v1398 = vsub.f32 1.0, %v1397
      %v1399 = vmul.f32 %v1396, %v1398
      %v1400 = vadd.f32 %v1396, %v1399
      %vm1401 = vweird.f32 %v1395
      %vm1402 = vweird.f32 %v1396
      %vm1403 = vmor %vm1401, %vm1402
      %v1404 = vsel %vm1403, %v1396, %v1400
      %v1405 = vand.u32 2147483647, %v1395
      %vm1406 = vcmp.eq.f32.partialorder %v1405, 8.507059e+37
      %v1407 = vand.u32 %v1395, 2147483648
      %v1408 = vor.u32 1.1754944e-38, %v1407
      %v1409 = vsel %vm1406, %v1408, %v1404
      %v1410 = vmul.f32 %v1385, %v1409
      %v1411 = vmin.f32 %v1410, 1.0
      %v1412 = vmax.f32 %v1411, -1.0
      %v1413 = vmul.f32 %v367, %v367
      %v1414 = vmin.f32 16.0, %v1413
      %v1415 = vmul.f32 %v1414, 2.1237322e-06
      %v1416 = vadd.f32 %v1415, 0.00028619796
      %v1417 = vmul.f32 %v1414, %v1416
      %v1418 = vadd.f32 %v1417, 0.0036580483
      %v1419 = vmul.f32 %v1414, %v1418
      %v1420 = vadd.f32 %v1419, 0.05243302
      %v1421 = vmul.f32 %v1414, %v1420
      %v1422 = vadd.f32 %v1421, 0.18741608
      %v1423 = vmul.f32 %v1414, %v1422
      %v1424 = vadd.f32 %v1423, 1.1283791
      %v1425 = vmul.f32 %v367, %v1424
      %v1426 = vmul.f32 %v1414, 3.8918573e-05
      %v1427 = vadd.f32 %v1426, 0.001143296
      %v1428 = vmul.f32 %v1414, %v1427
      %v1429 = vadd.f32 %v1428, 0.014752088
      %v1430 = vmul.f32 %v1414, %v1429
      %v1431 = vadd.f32 %v1430, 0.112945676
      %v1432 = vmul.f32 %v1414, %v1431
      %v1433 = vadd.f32 %v1432, 0.4994258
      %v1434 = vmul.f32 %v1414, %v1433
      %v1435 = vadd.f32 %v1434, 1.0
      %v1436 = vrcp.pop %v1435
      %v1437 = vmul.f32 %v1435, %v1436
      %v1438 = vsub.f32 1.0, %v1437
      %v1439 = vmul.f32 %v1436, %v1438
      %v1440 = vadd.f32 %v1436, %v1439
      %vm1441 = vweird.f32 %v1435
      %vm1442 = vweird.f32 %v1436
      %vm1443 = vmor %vm1441, %vm1442
      %v1444 = vsel %vm1443, %v1436, %v1440
      %v1445 = vand.u32 2147483647, %v1435
      %vm1446 = vcmp.eq.f32.partialorder %v1445, 8.507059e+37
      %v1447 = vand.u32 %v1435, 2147483648
      %v1448 = vor.u32 1.1754944e-38, %v1447
      %v1449 = vsel %vm1446, %v1448, %v1444
      %v1450 = vmul.f32 %v1425, %v1449
      %v1451 = vmin.f32 %v1450, 1.0
      %v1452 = vmax.f32 %v1451, -1.0
      %v1453 = vmul.f32 %v368, %v368
      %v1454 = vmin.f32 16.0, %v1453
      %v1455 = vmul.f32 %v1454, 2.1237322e-06
      %v1456 = vadd.f32 %v1455, 0.00028619796
      %v1457 = vmul.f32 %v1454, %v1456
      %v1458 = vadd.f32 %v1457, 0.0036580483
      %v1459 = vmul.f32 %v1454, %v1458
      %v1460 = vadd.f32 %v1459, 0.05243302
      %v1461 = vmul.f32 %v1454, %v1460
      %v1462 = vadd.f32 %v1461, 0.18741608
      %v1463 = vmul.f32 %v1454, %v1462
      %v1464 = vadd.f32 %v1463, 1.1283791
      %v1465 = vmul.f32 %v368, %v1464
      %v1466 = vmul.f32 %v1454, 3.8918573e-05
      %v1467 = vadd.f32 %v1466, 0.001143296
      %v1468 = vmul.f32 %v1454, %v1467
      %v1469 = vadd.f32 %v1468, 0.014752088
      %v1470 = vmul.f32 %v1454, %v1469
      %v1471 = vadd.f32 %v1470, 0.112945676
      %v1472 = vmul.f32 %v1454, %v1471
      %v1473 = vadd.f32 %v1472, 0.4994258
      %v1474 = vmul.f32 %v1454, %v1473
      %v1475 = vadd.f32 %v1474, 1.0
      %v1476 = vrcp.pop %v1475
      %v1477 = vmul.f32 %v1475, %v1476
      %v1478 = vsub.f32 1.0, %v1477
      %v1479 = vmul.f32 %v1476, %v1478
      %v1480 = vadd.f32 %v1476, %v1479
      %vm1481 = vweird.f32 %v1475
      %vm1482 = vweird.f32 %v1476
      %vm1483 = vmor %vm1481, %vm1482
      %v1484 = vsel %vm1483, %v1476, %v1480
      %v1485 = vand.u32 2147483647, %v1475
      %vm1486 = vcmp.eq.f32.partialorder %v1485, 8.507059e+37
      %v1487 = vand.u32 %v1475, 2147483648
      %v1488 = vor.u32 1.1754944e-38, %v1487
      %v1489 = vsel %vm1486, %v1488, %v1484
      %v1490 = vmul.f32 %v1465, %v1489
      %v1491 = vmin.f32 %v1490, 1.0
      %v1492 = vmax.f32 %v1491, -1.0
      %v1493 = vmul.f32 %v369, %v369
      %v1494 = vmin.f32 16.0, %v1493
      %v1495 = vmul.f32 %v1494, 2.1237322e-06
      %v1496 = vadd.f32 %v1495, 0.00028619796
      %v1497 = vmul.f32 %v1494, %v1496
      %v1498 = vadd.f32 %v1497, 0.0036580483
      %v1499 = vmul.f32 %v1494, %v1498
      %v1500 = vadd.f32 %v1499, 0.05243302
      %v1501 = vmul.f32 %v1494, %v1500
      %v1502 = vadd.f32 %v1501, 0.18741608
      %v1503 = vmul.f32 %v1494, %v1502
      %v1504 = vadd.f32 %v1503, 1.1283791
      %v1505 = vmul.f32 %v369, %v1504
      %v1506 = vmul.f32 %v1494, 3.8918573e-05
      %v1507 = vadd.f32 %v1506, 0.001143296
      %v1508 = vmul.f32 %v1494, %v1507
      %v1509 = vadd.f32 %v1508, 0.014752088
      %v1510 = vmul.f32 %v1494, %v1509
      %v1511 = vadd.f32 %v1510, 0.112945676
      %v1512 = vmul.f32 %v1494, %v1511
      %v1513 = vadd.f32 %v1512, 0.4994258
      %v1514 = vmul.f32 %v1494, %v1513
      %v1515 = vadd.f32 %v1514, 1.0
      %v1516 = vrcp.pop %v1515
      %v1517 = vmul.f32 %v1515, %v1516
      %v1518 = vsub.f32 1.0, %v1517
      %v1519 = vmul.f32 %v1516, %v1518
      %v1520 = vadd.f32 %v1516, %v1519
      %vm1521 = vweird.f32 %v1515
      %vm1522 = vweird.f32 %v1516
      %vm1523 = vmor %vm1521, %vm1522
      %v1524 = vsel %vm1523, %v1516, %v1520
      %v1525 = vand.u32 2147483647, %v1515
      %vm1526 = vcmp.eq.f32.partialorder %v1525, 8.507059e+37
      %v1527 = vand.u32 %v1515, 2147483648
      %v1528 = vor.u32 1.1754944e-38, %v1527
      %v1529 = vsel %vm1526, %v1528, %v1524
      %v1530 = vmul.f32 %v1505, %v1529
      %v1531 = vmin.f32 %v1530, 1.0
      %v1532 = vmax.f32 %v1531, -1.0
      %v1533 = vmul.f32 %v370, %v370
      %v1534 = vmin.f32 16.0, %v1533
      %v1535 = vmul.f32 %v1534, 2.1237322e-06
      %v1536 = vadd.f32 %v1535, 0.00028619796
      %v1537 = vmul.f32 %v1534, %v1536
      %v1538 = vadd.f32 %v1537, 0.0036580483
      %v1539 = vmul.f32 %v1534, %v1538
      %v1540 = vadd.f32 %v1539, 0.05243302
      %v1541 = vmul.f32 %v1534, %v1540
      %v1542 = vadd.f32 %v1541, 0.18741608
      %v1543 = vmul.f32 %v1534, %v1542
      %v1544 = vadd.f32 %v1543, 1.1283791
      %v1545 = vmul.f32 %v370, %v1544
      %v1546 = vmul.f32 %v1534, 3.8918573e-05
      %v1547 = vadd.f32 %v1546, 0.001143296
      %v1548 = vmul.f32 %v1534, %v1547
      %v1549 = vadd.f32 %v1548, 0.014752088
      %v1550 = vmul.f32 %v1534, %v1549
      %v1551 = vadd.f32 %v1550, 0.112945676
      %v1552 = vmul.f32 %v1534, %v1551
      %v1553 = vadd.f32 %v1552, 0.4994258
      %v1554 = vmul.f32 %v1534, %v1553
      %v1555 = vadd.f32 %v1554, 1.0
      %v1556 = vrcp.pop %v1555
      %v1557 = vmul.f32 %v1555, %v1556
      %v1558 = vsub.f32 1.0, %v1557
      %v1559 = vmul.f32 %v1556, %v1558
      %v1560 = vadd.f32 %v1556, %v1559
      %vm1561 = vweird.f32 %v1555
      %vm1562 = vweird.f32 %v1556
      %vm1563 = vmor %vm1561, %vm1562
      %v1564 = vsel %vm1563, %v1556, %v1560
      %v1565 = vand.u32 2147483647, %v1555
      %vm1566 = vcmp.eq.f32.partialorder %v1565, 8.507059e+37
      %v1567 = vand.u32 %v1555, 2147483648
      %v1568 = vor.u32 1.1754944e-38, %v1567
      %v1569 = vsel %vm1566, %v1568, %v1564
      %v1570 = vmul.f32 %v1545, %v1569
      %v1571 = vmin.f32 %v1570, 1.0
      %v1572 = vmax.f32 %v1571, -1.0
      %v1573 = vmul.f32 %v371, %v371
      %v1574 = vmin.f32 16.0, %v1573
      %v1575 = vmul.f32 %v1574, 2.1237322e-06
      %v1576 = vadd.f32 %v1575, 0.00028619796
      %v1577 = vmul.f32 %v1574, %v1576
      %v1578 = vadd.f32 %v1577, 0.0036580483
      %v1579 = vmul.f32 %v1574, %v1578
      %v1580 = vadd.f32 %v1579, 0.05243302
      %v1581 = vmul.f32 %v1574, %v1580
      %v1582 = vadd.f32 %v1581, 0.18741608
      %v1583 = vmul.f32 %v1574, %v1582
      %v1584 = vadd.f32 %v1583, 1.1283791
      %v1585 = vmul.f32 %v371, %v1584
      %v1586 = vmul.f32 %v1574, 3.8918573e-05
      %v1587 = vadd.f32 %v1586, 0.001143296
      %v1588 = vmul.f32 %v1574, %v1587
      %v1589 = vadd.f32 %v1588, 0.014752088
      %v1590 = vmul.f32 %v1574, %v1589
      %v1591 = vadd.f32 %v1590, 0.112945676
      %v1592 = vmul.f32 %v1574, %v1591
      %v1593 = vadd.f32 %v1592, 0.4994258
      %v1594 = vmul.f32 %v1574, %v1593
      %v1595 = vadd.f32 %v1594, 1.0
      %v1596 = vrcp.pop %v1595
      %v1597 = vmul.f32 %v1595, %v1596
      %v1598 = vsub.f32 1.0, %v1597
      %v1599 = vmul.f32 %v1596, %v1598
      %v1600 = vadd.f32 %v1596, %v1599
      %vm1601 = vweird.f32 %v1595
      %vm1602 = vweird.f32 %v1596
      %vm1603 = vmor %vm1601, %vm1602
      %v1604 = vsel %vm1603, %v1596, %v1600
      %v1605 = vand.u32 2147483647, %v1595
      %vm1606 = vcmp.eq.f32.partialorder %v1605, 8.507059e+37
      %v1607 = vand.u32 %v1595, 2147483648
      %v1608 = vor.u32 1.1754944e-38, %v1607
      %v1609 = vsel %vm1606, %v1608, %v1604
      %v1610 = vmul.f32 %v1585, %v1609
      %v1611 = vmin.f32 %v1610, 1.0
      %v1612 = vmax.f32 %v1611, -1.0
      %v1613 = vmul.f32 %v372, %v372
      %v1614 = vmin.f32 16.0, %v1613
      %v1615 = vmul.f32 %v1614, 2.1237322e-06
      %v1616 = vadd.f32 %v1615, 0.00028619796
      %v1617 = vmul.f32 %v1614, %v1616
      %v1618 = vadd.f32 %v1617, 0.0036580483
      %v1619 = vmul.f32 %v1614, %v1618
      %v1620 = vadd.f32 %v1619, 0.05243302
      %v1621 = vmul.f32 %v1614, %v1620
      %v1622 = vadd.f32 %v1621, 0.18741608
      %v1623 = vmul.f32 %v1614, %v1622
      %v1624 = vadd.f32 %v1623, 1.1283791
      %v1625 = vmul.f32 %v372, %v1624
      %v1626 = vmul.f32 %v1614, 3.8918573e-05
      %v1627 = vadd.f32 %v1626, 0.001143296
      %v1628 = vmul.f32 %v1614, %v1627
      %v1629 = vadd.f32 %v1628, 0.014752088
      %v1630 = vmul.f32 %v1614, %v1629
      %v1631 = vadd.f32 %v1630, 0.112945676
      %v1632 = vmul.f32 %v1614, %v1631
      %v1633 = vadd.f32 %v1632, 0.4994258
      %v1634 = vmul.f32 %v1614, %v1633
      %v1635 = vadd.f32 %v1634, 1.0
      %v1636 = vrcp.pop %v1635
      %v1637 = vmul.f32 %v1635, %v1636
      %v1638 = vsub.f32 1.0, %v1637
      %v1639 = vmul.f32 %v1636, %v1638
      %v1640 = vadd.f32 %v1636, %v1639
      %vm1641 = vweird.f32 %v1635
      %vm1642 = vweird.f32 %v1636
      %vm1643 = vmor %vm1641, %vm1642
      %v1644 = vsel %vm1643, %v1636, %v1640
      %v1645 = vand.u32 2147483647, %v1635
      %vm1646 = vcmp.eq.f32.partialorder %v1645, 8.507059e+37
      %v1647 = vand.u32 %v1635, 2147483648
      %v1648 = vor.u32 1.1754944e-38, %v1647
      %v1649 = vsel %vm1646, %v1648, %v1644
      %v1650 = vmul.f32 %v1625, %v1649
      %v1651 = vmin.f32 %v1650, 1.0
      %v1652 = vmax.f32 %v1651, -1.0
      %v1653 = vadd.f32 %v412, 1.0
      %v1654 = vadd.f32 %v452, 1.0
      %v1655 = vadd.f32 %v492, 1.0
      %v1656 = vadd.f32 %v532, 1.0
      %v1657 = vadd.f32 %v572, 1.0
      %v1658 = vadd.f32 %v612, 1.0
      %v1659 = vadd.f32 %v652, 1.0
      %v1660 = vadd.f32 %v692, 1.0
      %v1661 = vadd.f32 %v732, 1.0
      %v1662 = vadd.f32 %v772, 1.0
      %v1663 = vadd.f32 %v812, 1.0
      %v1664 = vadd.f32 %v852, 1.0
      %v1665 = vadd.f32 %v892, 1.0
      %v1666 = vadd.f32 %v932, 1.0
      %v1667 = vadd.f32 %v972, 1.0
      %v1668 = vadd.f32 %v1012, 1.0
      %v1669 = vadd.f32 %v1052, 1.0
      %v1670 = vadd.f32 %v1092, 1.0
      %v1671 = vadd.f32 %v1132, 1.0
      %v1672 = vadd.f32 %v1172, 1.0
      %v1673 = vadd.f32 %v1212, 1.0
      %v1674 = vadd.f32 %v1252, 1.0
      %v1675 = vadd.f32 %v1292, 1.0
      %v1676 = vadd.f32 %v1332, 1.0
      %v1677 = vadd.f32 %v1372, 1.0
      %v1678 = vadd.f32 %v1412, 1.0
      %v1679 = vadd.f32 %v1452, 1.0
      %v1680 = vadd.f32 %v1492, 1.0
      %v1681 = vadd.f32 %v1532, 1.0
      %v1682 = vadd.f32 %v1572, 1.0
      %v1683 = vadd.f32 %v1612, 1.0
      %v1684 = vadd.f32 %v1652, 1.0
      %v1685 = vmul.f32 %v302, %v1653
      %v1686 = vmul.f32 %v303, %v1654
      %v1687 = vmul.f32 %v304, %v1655
      %v1688 = vmul.f32 %v305, %v1656
      %v1689 = vmul.f32 %v306, %v1657
      %v1690 = vmul.f32 %v307, %v1658
      %v1691 = vmul.f32 %v308, %v1659
      %v1692 = vmul.f32 %v309, %v1660
      %v1693 = vmul.f32 %v310, %v1661
      %v1694 = vmul.f32 %v311, %v1662
      %v1695 = vmul.f32 %v312, %v1663
      %v1696 = vmul.f32 %v313, %v1664
      %v1697 = vmul.f32 %v314, %v1665
      %v1698 = vmul.f32 %v315, %v1666
      %v1699 = vmul.f32 %v316, %v1667
      %v1700 = vmul.f32 %v317, %v1668
      %v1701 = vmul.f32 %v318, %v1669
      %v1702 = vmul.f32 %v319, %v1670
      %v1703 = vmul.f32 %v320, %v1671
      %v1704 = vmul.f32 %v321, %v1672
      %v1705 = vmul.f32 %v322, %v1673
      %v1706 = vmul.f32 %v323, %v1674
      %v1707 = vmul.f32 %v324, %v1675
      %v1708 = vmul.f32 %v325, %v1676
      %v1709 = vmul.f32 %v326, %v1677
      %v1710 = vmul.f32 %v327, %v1678
      %v1711 = vmul.f32 %v328, %v1679
      %v1712 = vmul.f32 %v329, %v1680
      %v1713 = vmul.f32 %v330, %v1681
      %v1714 = vmul.f32 %v331, %v1682
      %v1715 = vmul.f32 %v332, %v1683
      %v1716 = vmul.f32 %v333, %v1684
      %1717 = vst [vmem:[#allocation2] sm:$0xff] 0.0
      %1718 = vst [vmem:[#allocation2 + $0x8] sm:$0xff] 0.0
      %1719 = vst [vmem:[#allocation2 + $0x10] sm:$0x3] 0.0
      %1720 = vst [vmem:[#allocation2 + $0x18] sm:$0xff] 0.0
      %1721 = vst [vmem:[#allocation2 + $0x20] sm:$0xff] 0.0
      %1722 = vst [vmem:[#allocation2 + $0x28] sm:$0x3] 0.0
      %1723 = vst [vmem:[#allocation2 + $0x30] sm:$0xff] 0.0
      %1724 = vst [vmem:[#allocation2 + $0x38] sm:$0xff] 0.0
      %1725 = vst [vmem:[#allocation2 + $0x40] sm:$0x3] 0.0
      %1726 = vst [vmem:[#allocation2 + $0x48] sm:$0xff] 0.0
      %1727 = vst [vmem:[#allocation2 + $0x50] sm:$0xff] 0.0
      %1728 = vst [vmem:[#allocation2 + $0x58] sm:$0x3] 0.0
      %1729 = vst [vmem:[#allocation2 + $0x60] sm:$0xff] 0.0
      %1730 = vst [vmem:[#allocation2 + $0x68] sm:$0xff] 0.0
      %1731 = vst [vmem:[#allocation2 + $0x70] sm:$0x3] 0.0
      %1732 = vst [vmem:[#allocation2 + $0x78] sm:$0xff] 0.0
      %1733 = vst [vmem:[#allocation2 + $0x80] sm:$0xff] 0.0
      %1734 = vst [vmem:[#allocation2 + $0x88] sm:$0x3] 0.0
      %1735 = vst [vmem:[#allocation2 + $0x90] sm:$0xff] 0.0
      %1736 = vst [vmem:[#allocation2 + $0x98] sm:$0xff] 0.0
      %1737 = vst [vmem:[#allocation2 + $0xa0] sm:$0x3] 0.0
      %1738 = vst [vmem:[#allocation2 + $0xa8] sm:$0xff] 0.0
      %1739 = vst [vmem:[#allocation2 + $0xb0] sm:$0xff] 0.0
      %1740 = vst [vmem:[#allocation2 + $0xb8] sm:$0x3] 0.0
      %1741 = vst [vmem:[#allocation2 + $0xc0] sm:$0xff] 0.0
      %1742 = vst [vmem:[#allocation2 + $0xc8] sm:$0xff] 0.0
      %1743 = vst [vmem:[#allocation2 + $0xd0] sm:$0x3] 0.0
      %1744 = vst [vmem:[#allocation2 + $0xd8] sm:$0xff] 0.0
      %1745 = vst [vmem:[#allocation2 + $0xe0] sm:$0xff] 0.0
      %1746 = vst [vmem:[#allocation2 + $0xe8] sm:$0x3] 0.0
      %1747 = vst [vmem:[#allocation2 + $0xf0] sm:$0xff] 0.0
      %1748 = vst [vmem:[#allocation2 + $0xf8] sm:$0xff] 0.0
      %1749 = vst [vmem:[#allocation2 + $0x100] sm:$0x3] 0.0
      %1750 = vst [vmem:[#allocation2 + $0x108] sm:$0xff] 0.0
      %1751 = vst [vmem:[#allocation2 + $0x110] sm:$0xff] 0.0
      %1752 = vst [vmem:[#allocation2 + $0x118] sm:$0x3] 0.0
      %1753 = vst [vmem:[#allocation2 + $0x120] sm:$0xff] 0.0
      %1754 = vst [vmem:[#allocation2 + $0x128] sm:$0xff] 0.0
      %1755 = vst [vmem:[#allocation2 + $0x130] sm:$0x3] 0.0
      %1756 = vst [vmem:[#allocation2 + $0x138] sm:$0xff] 0.0
      %1757 = vst [vmem:[#allocation2 + $0x140] sm:$0xff] 0.0
      %1758 = vst [vmem:[#allocation2 + $0x148] sm:$0x3] 0.0
      %1759 = vst [vmem:[#allocation2 + $0x150] sm:$0xff] 0.0
      %1760 = vst [vmem:[#allocation2 + $0x158] sm:$0xff] 0.0
      %1761 = vst [vmem:[#allocation2 + $0x160] sm:$0x3] 0.0
      %1762 = vst [vmem:[#allocation2 + $0x168] sm:$0xff] 0.0
      %1763 = vst [vmem:[#allocation2 + $0x170] sm:$0xff] 0.0
      %1764 = vst [vmem:[#allocation2 + $0x178] sm:$0x3] 0.0
      %1765 = vst [vmem:[#allocation2 + $0x180] sm:$0xff] 0.0
      %1766 = vst [vmem:[#allocation2 + $0x188] sm:$0xff] 0.0
      %1767 = vst [vmem:[#allocation2 + $0x190] sm:$0x3] 0.0
      %1768 = vst [vmem:[#allocation2 + $0x198] sm:$0xff] 0.0
      %1769 = vst [vmem:[#allocation2 + $0x1a0] sm:$0xff] 0.0
      %1770 = vst [vmem:[#allocation2 + $0x1a8] sm:$0x3] 0.0
      %s1771 = scalar_lea.vmem [#allocation2], 24
      %1772 = vst [vmem:[%s1771 + $0x1] sm:$0xff] %v1685
      %1773 = vst [vmem:[%s1771 + $0x9] sm:$0xff] %v1686
      %1774 = vst [vmem:[%s1771 + $0x19] sm:$0xff] %v1687
      %1775 = vst [vmem:[%s1771 + $0x21] sm:$0xff] %v1688
      %1776 = vst [vmem:[%s1771 + $0x31] sm:$0xff] %v1689
      %1777 = vst [vmem:[%s1771 + $0x39] sm:$0xff] %v1690
      %1778 = vst [vmem:[%s1771 + $0x49] sm:$0xff] %v1691
      %1779 = vst [vmem:[%s1771 + $0x51] sm:$0xff] %v1692
      %1780 = vst [vmem:[%s1771 + $0x61] sm:$0xff] %v1693
      %1781 = vst [vmem:[%s1771 + $0x69] sm:$0xff] %v1694
      %1782 = vst [vmem:[%s1771 + $0x79] sm:$0xff] %v1695
      %1783 = vst [vmem:[%s1771 + $0x81] sm:$0xff] %v1696
      %1784 = vst [vmem:[%s1771 + $0x91] sm:$0xff] %v1697
      %1785 = vst [vmem:[%s1771 + $0x99] sm:$0xff] %v1698
      %1786 = vst [vmem:[%s1771 + $0xa9] sm:$0xff] %v1699
      %1787 = vst [vmem:[%s1771 + $0xb1] sm:$0xff] %v1700
      %1788 = vst [vmem:[%s1771 + $0xc1] sm:$0xff] %v1701
      %1789 = vst [vmem:[%s1771 + $0xc9] sm:$0xff] %v1702
      %1790 = vst [vmem:[%s1771 + $0xd9] sm:$0xff] %v1703
      %1791 = vst [vmem:[%s1771 + $0xe1] sm:$0xff] %v1704
      %1792 = vst [vmem:[%s1771 + $0xf1] sm:$0xff] %v1705
      %1793 = vst [vmem:[%s1771 + $0xf9] sm:$0xff] %v1706
      %1794 = vst [vmem:[%s1771 + $0x109] sm:$0xff] %v1707
      %1795 = vst [vmem:[%s1771 + $0x111] sm:$0xff] %v1708
      %1796 = vst [vmem:[%s1771 + $0x121] sm:$0xff] %v1709
      %1797 = vst [vmem:[%s1771 + $0x129] sm:$0xff] %v1710
      %1798 = vst [vmem:[%s1771 + $0x139] sm:$0xff] %v1711
      %1799 = vst [vmem:[%s1771 + $0x141] sm:$0xff] %v1712
      %1800 = vst [vmem:[%s1771 + $0x151] sm:$0xff] %v1713
      %1801 = vst [vmem:[%s1771 + $0x159] sm:$0xff] %v1714
      %1802 = vst [vmem:[%s1771 + $0x169] sm:$0xff] %v1715
      %1803 = vst [vmem:[%s1771 + $0x171] sm:$0xff] %v1716
      %v1804 = vld [vmem:[#allocation2] sm:$0xff]
      %v1805 = vld [vmem:[#allocation2 + $0x8] sm:$0xff]
      %v1806 = vld [vmem:[#allocation2 + $0x18] sm:$0xff]
      %v1807 = vld [vmem:[#allocation2 + $0x20] sm:$0xff]
      %v1808 = vld [vmem:[#allocation2 + $0x30] sm:$0xff]
      %v1809 = vld [vmem:[#allocation2 + $0x38] sm:$0xff]
      %v1810 = vld [vmem:[#allocation2 + $0x48] sm:$0xff]
      %v1811 = vld [vmem:[#allocation2 + $0x50] sm:$0xff]
      %v1812 = vld [vmem:[#allocation2 + $0x60] sm:$0xff]
      %v1813 = vld [vmem:[#allocation2 + $0x68] sm:$0xff]
      %v1814 = vld [vmem:[#allocation2 + $0x78] sm:$0xff]
      %v1815 = vld [vmem:[#allocation2 + $0x80] sm:$0xff]
      %v1816 = vld [vmem:[#allocation2 + $0x90] sm:$0xff]
      %v1817 = vld [vmem:[#allocation2 + $0x98] sm:$0xff]
      %v1818 = vld [vmem:[#allocation2 + $0xa8] sm:$0xff]
      %v1819 = vld [vmem:[#allocation2 + $0xb0] sm:$0xff]
      %v1820 = vld [vmem:[#allocation2 + $0xc0] sm:$0xff]
      %v1821 = vld [vmem:[#allocation2 + $0xc8] sm:$0xff]
      %v1822 = vld [vmem:[#allocation2 + $0xd8] sm:$0xff]
      %v1823 = vld [vmem:[#allocation2 + $0xe0] sm:$0xff]
      %v1824 = vld [vmem:[#allocation2 + $0xf0] sm:$0xff]
      %v1825 = vld [vmem:[#allocation2 + $0xf8] sm:$0xff]
      %v1826 = vld [vmem:[#allocation2 + $0x108] sm:$0xff]
      %v1827 = vld [vmem:[#allocation2 + $0x110] sm:$0xff]
      %v1828 = vld [vmem:[#allocation2 + $0x120] sm:$0xff]
      %v1829 = vld [vmem:[#allocation2 + $0x128] sm:$0xff]
      %v1830 = vld [vmem:[#allocation2 + $0x138] sm:$0xff]
      %v1831 = vld [vmem:[#allocation2 + $0x140] sm:$0xff]
      %v1832 = vld [vmem:[#allocation2 + $0x150] sm:$0xff]
      %v1833 = vld [vmem:[#allocation2 + $0x158] sm:$0xff]
      %v1834 = vld [vmem:[#allocation2 + $0x168] sm:$0xff]
      %v1835 = vld [vmem:[#allocation2 + $0x170] sm:$0xff]
      %v1836 = vld [vmem:[%s3] sm:$0x1]
      %v1837 = vperm.slane %v1836, 0
      %v1838 = vmul.f32 %v1804, %v1837
      %v1839 = vmul.f32 %v1805, %v1837
      %v1840 = vmul.f32 %v1806, %v1837
      %v1841 = vmul.f32 %v1807, %v1837
      %v1842 = vmul.f32 %v1808, %v1837
      %v1843 = vmul.f32 %v1809, %v1837
      %v1844 = vmul.f32 %v1810, %v1837
      %v1845 = vmul.f32 %v1811, %v1837
      %v1846 = vmul.f32 %v1812, %v1837
      %v1847 = vmul.f32 %v1813, %v1837
      %v1848 = vmul.f32 %v1814, %v1837
      %v1849 = vmul.f32 %v1815, %v1837
      %v1850 = vmul.f32 %v1816, %v1837
      %v1851 = vmul.f32 %v1817, %v1837
      %v1852 = vmul.f32 %v1818, %v1837
      %v1853 = vmul.f32 %v1819, %v1837
      %v1854 = vmul.f32 %v1820, %v1837
      %v1855 = vmul.f32 %v1821, %v1837
      %v1856 = vmul.f32 %v1822, %v1837
      %v1857 = vmul.f32 %v1823, %v1837
      %v1858 = vmul.f32 %v1824, %v1837
      %v1859 = vmul.f32 %v1825, %v1837
      %v1860 = vmul.f32 %v1826, %v1837
      %v1861 = vmul.f32 %v1827, %v1837
      %v1862 = vmul.f32 %v1828, %v1837
      %v1863 = vmul.f32 %v1829, %v1837
      %v1864 = vmul.f32 %v1830, %v1837
      %v1865 = vmul.f32 %v1831, %v1837
      %v1866 = vmul.f32 %v1832, %v1837
      %v1867 = vmul.f32 %v1833, %v1837
      %v1868 = vmul.f32 %v1834, %v1837
      %v1869 = vmul.f32 %v1835, %v1837
      %1870 = vst [vmem:[%s197] sm:$0xff] %v1838
      %1871 = vst [vmem:[%s197 + $0x8] sm:$0xff] %v1839
      %1872 = vst [vmem:[%s197 + $0x10] sm:$0xff] %v1840
      %1873 = vst [vmem:[%s197 + $0x18] sm:$0xff] %v1841
      %1874 = vst [vmem:[%s197 + $0x20] sm:$0xff] %v1842
      %1875 = vst [vmem:[%s197 + $0x28] sm:$0xff] %v1843
      %1876 = vst [vmem:[%s197 + $0x30] sm:$0xff] %v1844
      %1877 = vst [vmem:[%s197 + $0x38] sm:$0xff] %v1845
      %1878 = vst [vmem:[%s197 + $0x40] sm:$0xff] %v1846
      %1879 = vst [vmem:[%s197 + $0x48] sm:$0xff] %v1847
      %1880 = vst [vmem:[%s197 + $0x50] sm:$0xff] %v1848
      %1881 = vst [vmem:[%s197 + $0x58] sm:$0xff] %v1849
      %1882 = vst [vmem:[%s197 + $0x60] sm:$0xff] %v1850
      %1883 = vst [vmem:[%s197 + $0x68] sm:$0xff] %v1851
      %1884 = vst [vmem:[%s197 + $0x70] sm:$0xff] %v1852
      %1885 = vst [vmem:[%s197 + $0x78] sm:$0xff] %v1853
      %1886 = vst [vmem:[%s197 + $0x80] sm:$0xff] %v1854
      %1887 = vst [vmem:[%s197 + $0x88] sm:$0xff] %v1855
      %1888 = vst [vmem:[%s197 + $0x90] sm:$0xff] %v1856
      %1889 = vst [vmem:[%s197 + $0x98] sm:$0xff] %v1857
      %1890 = vst [vmem:[%s197 + $0xa0] sm:$0xff] %v1858
      %1891 = vst [vmem:[%s197 + $0xa8] sm:$0xff] %v1859
      %1892 = vst [vmem:[%s197 + $0xb0] sm:$0xff] %v1860
      %1893 = vst [vmem:[%s197 + $0xb8] sm:$0xff] %v1861
      %1894 = vst [vmem:[%s197 + $0xc0] sm:$0xff] %v1862
      %1895 = vst [vmem:[%s197 + $0xc8] sm:$0xff] %v1863
      %1896 = vst [vmem:[%s197 + $0xd0] sm:$0xff] %v1864
      %1897 = vst [vmem:[%s197 + $0xd8] sm:$0xff] %v1865
      %1898 = vst [vmem:[%s197 + $0xe0] sm:$0xff] %v1866
      %1899 = vst [vmem:[%s197 + $0xe8] sm:$0xff] %v1867
      %1900 = vst [vmem:[%s197 + $0xf0] sm:$0xff] %v1868
      %1901 = vst [vmem:[%s197 + $0xf8] sm:$0xff] %v1869
      %v1902 = vld [vmem:[%s197] sm:$0xff]
      %v1903 = vld [vmem:[%s197 + $0x8] sm:$0xff]
      %v1904 = vld [vmem:[%s197 + $0x10] sm:$0xff]
      %v1905 = vld [vmem:[%s197 + $0x18] sm:$0xff]
      %v1906 = vld [vmem:[%s197 + $0x20] sm:$0xff]
      %v1907 = vld [vmem:[%s197 + $0x28] sm:$0xff]
      %v1908 = vld [vmem:[%s197 + $0x30] sm:$0xff]
      %v1909 = vld [vmem:[%s197 + $0x38] sm:$0xff]
      %v1910 = vld [vmem:[%s197 + $0x40] sm:$0xff]
      %v1911 = vld [vmem:[%s197 + $0x48] sm:$0xff]
      %v1912 = vld [vmem:[%s197 + $0x50] sm:$0xff]
      %v1913 = vld [vmem:[%s197 + $0x58] sm:$0xff]
      %v1914 = vld [vmem:[%s197 + $0x60] sm:$0xff]
      %v1915 = vld [vmem:[%s197 + $0x68] sm:$0xff]
      %v1916 = vld [vmem:[%s197 + $0x70] sm:$0xff]
      %v1917 = vld [vmem:[%s197 + $0x78] sm:$0xff]
      %v1918 = vld [vmem:[%s197 + $0x80] sm:$0xff]
      %v1919 = vld [vmem:[%s197 + $0x88] sm:$0xff]
      %v1920 = vld [vmem:[%s197 + $0x90] sm:$0xff]
      %v1921 = vld [vmem:[%s197 + $0x98] sm:$0xff]
      %v1922 = vld [vmem:[%s197 + $0xa0] sm:$0xff]
      %v1923 = vld [vmem:[%s197 + $0xa8] sm:$0xff]
      %v1924 = vld [vmem:[%s197 + $0xb0] sm:$0xff]
      %v1925 = vld [vmem:[%s197 + $0xb8] sm:$0xff]
      %v1926 = vld [vmem:[%s197 + $0xc0] sm:$0xff]
      %v1927 = vld [vmem:[%s197 + $0xc8] sm:$0xff]
      %v1928 = vld [vmem:[%s197 + $0xd0] sm:$0xff]
      %v1929 = vld [vmem:[%s197 + $0xd8] sm:$0xff]
      %v1930 = vld [vmem:[%s197 + $0xe0] sm:$0xff]
      %v1931 = vld [vmem:[%s197 + $0xe8] sm:$0xff]
      %v1932 = vld [vmem:[%s197 + $0xf0] sm:$0xff]
      %v1933 = vld [vmem:[%s197 + $0xf8] sm:$0xff]
      %v1934 = vld [vmem:[#allocation2 + $0x1] sm:$0xff]
      %v1935 = vld [vmem:[#allocation2 + $0x9] sm:$0xff]
      %v1936 = vld [vmem:[#allocation2 + $0x19] sm:$0xff]
      %v1937 = vld [vmem:[#allocation2 + $0x21] sm:$0xff]
      %v1938 = vld [vmem:[#allocation2 + $0x31] sm:$0xff]
      %v1939 = vld [vmem:[#allocation2 + $0x39] sm:$0xff]
      %v1940 = vld [vmem:[#allocation2 + $0x49] sm:$0xff]
      %v1941 = vld [vmem:[#allocation2 + $0x51] sm:$0xff]
      %v1942 = vld [vmem:[#allocation2 + $0x61] sm:$0xff]
      %v1943 = vld [vmem:[#allocation2 + $0x69] sm:$0xff]
      %v1944 = vld [vmem:[#allocation2 + $0x79] sm:$0xff]
      %v1945 = vld [vmem:[#allocation2 + $0x81] sm:$0xff]
      %v1946 = vld [vmem:[#allocation2 + $0x91] sm:$0xff]
      %v1947 = vld [vmem:[#allocation2 + $0x99] sm:$0xff]
      %v1948 = vld [vmem:[#allocation2 + $0xa9] sm:$0xff]
      %v1949 = vld [vmem:[#allocation2 + $0xb1] sm:$0xff]
      %v1950 = vld [vmem:[#allocation2 + $0xc1] sm:$0xff]
      %v1951 = vld [vmem:[#allocation2 + $0xc9] sm:$0xff]
      %v1952 = vld [vmem:[#allocation2 + $0xd9] sm:$0xff]
      %v1953 = vld [vmem:[#allocation2 + $0xe1] sm:$0xff]
      %v1954 = vld [vmem:[#allocation2 + $0xf1] sm:$0xff]
      %v1955 = vld [vmem:[#allocation2 + $0xf9] sm:$0xff]
      %v1956 = vld [vmem:[#allocation2 + $0x109] sm:$0xff]
      %v1957 = vld [vmem:[#allocation2 + $0x111] sm:$0xff]
      %v1958 = vld [vmem:[#allocation2 + $0x121] sm:$0xff]
      %v1959 = vld [vmem:[#allocation2 + $0x129] sm:$0xff]
      %v1960 = vld [vmem:[#allocation2 + $0x139] sm:$0xff]
      %v1961 = vld [vmem:[#allocation2 + $0x141] sm:$0xff]
      %v1962 = vld [vmem:[#allocation2 + $0x151] sm:$0xff]
      %v1963 = vld [vmem:[#allocation2 + $0x159] sm:$0xff]
      %v1964 = vld [vmem:[#allocation2 + $0x169] sm:$0xff]
      %v1965 = vld [vmem:[#allocation2 + $0x171] sm:$0xff]
      %v1966 = vld [vmem:[%s3 + $0x1] sm:$0x1]
      %v1967 = vperm.slane %v1966, 0
      %v1968 = vmul.f32 %v1934, %v1967
      %v1969 = vmul.f32 %v1935, %v1967
      %v1970 = vmul.f32 %v1936, %v1967
      %v1971 = vmul.f32 %v1937, %v1967
      %v1972 = vmul.f32 %v1938, %v1967
      %v1973 = vmul.f32 %v1939, %v1967
      %v1974 = vmul.f32 %v1940, %v1967
      %v1975 = vmul.f32 %v1941, %v1967
      %v1976 = vmul.f32 %v1942, %v1967
      %v1977 = vmul.f32 %v1943, %v1967
      %v1978 = vmul.f32 %v1944, %v1967
      %v1979 = vmul.f32 %v1945, %v1967
      %v1980 = vmul.f32 %v1946, %v1967
      %v1981 = vmul.f32 %v1947, %v1967
      %v1982 = vmul.f32 %v1948, %v1967
      %v1983 = vmul.f32 %v1949, %v1967
      %v1984 = vmul.f32 %v1950, %v1967
      %v1985 = vmul.f32 %v1951, %v1967
      %v1986 = vmul.f32 %v1952, %v1967
      %v1987 = vmul.f32 %v1953, %v1967
      %v1988 = vmul.f32 %v1954, %v1967
      %v1989 = vmul.f32 %v1955, %v1967
      %v1990 = vmul.f32 %v1956, %v1967
      %v1991 = vmul.f32 %v1957, %v1967
      %v1992 = vmul.f32 %v1958, %v1967
      %v1993 = vmul.f32 %v1959, %v1967
      %v1994 = vmul.f32 %v1960, %v1967
      %v1995 = vmul.f32 %v1961, %v1967
      %v1996 = vmul.f32 %v1962, %v1967
      %v1997 = vmul.f32 %v1963, %v1967
      %v1998 = vmul.f32 %v1964, %v1967
      %v1999 = vmul.f32 %v1965, %v1967
      %v2000 = vadd.f32 %v1902, %v1968
      %v2001 = vadd.f32 %v1903, %v1969
      %v2002 = vadd.f32 %v1904, %v1970
      %v2003 = vadd.f32 %v1905, %v1971
      %v2004 = vadd.f32 %v1906, %v1972
      %v2005 = vadd.f32 %v1907, %v1973
      %v2006 = vadd.f32 %v1908, %v1974
      %v2007 = vadd.f32 %v1909, %v1975
      %v2008 = vadd.f32 %v1910, %v1976
      %v2009 = vadd.f32 %v1911, %v1977
      %v2010 = vadd.f32 %v1912, %v1978
      %v2011 = vadd.f32 %v1913, %v1979
      %v2012 = vadd.f32 %v1914, %v1980
      %v2013 = vadd.f32 %v1915, %v1981
      %v2014 = vadd.f32 %v1916, %v1982
      %v2015 = vadd.f32 %v1917, %v1983
      %v2016 = vadd.f32 %v1918, %v1984
      %v2017 = vadd.f32 %v1919, %v1985
      %v2018 = vadd.f32 %v1920, %v1986
      %v2019 = vadd.f32 %v1921, %v1987
      %v2020 = vadd.f32 %v1922, %v1988
      %v2021 = vadd.f32 %v1923, %v1989
      %v2022 = vadd.f32 %v1924, %v1990
      %v2023 = vadd.f32 %v1925, %v1991
      %v2024 = vadd.f32 %v1926, %v1992
      %v2025 = vadd.f32 %v1927, %v1993
      %v2026 = vadd.f32 %v1928, %v1994
      %v2027 = vadd.f32 %v1929, %v1995
      %v2028 = vadd.f32 %v1930, %v1996
      %v2029 = vadd.f32 %v1931, %v1997
      %v2030 = vadd.f32 %v1932, %v1998
      %v2031 = vadd.f32 %v1933, %v1999
      %2032 = vst [vmem:[%s197] sm:$0xff] %v2000
      %2033 = vst [vmem:[%s197 + $0x8] sm:$0xff] %v2001
      %2034 = vst [vmem:[%s197 + $0x10] sm:$0xff] %v2002
      %2035 = vst [vmem:[%s197 + $0x18] sm:$0xff] %v2003
      %2036 = vst [vmem:[%s197 + $0x20] sm:$0xff] %v2004
      %2037 = vst [vmem:[%s197 + $0x28] sm:$0xff] %v2005
      %2038 = vst [vmem:[%s197 + $0x30] sm:$0xff] %v2006
      %2039 = vst [vmem:[%s197 + $0x38] sm:$0xff] %v2007
      %2040 = vst [vmem:[%s197 + $0x40] sm:$0xff] %v2008
      %2041 = vst [vmem:[%s197 + $0x48] sm:$0xff] %v2009
      %2042 = vst [vmem:[%s197 + $0x50] sm:$0xff] %v2010
      %2043 = vst [vmem:[%s197 + $0x58] sm:$0xff] %v2011
      %2044 = vst [vmem:[%s197 + $0x60] sm:$0xff] %v2012
      %2045 = vst [vmem:[%s197 + $0x68] sm:$0xff] %v2013
      %2046 = vst [vmem:[%s197 + $0x70] sm:$0xff] %v2014
      %2047 = vst [vmem:[%s197 + $0x78] sm:$0xff] %v2015
      %2048 = vst [vmem:[%s197 + $0x80] sm:$0xff] %v2016
      %2049 = vst [vmem:[%s197 + $0x88] sm:$0xff] %v2017
      %2050 = vst [vmem:[%s197 + $0x90] sm:$0xff] %v2018
      %2051 = vst [vmem:[%s197 + $0x98] sm:$0xff] %v2019
      %2052 = vst [vmem:[%s197 + $0xa0] sm:$0xff] %v2020
      %2053 = vst [vmem:[%s197 + $0xa8] sm:$0xff] %v2021
      %2054 = vst [vmem:[%s197 + $0xb0] sm:$0xff] %v2022
      %2055 = vst [vmem:[%s197 + $0xb8] sm:$0xff] %v2023
      %2056 = vst [vmem:[%s197 + $0xc0] sm:$0xff] %v2024
      %2057 = vst [vmem:[%s197 + $0xc8] sm:$0xff] %v2025
      %2058 = vst [vmem:[%s197 + $0xd0] sm:$0xff] %v2026
      %2059 = vst [vmem:[%s197 + $0xd8] sm:$0xff] %v2027
      %2060 = vst [vmem:[%s197 + $0xe0] sm:$0xff] %v2028
      %2061 = vst [vmem:[%s197 + $0xe8] sm:$0xff] %v2029
      %2062 = vst [vmem:[%s197 + $0xf0] sm:$0xff] %v2030
      %2063 = vst [vmem:[%s197 + $0xf8] sm:$0xff] %v2031
      %v2064 = vld [vmem:[%s197] sm:$0xff]
      %v2065 = vld [vmem:[%s197 + $0x8] sm:$0xff]
      %v2066 = vld [vmem:[%s197 + $0x10] sm:$0xff]
      %v2067 = vld [vmem:[%s197 + $0x18] sm:$0xff]
      %v2068 = vld [vmem:[%s197 + $0x20] sm:$0xff]
      %v2069 = vld [vmem:[%s197 + $0x28] sm:$0xff]
      %v2070 = vld [vmem:[%s197 + $0x30] sm:$0xff]
      %v2071 = vld [vmem:[%s197 + $0x38] sm:$0xff]
      %v2072 = vld [vmem:[%s197 + $0x40] sm:$0xff]
      %v2073 = vld [vmem:[%s197 + $0x48] sm:$0xff]
      %v2074 = vld [vmem:[%s197 + $0x50] sm:$0xff]
      %v2075 = vld [vmem:[%s197 + $0x58] sm:$0xff]
      %v2076 = vld [vmem:[%s197 + $0x60] sm:$0xff]
      %v2077 = vld [vmem:[%s197 + $0x68] sm:$0xff]
      %v2078 = vld [vmem:[%s197 + $0x70] sm:$0xff]
      %v2079 = vld [vmem:[%s197 + $0x78] sm:$0xff]
      %v2080 = vld [vmem:[%s197 + $0x80] sm:$0xff]
      %v2081 = vld [vmem:[%s197 + $0x88] sm:$0xff]
      %v2082 = vld [vmem:[%s197 + $0x90] sm:$0xff]
      %v2083 = vld [vmem:[%s197 + $0x98] sm:$0xff]
      %v2084 = vld [vmem:[%s197 + $0xa0] sm:$0xff]
      %v2085 = vld [vmem:[%s197 + $0xa8] sm:$0xff]
      %v2086 = vld [vmem:[%s197 + $0xb0] sm:$0xff]
      %v2087 = vld [vmem:[%s197 + $0xb8] sm:$0xff]
      %v2088 = vld [vmem:[%s197 + $0xc0] sm:$0xff]
      %v2089 = vld [vmem:[%s197 + $0xc8] sm:$0xff]
      %v2090 = vld [vmem:[%s197 + $0xd0] sm:$0xff]
      %v2091 = vld [vmem:[%s197 + $0xd8] sm:$0xff]
      %v2092 = vld [vmem:[%s197 + $0xe0] sm:$0xff]
      %v2093 = vld [vmem:[%s197 + $0xe8] sm:$0xff]
      %v2094 = vld [vmem:[%s197 + $0xf0] sm:$0xff]
      %v2095 = vld [vmem:[%s197 + $0xf8] sm:$0xff]
      %v2096 = vld [vmem:[#allocation2 + $0x2] sm:$0xff]
      %v2097 = vld [vmem:[#allocation2 + $0xa] sm:$0xff]
      %v2098 = vld [vmem:[#allocation2 + $0x1a] sm:$0xff]
      %v2099 = vld [vmem:[#allocation2 + $0x22] sm:$0xff]
      %v2100 = vld [vmem:[#allocation2 + $0x32] sm:$0xff]
      %v2101 = vld [vmem:[#allocation2 + $0x3a] sm:$0xff]
      %v2102 = vld [vmem:[#allocation2 + $0x4a] sm:$0xff]
      %v2103 = vld [vmem:[#allocation2 + $0x52] sm:$0xff]
      %v2104 = vld [vmem:[#allocation2 + $0x62] sm:$0xff]
      %v2105 = vld [vmem:[#allocation2 + $0x6a] sm:$0xff]
      %v2106 = vld [vmem:[#allocation2 + $0x7a] sm:$0xff]
      %v2107 = vld [vmem:[#allocation2 + $0x82] sm:$0xff]
      %v2108 = vld [vmem:[#allocation2 + $0x92] sm:$0xff]
      %v2109 = vld [vmem:[#allocation2 + $0x9a] sm:$0xff]
      %v2110 = vld [vmem:[#allocation2 + $0xaa] sm:$0xff]
      %v2111 = vld [vmem:[#allocation2 + $0xb2] sm:$0xff]
      %v2112 = vld [vmem:[#allocation2 + $0xc2] sm:$0xff]
      %v2113 = vld [vmem:[#allocation2 + $0xca] sm:$0xff]
      %v2114 = vld [vmem:[#allocation2 + $0xda] sm:$0xff]
      %v2115 = vld [vmem:[#allocation2 + $0xe2] sm:$0xff]
      %v2116 = vld [vmem:[#allocation2 + $0xf2] sm:$0xff]
      %v2117 = vld [vmem:[#allocation2 + $0xfa] sm:$0xff]
      %v2118 = vld [vmem:[#allocation2 + $0x10a] sm:$0xff]
      %v2119 = vld [vmem:[#allocation2 + $0x112] sm:$0xff]
      %v2120 = vld [vmem:[#allocation2 + $0x122] sm:$0xff]
      %v2121 = vld [vmem:[#allocation2 + $0x12a] sm:$0xff]
      %v2122 = vld [vmem:[#allocation2 + $0x13a] sm:$0xff]
      %v2123 = vld [vmem:[#allocation2 + $0x142] sm:$0xff]
      %v2124 = vld [vmem:[#allocation2 + $0x152] sm:$0xff]
      %v2125 = vld [vmem:[#allocation2 + $0x15a] sm:$0xff]
      %v2126 = vld [vmem:[#allocation2 + $0x16a] sm:$0xff]
      %v2127 = vld [vmem:[#allocation2 + $0x172] sm:$0xff]
      %v2128 = vld [vmem:[%s3 + $0x2] sm:$0x1]
      %v2129 = vperm.slane %v2128, 0
      %v2130 = vmul.f32 %v2096, %v2129
      %v2131 = vmul.f32 %v2097, %v2129
      %v2132 = vmul.f32 %v2098, %v2129
      %v2133 = vmul.f32 %v2099, %v2129
      %v2134 = vmul.f32 %v2100, %v2129
      %v2135 = vmul.f32 %v2101, %v2129
      %v2136 = vmul.f32 %v2102, %v2129
      %v2137 = vmul.f32 %v2103, %v2129
      %v2138 = vmul.f32 %v2104, %v2129
      %v2139 = vmul.f32 %v2105, %v2129
      %v2140 = vmul.f32 %v2106, %v2129
      %v2141 = vmul.f32 %v2107, %v2129
      %v2142 = vmul.f32 %v2108, %v2129
      %v2143 = vmul.f32 %v2109, %v2129
      %v2144 = vmul.f32 %v2110, %v2129
      %v2145 = vmul.f32 %v2111, %v2129
      %v2146 = vmul.f32 %v2112, %v2129
      %v2147 = vmul.f32 %v2113, %v2129
      %v2148 = vmul.f32 %v2114, %v2129
      %v2149 = vmul.f32 %v2115, %v2129
      %v2150 = vmul.f32 %v2116, %v2129
      %v2151 = vmul.f32 %v2117, %v2129
      %v2152 = vmul.f32 %v2118, %v2129
      %v2153 = vmul.f32 %v2119, %v2129
      %v2154 = vmul.f32 %v2120, %v2129
      %v2155 = vmul.f32 %v2121, %v2129
      %v2156 = vmul.f32 %v2122, %v2129
      %v2157 = vmul.f32 %v2123, %v2129
      %v2158 = vmul.f32 %v2124, %v2129
      %v2159 = vmul.f32 %v2125, %v2129
      %v2160 = vmul.f32 %v2126, %v2129
      %v2161 = vmul.f32 %v2127, %v2129
      %v2162 = vadd.f32 %v2064, %v2130
      %v2163 = vadd.f32 %v2065, %v2131
      %v2164 = vadd.f32 %v2066, %v2132
      %v2165 = vadd.f32 %v2067, %v2133
      %v2166 = vadd.f32 %v2068, %v2134
      %v2167 = vadd.f32 %v2069, %v2135
      %v2168 = vadd.f32 %v2070, %v2136
      %v2169 = vadd.f32 %v2071, %v2137
      %v2170 = vadd.f32 %v2072, %v2138
      %v2171 = vadd.f32 %v2073, %v2139
      %v2172 = vadd.f32 %v2074, %v2140
      %v2173 = vadd.f32 %v2075, %v2141
      %v2174 = vadd.f32 %v2076, %v2142
      %v2175 = vadd.f32 %v2077, %v2143
      %v2176 = vadd.f32 %v2078, %v2144
      %v2177 = vadd.f32 %v2079, %v2145
      %v2178 = vadd.f32 %v2080, %v2146
      %v2179 = vadd.f32 %v2081, %v2147
      %v2180 = vadd.f32 %v2082, %v2148
      %v2181 = vadd.f32 %v2083, %v2149
      %v2182 = vadd.f32 %v2084, %v2150
      %v2183 = vadd.f32 %v2085, %v2151
      %v2184 = vadd.f32 %v2086, %v2152
      %v2185 = vadd.f32 %v2087, %v2153
      %v2186 = vadd.f32 %v2088, %v2154
      %v2187 = vadd.f32 %v2089, %v2155
      %v2188 = vadd.f32 %v2090, %v2156
      %v2189 = vadd.f32 %v2091, %v2157
      %v2190 = vadd.f32 %v2092, %v2158
      %v2191 = vadd.f32 %v2093, %v2159
      %v2192 = vadd.f32 %v2094, %v2160
      %v2193 = vadd.f32 %v2095, %v2161
      %2194 = vst [vmem:[%s197] sm:$0xff] %v2162
      %2195 = vst [vmem:[%s197 + $0x8] sm:$0xff] %v2163
      %2196 = vst [vmem:[%s197 + $0x10] sm:$0xff] %v2164
      %2197 = vst [vmem:[%s197 + $0x18] sm:$0xff] %v2165
      %2198 = vst [vmem:[%s197 + $0x20] sm:$0xff] %v2166
      %2199 = vst [vmem:[%s197 + $0x28] sm:$0xff] %v2167
      %2200 = vst [vmem:[%s197 + $0x30] sm:$0xff] %v2168
      %2201 = vst [vmem:[%s197 + $0x38] sm:$0xff] %v2169
      %2202 = vst [vmem:[%s197 + $0x40] sm:$0xff] %v2170
      %2203 = vst [vmem:[%s197 + $0x48] sm:$0xff] %v2171
      %2204 = vst [vmem:[%s197 + $0x50] sm:$0xff] %v2172
      %2205 = vst [vmem:[%s197 + $0x58] sm:$0xff] %v2173
      %2206 = vst [vmem:[%s197 + $0x60] sm:$0xff] %v2174
      %2207 = vst [vmem:[%s197 + $0x68] sm:$0xff] %v2175
      %2208 = vst [vmem:[%s197 + $0x70] sm:$0xff] %v2176
      %2209 = vst [vmem:[%s197 + $0x78] sm:$0xff] %v2177
      %2210 = vst [vmem:[%s197 + $0x80] sm:$0xff] %v2178
      %2211 = vst [vmem:[%s197 + $0x88] sm:$0xff] %v2179
      %2212 = vst [vmem:[%s197 + $0x90] sm:$0xff] %v2180
      %2213 = vst [vmem:[%s197 + $0x98] sm:$0xff] %v2181
      %2214 = vst [vmem:[%s197 + $0xa0] sm:$0xff] %v2182
      %2215 = vst [vmem:[%s197 + $0xa8] sm:$0xff] %v2183
      %2216 = vst [vmem:[%s197 + $0xb0] sm:$0xff] %v2184
      %2217 = vst [vmem:[%s197 + $0xb8] sm:$0xff] %v2185
      %2218 = vst [vmem:[%s197 + $0xc0] sm:$0xff] %v2186
      %2219 = vst [vmem:[%s197 + $0xc8] sm:$0xff] %v2187
      %2220 = vst [vmem:[%s197 + $0xd0] sm:$0xff] %v2188
      %2221 = vst [vmem:[%s197 + $0xd8] sm:$0xff] %v2189
      %2222 = vst [vmem:[%s197 + $0xe0] sm:$0xff] %v2190
      %2223 = vst [vmem:[%s197 + $0xe8] sm:$0xff] %v2191
      %2224 = vst [vmem:[%s197 + $0xf0] sm:$0xff] %v2192
      %2225 = vst [vmem:[%s197 + $0xf8] sm:$0xff] %v2193
      %v2226 = vld [vmem:[%s197] sm:$0xff]
      %v2227 = vld [vmem:[%s197 + $0x8] sm:$0xff]
      %v2228 = vld [vmem:[%s197 + $0x10] sm:$0xff]
      %v2229 = vld [vmem:[%s197 + $0x18] sm:$0xff]
      %v2230 = vld [vmem:[%s197 + $0x20] sm:$0xff]
      %v2231 = vld [vmem:[%s197 + $0x28] sm:$0xff]
      %v2232 = vld [vmem:[%s197 + $0x30] sm:$0xff]
      %v2233 = vld [vmem:[%s197 + $0x38] sm:$0xff]
      %v2234 = vld [vmem:[%s197 + $0x40] sm:$0xff]
      %v2235 = vld [vmem:[%s197 + $0x48] sm:$0xff]
      %v2236 = vld [vmem:[%s197 + $0x50] sm:$0xff]
      %v2237 = vld [vmem:[%s197 + $0x58] sm:$0xff]
      %v2238 = vld [vmem:[%s197 + $0x60] sm:$0xff]
      %v2239 = vld [vmem:[%s197 + $0x68] sm:$0xff]
      %v2240 = vld [vmem:[%s197 + $0x70] sm:$0xff]
      %v2241 = vld [vmem:[%s197 + $0x78] sm:$0xff]
      %v2242 = vld [vmem:[%s197 + $0x80] sm:$0xff]
      %v2243 = vld [vmem:[%s197 + $0x88] sm:$0xff]
      %v2244 = vld [vmem:[%s197 + $0x90] sm:$0xff]
      %v2245 = vld [vmem:[%s197 + $0x98] sm:$0xff]
      %v2246 = vld [vmem:[%s197 + $0xa0] sm:$0xff]
      %v2247 = vld [vmem:[%s197 + $0xa8] sm:$0xff]
      %v2248 = vld [vmem:[%s197 + $0xb0] sm:$0xff]
      %v2249 = vld [vmem:[%s197 + $0xb8] sm:$0xff]
      %v2250 = vld [vmem:[%s197 + $0xc0] sm:$0xff]
      %v2251 = vld [vmem:[%s197 + $0xc8] sm:$0xff]
      %v2252 = vld [vmem:[%s197 + $0xd0] sm:$0xff]
      %v2253 = vld [vmem:[%s197 + $0xd8] sm:$0xff]
      %v2254 = vld [vmem:[%s197 + $0xe0] sm:$0xff]
      %v2255 = vld [vmem:[%s197 + $0xe8] sm:$0xff]
      %v2256 = vld [vmem:[%s197 + $0xf0] sm:$0xff]
      %v2257 = vld [vmem:[%s197 + $0xf8] sm:$0xff]
      %v2258 = vld [vmem:[%s1771] sm:$0xff]
      %v2259 = vld [vmem:[%s1771 + $0x8] sm:$0xff]
      %v2260 = vld [vmem:[%s1771 + $0x18] sm:$0xff]
      %v2261 = vld [vmem:[%s1771 + $0x20] sm:$0xff]
      %v2262 = vld [vmem:[%s1771 + $0x30] sm:$0xff]
      %v2263 = vld [vmem:[%s1771 + $0x38] sm:$0xff]
      %v2264 = vld [vmem:[%s1771 + $0x48] sm:$0xff]
      %v2265 = vld [vmem:[%s1771 + $0x50] sm:$0xff]
      %v2266 = vld [vmem:[%s1771 + $0x60] sm:$0xff]
      %v2267 = vld [vmem:[%s1771 + $0x68] sm:$0xff]
      %v2268 = vld [vmem:[%s1771 + $0x78] sm:$0xff]
      %v2269 = vld [vmem:[%s1771 + $0x80] sm:$0xff]
      %v2270 = vld [vmem:[%s1771 + $0x90] sm:$0xff]
      %v2271 = vld [vmem:[%s1771 + $0x98] sm:$0xff]
      %v2272 = vld [vmem:[%s1771 + $0xa8] sm:$0xff]
      %v2273 = vld [vmem:[%s1771 + $0xb0] sm:$0xff]
      %v2274 = vld [vmem:[%s1771 + $0xc0] sm:$0xff]
      %v2275 = vld [vmem:[%s1771 + $0xc8] sm:$0xff]
      %v2276 = vld [vmem:[%s1771 + $0xd8] sm:$0xff]
      %v2277 = vld [vmem:[%s1771 + $0xe0] sm:$0xff]
      %v2278 = vld [vmem:[%s1771 + $0xf0] sm:$0xff]
      %v2279 = vld [vmem:[%s1771 + $0xf8] sm:$0xff]
      %v2280 = vld [vmem:[%s1771 + $0x108] sm:$0xff]
      %v2281 = vld [vmem:[%s1771 + $0x110] sm:$0xff]
      %v2282 = vld [vmem:[%s1771 + $0x120] sm:$0xff]
      %v2283 = vld [vmem:[%s1771 + $0x128] sm:$0xff]
      %v2284 = vld [vmem:[%s1771 + $0x138] sm:$0xff]
      %v2285 = vld [vmem:[%s1771 + $0x140] sm:$0xff]
      %v2286 = vld [vmem:[%s1771 + $0x150] sm:$0xff]
      %v2287 = vld [vmem:[%s1771 + $0x158] sm:$0xff]
      %v2288 = vld [vmem:[%s1771 + $0x168] sm:$0xff]
      %v2289 = vld [vmem:[%s1771 + $0x170] sm:$0xff]
      %v2290 = vld [vmem:[%s3 + $0x3] sm:$0x1]
      %v2291 = vperm.slane %v2290, 0
      %v2292 = vmul.f32 %v2258, %v2291
      %v2293 = vmul.f32 %v2259, %v2291
      %v2294 = vmul.f32 %v2260, %v2291
      %v2295 = vmul.f32 %v2261, %v2291
      %v2296 = vmul.f32 %v2262, %v2291
      %v2297 = vmul.f32 %v2263, %v2291
      %v2298 = vmul.f32 %v2264, %v2291
      %v2299 = vmul.f32 %v2265, %v2291
      %v2300 = vmul.f32 %v2266, %v2291
      %v2301 = vmul.f32 %v2267, %v2291
      %v2302 = vmul.f32 %v2268, %v2291
      %v2303 = vmul.f32 %v2269, %v2291
      %v2304 = vmul.f32 %v2270, %v2291
      %v2305 = vmul.f32 %v2271, %v2291
      %v2306 = vmul.f32 %v2272, %v2291
      %v2307 = vmul.f32 %v2273, %v2291
      %v2308 = vmul.f32 %v2274, %v2291
      %v2309 = vmul.f32 %v2275, %v2291
      %v2310 = vmul.f32 %v2276, %v2291
      %v2311 = vmul.f32 %v2277, %v2291
      %v2312 = vmul.f32 %v2278, %v2291
      %v2313 = vmul.f32 %v2279, %v2291
      %v2314 = vmul.f32 %v2280, %v2291
      %v2315 = vmul.f32 %v2281, %v2291
      %v2316 = vmul.f32 %v2282, %v2291
      %v2317 = vmul.f32 %v2283, %v2291
      %v2318 = vmul.f32 %v2284, %v2291
      %v2319 = vmul.f32 %v2285, %v2291
      %v2320 = vmul.f32 %v2286, %v2291
      %v2321 = vmul.f32 %v2287, %v2291
      %v2322 = vmul.f32 %v2288, %v2291
      %v2323 = vmul.f32 %v2289, %v2291
      %v2324 = vadd.f32 %v2226, %v2292
      %v2325 = vadd.f32 %v2227, %v2293
      %v2326 = vadd.f32 %v2228, %v2294
      %v2327 = vadd.f32 %v2229, %v2295
      %v2328 = vadd.f32 %v2230, %v2296
      %v2329 = vadd.f32 %v2231, %v2297
      %v2330 = vadd.f32 %v2232, %v2298
      %v2331 = vadd.f32 %v2233, %v2299
      %v2332 = vadd.f32 %v2234, %v2300
      %v2333 = vadd.f32 %v2235, %v2301
      %v2334 = vadd.f32 %v2236, %v2302
      %v2335 = vadd.f32 %v2237, %v2303
      %v2336 = vadd.f32 %v2238, %v2304
      %v2337 = vadd.f32 %v2239, %v2305
      %v2338 = vadd.f32 %v2240, %v2306
      %v2339 = vadd.f32 %v2241, %v2307
      %v2340 = vadd.f32 %v2242, %v2308
      %v2341 = vadd.f32 %v2243, %v2309
      %v2342 = vadd.f32 %v2244, %v2310
      %v2343 = vadd.f32 %v2245, %v2311
      %v2344 = vadd.f32 %v2246, %v2312
      %v2345 = vadd.f32 %v2247, %v2313
      %v2346 = vadd.f32 %v2248, %v2314
      %v2347 = vadd.f32 %v2249, %v2315
      %v2348 = vadd.f32 %v2250, %v2316
      %v2349 = vadd.f32 %v2251, %v2317
      %v2350 = vadd.f32 %v2252, %v2318
      %v2351 = vadd.f32 %v2253, %v2319
      %v2352 = vadd.f32 %v2254, %v2320
      %v2353 = vadd.f32 %v2255, %v2321
      %v2354 = vadd.f32 %v2256, %v2322
      %v2355 = vadd.f32 %v2257, %v2323
      %2356 = vst [vmem:[%s197] sm:$0xff] %v2324
      %2357 = vst [vmem:[%s197 + $0x8] sm:$0xff] %v2325
      %2358 = vst [vmem:[%s197 + $0x10] sm:$0xff] %v2326
      %2359 = vst [vmem:[%s197 + $0x18] sm:$0xff] %v2327
      %2360 = vst [vmem:[%s197 + $0x20] sm:$0xff] %v2328
      %2361 = vst [vmem:[%s197 + $0x28] sm:$0xff] %v2329
      %2362 = vst [vmem:[%s197 + $0x30] sm:$0xff] %v2330
      %2363 = vst [vmem:[%s197 + $0x38] sm:$0xff] %v2331
      %2364 = vst [vmem:[%s197 + $0x40] sm:$0xff] %v2332
      %2365 = vst [vmem:[%s197 + $0x48] sm:$0xff] %v2333
      %2366 = vst [vmem:[%s197 + $0x50] sm:$0xff] %v2334
      %2367 = vst [vmem:[%s197 + $0x58] sm:$0xff] %v2335
      %2368 = vst [vmem:[%s197 + $0x60] sm:$0xff] %v2336
      %2369 = vst [vmem:[%s197 + $0x68] sm:$0xff] %v2337
      %2370 = vst [vmem:[%s197 + $0x70] sm:$0xff] %v2338
      %2371 = vst [vmem:[%s197 + $0x78] sm:$0xff] %v2339
      %2372 = vst [vmem:[%s197 + $0x80] sm:$0xff] %v2340
      %2373 = vst [vmem:[%s197 + $0x88] sm:$0xff] %v2341
      %2374 = vst [vmem:[%s197 + $0x90] sm:$0xff] %v2342
      %2375 = vst [vmem:[%s197 + $0x98] sm:$0xff] %v2343
      %2376 = vst [vmem:[%s197 + $0xa0] sm:$0xff] %v2344
      %2377 = vst [vmem:[%s197 + $0xa8] sm:$0xff] %v2345
      %2378 = vst [vmem:[%s197 + $0xb0] sm:$0xff] %v2346
      %2379 = vst [vmem:[%s197 + $0xb8] sm:$0xff] %v2347
      %2380 = vst [vmem:[%s197 + $0xc0] sm:$0xff] %v2348
      %2381 = vst [vmem:[%s197 + $0xc8] sm:$0xff] %v2349
      %2382 = vst [vmem:[%s197 + $0xd0] sm:$0xff] %v2350
      %2383 = vst [vmem:[%s197 + $0xd8] sm:$0xff] %v2351
      %2384 = vst [vmem:[%s197 + $0xe0] sm:$0xff] %v2352
      %2385 = vst [vmem:[%s197 + $0xe8] sm:$0xff] %v2353
      %2386 = vst [vmem:[%s197 + $0xf0] sm:$0xff] %v2354
      %2387 = vst [vmem:[%s197 + $0xf8] sm:$0xff] %v2355
      %v2388 = vld [vmem:[%s197] sm:$0xff]
      %v2389 = vld [vmem:[%s197 + $0x8] sm:$0xff]
      %v2390 = vld [vmem:[%s197 + $0x10] sm:$0xff]
      %v2391 = vld [vmem:[%s197 + $0x18] sm:$0xff]
      %v2392 = vld [vmem:[%s197 + $0x20] sm:$0xff]
      %v2393 = vld [vmem:[%s197 + $0x28] sm:$0xff]
      %v2394 = vld [vmem:[%s197 + $0x30] sm:$0xff]
      %v2395 = vld [vmem:[%s197 + $0x38] sm:$0xff]
      %v2396 = vld [vmem:[%s197 + $0x40] sm:$0xff]
      %v2397 = vld [vmem:[%s197 + $0x48] sm:$0xff]
      %v2398 = vld [vmem:[%s197 + $0x50] sm:$0xff]
      %v2399 = vld [vmem:[%s197 + $0x58] sm:$0xff]
      %v2400 = vld [vmem:[%s197 + $0x60] sm:$0xff]
      %v2401 = vld [vmem:[%s197 + $0x68] sm:$0xff]
      %v2402 = vld [vmem:[%s197 + $0x70] sm:$0xff]
      %v2403 = vld [vmem:[%s197 + $0x78] sm:$0xff]
      %v2404 = vld [vmem:[%s197 + $0x80] sm:$0xff]
      %v2405 = vld [vmem:[%s197 + $0x88] sm:$0xff]
      %v2406 = vld [vmem:[%s197 + $0x90] sm:$0xff]
      %v2407 = vld [vmem:[%s197 + $0x98] sm:$0xff]
      %v2408 = vld [vmem:[%s197 + $0xa0] sm:$0xff]
      %v2409 = vld [vmem:[%s197 + $0xa8] sm:$0xff]
      %v2410 = vld [vmem:[%s197 + $0xb0] sm:$0xff]
      %v2411 = vld [vmem:[%s197 + $0xb8] sm:$0xff]
      %v2412 = vld [vmem:[%s197 + $0xc0] sm:$0xff]
      %v2413 = vld [vmem:[%s197 + $0xc8] sm:$0xff]
      %v2414 = vld [vmem:[%s197 + $0xd0] sm:$0xff]
      %v2415 = vld [vmem:[%s197 + $0xd8] sm:$0xff]
      %v2416 = vld [vmem:[%s197 + $0xe0] sm:$0xff]
      %v2417 = vld [vmem:[%s197 + $0xe8] sm:$0xff]
      %v2418 = vld [vmem:[%s197 + $0xf0] sm:$0xff]
      %v2419 = vld [vmem:[%s197 + $0xf8] sm:$0xff]
      %v2420 = vld [vmem:[%s1771 + $0x1] sm:$0xff]
      %v2421 = vld [vmem:[%s1771 + $0x9] sm:$0xff]
      %v2422 = vld [vmem:[%s1771 + $0x19] sm:$0xff]
      %v2423 = vld [vmem:[%s1771 + $0x21] sm:$0xff]
      %v2424 = vld [vmem:[%s1771 + $0x31] sm:$0xff]
      %v2425 = vld [vmem:[%s1771 + $0x39] sm:$0xff]
      %v2426 = vld [vmem:[%s1771 + $0x49] sm:$0xff]
      %v2427 = vld [vmem:[%s1771 + $0x51] sm:$0xff]
      %v2428 = vld [vmem:[%s1771 + $0x61] sm:$0xff]
      %v2429 = vld [vmem:[%s1771 + $0x69] sm:$0xff]
      %v2430 = vld [vmem:[%s1771 + $0x79] sm:$0xff]
      %v2431 = vld [vmem:[%s1771 + $0x81] sm:$0xff]
      %v2432 = vld [vmem:[%s1771 + $0x91] sm:$0xff]
      %v2433 = vld [vmem:[%s1771 + $0x99] sm:$0xff]
      %v2434 = vld [vmem:[%s1771 + $0xa9] sm:$0xff]
      %v2435 = vld [vmem:[%s1771 + $0xb1] sm:$0xff]
      %v2436 = vld [vmem:[%s1771 + $0xc1] sm:$0xff]
      %v2437 = vld [vmem:[%s1771 + $0xc9] sm:$0xff]
      %v2438 = vld [vmem:[%s1771 + $0xd9] sm:$0xff]
      %v2439 = vld [vmem:[%s1771 + $0xe1] sm:$0xff]
      %v2440 = vld [vmem:[%s1771 + $0xf1] sm:$0xff]
      %v2441 = vld [vmem:[%s1771 + $0xf9] sm:$0xff]
      %v2442 = vld [vmem:[%s1771 + $0x109] sm:$0xff]
      %v2443 = vld [vmem:[%s1771 + $0x111] sm:$0xff]
      %v2444 = vld [vmem:[%s1771 + $0x121] sm:$0xff]
      %v2445 = vld [vmem:[%s1771 + $0x129] sm:$0xff]
      %v2446 = vld [vmem:[%s1771 + $0x139] sm:$0xff]
      %v2447 = vld [vmem:[%s1771 + $0x141] sm:$0xff]
      %v2448 = vld [vmem:[%s1771 + $0x151] sm:$0xff]
      %v2449 = vld [vmem:[%s1771 + $0x159] sm:$0xff]
      %v2450 = vld [vmem:[%s1771 + $0x169] sm:$0xff]
      %v2451 = vld [vmem:[%s1771 + $0x171] sm:$0xff]
      %v2452 = vld [vmem:[%s3 + $0x4] sm:$0x1]
      %v2453 = vperm.slane %v2452, 0
      %v2454 = vmul.f32 %v2420, %v2453
      %v2455 = vmul.f32 %v2421, %v2453
      %v2456 = vmul.f32 %v2422, %v2453
      %v2457 = vmul.f32 %v2423, %v2453
      %v2458 = vmul.f32 %v2424, %v2453
      %v2459 = vmul.f32 %v2425, %v2453
      %v2460 = vmul.f32 %v2426, %v2453
      %v2461 = vmul.f32 %v2427, %v2453
      %v2462 = vmul.f32 %v2428, %v2453
      %v2463 = vmul.f32 %v2429, %v2453
      %v2464 = vmul.f32 %v2430, %v2453
      %v2465 = vmul.f32 %v2431, %v2453
      %v2466 = vmul.f32 %v2432, %v2453
      %v2467 = vmul.f32 %v2433, %v2453
      %v2468 = vmul.f32 %v2434, %v2453
      %v2469 = vmul.f32 %v2435, %v2453
      %v2470 = vmul.f32 %v2436, %v2453
      %v2471 = vmul.f32 %v2437, %v2453
      %v2472 = vmul.f32 %v2438, %v2453
      %v2473 = vmul.f32 %v2439, %v2453
      %v2474 = vmul.f32 %v2440, %v2453
      %v2475 = vmul.f32 %v2441, %v2453
      %v2476 = vmul.f32 %v2442, %v2453
      %v2477 = vmul.f32 %v2443, %v2453
      %v2478 = vmul.f32 %v2444, %v2453
      %v2479 = vmul.f32 %v2445, %v2453
      %v2480 = vmul.f32 %v2446, %v2453
      %v2481 = vmul.f32 %v2447, %v2453
      %v2482 = vmul.f32 %v2448, %v2453
      %v2483 = vmul.f32 %v2449, %v2453
      %v2484 = vmul.f32 %v2450, %v2453
      %v2485 = vmul.f32 %v2451, %v2453
      %v2486 = vadd.f32 %v2388, %v2454
      %v2487 = vadd.f32 %v2389, %v2455
      %v2488 = vadd.f32 %v2390, %v2456
      %v2489 = vadd.f32 %v2391, %v2457
      %v2490 = vadd.f32 %v2392, %v2458
      %v2491 = vadd.f32 %v2393, %v2459
      %v2492 = vadd.f32 %v2394, %v2460
      %v2493 = vadd.f32 %v2395, %v2461
      %v2494 = vadd.f32 %v2396, %v2462
      %v2495 = vadd.f32 %v2397, %v2463
      %v2496 = vadd.f32 %v2398, %v2464
      %v2497 = vadd.f32 %v2399, %v2465
      %v2498 = vadd.f32 %v2400, %v2466
      %v2499 = vadd.f32 %v2401, %v2467
      %v2500 = vadd.f32 %v2402, %v2468
      %v2501 = vadd.f32 %v2403, %v2469
      %v2502 = vadd.f32 %v2404, %v2470
      %v2503 = vadd.f32 %v2405, %v2471
      %v2504 = vadd.f32 %v2406, %v2472
      %v2505 = vadd.f32 %v2407, %v2473
      %v2506 = vadd.f32 %v2408, %v2474
      %v2507 = vadd.f32 %v2409, %v2475
      %v2508 = vadd.f32 %v2410, %v2476
      %v2509 = vadd.f32 %v2411, %v2477
      %v2510 = vadd.f32 %v2412, %v2478
      %v2511 = vadd.f32 %v2413, %v2479
      %v2512 = vadd.f32 %v2414, %v2480
      %v2513 = vadd.f32 %v2415, %v2481
      %v2514 = vadd.f32 %v2416, %v2482
      %v2515 = vadd.f32 %v2417, %v2483
      %v2516 = vadd.f32 %v2418, %v2484
      %v2517 = vadd.f32 %v2419, %v2485
      %2518 = vst [vmem:[%s197] sm:$0xff] %v2486
      %2519 = vst [vmem:[%s197 + $0x8] sm:$0xff] %v2487
      %2520 = vst [vmem:[%s197 + $0x10] sm:$0xff] %v2488
      %2521 = vst [vmem:[%s197 + $0x18] sm:$0xff] %v2489
      %2522 = vst [vmem:[%s197 + $0x20] sm:$0xff] %v2490
      %2523 = vst [vmem:[%s197 + $0x28] sm:$0xff] %v2491
      %2524 = vst [vmem:[%s197 + $0x30] sm:$0xff] %v2492
      %2525 = vst [vmem:[%s197 + $0x38] sm:$0xff] %v2493
      %2526 = vst [vmem:[%s197 + $0x40] sm:$0xff] %v2494
      %2527 = vst [vmem:[%s197 + $0x48] sm:$0xff] %v2495
      %2528 = vst [vmem:[%s197 + $0x50] sm:$0xff] %v2496
      %2529 = vst [vmem:[%s197 + $0x58] sm:$0xff] %v2497
      %2530 = vst [vmem:[%s197 + $0x60] sm:$0xff] %v2498
      %2531 = vst [vmem:[%s197 + $0x68] sm:$0xff] %v2499
      %2532 = vst [vmem:[%s197 + $0x70] sm:$0xff] %v2500
      %2533 = vst [vmem:[%s197 + $0x78] sm:$0xff] %v2501
      %2534 = vst [vmem:[%s197 + $0x80] sm:$0xff] %v2502
      %2535 = vst [vmem:[%s197 + $0x88] sm:$0xff] %v2503
      %2536 = vst [vmem:[%s197 + $0x90] sm:$0xff] %v2504
      %2537 = vst [vmem:[%s197 + $0x98] sm:$0xff] %v2505
      %2538 = vst [vmem:[%s197 + $0xa0] sm:$0xff] %v2506
      %2539 = vst [vmem:[%s197 + $0xa8] sm:$0xff] %v2507
      %2540 = vst [vmem:[%s197 + $0xb0] sm:$0xff] %v2508
      %2541 = vst [vmem:[%s197 + $0xb8] sm:$0xff] %v2509
      %2542 = vst [vmem:[%s197 + $0xc0] sm:$0xff] %v2510
      %2543 = vst [vmem:[%s197 + $0xc8] sm:$0xff] %v2511
      %2544 = vst [vmem:[%s197 + $0xd0] sm:$0xff] %v2512
      %2545 = vst [vmem:[%s197 + $0xd8] sm:$0xff] %v2513
      %2546 = vst [vmem:[%s197 + $0xe0] sm:$0xff] %v2514
      %2547 = vst [vmem:[%s197 + $0xe8] sm:$0xff] %v2515
      %2548 = vst [vmem:[%s197 + $0xf0] sm:$0xff] %v2516
      %2549 = vst [vmem:[%s197 + $0xf8] sm:$0xff] %v2517
      %v2550 = vld [vmem:[%s197] sm:$0xff]
      %v2551 = vld [vmem:[%s197 + $0x8] sm:$0xff]
      %v2552 = vld [vmem:[%s197 + $0x10] sm:$0xff]
      %v2553 = vld [vmem:[%s197 + $0x18] sm:$0xff]
      %v2554 = vld [vmem:[%s197 + $0x20] sm:$0xff]
      %v2555 = vld [vmem:[%s197 + $0x28] sm:$0xff]
      %v2556 = vld [vmem:[%s197 + $0x30] sm:$0xff]
      %v2557 = vld [vmem:[%s197 + $0x38] sm:$0xff]
      %v2558 = vld [vmem:[%s197 + $0x40] sm:$0xff]
      %v2559 = vld [vmem:[%s197 + $0x48] sm:$0xff]
      %v2560 = vld [vmem:[%s197 + $0x50] sm:$0xff]
      %v2561 = vld [vmem:[%s197 + $0x58] sm:$0xff]
      %v2562 = vld [vmem:[%s197 + $0x60] sm:$0xff]
      %v2563 = vld [vmem:[%s197 + $0x68] sm:$0xff]
      %v2564 = vld [vmem:[%s197 + $0x70] sm:$0xff]
      %v2565 = vld [vmem:[%s197 + $0x78] sm:$0xff]
      %v2566 = vld [vmem:[%s197 + $0x80] sm:$0xff]
      %v2567 = vld [vmem:[%s197 + $0x88] sm:$0xff]
      %v2568 = vld [vmem:[%s197 + $0x90] sm:$0xff]
      %v2569 = vld [vmem:[%s197 + $0x98] sm:$0xff]
      %v2570 = vld [vmem:[%s197 + $0xa0] sm:$0xff]
      %v2571 = vld [vmem:[%s197 + $0xa8] sm:$0xff]
      %v2572 = vld [vmem:[%s197 + $0xb0] sm:$0xff]
      %v2573 = vld [vmem:[%s197 + $0xb8] sm:$0xff]
      %v2574 = vld [vmem:[%s197 + $0xc0] sm:$0xff]
      %v2575 = vld [vmem:[%s197 + $0xc8] sm:$0xff]
      %v2576 = vld [vmem:[%s197 + $0xd0] sm:$0xff]
      %v2577 = vld [vmem:[%s197 + $0xd8] sm:$0xff]
      %v2578 = vld [vmem:[%s197 + $0xe0] sm:$0xff]
      %v2579 = vld [vmem:[%s197 + $0xe8] sm:$0xff]
      %v2580 = vld [vmem:[%s197 + $0xf0] sm:$0xff]
      %v2581 = vld [vmem:[%s197 + $0xf8] sm:$0xff]
      %v2582 = vld [vmem:[%s1771 + $0x2] sm:$0xff]
      %v2583 = vld [vmem:[%s1771 + $0xa] sm:$0xff]
      %v2584 = vld [vmem:[%s1771 + $0x1a] sm:$0xff]
      %v2585 = vld [vmem:[%s1771 + $0x22] sm:$0xff]
      %v2586 = vld [vmem:[%s1771 + $0x32] sm:$0xff]
      %v2587 = vld [vmem:[%s1771 + $0x3a] sm:$0xff]
      %v2588 = vld [vmem:[%s1771 + $0x4a] sm:$0xff]
      %v2589 = vld [vmem:[%s1771 + $0x52] sm:$0xff]
      %v2590 = vld [vmem:[%s1771 + $0x62] sm:$0xff]
      %v2591 = vld [vmem:[%s1771 + $0x6a] sm:$0xff]
      %v2592 = vld [vmem:[%s1771 + $0x7a] sm:$0xff]
      %v2593 = vld [vmem:[%s1771 + $0x82] sm:$0xff]
      %v2594 = vld [vmem:[%s1771 + $0x92] sm:$0xff]
      %v2595 = vld [vmem:[%s1771 + $0x9a] sm:$0xff]
      %v2596 = vld [vmem:[%s1771 + $0xaa] sm:$0xff]
      %v2597 = vld [vmem:[%s1771 + $0xb2] sm:$0xff]
      %v2598 = vld [vmem:[%s1771 + $0xc2] sm:$0xff]
      %v2599 = vld [vmem:[%s1771 + $0xca] sm:$0xff]
      %v2600 = vld [vmem:[%s1771 + $0xda] sm:$0xff]
      %v2601 = vld [vmem:[%s1771 + $0xe2] sm:$0xff]
      %v2602 = vld [vmem:[%s1771 + $0xf2] sm:$0xff]
      %v2603 = vld [vmem:[%s1771 + $0xfa] sm:$0xff]
      %v2604 = vld [vmem:[%s1771 + $0x10a] sm:$0xff]
      %v2605 = vld [vmem:[%s1771 + $0x112] sm:$0xff]
      %v2606 = vld [vmem:[%s1771 + $0x122] sm:$0xff]
      %v2607 = vld [vmem:[%s1771 + $0x12a] sm:$0xff]
      %v2608 = vld [vmem:[%s1771 + $0x13a] sm:$0xff]
      %v2609 = vld [vmem:[%s1771 + $0x142] sm:$0xff]
      %v2610 = vld [vmem:[%s1771 + $0x152] sm:$0xff]
      %v2611 = vld [vmem:[%s1771 + $0x15a] sm:$0xff]
      %v2612 = vld [vmem:[%s1771 + $0x16a] sm:$0xff]
      %v2613 = vld [vmem:[%s1771 + $0x172] sm:$0xff]
      %v2614 = vld [vmem:[%s3 + $0x5] sm:$0x1]
      %v2615 = vperm.slane %v2614, 0
      %v2616 = vmul.f32 %v2582, %v2615
      %v2617 = vmul.f32 %v2583, %v2615
      %v2618 = vmul.f32 %v2584, %v2615
      %v2619 = vmul.f32 %v2585, %v2615
      %v2620 = vmul.f32 %v2586, %v2615
      %v2621 = vmul.f32 %v2587, %v2615
      %v2622 = vmul.f32 %v2588, %v2615
      %v2623 = vmul.f32 %v2589, %v2615
      %v2624 = vmul.f32 %v2590, %v2615
      %v2625 = vmul.f32 %v2591, %v2615
      %v2626 = vmul.f32 %v2592, %v2615
      %v2627 = vmul.f32 %v2593, %v2615
      %v2628 = vmul.f32 %v2594, %v2615
      %v2629 = vmul.f32 %v2595, %v2615
      %v2630 = vmul.f32 %v2596, %v2615
      %v2631 = vmul.f32 %v2597, %v2615
      %v2632 = vmul.f32 %v2598, %v2615
      %v2633 = vmul.f32 %v2599, %v2615
      %v2634 = vmul.f32 %v2600, %v2615
      %v2635 = vmul.f32 %v2601, %v2615
      %v2636 = vmul.f32 %v2602, %v2615
      %v2637 = vmul.f32 %v2603, %v2615
      %v2638 = vmul.f32 %v2604, %v2615
      %v2639 = vmul.f32 %v2605, %v2615
      %v2640 = vmul.f32 %v2606, %v2615
      %v2641 = vmul.f32 %v2607, %v2615
      %v2642 = vmul.f32 %v2608, %v2615
      %v2643 = vmul.f32 %v2609, %v2615
      %v2644 = vmul.f32 %v2610, %v2615
      %v2645 = vmul.f32 %v2611, %v2615
      %v2646 = vmul.f32 %v2612, %v2615
      %v2647 = vmul.f32 %v2613, %v2615
      %v2648 = vadd.f32 %v2550, %v2616
      %v2649 = vadd.f32 %v2551, %v2617
      %v2650 = vadd.f32 %v2552, %v2618
      %v2651 = vadd.f32 %v2553, %v2619
      %v2652 = vadd.f32 %v2554, %v2620
      %v2653 = vadd.f32 %v2555, %v2621
      %v2654 = vadd.f32 %v2556, %v2622
      %v2655 = vadd.f32 %v2557, %v2623
      %v2656 = vadd.f32 %v2558, %v2624
      %v2657 = vadd.f32 %v2559, %v2625
      %v2658 = vadd.f32 %v2560, %v2626
      %v2659 = vadd.f32 %v2561, %v2627
      %v2660 = vadd.f32 %v2562, %v2628
      %v2661 = vadd.f32 %v2563, %v2629
      %v2662 = vadd.f32 %v2564, %v2630
      %v2663 = vadd.f32 %v2565, %v2631
      %v2664 = vadd.f32 %v2566, %v2632
      %v2665 = vadd.f32 %v2567, %v2633
      %v2666 = vadd.f32 %v2568, %v2634
      %v2667 = vadd.f32 %v2569, %v2635
      %v2668 = vadd.f32 %v2570, %v2636
      %v2669 = vadd.f32 %v2571, %v2637
      %v2670 = vadd.f32 %v2572, %v2638
      %v2671 = vadd.f32 %v2573, %v2639
      %v2672 = vadd.f32 %v2574, %v2640
      %v2673 = vadd.f32 %v2575, %v2641
      %v2674 = vadd.f32 %v2576, %v2642
      %v2675 = vadd.f32 %v2577, %v2643
      %v2676 = vadd.f32 %v2578, %v2644
      %v2677 = vadd.f32 %v2579, %v2645
      %v2678 = vadd.f32 %v2580, %v2646
      %v2679 = vadd.f32 %v2581, %v2647
      %2680 = vst [vmem:[%s197] sm:$0xff] %v2648
      %2681 = vst [vmem:[%s197 + $0x8] sm:$0xff] %v2649
      %2682 = vst [vmem:[%s197 + $0x10] sm:$0xff] %v2650
      %2683 = vst [vmem:[%s197 + $0x18] sm:$0xff] %v2651
      %2684 = vst [vmem:[%s197 + $0x20] sm:$0xff] %v2652
      %2685 = vst [vmem:[%s197 + $0x28] sm:$0xff] %v2653
      %2686 = vst [vmem:[%s197 + $0x30] sm:$0xff] %v2654
      %2687 = vst [vmem:[%s197 + $0x38] sm:$0xff] %v2655
      %2688 = vst [vmem:[%s197 + $0x40] sm:$0xff] %v2656
      %2689 = vst [vmem:[%s197 + $0x48] sm:$0xff] %v2657
      %2690 = vst [vmem:[%s197 + $0x50] sm:$0xff] %v2658
      %2691 = vst [vmem:[%s197 + $0x58] sm:$0xff] %v2659
      %2692 = vst [vmem:[%s197 + $0x60] sm:$0xff] %v2660
      %2693 = vst [vmem:[%s197 + $0x68] sm:$0xff] %v2661
      %2694 = vst [vmem:[%s197 + $0x70] sm:$0xff] %v2662
      %2695 = vst [vmem:[%s197 + $0x78] sm:$0xff] %v2663
      %2696 = vst [vmem:[%s197 + $0x80] sm:$0xff] %v2664
      %2697 = vst [vmem:[%s197 + $0x88] sm:$0xff] %v2665
      %2698 = vst [vmem:[%s197 + $0x90] sm:$0xff] %v2666
      %2699 = vst [vmem:[%s197 + $0x98] sm:$0xff] %v2667
      %2700 = vst [vmem:[%s197 + $0xa0] sm:$0xff] %v2668
      %2701 = vst [vmem:[%s197 + $0xa8] sm:$0xff] %v2669
      %2702 = vst [vmem:[%s197 + $0xb0] sm:$0xff] %v2670
      %2703 = vst [vmem:[%s197 + $0xb8] sm:$0xff] %v2671
      %2704 = vst [vmem:[%s197 + $0xc0] sm:$0xff] %v2672
      %2705 = vst [vmem:[%s197 + $0xc8] sm:$0xff] %v2673
      %2706 = vst [vmem:[%s197 + $0xd0] sm:$0xff] %v2674
      %2707 = vst [vmem:[%s197 + $0xd8] sm:$0xff] %v2675
      %2708 = vst [vmem:[%s197 + $0xe0] sm:$0xff] %v2676
      %2709 = vst [vmem:[%s197 + $0xe8] sm:$0xff] %v2677
      %2710 = vst [vmem:[%s197 + $0xf0] sm:$0xff] %v2678
      %2711 = vst [vmem:[%s197 + $0xf8] sm:$0xff] %v2679
      %v2712 = vld [vmem:[%s197] sm:$0xff]
      %v2713 = vld [vmem:[%s197 + $0x8] sm:$0xff]
      %v2714 = vld [vmem:[%s197 + $0x10] sm:$0xff]
      %v2715 = vld [vmem:[%s197 + $0x18] sm:$0xff]
      %v2716 = vld [vmem:[%s197 + $0x20] sm:$0xff]
      %v2717 = vld [vmem:[%s197 + $0x28] sm:$0xff]
      %v2718 = vld [vmem:[%s197 + $0x30] sm:$0xff]
      %v2719 = vld [vmem:[%s197 + $0x38] sm:$0xff]
      %v2720 = vld [vmem:[%s197 + $0x40] sm:$0xff]
      %v2721 = vld [vmem:[%s197 + $0x48] sm:$0xff]
      %v2722 = vld [vmem:[%s197 + $0x50] sm:$0xff]
      %v2723 = vld [vmem:[%s197 + $0x58] sm:$0xff]
      %v2724 = vld [vmem:[%s197 + $0x60] sm:$0xff]
      %v2725 = vld [vmem:[%s197 + $0x68] sm:$0xff]
      %v2726 = vld [vmem:[%s197 + $0x70] sm:$0xff]
      %v2727 = vld [vmem:[%s197 + $0x78] sm:$0xff]
      %v2728 = vld [vmem:[%s197 + $0x80] sm:$0xff]
      %v2729 = vld [vmem:[%s197 + $0x88] sm:$0xff]
      %v2730 = vld [vmem:[%s197 + $0x90] sm:$0xff]
      %v2731 = vld [vmem:[%s197 + $0x98] sm:$0xff]
      %v2732 = vld [vmem:[%s197 + $0xa0] sm:$0xff]
      %v2733 = vld [vmem:[%s197 + $0xa8] sm:$0xff]
      %v2734 = vld [vmem:[%s197 + $0xb0] sm:$0xff]
      %v2735 = vld [vmem:[%s197 + $0xb8] sm:$0xff]
      %v2736 = vld [vmem:[%s197 + $0xc0] sm:$0xff]
      %v2737 = vld [vmem:[%s197 + $0xc8] sm:$0xff]
      %v2738 = vld [vmem:[%s197 + $0xd0] sm:$0xff]
      %v2739 = vld [vmem:[%s197 + $0xd8] sm:$0xff]
      %v2740 = vld [vmem:[%s197 + $0xe0] sm:$0xff]
      %v2741 = vld [vmem:[%s197 + $0xe8] sm:$0xff]
      %v2742 = vld [vmem:[%s197 + $0xf0] sm:$0xff]
      %v2743 = vld [vmem:[%s197 + $0xf8] sm:$0xff]
      %s2744 = scalar_lea.vmem [#allocation2], 48
      %v2745 = vld [vmem:[%s2744] sm:$0xff]
      %v2746 = vld [vmem:[%s2744 + $0x8] sm:$0xff]
      %v2747 = vld [vmem:[%s2744 + $0x18] sm:$0xff]
      %v2748 = vld [vmem:[%s2744 + $0x20] sm:$0xff]
      %v2749 = vld [vmem:[%s2744 + $0x30] sm:$0xff]
      %v2750 = vld [vmem:[%s2744 + $0x38] sm:$0xff]
      %v2751 = vld [vmem:[%s2744 + $0x48] sm:$0xff]
      %v2752 = vld [vmem:[%s2744 + $0x50] sm:$0xff]
      %v2753 = vld [vmem:[%s2744 + $0x60] sm:$0xff]
      %v2754 = vld [vmem:[%s2744 + $0x68] sm:$0xff]
      %v2755 = vld [vmem:[%s2744 + $0x78] sm:$0xff]
      %v2756 = vld [vmem:[%s2744 + $0x80] sm:$0xff]
      %v2757 = vld [vmem:[%s2744 + $0x90] sm:$0xff]
      %v2758 = vld [vmem:[%s2744 + $0x98] sm:$0xff]
      %v2759 = vld [vmem:[%s2744 + $0xa8] sm:$0xff]
      %v2760 = vld [vmem:[%s2744 + $0xb0] sm:$0xff]
      %v2761 = vld [vmem:[%s2744 + $0xc0] sm:$0xff]
      %v2762 = vld [vmem:[%s2744 + $0xc8] sm:$0xff]
      %v2763 = vld [vmem:[%s2744 + $0xd8] sm:$0xff]
      %v2764 = vld [vmem:[%s2744 + $0xe0] sm:$0xff]
      %v2765 = vld [vmem:[%s2744 + $0xf0] sm:$0xff]
      %v2766 = vld [vmem:[%s2744 + $0xf8] sm:$0xff]
      %v2767 = vld [vmem:[%s2744 + $0x108] sm:$0xff]
      %v2768 = vld [vmem:[%s2744 + $0x110] sm:$0xff]
      %v2769 = vld [vmem:[%s2744 + $0x120] sm:$0xff]
      %v2770 = vld [vmem:[%s2744 + $0x128] sm:$0xff]
      %v2771 = vld [vmem:[%s2744 + $0x138] sm:$0xff]
      %v2772 = vld [vmem:[%s2744 + $0x140] sm:$0xff]
      %v2773 = vld [vmem:[%s2744 + $0x150] sm:$0xff]
      %v2774 = vld [vmem:[%s2744 + $0x158] sm:$0xff]
      %v2775 = vld [vmem:[%s2744 + $0x168] sm:$0xff]
      %v2776 = vld [vmem:[%s2744 + $0x170] sm:$0xff]
      %v2777 = vld [vmem:[%s3 + $0x6] sm:$0x1]
      %v2778 = vperm.slane %v2777, 0
      %v2779 = vmul.f32 %v2745, %v2778
      %v2780 = vmul.f32 %v2746, %v2778
      %v2781 = vmul.f32 %v2747, %v2778
      %v2782 = vmul.f32 %v2748, %v2778
      %v2783 = vmul.f32 %v2749, %v2778
      %v2784 = vmul.f32 %v2750, %v2778
      %v2785 = vmul.f32 %v2751, %v2778
      %v2786 = vmul.f32 %v2752, %v2778
      %v2787 = vmul.f32 %v2753, %v2778
      %v2788 = vmul.f32 %v2754, %v2778
      %v2789 = vmul.f32 %v2755, %v2778
      %v2790 = vmul.f32 %v2756, %v2778
      %v2791 = vmul.f32 %v2757, %v2778
      %v2792 = vmul.f32 %v2758, %v2778
      %v2793 = vmul.f32 %v2759, %v2778
      %v2794 = vmul.f32 %v2760, %v2778
      %v2795 = vmul.f32 %v2761, %v2778
      %v2796 = vmul.f32 %v2762, %v2778
      %v2797 = vmul.f32 %v2763, %v2778
      %v2798 = vmul.f32 %v2764, %v2778
      %v2799 = vmul.f32 %v2765, %v2778
      %v2800 = vmul.f32 %v2766, %v2778
      %v2801 = vmul.f32 %v2767, %v2778
      %v2802 = vmul.f32 %v2768, %v2778
      %v2803 = vmul.f32 %v2769, %v2778
      %v2804 = vmul.f32 %v2770, %v2778
      %v2805 = vmul.f32 %v2771, %v2778
      %v2806 = vmul.f32 %v2772, %v2778
      %v2807 = vmul.f32 %v2773, %v2778
      %v2808 = vmul.f32 %v2774, %v2778
      %v2809 = vmul.f32 %v2775, %v2778
      %v2810 = vmul.f32 %v2776, %v2778
      %v2811 = vadd.f32 %v2712, %v2779
      %v2812 = vadd.f32 %v2713, %v2780
      %v2813 = vadd.f32 %v2714, %v2781
      %v2814 = vadd.f32 %v2715, %v2782
      %v2815 = vadd.f32 %v2716, %v2783
      %v2816 = vadd.f32 %v2717, %v2784
      %v2817 = vadd.f32 %v2718, %v2785
      %v2818 = vadd.f32 %v2719, %v2786
      %v2819 = vadd.f32 %v2720, %v2787
      %v2820 = vadd.f32 %v2721, %v2788
      %v2821 = vadd.f32 %v2722, %v2789
      %v2822 = vadd.f32 %v2723, %v2790
      %v2823 = vadd.f32 %v2724, %v2791
      %v2824 = vadd.f32 %v2725, %v2792
      %v2825 = vadd.f32 %v2726, %v2793
      %v2826 = vadd.f32 %v2727, %v2794
      %v2827 = vadd.f32 %v2728, %v2795
      %v2828 = vadd.f32 %v2729, %v2796
      %v2829 = vadd.f32 %v2730, %v2797
      %v2830 = vadd.f32 %v2731, %v2798
      %v2831 = vadd.f32 %v2732, %v2799
      %v2832 = vadd.f32 %v2733, %v2800
      %v2833 = vadd.f32 %v2734, %v2801
      %v2834 = vadd.f32 %v2735, %v2802
      %v2835 = vadd.f32 %v2736, %v2803
      %v2836 = vadd.f32 %v2737, %v2804
      %v2837 = vadd.f32 %v2738, %v2805
      %v2838 = vadd.f32 %v2739, %v2806
      %v2839 = vadd.f32 %v2740, %v2807
      %v2840 = vadd.f32 %v2741, %v2808
      %v2841 = vadd.f32 %v2742, %v2809
      %v2842 = vadd.f32 %v2743, %v2810
      %2843 = vst [vmem:[%s197] sm:$0xff] %v2811
      %2844 = vst [vmem:[%s197 + $0x8] sm:$0xff] %v2812
      %2845 = vst [vmem:[%s197 + $0x10] sm:$0xff] %v2813
      %2846 = vst [vmem:[%s197 + $0x18] sm:$0xff] %v2814
      %2847 = vst [vmem:[%s197 + $0x20] sm:$0xff] %v2815
      %2848 = vst [vmem:[%s197 + $0x28] sm:$0xff] %v2816
      %2849 = vst [vmem:[%s197 + $0x30] sm:$0xff] %v2817
      %2850 = vst [vmem:[%s197 + $0x38] sm:$0xff] %v2818
      %2851 = vst [vmem:[%s197 + $0x40] sm:$0xff] %v2819
      %2852 = vst [vmem:[%s197 + $0x48] sm:$0xff] %v2820
      %2853 = vst [vmem:[%s197 + $0x50] sm:$0xff] %v2821
      %2854 = vst [vmem:[%s197 + $0x58] sm:$0xff] %v2822
      %2855 = vst [vmem:[%s197 + $0x60] sm:$0xff] %v2823
      %2856 = vst [vmem:[%s197 + $0x68] sm:$0xff] %v2824
      %2857 = vst [vmem:[%s197 + $0x70] sm:$0xff] %v2825
      %2858 = vst [vmem:[%s197 + $0x78] sm:$0xff] %v2826
      %2859 = vst [vmem:[%s197 + $0x80] sm:$0xff] %v2827
      %2860 = vst [vmem:[%s197 + $0x88] sm:$0xff] %v2828
      %2861 = vst [vmem:[%s197 + $0x90] sm:$0xff] %v2829
      %2862 = vst [vmem:[%s197 + $0x98] sm:$0xff] %v2830
      %2863 = vst [vmem:[%s197 + $0xa0] sm:$0xff] %v2831
      %2864 = vst [vmem:[%s197 + $0xa8] sm:$0xff] %v2832
      %2865 = vst [vmem:[%s197 + $0xb0] sm:$0xff] %v2833
      %2866 = vst [vmem:[%s197 + $0xb8] sm:$0xff] %v2834
      %2867 = vst [vmem:[%s197 + $0xc0] sm:$0xff] %v2835
      %2868 = vst [vmem:[%s197 + $0xc8] sm:$0xff] %v2836
      %2869 = vst [vmem:[%s197 + $0xd0] sm:$0xff] %v2837
      %2870 = vst [vmem:[%s197 + $0xd8] sm:$0xff] %v2838
      %2871 = vst [vmem:[%s197 + $0xe0] sm:$0xff] %v2839
      %2872 = vst [vmem:[%s197 + $0xe8] sm:$0xff] %v2840
      %2873 = vst [vmem:[%s197 + $0xf0] sm:$0xff] %v2841
      %2874 = vst [vmem:[%s197 + $0xf8] sm:$0xff] %v2842
      %v2875 = vld [vmem:[%s197] sm:$0xff]
      %v2876 = vld [vmem:[%s197 + $0x8] sm:$0xff]
      %v2877 = vld [vmem:[%s197 + $0x10] sm:$0xff]
      %v2878 = vld [vmem:[%s197 + $0x18] sm:$0xff]
      %v2879 = vld [vmem:[%s197 + $0x20] sm:$0xff]
      %v2880 = vld [vmem:[%s197 + $0x28] sm:$0xff]
      %v2881 = vld [vmem:[%s197 + $0x30] sm:$0xff]
      %v2882 = vld [vmem:[%s197 + $0x38] sm:$0xff]
      %v2883 = vld [vmem:[%s197 + $0x40] sm:$0xff]
      %v2884 = vld [vmem:[%s197 + $0x48] sm:$0xff]
      %v2885 = vld [vmem:[%s197 + $0x50] sm:$0xff]
      %v2886 = vld [vmem:[%s197 + $0x58] sm:$0xff]
      %v2887 = vld [vmem:[%s197 + $0x60] sm:$0xff]
      %v2888 = vld [vmem:[%s197 + $0x68] sm:$0xff]
      %v2889 = vld [vmem:[%s197 + $0x70] sm:$0xff]
      %v2890 = vld [vmem:[%s197 + $0x78] sm:$0xff]
      %v2891 = vld [vmem:[%s197 + $0x80] sm:$0xff]
      %v2892 = vld [vmem:[%s197 + $0x88] sm:$0xff]
      %v2893 = vld [vmem:[%s197 + $0x90] sm:$0xff]
      %v2894 = vld [vmem:[%s197 + $0x98] sm:$0xff]
      %v2895 = vld [vmem:[%s197 + $0xa0] sm:$0xff]
      %v2896 = vld [vmem:[%s197 + $0xa8] sm:$0xff]
      %v2897 = vld [vmem:[%s197 + $0xb0] sm:$0xff]
      %v2898 = vld [vmem:[%s197 + $0xb8] sm:$0xff]
      %v2899 = vld [vmem:[%s197 + $0xc0] sm:$0xff]
      %v2900 = vld [vmem:[%s197 + $0xc8] sm:$0xff]
      %v2901 = vld [vmem:[%s197 + $0xd0] sm:$0xff]
      %v2902 = vld [vmem:[%s197 + $0xd8] sm:$0xff]
      %v2903 = vld [vmem:[%s197 + $0xe0] sm:$0xff]
      %v2904 = vld [vmem:[%s197 + $0xe8] sm:$0xff]
      %v2905 = vld [vmem:[%s197 + $0xf0] sm:$0xff]
      %v2906 = vld [vmem:[%s197 + $0xf8] sm:$0xff]
      %v2907 = vld [vmem:[%s2744 + $0x1] sm:$0xff]
      %v2908 = vld [vmem:[%s2744 + $0x9] sm:$0xff]
      %v2909 = vld [vmem:[%s2744 + $0x19] sm:$0xff]
      %v2910 = vld [vmem:[%s2744 + $0x21] sm:$0xff]
      %v2911 = vld [vmem:[%s2744 + $0x31] sm:$0xff]
      %v2912 = vld [vmem:[%s2744 + $0x39] sm:$0xff]
      %v2913 = vld [vmem:[%s2744 + $0x49] sm:$0xff]
      %v2914 = vld [vmem:[%s2744 + $0x51] sm:$0xff]
      %v2915 = vld [vmem:[%s2744 + $0x61] sm:$0xff]
      %v2916 = vld [vmem:[%s2744 + $0x69] sm:$0xff]
      %v2917 = vld [vmem:[%s2744 + $0x79] sm:$0xff]
      %v2918 = vld [vmem:[%s2744 + $0x81] sm:$0xff]
      %v2919 = vld [vmem:[%s2744 + $0x91] sm:$0xff]
      %v2920 = vld [vmem:[%s2744 + $0x99] sm:$0xff]
      %v2921 = vld [vmem:[%s2744 + $0xa9] sm:$0xff]
      %v2922 = vld [vmem:[%s2744 + $0xb1] sm:$0xff]
      %v2923 = vld [vmem:[%s2744 + $0xc1] sm:$0xff]
      %v2924 = vld [vmem:[%s2744 + $0xc9] sm:$0xff]
      %v2925 = vld [vmem:[%s2744 + $0xd9] sm:$0xff]
      %v2926 = vld [vmem:[%s2744 + $0xe1] sm:$0xff]
      %v2927 = vld [vmem:[%s2744 + $0xf1] sm:$0xff]
      %v2928 = vld [vmem:[%s2744 + $0xf9] sm:$0xff]
      %v2929 = vld [vmem:[%s2744 + $0x109] sm:$0xff]
      %v2930 = vld [vmem:[%s2744 + $0x111] sm:$0xff]
      %v2931 = vld [vmem:[%s2744 + $0x121] sm:$0xff]
      %v2932 = vld [vmem:[%s2744 + $0x129] sm:$0xff]
      %v2933 = vld [vmem:[%s2744 + $0x139] sm:$0xff]
      %v2934 = vld [vmem:[%s2744 + $0x141] sm:$0xff]
      %v2935 = vld [vmem:[%s2744 + $0x151] sm:$0xff]
      %v2936 = vld [vmem:[%s2744 + $0x159] sm:$0xff]
      %v2937 = vld [vmem:[%s2744 + $0x169] sm:$0xff]
      %v2938 = vld [vmem:[%s2744 + $0x171] sm:$0xff]
      %v2939 = vld [vmem:[%s3 + $0x7] sm:$0x1]
      %v2940 = vperm.slane %v2939, 0
      %v2941 = vmul.f32 %v2907, %v2940
      %v2942 = vmul.f32 %v2908, %v2940
      %v2943 = vmul.f32 %v2909, %v2940
      %v2944 = vmul.f32 %v2910, %v2940
      %v2945 = vmul.f32 %v2911, %v2940
      %v2946 = vmul.f32 %v2912, %v2940
      %v2947 = vmul.f32 %v2913, %v2940
      %v2948 = vmul.f32 %v2914, %v2940
      %v2949 = vmul.f32 %v2915, %v2940
      %v2950 = vmul.f32 %v2916, %v2940
      %v2951 = vmul.f32 %v2917, %v2940
      %v2952 = vmul.f32 %v2918, %v2940
      %v2953 = vmul.f32 %v2919, %v2940
      %v2954 = vmul.f32 %v2920, %v2940
      %v2955 = vmul.f32 %v2921, %v2940
      %v2956 = vmul.f32 %v2922, %v2940
      %v2957 = vmul.f32 %v2923, %v2940
      %v2958 = vmul.f32 %v2924, %v2940
      %v2959 = vmul.f32 %v2925, %v2940
      %v2960 = vmul.f32 %v2926, %v2940
      %v2961 = vmul.f32 %v2927, %v2940
      %v2962 = vmul.f32 %v2928, %v2940
      %v2963 = vmul.f32 %v2929, %v2940
      %v2964 = vmul.f32 %v2930, %v2940
      %v2965 = vmul.f32 %v2931, %v2940
      %v2966 = vmul.f32 %v2932, %v2940
      %v2967 = vmul.f32 %v2933, %v2940
      %v2968 = vmul.f32 %v2934, %v2940
      %v2969 = vmul.f32 %v2935, %v2940
      %v2970 = vmul.f32 %v2936, %v2940
      %v2971 = vmul.f32 %v2937, %v2940
      %v2972 = vmul.f32 %v2938, %v2940
      %v2973 = vadd.f32 %v2875, %v2941
      %v2974 = vadd.f32 %v2876, %v2942
      %v2975 = vadd.f32 %v2877, %v2943
      %v2976 = vadd.f32 %v2878, %v2944
      %v2977 = vadd.f32 %v2879, %v2945
      %v2978 = vadd.f32 %v2880, %v2946
      %v2979 = vadd.f32 %v2881, %v2947
      %v2980 = vadd.f32 %v2882, %v2948
      %v2981 = vadd.f32 %v2883, %v2949
      %v2982 = vadd.f32 %v2884, %v2950
      %v2983 = vadd.f32 %v2885, %v2951
      %v2984 = vadd.f32 %v2886, %v2952
      %v2985 = vadd.f32 %v2887, %v2953
      %v2986 = vadd.f32 %v2888, %v2954
      %v2987 = vadd.f32 %v2889, %v2955
      %v2988 = vadd.f32 %v2890, %v2956
      %v2989 = vadd.f32 %v2891, %v2957
      %v2990 = vadd.f32 %v2892, %v2958
      %v2991 = vadd.f32 %v2893, %v2959
      %v2992 = vadd.f32 %v2894, %v2960
      %v2993 = vadd.f32 %v2895, %v2961
      %v2994 = vadd.f32 %v2896, %v2962
      %v2995 = vadd.f32 %v2897, %v2963
      %v2996 = vadd.f32 %v2898, %v2964
      %v2997 = vadd.f32 %v2899, %v2965
      %v2998 = vadd.f32 %v2900, %v2966
      %v2999 = vadd.f32 %v2901, %v2967
      %v3000 = vadd.f32 %v2902, %v2968
      %v3001 = vadd.f32 %v2903, %v2969
      %v3002 = vadd.f32 %v2904, %v2970
      %v3003 = vadd.f32 %v2905, %v2971
      %v3004 = vadd.f32 %v2906, %v2972
      %3005 = vst [vmem:[%s197] sm:$0xff] %v2973
      %3006 = vst [vmem:[%s197 + $0x8] sm:$0xff] %v2974
      %3007 = vst [vmem:[%s197 + $0x10] sm:$0xff] %v2975
      %3008 = vst [vmem:[%s197 + $0x18] sm:$0xff] %v2976
      %3009 = vst [vmem:[%s197 + $0x20] sm:$0xff] %v2977
      %3010 = vst [vmem:[%s197 + $0x28] sm:$0xff] %v2978
      %3011 = vst [vmem:[%s197 + $0x30] sm:$0xff] %v2979
      %3012 = vst [vmem:[%s197 + $0x38] sm:$0xff] %v2980
      %3013 = vst [vmem:[%s197 + $0x40] sm:$0xff] %v2981
      %3014 = vst [vmem:[%s197 + $0x48] sm:$0xff] %v2982
      %3015 = vst [vmem:[%s197 + $0x50] sm:$0xff] %v2983
      %3016 = vst [vmem:[%s197 + $0x58] sm:$0xff] %v2984
      %3017 = vst [vmem:[%s197 + $0x60] sm:$0xff] %v2985
      %3018 = vst [vmem:[%s197 + $0x68] sm:$0xff] %v2986
      %3019 = vst [vmem:[%s197 + $0x70] sm:$0xff] %v2987
      %3020 = vst [vmem:[%s197 + $0x78] sm:$0xff] %v2988
      %3021 = vst [vmem:[%s197 + $0x80] sm:$0xff] %v2989
      %3022 = vst [vmem:[%s197 + $0x88] sm:$0xff] %v2990
      %3023 = vst [vmem:[%s197 + $0x90] sm:$0xff] %v2991
      %3024 = vst [vmem:[%s197 + $0x98] sm:$0xff] %v2992
      %3025 = vst [vmem:[%s197 + $0xa0] sm:$0xff] %v2993
      %3026 = vst [vmem:[%s197 + $0xa8] sm:$0xff] %v2994
      %3027 = vst [vmem:[%s197 + $0xb0] sm:$0xff] %v2995
      %3028 = vst [vmem:[%s197 + $0xb8] sm:$0xff] %v2996
      %3029 = vst [vmem:[%s197 + $0xc0] sm:$0xff] %v2997
      %3030 = vst [vmem:[%s197 + $0xc8] sm:$0xff] %v2998
      %3031 = vst [vmem:[%s197 + $0xd0] sm:$0xff] %v2999
      %3032 = vst [vmem:[%s197 + $0xd8] sm:$0xff] %v3000
      %3033 = vst [vmem:[%s197 + $0xe0] sm:$0xff] %v3001
      %3034 = vst [vmem:[%s197 + $0xe8] sm:$0xff] %v3002
      %3035 = vst [vmem:[%s197 + $0xf0] sm:$0xff] %v3003
      %3036 = vst [vmem:[%s197 + $0xf8] sm:$0xff] %v3004
      %v3037 = vld [vmem:[%s197] sm:$0xff]
      %v3038 = vld [vmem:[%s197 + $0x8] sm:$0xff]
      %v3039 = vld [vmem:[%s197 + $0x10] sm:$0xff]
      %v3040 = vld [vmem:[%s197 + $0x18] sm:$0xff]
      %v3041 = vld [vmem:[%s197 + $0x20] sm:$0xff]
      %v3042 = vld [vmem:[%s197 + $0x28] sm:$0xff]
      %v3043 = vld [vmem:[%s197 + $0x30] sm:$0xff]
      %v3044 = vld [vmem:[%s197 + $0x38] sm:$0xff]
      %v3045 = vld [vmem:[%s197 + $0x40] sm:$0xff]
      %v3046 = vld [vmem:[%s197 + $0x48] sm:$0xff]
      %v3047 = vld [vmem:[%s197 + $0x50] sm:$0xff]
      %v3048 = vld [vmem:[%s197 + $0x58] sm:$0xff]
      %v3049 = vld [vmem:[%s197 + $0x60] sm:$0xff]
      %v3050 = vld [vmem:[%s197 + $0x68] sm:$0xff]
      %v3051 = vld [vmem:[%s197 + $0x70] sm:$0xff]
      %v3052 = vld [vmem:[%s197 + $0x78] sm:$0xff]
      %v3053 = vld [vmem:[%s197 + $0x80] sm:$0xff]
      %v3054 = vld [vmem:[%s197 + $0x88] sm:$0xff]
      %v3055 = vld [vmem:[%s197 + $0x90] sm:$0xff]
      %v3056 = vld [vmem:[%s197 + $0x98] sm:$0xff]
      %v3057 = vld [vmem:[%s197 + $0xa0] sm:$0xff]
      %v3058 = vld [vmem:[%s197 + $0xa8] sm:$0xff]
      %v3059 = vld [vmem:[%s197 + $0xb0] sm:$0xff]
      %v3060 = vld [vmem:[%s197 + $0xb8] sm:$0xff]
      %v3061 = vld [vmem:[%s197 + $0xc0] sm:$0xff]
      %v3062 = vld [vmem:[%s197 + $0xc8] sm:$0xff]
      %v3063 = vld [vmem:[%s197 + $0xd0] sm:$0xff]
      %v3064 = vld [vmem:[%s197 + $0xd8] sm:$0xff]
      %v3065 = vld [vmem:[%s197 + $0xe0] sm:$0xff]
      %v3066 = vld [vmem:[%s197 + $0xe8] sm:$0xff]
      %v3067 = vld [vmem:[%s197 + $0xf0] sm:$0xff]
      %v3068 = vld [vmem:[%s197 + $0xf8] sm:$0xff]
      %v3069 = vld [vmem:[%s2744 + $0x2] sm:$0xff]
      %v3070 = vld [vmem:[%s2744 + $0xa] sm:$0xff]
      %v3071 = vld [vmem:[%s2744 + $0x1a] sm:$0xff]
      %v3072 = vld [vmem:[%s2744 + $0x22] sm:$0xff]
      %v3073 = vld [vmem:[%s2744 + $0x32] sm:$0xff]
      %v3074 = vld [vmem:[%s2744 + $0x3a] sm:$0xff]
      %v3075 = vld [vmem:[%s2744 + $0x4a] sm:$0xff]
      %v3076 = vld [vmem:[%s2744 + $0x52] sm:$0xff]
      %v3077 = vld [vmem:[%s2744 + $0x62] sm:$0xff]
      %v3078 = vld [vmem:[%s2744 + $0x6a] sm:$0xff]
      %v3079 = vld [vmem:[%s2744 + $0x7a] sm:$0xff]
      %v3080 = vld [vmem:[%s2744 + $0x82] sm:$0xff]
      %v3081 = vld [vmem:[%s2744 + $0x92] sm:$0xff]
      %v3082 = vld [vmem:[%s2744 + $0x9a] sm:$0xff]
      %v3083 = vld [vmem:[%s2744 + $0xaa] sm:$0xff]
      %v3084 = vld [vmem:[%s2744 + $0xb2] sm:$0xff]
      %v3085 = vld [vmem:[%s2744 + $0xc2] sm:$0xff]
      %v3086 = vld [vmem:[%s2744 + $0xca] sm:$0xff]
      %v3087 = vld [vmem:[%s2744 + $0xda] sm:$0xff]
      %v3088 = vld [vmem:[%s2744 + $0xe2] sm:$0xff]
      %v3089 = vld [vmem:[%s2744 + $0xf2] sm:$0xff]
      %v3090 = vld [vmem:[%s2744 + $0xfa] sm:$0xff]
      %v3091 = vld [vmem:[%s2744 + $0x10a] sm:$0xff]
      %v3092 = vld [vmem:[%s2744 + $0x112] sm:$0xff]
      %v3093 = vld [vmem:[%s2744 + $0x122] sm:$0xff]
      %v3094 = vld [vmem:[%s2744 + $0x12a] sm:$0xff]
      %v3095 = vld [vmem:[%s2744 + $0x13a] sm:$0xff]
      %v3096 = vld [vmem:[%s2744 + $0x142] sm:$0xff]
      %v3097 = vld [vmem:[%s2744 + $0x152] sm:$0xff]
      %v3098 = vld [vmem:[%s2744 + $0x15a] sm:$0xff]
      %v3099 = vld [vmem:[%s2744 + $0x16a] sm:$0xff]
      %v3100 = vld [vmem:[%s2744 + $0x172] sm:$0xff]
      %v3101 = vld [vmem:[%s3 + $0x8] sm:$0x1]
      %v3102 = vperm.slane %v3101, 0
      %v3103 = vmul.f32 %v3069, %v3102
      %v3104 = vmul.f32 %v3070, %v3102
      %v3105 = vmul.f32 %v3071, %v3102
      %v3106 = vmul.f32 %v3072, %v3102
      %v3107 = vmul.f32 %v3073, %v3102
      %v3108 = vmul.f32 %v3074, %v3102
      %v3109 = vmul.f32 %v3075, %v3102
      %v3110 = vmul.f32 %v3076, %v3102
      %v3111 = vmul.f32 %v3077, %v3102
      %v3112 = vmul.f32 %v3078, %v3102
      %v3113 = vmul.f32 %v3079, %v3102
      %v3114 = vmul.f32 %v3080, %v3102
      %v3115 = vmul.f32 %v3081, %v3102
      %v3116 = vmul.f32 %v3082, %v3102
      %v3117 = vmul.f32 %v3083, %v3102
      %v3118 = vmul.f32 %v3084, %v3102
      %v3119 = vmul.f32 %v3085, %v3102
      %v3120 = vmul.f32 %v3086, %v3102
      %v3121 = vmul.f32 %v3087, %v3102
      %v3122 = vmul.f32 %v3088, %v3102
      %v3123 = vmul.f32 %v3089, %v3102
      %v3124 = vmul.f32 %v3090, %v3102
      %v3125 = vmul.f32 %v3091, %v3102
      %v3126 = vmul.f32 %v3092, %v3102
      %v3127 = vmul.f32 %v3093, %v3102
      %v3128 = vmul.f32 %v3094, %v3102
      %v3129 = vmul.f32 %v3095, %v3102
      %v3130 = vmul.f32 %v3096, %v3102
      %v3131 = vmul.f32 %v3097, %v3102
      %v3132 = vmul.f32 %v3098, %v3102
      %v3133 = vmul.f32 %v3099, %v3102
      %v3134 = vmul.f32 %v3100, %v3102
      %v3135 = vadd.f32 %v3037, %v3103
      %v3136 = vadd.f32 %v3038, %v3104
      %v3137 = vadd.f32 %v3039, %v3105
      %v3138 = vadd.f32 %v3040, %v3106
      %v3139 = vadd.f32 %v3041, %v3107
      %v3140 = vadd.f32 %v3042, %v3108
      %v3141 = vadd.f32 %v3043, %v3109
      %v3142 = vadd.f32 %v3044, %v3110
      %v3143 = vadd.f32 %v3045, %v3111
      %v3144 = vadd.f32 %v3046, %v3112
      %v3145 = vadd.f32 %v3047, %v3113
      %v3146 = vadd.f32 %v3048, %v3114
      %v3147 = vadd.f32 %v3049, %v3115
      %v3148 = vadd.f32 %v3050, %v3116
      %v3149 = vadd.f32 %v3051, %v3117
      %v3150 = vadd.f32 %v3052, %v3118
      %v3151 = vadd.f32 %v3053, %v3119
      %v3152 = vadd.f32 %v3054, %v3120
      %v3153 = vadd.f32 %v3055, %v3121
      %v3154 = vadd.f32 %v3056, %v3122
      %v3155 = vadd.f32 %v3057, %v3123
      %v3156 = vadd.f32 %v3058, %v3124
      %v3157 = vadd.f32 %v3059, %v3125
      %v3158 = vadd.f32 %v3060, %v3126
      %v3159 = vadd.f32 %v3061, %v3127
      %v3160 = vadd.f32 %v3062, %v3128
      %v3161 = vadd.f32 %v3063, %v3129
      %v3162 = vadd.f32 %v3064, %v3130
      %v3163 = vadd.f32 %v3065, %v3131
      %v3164 = vadd.f32 %v3066, %v3132
      %v3165 = vadd.f32 %v3067, %v3133
      %v3166 = vadd.f32 %v3068, %v3134
      %3167 = vst [vmem:[%s197] sm:$0xff] %v3135
      %3168 = vst [vmem:[%s197 + $0x8] sm:$0xff] %v3136
      %3169 = vst [vmem:[%s197 + $0x10] sm:$0xff] %v3137
      %3170 = vst [vmem:[%s197 + $0x18] sm:$0xff] %v3138
      %3171 = vst [vmem:[%s197 + $0x20] sm:$0xff] %v3139
      %3172 = vst [vmem:[%s197 + $0x28] sm:$0xff] %v3140
      %3173 = vst [vmem:[%s197 + $0x30] sm:$0xff] %v3141
      %3174 = vst [vmem:[%s197 + $0x38] sm:$0xff] %v3142
      %3175 = vst [vmem:[%s197 + $0x40] sm:$0xff] %v3143
      %3176 = vst [vmem:[%s197 + $0x48] sm:$0xff] %v3144
      %3177 = vst [vmem:[%s197 + $0x50] sm:$0xff] %v3145
      %3178 = vst [vmem:[%s197 + $0x58] sm:$0xff] %v3146
      %3179 = vst [vmem:[%s197 + $0x60] sm:$0xff] %v3147
      %3180 = vst [vmem:[%s197 + $0x68] sm:$0xff] %v3148
      %3181 = vst [vmem:[%s197 + $0x70] sm:$0xff] %v3149
      %3182 = vst [vmem:[%s197 + $0x78] sm:$0xff] %v3150
      %3183 = vst [vmem:[%s197 + $0x80] sm:$0xff] %v3151
      %3184 = vst [vmem:[%s197 + $0x88] sm:$0xff] %v3152
      %3185 = vst [vmem:[%s197 + $0x90] sm:$0xff] %v3153
      %3186 = vst [vmem:[%s197 + $0x98] sm:$0xff] %v3154
      %3187 = vst [vmem:[%s197 + $0xa0] sm:$0xff] %v3155
      %3188 = vst [vmem:[%s197 + $0xa8] sm:$0xff] %v3156
      %3189 = vst [vmem:[%s197 + $0xb0] sm:$0xff] %v3157
      %3190 = vst [vmem:[%s197 + $0xb8] sm:$0xff] %v3158
      %3191 = vst [vmem:[%s197 + $0xc0] sm:$0xff] %v3159
      %3192 = vst [vmem:[%s197 + $0xc8] sm:$0xff] %v3160
      %3193 = vst [vmem:[%s197 + $0xd0] sm:$0xff] %v3161
      %3194 = vst [vmem:[%s197 + $0xd8] sm:$0xff] %v3162
      %3195 = vst [vmem:[%s197 + $0xe0] sm:$0xff] %v3163
      %3196 = vst [vmem:[%s197 + $0xe8] sm:$0xff] %v3164
      %3197 = vst [vmem:[%s197 + $0xf0] sm:$0xff] %v3165
      %3198 = vst [vmem:[%s197 + $0xf8] sm:$0xff] %v3166
      %p3199 = scmp.lt.s32.totalorder %s15, 1
      %s3200 = scalar_select %p3199, %s15, 1
      %s3201 = smul.addr %s3200, 32
      %s3202 = smul.addr %s3201, 8
      %s3203 = scalar_lea.vmem %s4, %s3202
      // Predicated region
      $region37: #{mbconv_forward.13} parent=35 // pred_check
        %p3204 = pneg %p122
      $region38: #{mbconv_forward.13} parent=35 // pred_check_branch
        %3206 = sbr.rel (%p3204) target = $region40
      $region39: #{mbconv_forward.13} parent=35 // pred_region
        _
      $region40: #{mbconv_forward.13} parent=35 // pred_fallthru
        _
    $region36: #{mbconv_forward.13} parent=5 // pred_fallthru
      _
    %p3207 = scmp.le.s32.totalorder 2, %s10
    // Predicated region
    $region41: #{mbconv_forward.13} parent=5 // pred_check
      %p3208 = pneg %p3207
    $region42: #{mbconv_forward.13} parent=5 // pred_check_branch
      %3210 = sbr.rel (%p3208) target = $region44
    $region43: #{mbconv_forward.13} parent=5 // pred_region
      %s3211 = ssub.s32 %s10, 2
      // Predicated region
      $region45: #{mbconv_forward.13} parent=43 // pred_check
        %p3212 = pneg %p128
      $region46: #{mbconv_forward.13} parent=43 // pred_check_branch
        %3214 = sbr.rel (%p3212) target = $region48
      $region47: #{mbconv_forward.13} parent=43 // pred_region
        %p3215 = scmp.lt.s32.totalorder %s16, 1
        %s3216 = scalar_select %p3215, %s16, 1
        %s3217 = smul.addr %s3216, 32
        %s3218 = smul.addr %s3217, 8
        %s3219 = scalar_lea.vmem %s4, %s3218
      $region48: #{mbconv_forward.13} parent=43 // pred_fallthru
        _
    $region44: #{mbconv_forward.13} parent=5 // pred_fallthru
      _
  $region6: #{mbconv_forward.13} parent=0 // loop_footer
    %s14 = sadd.s32 1, %s10
  $region7: #{mbconv_forward.13} parent=0 // loop_footer_branch
    %9 = sbr.rel target = $region3
  $region8: #{mbconv_forward.13} parent=0 // loop_exit
    _

// kernel: mbconv_forward.19
$region0: #{mbconv_forward.19}
  #allocation0 [shape = 'u32[]', space=smem, size = 0x4, offset = 0x4, fixed_abs, tag = 'smem constant byte address 0x4 - core index']
  #allocation1 [shape = 'u32[72,128]{1,0:T(1,128)}', space=vmem, size = 0x9000, scoped, tag = 'internal scratch']
  %s0 = inlined_call_operand.vmem [shape: f32[32,512], index: 0, kind: input, shape index: {}]
  %s1 = inlined_call_operand.vmem [shape: f32[32,512], index: 1, kind: input, shape index: {}]
  %s2 = inlined_call_operand.vmem [shape: f32[1,512], index: 2, kind: input, shape index: {}]
  %s3 = inlined_call_operand.vmem [shape: f32[1,512], index: 3, kind: input, shape index: {}]
  %s4 = inlined_call_operand.vmem [shape: f32[32,512], index: 4, kind: output, shape index: {}]
  %s5 = sld [smem:[#allocation0]]
  $region26: #{mbconv_forward.19} parent=0
    _
  %s7 = ssub.s32 1, %s5
  %s8 = scalar_select 0, %s7, %s5
  // Predicated region
  $region2: #{mbconv_forward.19} parent=0 // pred_check
    _
  $region3: #{mbconv_forward.19} parent=0 // pred_check_branch
    %10 = sbr.rel (0) target = $region5
  $region4: #{mbconv_forward.19} parent=0 // pred_region
    _
  $region5: #{mbconv_forward.19} parent=0 // pred_fallthru
    _
  // Predicated region
  $region6: #{mbconv_forward.19} parent=0 // pred_check
    _
  $region7: #{mbconv_forward.19} parent=0 // pred_check_branch
    %12 = sbr.rel (0) target = $region9
  $region8: #{mbconv_forward.19} parent=0 // pred_region
    _
  $region9: #{mbconv_forward.19} parent=0 // pred_fallthru
    _
  // Predicated region
  $region10: #{mbconv_forward.19} parent=0 // pred_check
    _
  $region11: #{mbconv_forward.19} parent=0 // pred_check_branch
    %14 = sbr.rel (0) target = $region13
  $region12: #{mbconv_forward.19} parent=0 // pred_region
    _
  $region13: #{mbconv_forward.19} parent=0 // pred_fallthru
    _
  // Predicated region
  $region14: #{mbconv_forward.19} parent=0 // pred_check
    _
  $region15: #{mbconv_forward.19} parent=0 // pred_check_branch
    %16 = sbr.rel (0) target = $region17
  $region16: #{mbconv_forward.19} parent=0 // pred_region
    _
  $region17: #{mbconv_forward.19} parent=0 // pred_fallthru
    _
  %v17 = vld [vmem:[%s0] sm:$0xff]
  %v18 = vld [vmem:[%s0 + $0x8] sm:$0xff]
  %v19 = vld [vmem:[%s0 + $0x10] sm:$0xff]
  %v20 = vld [vmem:[%s0 + $0x18] sm:$0xff]
  %v21 = vld [vmem:[%s0 + $0x20] sm:$0xff]
  %v22 = vld [vmem:[%s0 + $0x28] sm:$0xff]
  %v23 = vld [vmem:[%s0 + $0x30] sm:$0xff]
  %v24 = vld [vmem:[%s0 + $0x38] sm:$0xff]
  %v25 = vld [vmem:[%s0 + $0x40] sm:$0xff]
  %v26 = vld [vmem:[%s0 + $0x48] sm:$0xff]
  %v27 = vld [vmem:[%s0 + $0x50] sm:$0xff]
  %v28 = vld [vmem:[%s0 + $0x58] sm:$0xff]
  %v29 = vld [vmem:[%s0 + $0x60] sm:$0xff]
  %v30 = vld [vmem:[%s0 + $0x68] sm:$0xff]
  %v31 = vld [vmem:[%s0 + $0x70] sm:$0xff]
  %v32 = vld [vmem:[%s0 + $0x78] sm:$0xff]
  %v33 = vld [vmem:[%s1] sm:$0xff]
  %v34 = vld [vmem:[%s1 + $0x8] sm:$0xff]
  %v35 = vld [vmem:[%s1 + $0x10] sm:$0xff]
  %v36 = vld [vmem:[%s1 + $0x18] sm:$0xff]
  %v37 = vld [vmem:[%s1 + $0x20] sm:$0xff]
  %v38 = vld [vmem:[%s1 + $0x28] sm:$0xff]
  %v39 = vld [vmem:[%s1 + $0x30] sm:$0xff]
  %v40 = vld [vmem:[%s1 + $0x38] sm:$0xff]
  %v41 = vld [vmem:[%s1 + $0x40] sm:$0xff]
  %v42 = vld [vmem:[%s1 + $0x48] sm:$0xff]
  %v43 = vld [vmem:[%s1 + $0x50] sm:$0xff]
  %v44 = vld [vmem:[%s1 + $0x58] sm:$0xff]
  %v45 = vld [vmem:[%s1 + $0x60] sm:$0xff]
  %v46 = vld [vmem:[%s1 + $0x68] sm:$0xff]
  %v47 = vld [vmem:[%s1 + $0x70] sm:$0xff]
  %v48 = vld [vmem:[%s1 + $0x78] sm:$0xff]
  %v49 = vld [vmem:[%s2] sm:$0xf]
  %v51 = vperm.slane %v49, 0
  %v52 = vperm.slane %v49, 1
  %v53 = vperm.slane %v49, 2
  %v54 = vperm.slane %v49, 3
  %v59 = vmul.f32 %v33, %v51
  %v60 = vmul.f32 %v34, %v52
  %v61 = vmul.f32 %v35, %v53
  %v62 = vmul.f32 %v36, %v54
  %v63 = vmul.f32 %v37, %v51
  %v64 = vmul.f32 %v38, %v52
  %v65 = vmul.f32 %v39, %v53
  %v66 = vmul.f32 %v40, %v54
  %v67 = vmul.f32 %v41, %v51
  %v68 = vmul.f32 %v42, %v52
  %v69 = vmul.f32 %v43, %v53
  %v70 = vmul.f32 %v44, %v54
  %v71 = vmul.f32 %v45, %v51
  %v72 = vmul.f32 %v46, %v52
  %v73 = vmul.f32 %v47, %v53
  %v74 = vmul.f32 %v48, %v54
  %v75 = vadd.f32 %v17, %v59
  %v76 = vadd.f32 %v18, %v60
  %v77 = vadd.f32 %v19, %v61
  %v78 = vadd.f32 %v20, %v62
  %v79 = vadd.f32 %v21, %v63
  %v80 = vadd.f32 %v22, %v64
  %v81 = vadd.f32 %v23, %v65
  %v82 = vadd.f32 %v24, %v66
  %v83 = vadd.f32 %v25, %v67
  %v84 = vadd.f32 %v26, %v68
  %v85 = vadd.f32 %v27, %v69
  %v86 = vadd.f32 %v28, %v70
  %v87 = vadd.f32 %v29, %v71
  %v88 = vadd.f32 %v30, %v72
  %v89 = vadd.f32 %v31, %v73
  %v90 = vadd.f32 %v32, %v74
  %v91 = vld [vmem:[%s3] sm:$0xf]
  %v93 = vperm.slane %v91, 0
  %v94 = vperm.slane %v91, 1
  %v95 = vperm.slane %v91, 2
  %v96 = vperm.slane %v91, 3
  %v101 = vadd.f32 %v75, %v93
  %v102 = vadd.f32 %v76, %v94
  %v103 = vadd.f32 %v77, %v95
  %v104 = vadd.f32 %v78, %v96
  %v105 = vadd.f32 %v79, %v93
  %v106 = vadd.f32 %v80, %v94
  %v107 = vadd.f32 %v81, %v95
  %v108 = vadd.f32 %v82, %v96
  %v109 = vadd.f32 %v83, %v93
  %v110 = vadd.f32 %v84, %v94
  %v111 = vadd.f32 %v85, %v95
  %v112 = vadd.f32 %v86, %v96
  %v113 = vadd.f32 %v87, %v93
  %v114 = vadd.f32 %v88, %v94
  %v115 = vadd.f32 %v89, %v95
  %v116 = vadd.f32 %v90, %v96
  %117 = vst [vmem:[%s4] sm:$0xff] %v101
  %118 = vst [vmem:[%s4 + $0x8] sm:$0xff] %v102
  %119 = vst [vmem:[%s4 + $0x10] sm:$0xff] %v103
  %120 = vst [vmem:[%s4 + $0x18] sm:$0xff] %v104
  %121 = vst [vmem:[%s4 + $0x20] sm:$0xff] %v105
  %122 = vst [vmem:[%s4 + $0x28] sm:$0xff] %v106
  %123 = vst [vmem:[%s4 + $0x30] sm:$0xff] %v107
  %124 = vst [vmem:[%s4 + $0x38] sm:$0xff] %v108
  %125 = vst [vmem:[%s4 + $0x40] sm:$0xff] %v109
  %126 = vst [vmem:[%s4 + $0x48] sm:$0xff] %v110
  %127 = vst [vmem:[%s4 + $0x50] sm:$0xff] %v111
  %128 = vst [vmem:[%s4 + $0x58] sm:$0xff] %v112
  %129 = vst [vmem:[%s4 + $0x60] sm:$0xff] %v113
  %130 = vst [vmem:[%s4 + $0x68] sm:$0xff] %v114
  %131 = vst [vmem:[%s4 + $0x70] sm:$0xff] %v115
  %132 = vst [vmem:[%s4 + $0x78] sm:$0xff] %v116
  // Predicated region
  $region18: #{mbconv_forward.19} parent=0 // pred_check
    _
  $region19: #{mbconv_forward.19} parent=0 // pred_check_branch
    %134 = sbr.rel (0) target = $region21
  $region20: #{mbconv_forward.19} parent=0 // pred_region
    _
  $region21: #{mbconv_forward.19} parent=0 // pred_fallthru
    _
  // Predicated region
  $region22: #{mbconv_forward.19} parent=0 // pred_check
    _
  $region23: #{mbconv_forward.19} parent=0 // pred_check_branch
    %136 = sbr.rel (0) target = $region25
  $region24: #{mbconv_forward.19} parent=0 // pred_region
    _
  $region25: #{mbconv_forward.19} parent=0 // pred_fallthru
    _

</llo_original>
